<compile_context>
chip_gen: v5e
topology: v5e:2x2
jax: 0.10.0
libtpu: 0.0.40
codegen_flags: <defaults>
</compile_context>

<pallas_src>
import functools
import math

import jax
import jax.numpy as jnp
from jax.experimental import pallas as pl
from jax.experimental.pallas import tpu as pltpu


# ------------------------------- kernel ------------------------------------ #

def _fused_ensemble_kernel(*refs, cfg):
    """Single fused forward of the whole ensemble (no grid; everything VMEM).

    Ref order:
      x,
      (w_i, scale_i, shift_i) for each conv layer,
      lin_w (Wfold), lin_mask, lin_gsum, lin_ssel, lin_b,   (inputs)
      out,                                                  (output)
      pad_i  for each conv layer,                           (scratch)
      pool_i for each pooled conv layer.                    (scratch)
    """
    n_conv = cfg["n_conv"]
    beta = cfg["beta"]
    relu = cfg["relu"]
    layer_dims = cfg["layer_dims"]
    N = cfg["batch"]

    x_ref = refs[0]
    conv_refs = refs[1:1 + 3 * n_conv]
    (lin_w_ref, mask_ref, gsum_ref, ssel_ref,
     lin_b_ref) = refs[1 + 3 * n_conv: 6 + 3 * n_conv]
    o_ref = refs[6 + 3 * n_conv]
    pad_refs = refs[7 + 3 * n_conv: 7 + 4 * n_conv]
    pool_refs = list(refs[7 + 4 * n_conv:])

    act4 = x_ref[...].astype(jnp.float32)      # (N, H0, W0, 1) NHWC
    act2d = None
    pool_i = 0

    for i in range(n_conv):
        H, W, Cin, Cout, K, do_pool = layer_dims[i]
        w_ref = conv_refs[3 * i]
        s_ref = conv_refs[3 * i + 1]
        t_ref = conv_refs[3 * i + 2]
        p = K // 2
        pad_ref = pad_refs[i]

        # In-kernel halo ("same") padding into a VMEM scratch.
        pad_ref[...] = jnp.zeros(pad_ref.shape, jnp.float32)
        pad_ref[:, p:p + H, p:p + W, :] = act4

        # im2col: K*K shifted windows read straight from the padded scratch,
        # concatenated along the channel (lane) axis -> one MXU matmul.
        taps = [pad_ref[:, dy:dy + H, dx:dx + W, :]
                for dy in range(K) for dx in range(K)]
        patches = jnp.concatenate(taps, axis=-1).reshape(N * H * W, K * K * Cin)

        y = jnp.dot(patches, w_ref[...], preferred_element_type=jnp.float32)
        # Folded conv-bias + eval-mode BatchNorm (per-channel scale / shift).
        y = y * s_ref[...] + t_ref[...]
        if relu:
            y = jnp.maximum(y, 0.0)
        else:
            y = y * jax.nn.sigmoid(beta * y)            # Swish
        # TODO(synk): Dropout is identity (eval mode).

        if do_pool:
            # Fused MaxPool2d(2, 2):
            #  * W-pool: adjacent rows of the (N*H*W, C) activation are
            #    (w, w+1) pairs -> stride-2 sublane reads from VMEM scratch.
            #  * H-pool: each resulting W-row slab holds [h even | h odd]
            #    halves -> max of two contiguous sublane slices.
            pr = pool_refs[pool_i]
            pool_i += 1
            pr[...] = y
            R = N * H * W
            a = pr[pl.ds(0, R // 2, stride=2), :]
            b = pr[pl.ds(1, R // 2, stride=2), :]
            wp = jnp.maximum(a, b)                       # (N*H*(W//2), C)
            z = wp.reshape(N * (H // 2), W, Cout)        # slab index = (n, h//2)
            hp = jnp.maximum(z[:, :W // 2, :], z[:, W // 2:, :])
            act4 = hp.reshape(N, H // 2, W // 2, Cout)   # leading-dim split only
        else:
            act2d = y                                    # (N*H*W, Cout), rows (n, h, w)

    # Flatten + Linear + ensemble mean without any lane<->sublane reshuffle:
    #   logits[n, o] = sum_{s, c} act2d[n*S + s, c] * L[s, c, o]
    #               = (Ssel @ ((act2d @ Wfold) * mask) @ Gsum)[n, o]
    u = jnp.dot(act2d, lin_w_ref[...], preferred_element_type=jnp.float32)
    u = u * mask_ref[...]
    r = jnp.dot(u, gsum_ref[...], preferred_element_type=jnp.float32)
    logits = jnp.dot(ssel_ref[...], r, preferred_element_type=jnp.float32)
    o_ref[...] = logits + lin_b_ref[...]


# ------------------------------- wrapper ------------------------------------ #

def make_cfg(num_models, conv_kernel_sizes, conv_kernel_channels,
             input_height, input_width, batch, num_classes, beta, relu):
    layer_dims = []
    H, W = input_height, input_width
    in_ch = 1
    n = len(conv_kernel_sizes)
    for i, k in enumerate(conv_kernel_sizes):
        assert k % 2 == 1, "only odd ('same') kernel sizes supported"
        cin_total = in_ch if i == 0 else num_models * in_ch
        cout_total = num_models * conv_kernel_channels[i]
        do_pool = i < n - 1
        if do_pool:
            assert H % 2 == 0 and W % 2 == 0
        layer_dims.append((H, W, cin_total, cout_total, k, do_pool))
        if do_pool:
            H //= 2
            W //= 2
        in_ch = conv_kernel_channels[i]
    return dict(n_conv=n, beta=float(beta), relu=bool(relu),
                layer_dims=tuple(layer_dims), batch=batch,
                num_classes=num_classes)


def build_fused_ensemble_forward(packed, cfg):
    n_conv = cfg["n_conv"]
    N = cfg["batch"]
    num_classes = cfg["num_classes"]
    layer_dims = cfg["layer_dims"]
    H0, W0 = layer_dims[0][0], layer_dims[0][1]

    scratch_shapes = []
    for (H, W, cin, _cout, K, _pool) in layer_dims:
        p = K // 2
        scratch_shapes.append(
            pltpu.VMEM((N, H + 2 * p, W + 2 * p, cin), jnp.float32))
    for (H, W, _cin, cout, _K, do_pool) in layer_dims:
        if do_pool:
            scratch_shapes.append(pltpu.VMEM((N * H * W, cout), jnp.float32))

    n_inputs = 1 + 3 * n_conv + 5
    kernel = functools.partial(_fused_ensemble_kernel, cfg=cfg)

    call = pl.pallas_call(
        kernel,
        out_shape=jax.ShapeDtypeStruct((N, num_classes), jnp.float32),
        in_specs=[pl.BlockSpec(memory_space=pltpu.MemorySpace.VMEM)] * n_inputs,
        out_specs=pl.BlockSpec(memory_space=pltpu.MemorySpace.VMEM),
        scratch_shapes=scratch_shapes,
    )

    def fwd(x_nchw):
        # First conv is pinned to in_channels=1, so NCHW -> NHWC is a pure
        # (free) reshape: (N, 1, H, W) -> (N, H, W, 1).
        x_nhwc = x_nchw.reshape(N, H0, W0, 1).astype(jnp.float32)
        args = [x_nhwc]
        for (w, s, t) in packed["convs"]:
            args.extend([w, s, t])
        args.extend([packed["lin_w"], packed["mask"], packed["gsum"],
                     packed["ssel"], packed["lin_b"]])
        return call(*args)

    return fwd


# --------------------------- init & packing --------------------------------- #

def init_cnn_params_torch(key, conv_kernel_sizes, conv_kernel_channels,
                          input_height, input_width, num_classes=15):
    """Per-model params in PyTorch layouts (Kaiming-normal like the module)."""
    params = {"convs": [], "bns": []}
    in_ch = 1
    for i, k in enumerate(conv_kernel_sizes):
        out_ch = conv_kernel_channels[i]
        key, wk = jax.random.split(key)
        fan_out = out_ch * k * k                      # kaiming fan_out for conv
        std = math.sqrt(2.0 / fan_out)
        w = jax.random.normal(wk, (out_ch, in_ch, k, k), jnp.float32) * std  # OIHW
        b = jnp.zeros((out_ch,), jnp.float32)
        params["convs"].append((w, b))
        # BatchNorm2d defaults: gamma=1, beta=0, running_mean=0, running_var=1.
        params["bns"].append((jnp.ones((out_ch,), jnp.float32),
                              jnp.zeros((out_ch,), jnp.float32),
                              jnp.zeros((out_ch,), jnp.float32),
                              jnp.ones((out_ch,), jnp.float32)))
        in_ch = out_ch

    ds = 2 ** (len(conv_kernel_sizes) - 1)
    feat = (input_height // ds) * (input_width // ds) * conv_kernel_channels[-1]
    key, wk = jax.random.split(key)
    std = math.sqrt(2.0 / feat)                       # kaiming fan_in for linear
    params["lin_w"] = jax.random.normal(wk, (num_classes, feat), jnp.float32) * std
    params["lin_b"] = jnp.zeros((num_classes,), jnp.float32)
    return params


def pack_ensemble(models, conv_kernel_sizes, conv_kernel_channels,
                  input_height, input_width, batch, num_classes=15,
                  batch_normalization=True, eps=1e-5):
    """Pack per-model torch-layout params into the fused-kernel layouts."""
    M = len(models)
    packed = {"convs": []}
    in_ch = 1
    H, W = input_height, input_width
    n = len(conv_kernel_sizes)
    for i, k in enumerate(conv_kernel_sizes):
        out_ch = conv_kernel_channels[i]
        ws, scales, shifts = [], [], []
        for mdl in models:
            w, b = mdl["convs"][i]
            if batch_normalization:
                gamma, bn_beta, mean, var = mdl["bns"][i]
                s = gamma / jnp.sqrt(var + eps)
                t = (b - mean) * s + bn_beta          # conv bias folded in
            else:
                s = jnp.ones_like(b)
                t = b
            # OIHW -> (K, K, Cin, Cout): rows ordered (ky, kx, cin) = im2col order.
            ws.append(jnp.transpose(w, (2, 3, 1, 0)))
            scales.append(s)
            shifts.append(t)
        if i == 0:
            # Shared input: concatenate members along the Cout (lane) axis.
            w_pack = jnp.concatenate(
                [wm.reshape(k * k * in_ch, out_ch) for wm in ws], axis=-1)
        else:
            # Block-diagonal over models: each model consumes only its own
            # channel slab of the packed activation.
            w_bd = jnp.zeros((k, k, M, in_ch, M, out_ch), jnp.float32)
            for mi, wm in enumerate(ws):
                w_bd = w_bd.at[:, :, mi, :, mi, :].set(wm)
            w_pack = w_bd.reshape(k * k * M * in_ch, M * out_ch)
        packed["convs"].append((w_pack.astype(jnp.float32),
                                jnp.concatenate(scales).reshape(1, M * out_ch),
                                jnp.concatenate(shifts).reshape(1, M * out_ch)))
        in_ch = out_ch
        if i < n - 1:
            H //= 2
            W //= 2

    # Linear (flatten + Linear + 1/M mean) rewritten for the packed layout.
    C2 = conv_kernel_channels[-1]
    S = H * W
    MC = M * C2
    O = num_classes
    NS = batch * S
    L = jnp.zeros((S, M, C2, O), jnp.float32)        # L[s, m, c, o]
    for mi, mdl in enumerate(models):
        lw = mdl["lin_w"].reshape(O, C2, H, W)       # torch flatten order (c, h, w)
        L = L.at[:, mi, :, :].set(
            jnp.transpose(lw, (2, 3, 1, 0)).reshape(S, C2, O) / M)
    packed["lin_w"] = jnp.transpose(
        L.reshape(S, MC, O), (1, 0, 2)).reshape(MC, S * O)     # Wfold[c, s*O+o]
    packed["lin_b"] = (sum(mdl["lin_b"] for mdl in models) / M
                       ).reshape(1, O).astype(jnp.float32)

    row_s = jnp.arange(NS, dtype=jnp.int32) % S
    col_s = jnp.arange(S * O, dtype=jnp.int32) // O
    packed["mask"] = (row_s[:, None] == col_s[None, :]).astype(jnp.float32)
    packed["gsum"] = jnp.tile(jnp.eye(O, dtype=jnp.float32), (S, 1))
    packed["ssel"] = (jnp.arange(batch, dtype=jnp.int32)[:, None]
                      == (jnp.arange(NS, dtype=jnp.int32)[None, :] // S)
                      ).astype(jnp.float32)
    return packed


# ------------------------------ reference ----------------------------------- #

def reference_forward(models, x_nchw, conv_kernel_sizes, conv_kernel_channels,
                      beta, relu, batch_normalization=True, eps=1e-5):
    """Pure-JAX (XLA) reference matching the PyTorch module in eval mode."""
    outs = []
    n = len(conv_kernel_sizes)
    for mdl in models:
        h = x_nchw
        for i, k in enumerate(conv_kernel_sizes):
            w, b = mdl["convs"][i]
            h = jax.lax.conv_general_dilated(
                h, w, window_strides=(1, 1),
                padding=[(k // 2, k // 2), (k // 2, k // 2)],
                dimension_numbers=("NCHW", "OIHW", "NCHW"))
            h = h + b[None, :, None, None]
            if batch_normalization:
                gamma, bn_beta, mean, var = mdl["bns"][i]
                h = ((h - mean[None, :, None, None])
                     * (gamma[None, :, None, None]
                        / jnp.sqrt(var[None, :, None, None] + eps))
                     + bn_beta[None, :, None, None])
            h = jnp.maximum(h, 0.0) if relu else h * jax.nn.sigmoid(beta * h)
            if i < n - 1:
                h = jax.lax.reduce_window(h, -jnp.inf, jax.lax.max,
                                          (1, 1, 2, 2), (1, 1, 2, 2), "VALID")
        feat = h.reshape(h.shape[0], -1)
        outs.append(feat @ mdl["lin_w"].T + mdl["lin_b"])
    return sum(outs) / len(outs)


# --------------------------------- main ------------------------------------- #

if __name__ == "__main__":
    # Small, module-consistent configuration.
    number_of_models = 2
    conv_kernel_sizes = (3, 3)
    conv_kernel_channels = (4, 8)
    dropout = 0.0                    # Dropout is identity at inference anyway.
    batch_normalization = True
    input_height = input_width = 16
    beta = 1.0
    relu = False
    num_classes = 15
    batch = 2

    key = jax.random.PRNGKey(0)
    key, xk = jax.random.split(key)
    x = jax.random.normal(xk, (batch, 1, input_height, input_width), jnp.float32)

    models = []
    for _ in range(number_of_models):
        key, sub = jax.random.split(key)
        models.append(init_cnn_params_torch(sub, conv_kernel_sizes,
                                            conv_kernel_channels,
                                            input_height, input_width,
                                            num_classes))

    packed = pack_ensemble(models, conv_kernel_sizes, conv_kernel_channels,
                           input_height, input_width, batch,
                           num_classes=num_classes,
                           batch_normalization=batch_normalization)
    cfg = make_cfg(number_of_models, conv_kernel_sizes, conv_kernel_channels,
                   input_height, input_width, batch, num_classes, beta, relu)

    fwd = jax.jit(build_fused_ensemble_forward(packed, cfg))
    out = fwd(x)
    jax.block_until_ready(out)
    assert out.shape == (batch, num_classes) and out.dtype == jnp.float32

    ref = reference_forward(models, x, conv_kernel_sizes, conv_kernel_channels,
                            beta, relu, batch_normalization)
    if not jnp.allclose(out, ref, atol=2e-3, rtol=2e-3):
        max_err = float(jnp.max(jnp.abs(out - ref)))
        raise AssertionError(f"kernel/reference mismatch, max abs err={max_err}")

    print("KERNEL_OK")
</pallas_src>

<mosaic_0001>
module attributes {stable_mosaic.version = 11 : i64} {
  func.func @_fused_ensemble_kernel(%arg0: memref<2x16x16x1xf32, #tpu.memory_space<vmem>>, %arg1: memref<9x8xf32, #tpu.memory_space<vmem>>, %arg2: memref<1x8xf32, #tpu.memory_space<vmem>>, %arg3: memref<1x8xf32, #tpu.memory_space<vmem>>, %arg4: memref<72x16xf32, #tpu.memory_space<vmem>>, %arg5: memref<1x16xf32, #tpu.memory_space<vmem>>, %arg6: memref<1x16xf32, #tpu.memory_space<vmem>>, %arg7: memref<16x960xf32, #tpu.memory_space<vmem>>, %arg8: memref<128x960xf32, #tpu.memory_space<vmem>>, %arg9: memref<960x15xf32, #tpu.memory_space<vmem>>, %arg10: memref<2x128xf32, #tpu.memory_space<vmem>>, %arg11: memref<1x15xf32, #tpu.memory_space<vmem>>, %arg12: memref<2x15xf32, #tpu.memory_space<vmem>>, %arg13: memref<2x18x18x1xf32, #tpu.memory_space<vmem>>, %arg14: memref<2x10x10x8xf32, #tpu.memory_space<vmem>>, %arg15: memref<512x8xf32, #tpu.memory_space<vmem>>) attributes {dimension_semantics = [], scalar_prefetch = 0 : i64, scratch_operands = 3 : i64, tpu.core_type = #tpu.core_type<tc>} {
    %c0 = arith.constant 0 : index
    %c0_0 = arith.constant 0 : index
    %c0_1 = arith.constant 0 : index
    %c0_2 = arith.constant 0 : index
    %0 = vector.load %arg0[%c0, %c0_0, %c0_1, %c0_2] : memref<2x16x16x1xf32, #tpu.memory_space<vmem>>, vector<2x16x16x1xf32>
    %cst = arith.constant 0.000000e+00 : f32
    %1 = vector.broadcast %cst : f32 to vector<2x18x18x1xf32>
    %c0_3 = arith.constant 0 : index
    %c0_4 = arith.constant 0 : index
    %c0_5 = arith.constant 0 : index
    %c0_6 = arith.constant 0 : index
    %2 = vector.load %arg13[%c0_3, %c0_4, %c0_5, %c0_6] : memref<2x18x18x1xf32, #tpu.memory_space<vmem>>, vector<2x18x18x1xf32>
    tpu.vector_store %arg13[%c0_3, %c0_4, %c0_5, %c0_6], %1 {strides = array<i32>} : memref<2x18x18x1xf32, #tpu.memory_space<vmem>>, vector<2x18x18x1xf32>,
    %c0_7 = arith.constant 0 : index
    %c1 = arith.constant 1 : index
    %c1_8 = arith.constant 1 : index
    %c0_9 = arith.constant 0 : index
    %3 = vector.load %arg13[%c0_7, %c1, %c1_8, %c0_9] : memref<2x18x18x1xf32, #tpu.memory_space<vmem>>, vector<2x16x16x1xf32>
    tpu.vector_store %arg13[%c0_7, %c1, %c1_8, %c0_9], %0 {strides = array<i32>} : memref<2x18x18x1xf32, #tpu.memory_space<vmem>>, vector<2x16x16x1xf32>,
    %c0_10 = arith.constant 0 : index
    %c0_11 = arith.constant 0 : index
    %c0_12 = arith.constant 0 : index
    %c0_13 = arith.constant 0 : index
    %4 = vector.load %arg13[%c0_10, %c0_11, %c0_12, %c0_13] : memref<2x18x18x1xf32, #tpu.memory_space<vmem>>, vector<2x16x16x1xf32>
    %c0_14 = arith.constant 0 : index
    %c0_15 = arith.constant 0 : index
    %c1_16 = arith.constant 1 : index
    %c0_17 = arith.constant 0 : index
    %5 = vector.load %arg13[%c0_14, %c0_15, %c1_16, %c0_17] : memref<2x18x18x1xf32, #tpu.memory_space<vmem>>, vector<2x16x16x1xf32>
    %c0_18 = arith.constant 0 : index
    %c0_19 = arith.constant 0 : index
    %c2 = arith.constant 2 : index
    %c0_20 = arith.constant 0 : index
    %6 = vector.load %arg13[%c0_18, %c0_19, %c2, %c0_20] : memref<2x18x18x1xf32, #tpu.memory_space<vmem>>, vector<2x16x16x1xf32>
    %c0_21 = arith.constant 0 : index
    %c1_22 = arith.constant 1 : index
    %c0_23 = arith.constant 0 : index
    %c0_24 = arith.constant 0 : index
    %7 = vector.load %arg13[%c0_21, %c1_22, %c0_23, %c0_24] : memref<2x18x18x1xf32, #tpu.memory_space<vmem>>, vector<2x16x16x1xf32>
    %c0_25 = arith.constant 0 : index
    %c1_26 = arith.constant 1 : index
    %c1_27 = arith.constant 1 : index
    %c0_28 = arith.constant 0 : index
    %8 = vector.load %arg13[%c0_25, %c1_26, %c1_27, %c0_28] : memref<2x18x18x1xf32, #tpu.memory_space<vmem>>, vector<2x16x16x1xf32>
    %c0_29 = arith.constant 0 : index
    %c1_30 = arith.constant 1 : index
    %c2_31 = arith.constant 2 : index
    %c0_32 = arith.constant 0 : index
    %9 = vector.load %arg13[%c0_29, %c1_30, %c2_31, %c0_32] : memref<2x18x18x1xf32, #tpu.memory_space<vmem>>, vector<2x16x16x1xf32>
    %c0_33 = arith.constant 0 : index
    %c2_34 = arith.constant 2 : index
    %c0_35 = arith.constant 0 : index
    %c0_36 = arith.constant 0 : index
    %10 = vector.load %arg13[%c0_33, %c2_34, %c0_35, %c0_36] : memref<2x18x18x1xf32, #tpu.memory_space<vmem>>, vector<2x16x16x1xf32>
    %c0_37 = arith.constant 0 : index
    %c2_38 = arith.constant 2 : index
    %c1_39 = arith.constant 1 : index
    %c0_40 = arith.constant 0 : index
    %11 = vector.load %arg13[%c0_37, %c2_38, %c1_39, %c0_40] : memref<2x18x18x1xf32, #tpu.memory_space<vmem>>, vector<2x16x16x1xf32>
    %c0_41 = arith.constant 0 : index
    %c2_42 = arith.constant 2 : index
    %c2_43 = arith.constant 2 : index
    %c0_44 = arith.constant 0 : index
    %12 = vector.load %arg13[%c0_41, %c2_42, %c2_43, %c0_44] : memref<2x18x18x1xf32, #tpu.memory_space<vmem>>, vector<2x16x16x1xf32>
    %13 = tpu.concatenate %4, %5, %6, %7, %8, %9, %10, %11, %12 in 3 : vector<2x16x16x1xf32>, vector<2x16x16x1xf32>, vector<2x16x16x1xf32>, vector<2x16x16x1xf32>, vector<2x16x16x1xf32>, vector<2x16x16x1xf32>, vector<2x16x16x1xf32>, vector<2x16x16x1xf32>, vector<2x16x16x1xf32> -> vector<2x16x16x9xf32>
    %14 = vector.shape_cast %13 : vector<2x16x16x9xf32> to vector<512x9xf32>
    %c0_45 = arith.constant 0 : index
    %c0_46 = arith.constant 0 : index
    %15 = vector.load %arg1[%c0_45, %c0_46] : memref<9x8xf32, #tpu.memory_space<vmem>>, vector<9x8xf32>
    %cst_47 = arith.constant dense<0.000000e+00> : vector<512x8xf32>
    %16 = tpu.matmul %14, %15, %cst_47 {dimension_numbers = #tpu.dot_dimension_numbers<[1], [0], [0], [1], [0, 0, 1, 1], [], []>} : vector<512x9xf32>, vector<9x8xf32>, vector<512x8xf32> -> vector<512x8xf32>
    %c0_48 = arith.constant 0 : index
    %c0_49 = arith.constant 0 : index
    %17 = vector.load %arg2[%c0_48, %c0_49] : memref<1x8xf32, #tpu.memory_space<vmem>>, vector<1x8xf32>
    %18 = vector.broadcast %17 : vector<1x8xf32> to vector<512x8xf32>
    %19 = arith.mulf %16, %18 : vector<512x8xf32>
    %c0_50 = arith.constant 0 : index
    %c0_51 = arith.constant 0 : index
    %20 = vector.load %arg3[%c0_50, %c0_51] : memref<1x8xf32, #tpu.memory_space<vmem>>, vector<1x8xf32>
    %21 = vector.broadcast %20 : vector<1x8xf32> to vector<512x8xf32>
    %22 = arith.addf %19, %21 : vector<512x8xf32>
    %cst_52 = arith.constant 1.000000e+00 : f32
    %23 = vector.broadcast %cst_52 : f32 to vector<512x8xf32>
    %24 = arith.mulf %23, %22 : vector<512x8xf32>
    %25 = arith.negf %24 : vector<512x8xf32>
    %26 = math.exp %25 : vector<512x8xf32>
    %cst_53 = arith.constant 1.000000e+00 : f32
    %27 = vector.broadcast %cst_53 : f32 to vector<512x8xf32>
    %28 = arith.addf %27, %26 : vector<512x8xf32>
    %29 = arith.divf %27, %28 : vector<512x8xf32>
    %30 = arith.mulf %22, %29 : vector<512x8xf32>
    %c0_54 = arith.constant 0 : index
    %c0_55 = arith.constant 0 : index
    %31 = vector.load %arg15[%c0_54, %c0_55] : memref<512x8xf32, #tpu.memory_space<vmem>>, vector<512x8xf32>
    tpu.vector_store %arg15[%c0_54, %c0_55], %30 {strides = array<i32>} : memref<512x8xf32, #tpu.memory_space<vmem>>, vector<512x8xf32>,
    %c0_56 = arith.constant 0 : index
    %c0_57 = arith.constant 0 : index
    %32 = tpu.strided_load %arg15[%c0_56, %c0_57] {strides = array<i32: 2, 1>} : memref<512x8xf32, #tpu.memory_space<vmem>>, vector<256x8xf32>
    %c1_58 = arith.constant 1 : index
    %c0_59 = arith.constant 0 : index
    %33 = tpu.strided_load %arg15[%c1_58, %c0_59] {strides = array<i32: 2, 1>} : memref<512x8xf32, #tpu.memory_space<vmem>>, vector<256x8xf32>
    %34 = arith.maximumf %32, %33 : vector<256x8xf32>
    %35 = vector.shape_cast %34 : vector<256x8xf32> to vector<16x16x8xf32>
    %36 = vector.extract_strided_slice %35 {offsets = [0, 0, 0], sizes = [16, 8, 8], strides = [1, 1, 1]} : vector<16x16x8xf32> to vector<16x8x8xf32>
    %37 = vector.extract_strided_slice %35 {offsets = [0, 8, 0], sizes = [16, 8, 8], strides = [1, 1, 1]} : vector<16x16x8xf32> to vector<16x8x8xf32>
    %38 = arith.maximumf %36, %37 : vector<16x8x8xf32>
    %39 = vector.shape_cast %38 : vector<16x8x8xf32> to vector<2x8x8x8xf32>
    %cst_60 = arith.constant 0.000000e+00 : f32
    %40 = vector.broadcast %cst_60 : f32 to vector<2x10x10x8xf32>
    %c0_61 = arith.constant 0 : index
    %c0_62 = arith.constant 0 : index
    %c0_63 = arith.constant 0 : index
    %c0_64 = arith.constant 0 : index
    %41 = vector.load %arg14[%c0_61, %c0_62, %c0_63, %c0_64] : memref<2x10x10x8xf32, #tpu.memory_space<vmem>>, vector<2x10x10x8xf32>
    tpu.vector_store %arg14[%c0_61, %c0_62, %c0_63, %c0_64], %40 {strides = array<i32>} : memref<2x10x10x8xf32, #tpu.memory_space<vmem>>, vector<2x10x10x8xf32>,
    %c0_65 = arith.constant 0 : index
    %c1_66 = arith.constant 1 : index
    %c1_67 = arith.constant 1 : index
    %c0_68 = arith.constant 0 : index
    %42 = vector.load %arg14[%c0_65, %c1_66, %c1_67, %c0_68] : memref<2x10x10x8xf32, #tpu.memory_space<vmem>>, vector<2x8x8x8xf32>
    tpu.vector_store %arg14[%c0_65, %c1_66, %c1_67, %c0_68], %39 {strides = array<i32>} : memref<2x10x10x8xf32, #tpu.memory_space<vmem>>, vector<2x8x8x8xf32>,
    %c0_69 = arith.constant 0 : index
    %c0_70 = arith.constant 0 : index
    %c0_71 = arith.constant 0 : index
    %c0_72 = arith.constant 0 : index
    %43 = vector.load %arg14[%c0_69, %c0_70, %c0_71, %c0_72] : memref<2x10x10x8xf32, #tpu.memory_space<vmem>>, vector<2x8x8x8xf32>
    %c0_73 = arith.constant 0 : index
    %c0_74 = arith.constant 0 : index
    %c1_75 = arith.constant 1 : index
    %c0_76 = arith.constant 0 : index
    %44 = vector.load %arg14[%c0_73, %c0_74, %c1_75, %c0_76] : memref<2x10x10x8xf32, #tpu.memory_space<vmem>>, vector<2x8x8x8xf32>
    %c0_77 = arith.constant 0 : index
    %c0_78 = arith.constant 0 : index
    %c2_79 = arith.constant 2 : index
    %c0_80 = arith.constant 0 : index
    %45 = vector.load %arg14[%c0_77, %c0_78, %c2_79, %c0_80] : memref<2x10x10x8xf32, #tpu.memory_space<vmem>>, vector<2x8x8x8xf32>
    %c0_81 = arith.constant 0 : index
    %c1_82 = arith.constant 1 : index
    %c0_83 = arith.constant 0 : index
    %c0_84 = arith.constant 0 : index
    %46 = vector.load %arg14[%c0_81, %c1_82, %c0_83, %c0_84] : memref<2x10x10x8xf32, #tpu.memory_space<vmem>>, vector<2x8x8x8xf32>
    %c0_85 = arith.constant 0 : index
    %c1_86 = arith.constant 1 : index
    %c1_87 = arith.constant 1 : index
    %c0_88 = arith.constant 0 : index
    %47 = vector.load %arg14[%c0_85, %c1_86, %c1_87, %c0_88] : memref<2x10x10x8xf32, #tpu.memory_space<vmem>>, vector<2x8x8x8xf32>
    %c0_89 = arith.constant 0 : index
    %c1_90 = arith.constant 1 : index
    %c2_91 = arith.constant 2 : index
    %c0_92 = arith.constant 0 : index
    %48 = vector.load %arg14[%c0_89, %c1_90, %c2_91, %c0_92] : memref<2x10x10x8xf32, #tpu.memory_space<vmem>>, vector<2x8x8x8xf32>
    %c0_93 = arith.constant 0 : index
    %c2_94 = arith.constant 2 : index
    %c0_95 = arith.constant 0 : index
    %c0_96 = arith.constant 0 : index
    %49 = vector.load %arg14[%c0_93, %c2_94, %c0_95, %c0_96] : memref<2x10x10x8xf32, #tpu.memory_space<vmem>>, vector<2x8x8x8xf32>
    %c0_97 = arith.constant 0 : index
    %c2_98 = arith.constant 2 : index
    %c1_99 = arith.constant 1 : index
    %c0_100 = arith.constant 0 : index
    %50 = vector.load %arg14[%c0_97, %c2_98, %c1_99, %c0_100] : memref<2x10x10x8xf32, #tpu.memory_space<vmem>>, vector<2x8x8x8xf32>
    %c0_101 = arith.constant 0 : index
    %c2_102 = arith.constant 2 : index
    %c2_103 = arith.constant 2 : index
    %c0_104 = arith.constant 0 : index
    %51 = vector.load %arg14[%c0_101, %c2_102, %c2_103, %c0_104] : memref<2x10x10x8xf32, #tpu.memory_space<vmem>>, vector<2x8x8x8xf32>
    %52 = tpu.concatenate %43, %44, %45, %46, %47, %48, %49, %50, %51 in 3 : vector<2x8x8x8xf32>, vector<2x8x8x8xf32>, vector<2x8x8x8xf32>, vector<2x8x8x8xf32>, vector<2x8x8x8xf32>, vector<2x8x8x8xf32>, vector<2x8x8x8xf32>, vector<2x8x8x8xf32>, vector<2x8x8x8xf32> -> vector<2x8x8x72xf32>
    %53 = vector.shape_cast %52 : vector<2x8x8x72xf32> to vector<128x72xf32>
    %c0_105 = arith.constant 0 : index
    %c0_106 = arith.constant 0 : index
    %54 = vector.load %arg4[%c0_105, %c0_106] : memref<72x16xf32, #tpu.memory_space<vmem>>, vector<72x16xf32>
    %cst_107 = arith.constant dense<0.000000e+00> : vector<128x16xf32>
    %55 = tpu.matmul %53, %54, %cst_107 {dimension_numbers = #tpu.dot_dimension_numbers<[1], [0], [0], [1], [0, 0, 1, 1], [], []>} : vector<128x72xf32>, vector<72x16xf32>, vector<128x16xf32> -> vector<128x16xf32>
    %c0_108 = arith.constant 0 : index
    %c0_109 = arith.constant 0 : index
    %56 = vector.load %arg5[%c0_108, %c0_109] : memref<1x16xf32, #tpu.memory_space<vmem>>, vector<1x16xf32>
    %57 = vector.broadcast %56 : vector<1x16xf32> to vector<128x16xf32>
    %58 = arith.mulf %55, %57 : vector<128x16xf32>
    %c0_110 = arith.constant 0 : index
    %c0_111 = arith.constant 0 : index
    %59 = vector.load %arg6[%c0_110, %c0_111] : memref<1x16xf32, #tpu.memory_space<vmem>>, vector<1x16xf32>
    %60 = vector.broadcast %59 : vector<1x16xf32> to vector<128x16xf32>
    %61 = arith.addf %58, %60 : vector<128x16xf32>
    %cst_112 = arith.constant 1.000000e+00 : f32
    %62 = vector.broadcast %cst_112 : f32 to vector<128x16xf32>
    %63 = arith.mulf %62, %61 : vector<128x16xf32>
    %64 = arith.negf %63 : vector<128x16xf32>
    %65 = math.exp %64 : vector<128x16xf32>
    %cst_113 = arith.constant 1.000000e+00 : f32
    %66 = vector.broadcast %cst_113 : f32 to vector<128x16xf32>
    %67 = arith.addf %66, %65 : vector<128x16xf32>
    %68 = arith.divf %66, %67 : vector<128x16xf32>
    %69 = arith.mulf %61, %68 : vector<128x16xf32>
    %c0_114 = arith.constant 0 : index
    %c0_115 = arith.constant 0 : index
    %70 = vector.load %arg7[%c0_114, %c0_115] : memref<16x960xf32, #tpu.memory_space<vmem>>, vector<16x960xf32>
    %cst_116 = arith.constant dense<0.000000e+00> : vector<128x960xf32>
    %71 = tpu.matmul %69, %70, %cst_116 {dimension_numbers = #tpu.dot_dimension_numbers<[1], [0], [0], [1], [0, 0, 1, 1], [], []>} : vector<128x16xf32>, vector<16x960xf32>, vector<128x960xf32> -> vector<128x960xf32>
    %c0_117 = arith.constant 0 : index
    %c0_118 = arith.constant 0 : index
    %72 = vector.load %arg8[%c0_117, %c0_118] : memref<128x960xf32, #tpu.memory_space<vmem>>, vector<128x960xf32>
    %73 = arith.mulf %71, %72 : vector<128x960xf32>
    %c0_119 = arith.constant 0 : index
    %c0_120 = arith.constant 0 : index
    %74 = vector.load %arg9[%c0_119, %c0_120] : memref<960x15xf32, #tpu.memory_space<vmem>>, vector<960x15xf32>
    %cst_121 = arith.constant dense<0.000000e+00> : vector<128x15xf32>
    %75 = tpu.matmul %73, %74, %cst_121 {dimension_numbers = #tpu.dot_dimension_numbers<[1], [0], [0], [1], [0, 0, 1, 1], [], []>} : vector<128x960xf32>, vector<960x15xf32>, vector<128x15xf32> -> vector<128x15xf32>
    %c0_122 = arith.constant 0 : index
    %c0_123 = arith.constant 0 : index
    %76 = vector.load %arg10[%c0_122, %c0_123] : memref<2x128xf32, #tpu.memory_space<vmem>>, vector<2x128xf32>
    %cst_124 = arith.constant dense<0.000000e+00> : vector<2x15xf32>
    %77 = tpu.matmul %76, %75, %cst_124 {dimension_numbers = #tpu.dot_dimension_numbers<[1], [0], [0], [1], [0, 0, 1, 1], [], []>} : vector<2x128xf32>, vector<128x15xf32>, vector<2x15xf32> -> vector<2x15xf32>
    %c0_125 = arith.constant 0 : index
    %c0_126 = arith.constant 0 : index
    %78 = vector.load %arg11[%c0_125, %c0_126] : memref<1x15xf32, #tpu.memory_space<vmem>>, vector<1x15xf32>
    %79 = vector.broadcast %78 : vector<1x15xf32> to vector<2x15xf32>
    %80 = arith.addf %77, %79 : vector<2x15xf32>
    %c0_127 = arith.constant 0 : index
    %c0_128 = arith.constant 0 : index
    %81 = vector.load %arg12[%c0_127, %c0_128] : memref<2x15xf32, #tpu.memory_space<vmem>>, vector<2x15xf32>
    tpu.vector_store %arg12[%c0_127, %c0_128], %80 {strides = array<i32>} : memref<2x15xf32, #tpu.memory_space<vmem>>, vector<2x15xf32>,
    return
  }
}

</mosaic_0001>

<llo_original>
// kernel: fwd.1
$region0: #{fwd.1}
  #allocation0 [shape = 'u32[]', space=smem, size = 0x4, offset = 0x4, fixed_abs, tag = 'smem constant byte address 0x4 - core index']
  #allocation1 [shape = 'u32[72,128]{1,0:T(1,128)}', space=vmem, size = 0x9000, scoped, tag = 'internal scratch']
  #allocation2 [shape = 'f32[2,18,18,1]{3,2,1,0:T(8,128)}', space=vmem, size = 0x6c000, scoped, tag = 'scratch operand']
  #allocation3 [shape = 'f32[2,10,10,8]{3,2,1,0:T(8,128)}', space=vmem, size = 0x28000, scoped, tag = 'scratch operand']
  #allocation4 [shape = 'f32[512,8]{1,0:T(8,128)}', space=vmem, size = 0x40000, scoped, tag = 'scratch operand']
  %s0 = inlined_call_operand.vmem [shape: f32[2,16,16,1], index: 0, kind: input, shape index: {}]
  %s1 = inlined_call_operand.vmem [shape: f32[9,8], index: 1, kind: input, shape index: {}]
  %s2 = inlined_call_operand.vmem [shape: f32[1,8], index: 2, kind: input, shape index: {}]
  %s3 = inlined_call_operand.vmem [shape: f32[1,8], index: 3, kind: input, shape index: {}]
  %s4 = inlined_call_operand.vmem [shape: f32[72,16], index: 4, kind: input, shape index: {}]
  %s5 = inlined_call_operand.vmem [shape: f32[1,16], index: 5, kind: input, shape index: {}]
  %s6 = inlined_call_operand.vmem [shape: f32[1,16], index: 6, kind: input, shape index: {}]
  %s7 = inlined_call_operand.vmem [shape: f32[16,960], index: 7, kind: input, shape index: {}]
  %s8 = inlined_call_operand.hbm [shape: f32[128,960], index: 8, kind: input, shape index: {}]
  %s9 = inlined_call_operand.hbm [shape: f32[960,15], index: 9, kind: input, shape index: {}]
  %s10 = inlined_call_operand.vmem [shape: f32[2,128], index: 10, kind: input, shape index: {}]
  %s11 = inlined_call_operand.vmem [shape: f32[1,15], index: 11, kind: input, shape index: {}]
  %s12 = inlined_call_operand.hbm [shape: f32[2,15], index: 12, kind: output, shape index: {}]
  %s13 = sld [smem:[#allocation0]]
  $region66: #{fwd.1} parent=0
    _
  %s15 = ssub.s32 1, %s13
  %s16 = scalar_select 0, %s15, %s13
  $region1: #{fwd.1} parent=0
    #allocation5 [shape = 'u8[524288]{0}', space=vmem, size = 0x80000, scoped, tag = 'input window, operand 8, single buffered']
    #allocation6 [shape = 's32[1]{0}', space=sflag, size = 0x4, scoped, tag = 'scoped memory for fwd.1']
    #allocation7 [shape = 's32[1]{0}', space=sflag, size = 0x4, scoped, tag = 'scoped memory for fwd.1']
    #allocation8 [shape = 'u8[491520]{0}', space=vmem, size = 0x78000, scoped, tag = 'input window, operand 9, single buffered']
    #allocation9 [shape = 's32[1]{0}', space=sflag, size = 0x4, scoped, tag = 'scoped memory for fwd.1']
    #allocation10 [shape = 'u8[1024]{0}', space=vmem, size = 0x400, scoped, tag = 'output window, operand 0, single buffered']
    %17 = vsyncpa [#allocation6], 0
    %18 = vsyncpa [#allocation9], 0
    %19 = vsyncpa [#allocation7], 0
    // Predicated region
    $region2: #{fwd.1} parent=1 // pred_check
      _
    $region3: #{fwd.1} parent=1 // pred_check_branch
      %21 = sbr.rel (0) target = $region5
    $region4: #{fwd.1} parent=1 // pred_region
      _
    $region5: #{fwd.1} parent=1 // pred_fallthru
      _
    // Predicated region
    $region6: #{fwd.1} parent=1 // pred_check
      _
    $region7: #{fwd.1} parent=1 // pred_check_branch
      %23 = sbr.rel (0) target = $region9
    $region8: #{fwd.1} parent=1 // pred_region
      _
    $region9: #{fwd.1} parent=1 // pred_fallthru
      _
    // Predicated region
    $region10: #{fwd.1} parent=1 // pred_check
      _
    $region11: #{fwd.1} parent=1 // pred_check_branch
      %25 = sbr.rel (0) target = $region13
    $region12: #{fwd.1} parent=1 // pred_region
      _
    $region13: #{fwd.1} parent=1 // pred_fallthru
      _
    // Predicated region
    $region14: #{fwd.1} parent=1 // pred_check
      _
    $region15: #{fwd.1} parent=1 // pred_check_branch
      %27 = sbr.rel (0) target = $region17
    $region16: #{fwd.1} parent=1 // pred_region
      _
    $region17: #{fwd.1} parent=1 // pred_fallthru
      _
    // Predicated region
    $region18: #{fwd.1} parent=1 // pred_check
      _
    $region19: #{fwd.1} parent=1 // pred_check_branch
      %29 = sbr.rel (0) target = $region21
    $region20: #{fwd.1} parent=1 // pred_region
      _
    $region21: #{fwd.1} parent=1 // pred_fallthru
      _
    // Predicated region
    $region22: #{fwd.1} parent=1 // pred_check
      _
    $region23: #{fwd.1} parent=1 // pred_check_branch
      %31 = sbr.rel (0) target = $region25
    $region24: #{fwd.1} parent=1 // pred_region
      _
    $region25: #{fwd.1} parent=1 // pred_fallthru
      _
    // Predicated region
    $region26: #{fwd.1} parent=1 // pred_check
      _
    $region27: #{fwd.1} parent=1 // pred_check_branch
      %33 = sbr.rel (0) target = $region29
    $region28: #{fwd.1} parent=1 // pred_region
      _
    $region29: #{fwd.1} parent=1 // pred_fallthru
      _
    // Predicated region
    $region30: #{fwd.1} parent=1 // pred_check
      _
    $region31: #{fwd.1} parent=1 // pred_check_branch
      %35 = sbr.rel (0) target = $region33
    $region32: #{fwd.1} parent=1 // pred_region
      _
    $region33: #{fwd.1} parent=1 // pred_fallthru
      _
    // Predicated region
    $region34: #{fwd.1} parent=1 // pred_check
      _
    $region35: #{fwd.1} parent=1 // pred_check_branch
      %37 = sbr.rel (0) target = $region37
    $region36: #{fwd.1} parent=1 // pred_region
      %39 = vsyncadd [#allocation6], 0
      %s40 = sshll.u32 %s8, 4
      %s41 = int_to_ptr.hbm [resolvable:$true] %s40
      %s42 = sshll.u32 [#allocation5], 4
      %s43 = int_to_ptr.vmem [resolvable:$true] %s42
      %48 = dma.hbm_to_vmem [thread:$0]  %s41, 16384, %s43, [#allocation6], 1024, 1024, 64
    $region37: #{fwd.1} parent=1 // pred_fallthru
      _
    // Predicated region
    $region38: #{fwd.1} parent=1 // pred_check
      _
    $region39: #{fwd.1} parent=1 // pred_check_branch
      %50 = sbr.rel (0) target = $region41
    $region40: #{fwd.1} parent=1 // pred_region
      %52 = vsyncadd [#allocation9], 0
      %s53 = sshll.u32 %s9, 4
      %s54 = int_to_ptr.hbm [resolvable:$true] %s53
      %s55 = sshll.u32 [#allocation8], 4
      %s56 = int_to_ptr.vmem [resolvable:$true] %s55
      %61 = dma.hbm_to_vmem [thread:$0]  %s54, 15360, %s56, [#allocation9], 128, 128, 8
    $region41: #{fwd.1} parent=1 // pred_fallthru
      _
    // Predicated region
    $region42: #{fwd.1} parent=1 // pred_check
      _
    $region43: #{fwd.1} parent=1 // pred_check_branch
      %63 = sbr.rel (0) target = $region45
    $region44: #{fwd.1} parent=1 // pred_region
      _
    $region45: #{fwd.1} parent=1 // pred_fallthru
      _
    // Predicated region
    $region46: #{fwd.1} parent=1 // pred_check
      _
    $region47: #{fwd.1} parent=1 // pred_check_branch
      %65 = sbr.rel (0) target = $region49
    $region48: #{fwd.1} parent=1 // pred_region
      _
    $region49: #{fwd.1} parent=1 // pred_fallthru
      _
    // Predicated region
    $region50: #{fwd.1} parent=1 // pred_check
      _
    $region51: #{fwd.1} parent=1 // pred_check_branch
      %67 = sbr.rel (0) target = $region53
    $region52: #{fwd.1} parent=1 // pred_region
      %69 = dma.done [#allocation6], 16384
    $region53: #{fwd.1} parent=1 // pred_fallthru
      _
    // Predicated region
    $region54: #{fwd.1} parent=1 // pred_check
      _
    $region55: #{fwd.1} parent=1 // pred_check_branch
      %71 = sbr.rel (0) target = $region57
    $region56: #{fwd.1} parent=1 // pred_region
      %73 = dma.done [#allocation9], 15360
    $region57: #{fwd.1} parent=1 // pred_fallthru
      _
    %v74 = vld [vmem:[%s0] sm:$0xff]
    %v75 = vld [vmem:[%s0 + $0x8] sm:$0xff]
    %v76 = vld [vmem:[%s0 + $0x10] sm:$0xff]
    %v77 = vld [vmem:[%s0 + $0x18] sm:$0xff]
    %v78 = vld [vmem:[%s0 + $0x20] sm:$0xff]
    %v79 = vld [vmem:[%s0 + $0x28] sm:$0xff]
    %v80 = vld [vmem:[%s0 + $0x30] sm:$0xff]
    %v81 = vld [vmem:[%s0 + $0x38] sm:$0xff]
    %v82 = vld [vmem:[%s0 + $0x40] sm:$0xff]
    %v83 = vld [vmem:[%s0 + $0x48] sm:$0xff]
    %v84 = vld [vmem:[%s0 + $0x50] sm:$0xff]
    %v85 = vld [vmem:[%s0 + $0x58] sm:$0xff]
    %v86 = vld [vmem:[%s0 + $0x60] sm:$0xff]
    %v87 = vld [vmem:[%s0 + $0x68] sm:$0xff]
    %v88 = vld [vmem:[%s0 + $0x70] sm:$0xff]
    %v89 = vld [vmem:[%s0 + $0x78] sm:$0xff]
    %v90 = vld [vmem:[%s0 + $0x80] sm:$0xff]
    %v91 = vld [vmem:[%s0 + $0x88] sm:$0xff]
    %v92 = vld [vmem:[%s0 + $0x90] sm:$0xff]
    %v93 = vld [vmem:[%s0 + $0x98] sm:$0xff]
    %v94 = vld [vmem:[%s0 + $0xa0] sm:$0xff]
    %v95 = vld [vmem:[%s0 + $0xa8] sm:$0xff]
    %v96 = vld [vmem:[%s0 + $0xb0] sm:$0xff]
    %v97 = vld [vmem:[%s0 + $0xb8] sm:$0xff]
    %v98 = vld [vmem:[%s0 + $0xc0] sm:$0xff]
    %v99 = vld [vmem:[%s0 + $0xc8] sm:$0xff]
    %v100 = vld [vmem:[%s0 + $0xd0] sm:$0xff]
    %v101 = vld [vmem:[%s0 + $0xd8] sm:$0xff]
    %v102 = vld [vmem:[%s0 + $0xe0] sm:$0xff]
    %v103 = vld [vmem:[%s0 + $0xe8] sm:$0xff]
    %v104 = vld [vmem:[%s0 + $0xf0] sm:$0xff]
    %v105 = vld [vmem:[%s0 + $0xf8] sm:$0xff]
    %v106 = vld [vmem:[%s0 + $0x100] sm:$0xff]
    %v107 = vld [vmem:[%s0 + $0x108] sm:$0xff]
    %v108 = vld [vmem:[%s0 + $0x110] sm:$0xff]
    %v109 = vld [vmem:[%s0 + $0x118] sm:$0xff]
    %v110 = vld [vmem:[%s0 + $0x120] sm:$0xff]
    %v111 = vld [vmem:[%s0 + $0x128] sm:$0xff]
    %v112 = vld [vmem:[%s0 + $0x130] sm:$0xff]
    %v113 = vld [vmem:[%s0 + $0x138] sm:$0xff]
    %v114 = vld [vmem:[%s0 + $0x140] sm:$0xff]
    %v115 = vld [vmem:[%s0 + $0x148] sm:$0xff]
    %v116 = vld [vmem:[%s0 + $0x150] sm:$0xff]
    %v117 = vld [vmem:[%s0 + $0x158] sm:$0xff]
    %v118 = vld [vmem:[%s0 + $0x160] sm:$0xff]
    %v119 = vld [vmem:[%s0 + $0x168] sm:$0xff]
    %v120 = vld [vmem:[%s0 + $0x170] sm:$0xff]
    %v121 = vld [vmem:[%s0 + $0x178] sm:$0xff]
    %v122 = vld [vmem:[%s0 + $0x180] sm:$0xff]
    %v123 = vld [vmem:[%s0 + $0x188] sm:$0xff]
    %v124 = vld [vmem:[%s0 + $0x190] sm:$0xff]
    %v125 = vld [vmem:[%s0 + $0x198] sm:$0xff]
    %v126 = vld [vmem:[%s0 + $0x1a0] sm:$0xff]
    %v127 = vld [vmem:[%s0 + $0x1a8] sm:$0xff]
    %v128 = vld [vmem:[%s0 + $0x1b0] sm:$0xff]
    %v129 = vld [vmem:[%s0 + $0x1b8] sm:$0xff]
    %v130 = vld [vmem:[%s0 + $0x1c0] sm:$0xff]
    %v131 = vld [vmem:[%s0 + $0x1c8] sm:$0xff]
    %v132 = vld [vmem:[%s0 + $0x1d0] sm:$0xff]
    %v133 = vld [vmem:[%s0 + $0x1d8] sm:$0xff]
    %v134 = vld [vmem:[%s0 + $0x1e0] sm:$0xff]
    %v135 = vld [vmem:[%s0 + $0x1e8] sm:$0xff]
    %v136 = vld [vmem:[%s0 + $0x1f0] sm:$0xff]
    %v137 = vld [vmem:[%s0 + $0x1f8] sm:$0xff]
    %vm138 = vcmask 7168
    %139 = vst.msk [vmem:[#allocation2] sm:$0xff] %vm138, 0.0
    %140 = vst.msk [vmem:[#allocation2 + $0x8] sm:$0xff] %vm138, 0.0
    %vm141 = vcmask 1024
    %142 = vst.msk [vmem:[#allocation2 + $0x10] sm:$0x3] %vm141, 0.0
    %143 = vst.msk [vmem:[#allocation2 + $0x18] sm:$0xff] %vm138, 0.0
    %144 = vst.msk [vmem:[#allocation2 + $0x20] sm:$0xff] %vm138, 0.0
    %145 = vst.msk [vmem:[#allocation2 + $0x28] sm:$0x3] %vm141, 0.0
    %146 = vst.msk [vmem:[#allocation2 + $0x30] sm:$0xff] %vm138, 0.0
    %147 = vst.msk [vmem:[#allocation2 + $0x38] sm:$0xff] %vm138, 0.0
    %148 = vst.msk [vmem:[#allocation2 + $0x40] sm:$0x3] %vm141, 0.0
    %149 = vst.msk [vmem:[#allocation2 + $0x48] sm:$0xff] %vm138, 0.0
    %150 = vst.msk [vmem:[#allocation2 + $0x50] sm:$0xff] %vm138, 0.0
    %151 = vst.msk [vmem:[#allocation2 + $0x58] sm:$0x3] %vm141, 0.0
    %152 = vst.msk [vmem:[#allocation2 + $0x60] sm:$0xff] %vm138, 0.0
    %153 = vst.msk [vmem:[#allocation2 + $0x68] sm:$0xff] %vm138, 0.0
    %154 = vst.msk [vmem:[#allocation2 + $0x70] sm:$0x3] %vm141, 0.0
    %155 = vst.msk [vmem:[#allocation2 + $0x78] sm:$0xff] %vm138, 0.0
    %156 = vst.msk [vmem:[#allocation2 + $0x80] sm:$0xff] %vm138, 0.0
    %157 = vst.msk [vmem:[#allocation2 + $0x88] sm:$0x3] %vm141, 0.0
    %158 = vst.msk [vmem:[#allocation2 + $0x90] sm:$0xff] %vm138, 0.0
    %159 = vst.msk [vmem:[#allocation2 + $0x98] sm:$0xff] %vm138, 0.0
    %160 = vst.msk [vmem:[#allocation2 + $0xa0] sm:$0x3] %vm141, 0.0
    %161 = vst.msk [vmem:[#allocation2 + $0xa8] sm:$0xff] %vm138, 0.0
    %162 = vst.msk [vmem:[#allocation2 + $0xb0] sm:$0xff] %vm138, 0.0
    %163 = vst.msk [vmem:[#allocation2 + $0xb8] sm:$0x3] %vm141, 0.0
    %164 = vst.msk [vmem:[#allocation2 + $0xc0] sm:$0xff] %vm138, 0.0
    %165 = vst.msk [vmem:[#allocation2 + $0xc8] sm:$0xff] %vm138, 0.0
    %166 = vst.msk [vmem:[#allocation2 + $0xd0] sm:$0x3] %vm141, 0.0
    %167 = vst.msk [vmem:[#allocation2 + $0xd8] sm:$0xff] %vm138, 0.0
    %168 = vst.msk [vmem:[#allocation2 + $0xe0] sm:$0xff] %vm138, 0.0
    %169 = vst.msk [vmem:[#allocation2 + $0xe8] sm:$0x3] %vm141, 0.0
    %170 = vst.msk [vmem:[#allocation2 + $0xf0] sm:$0xff] %vm138, 0.0
    %171 = vst.msk [vmem:[#allocation2 + $0xf8] sm:$0xff] %vm138, 0.0
    %172 = vst.msk [vmem:[#allocation2 + $0x100] sm:$0x3] %vm141, 0.0
    %173 = vst.msk [vmem:[#allocation2 + $0x108] sm:$0xff] %vm138, 0.0
    %174 = vst.msk [vmem:[#allocation2 + $0x110] sm:$0xff] %vm138, 0.0
    %175 = vst.msk [vmem:[#allocation2 + $0x118] sm:$0x3] %vm141, 0.0
    %176 = vst.msk [vmem:[#allocation2 + $0x120] sm:$0xff] %vm138, 0.0
    %177 = vst.msk [vmem:[#allocation2 + $0x128] sm:$0xff] %vm138, 0.0
    %178 = vst.msk [vmem:[#allocation2 + $0x130] sm:$0x3] %vm141, 0.0
    %179 = vst.msk [vmem:[#allocation2 + $0x138] sm:$0xff] %vm138, 0.0
    %180 = vst.msk [vmem:[#allocation2 + $0x140] sm:$0xff] %vm138, 0.0
    %181 = vst.msk [vmem:[#allocation2 + $0x148] sm:$0x3] %vm141, 0.0
    %182 = vst.msk [vmem:[#allocation2 + $0x150] sm:$0xff] %vm138, 0.0
    %183 = vst.msk [vmem:[#allocation2 + $0x158] sm:$0xff] %vm138, 0.0
    %184 = vst.msk [vmem:[#allocation2 + $0x160] sm:$0x3] %vm141, 0.0
    %185 = vst.msk [vmem:[#allocation2 + $0x168] sm:$0xff] %vm138, 0.0
    %186 = vst.msk [vmem:[#allocation2 + $0x170] sm:$0xff] %vm138, 0.0
    %187 = vst.msk [vmem:[#allocation2 + $0x178] sm:$0x3] %vm141, 0.0
    %188 = vst.msk [vmem:[#allocation2 + $0x180] sm:$0xff] %vm138, 0.0
    %189 = vst.msk [vmem:[#allocation2 + $0x188] sm:$0xff] %vm138, 0.0
    %190 = vst.msk [vmem:[#allocation2 + $0x190] sm:$0x3] %vm141, 0.0
    %191 = vst.msk [vmem:[#allocation2 + $0x198] sm:$0xff] %vm138, 0.0
    %192 = vst.msk [vmem:[#allocation2 + $0x1a0] sm:$0xff] %vm138, 0.0
    %193 = vst.msk [vmem:[#allocation2 + $0x1a8] sm:$0x3] %vm141, 0.0
    %194 = vst.msk [vmem:[#allocation2 + $0x1b0] sm:$0xff] %vm138, 0.0
    %195 = vst.msk [vmem:[#allocation2 + $0x1b8] sm:$0xff] %vm138, 0.0
    %196 = vst.msk [vmem:[#allocation2 + $0x1c0] sm:$0x3] %vm141, 0.0
    %197 = vst.msk [vmem:[#allocation2 + $0x1c8] sm:$0xff] %vm138, 0.0
    %198 = vst.msk [vmem:[#allocation2 + $0x1d0] sm:$0xff] %vm138, 0.0
    %199 = vst.msk [vmem:[#allocation2 + $0x1d8] sm:$0x3] %vm141, 0.0
    %200 = vst.msk [vmem:[#allocation2 + $0x1e0] sm:$0xff] %vm138, 0.0
    %201 = vst.msk [vmem:[#allocation2 + $0x1e8] sm:$0xff] %vm138, 0.0
    %202 = vst.msk [vmem:[#allocation2 + $0x1f0] sm:$0x3] %vm141, 0.0
    %203 = vst.msk [vmem:[#allocation2 + $0x1f8] sm:$0xff] %vm138, 0.0
    %204 = vst.msk [vmem:[#allocation2 + $0x200] sm:$0xff] %vm138, 0.0
    %205 = vst.msk [vmem:[#allocation2 + $0x208] sm:$0x3] %vm141, 0.0
    %206 = vst.msk [vmem:[#allocation2 + $0x210] sm:$0xff] %vm138, 0.0
    %207 = vst.msk [vmem:[#allocation2 + $0x218] sm:$0xff] %vm138, 0.0
    %208 = vst.msk [vmem:[#allocation2 + $0x220] sm:$0x3] %vm141, 0.0
    %209 = vst.msk [vmem:[#allocation2 + $0x228] sm:$0xff] %vm138, 0.0
    %210 = vst.msk [vmem:[#allocation2 + $0x230] sm:$0xff] %vm138, 0.0
    %211 = vst.msk [vmem:[#allocation2 + $0x238] sm:$0x3] %vm141, 0.0
    %212 = vst.msk [vmem:[#allocation2 + $0x240] sm:$0xff] %vm138, 0.0
    %213 = vst.msk [vmem:[#allocation2 + $0x248] sm:$0xff] %vm138, 0.0
    %214 = vst.msk [vmem:[#allocation2 + $0x250] sm:$0x3] %vm141, 0.0
    %215 = vst.msk [vmem:[#allocation2 + $0x258] sm:$0xff] %vm138, 0.0
    %216 = vst.msk [vmem:[#allocation2 + $0x260] sm:$0xff] %vm138, 0.0
    %217 = vst.msk [vmem:[#allocation2 + $0x268] sm:$0x3] %vm141, 0.0
    %218 = vst.msk [vmem:[#allocation2 + $0x270] sm:$0xff] %vm138, 0.0
    %219 = vst.msk [vmem:[#allocation2 + $0x278] sm:$0xff] %vm138, 0.0
    %220 = vst.msk [vmem:[#allocation2 + $0x280] sm:$0x3] %vm141, 0.0
    %221 = vst.msk [vmem:[#allocation2 + $0x288] sm:$0xff] %vm138, 0.0
    %222 = vst.msk [vmem:[#allocation2 + $0x290] sm:$0xff] %vm138, 0.0
    %223 = vst.msk [vmem:[#allocation2 + $0x298] sm:$0x3] %vm141, 0.0
    %224 = vst.msk [vmem:[#allocation2 + $0x2a0] sm:$0xff] %vm138, 0.0
    %225 = vst.msk [vmem:[#allocation2 + $0x2a8] sm:$0xff] %vm138, 0.0
    %226 = vst.msk [vmem:[#allocation2 + $0x2b0] sm:$0x3] %vm141, 0.0
    %227 = vst.msk [vmem:[#allocation2 + $0x2b8] sm:$0xff] %vm138, 0.0
    %228 = vst.msk [vmem:[#allocation2 + $0x2c0] sm:$0xff] %vm138, 0.0
    %229 = vst.msk [vmem:[#allocation2 + $0x2c8] sm:$0x3] %vm141, 0.0
    %230 = vst.msk [vmem:[#allocation2 + $0x2d0] sm:$0xff] %vm138, 0.0
    %231 = vst.msk [vmem:[#allocation2 + $0x2d8] sm:$0xff] %vm138, 0.0
    %232 = vst.msk [vmem:[#allocation2 + $0x2e0] sm:$0x3] %vm141, 0.0
    %233 = vst.msk [vmem:[#allocation2 + $0x2e8] sm:$0xff] %vm138, 0.0
    %234 = vst.msk [vmem:[#allocation2 + $0x2f0] sm:$0xff] %vm138, 0.0
    %235 = vst.msk [vmem:[#allocation2 + $0x2f8] sm:$0x3] %vm141, 0.0
    %236 = vst.msk [vmem:[#allocation2 + $0x300] sm:$0xff] %vm138, 0.0
    %237 = vst.msk [vmem:[#allocation2 + $0x308] sm:$0xff] %vm138, 0.0
    %238 = vst.msk [vmem:[#allocation2 + $0x310] sm:$0x3] %vm141, 0.0
    %239 = vst.msk [vmem:[#allocation2 + $0x318] sm:$0xff] %vm138, 0.0
    %240 = vst.msk [vmem:[#allocation2 + $0x320] sm:$0xff] %vm138, 0.0
    %241 = vst.msk [vmem:[#allocation2 + $0x328] sm:$0x3] %vm141, 0.0
    %242 = vst.msk [vmem:[#allocation2 + $0x330] sm:$0xff] %vm138, 0.0
    %243 = vst.msk [vmem:[#allocation2 + $0x338] sm:$0xff] %vm138, 0.0
    %244 = vst.msk [vmem:[#allocation2 + $0x340] sm:$0x3] %vm141, 0.0
    %245 = vst.msk [vmem:[#allocation2 + $0x348] sm:$0xff] %vm138, 0.0
    %246 = vst.msk [vmem:[#allocation2 + $0x350] sm:$0xff] %vm138, 0.0
    %247 = vst.msk [vmem:[#allocation2 + $0x358] sm:$0x3] %vm141, 0.0
    %s248 = scalar_lea.vmem [#allocation2], 24
    %249 = vst.msk [vmem:[%s248 + $0x1] sm:$0xff] %vm138, %v74
    %250 = vst.msk [vmem:[%s248 + $0x9] sm:$0xff] %vm138, %v75
    %251 = vst.msk [vmem:[%s248 + $0x19] sm:$0xff] %vm138, %v76
    %252 = vst.msk [vmem:[%s248 + $0x21] sm:$0xff] %vm138, %v77
    %253 = vst.msk [vmem:[%s248 + $0x31] sm:$0xff] %vm138, %v78
    %254 = vst.msk [vmem:[%s248 + $0x39] sm:$0xff] %vm138, %v79
    %255 = vst.msk [vmem:[%s248 + $0x49] sm:$0xff] %vm138, %v80
    %256 = vst.msk [vmem:[%s248 + $0x51] sm:$0xff] %vm138, %v81
    %257 = vst.msk [vmem:[%s248 + $0x61] sm:$0xff] %vm138, %v82
    %258 = vst.msk [vmem:[%s248 + $0x69] sm:$0xff] %vm138, %v83
    %259 = vst.msk [vmem:[%s248 + $0x79] sm:$0xff] %vm138, %v84
    %260 = vst.msk [vmem:[%s248 + $0x81] sm:$0xff] %vm138, %v85
    %261 = vst.msk [vmem:[%s248 + $0x91] sm:$0xff] %vm138, %v86
    %262 = vst.msk [vmem:[%s248 + $0x99] sm:$0xff] %vm138, %v87
    %263 = vst.msk [vmem:[%s248 + $0xa9] sm:$0xff] %vm138, %v88
    %264 = vst.msk [vmem:[%s248 + $0xb1] sm:$0xff] %vm138, %v89
    %265 = vst.msk [vmem:[%s248 + $0xc1] sm:$0xff] %vm138, %v90
    %266 = vst.msk [vmem:[%s248 + $0xc9] sm:$0xff] %vm138, %v91
    %267 = vst.msk [vmem:[%s248 + $0xd9] sm:$0xff] %vm138, %v92
    %268 = vst.msk [vmem:[%s248 + $0xe1] sm:$0xff] %vm138, %v93
    %269 = vst.msk [vmem:[%s248 + $0xf1] sm:$0xff] %vm138, %v94
    %270 = vst.msk [vmem:[%s248 + $0xf9] sm:$0xff] %vm138, %v95
    %271 = vst.msk [vmem:[%s248 + $0x109] sm:$0xff] %vm138, %v96
    %272 = vst.msk [vmem:[%s248 + $0x111] sm:$0xff] %vm138, %v97
    %273 = vst.msk [vmem:[%s248 + $0x121] sm:$0xff] %vm138, %v98
    %274 = vst.msk [vmem:[%s248 + $0x129] sm:$0xff] %vm138, %v99
    %275 = vst.msk [vmem:[%s248 + $0x139] sm:$0xff] %vm138, %v100
    %276 = vst.msk [vmem:[%s248 + $0x141] sm:$0xff] %vm138, %v101
    %277 = vst.msk [vmem:[%s248 + $0x151] sm:$0xff] %vm138, %v102
    %278 = vst.msk [vmem:[%s248 + $0x159] sm:$0xff] %vm138, %v103
    %279 = vst.msk [vmem:[%s248 + $0x169] sm:$0xff] %vm138, %v104
    %280 = vst.msk [vmem:[%s248 + $0x171] sm:$0xff] %vm138, %v105
    %281 = vst.msk [vmem:[%s248 + $0x1b1] sm:$0xff] %vm138, %v106
    %282 = vst.msk [vmem:[%s248 + $0x1b9] sm:$0xff] %vm138, %v107
    %283 = vst.msk [vmem:[%s248 + $0x1c9] sm:$0xff] %vm138, %v108
    %284 = vst.msk [vmem:[%s248 + $0x1d1] sm:$0xff] %vm138, %v109
    %285 = vst.msk [vmem:[%s248 + $0x1e1] sm:$0xff] %vm138, %v110
    %286 = vst.msk [vmem:[%s248 + $0x1e9] sm:$0xff] %vm138, %v111
    %287 = vst.msk [vmem:[%s248 + $0x1f9] sm:$0xff] %vm138, %v112
    %288 = vst.msk [vmem:[%s248 + $0x201] sm:$0xff] %vm138, %v113
    %289 = vst.msk [vmem:[%s248 + $0x211] sm:$0xff] %vm138, %v114
    %290 = vst.msk [vmem:[%s248 + $0x219] sm:$0xff] %vm138, %v115
    %291 = vst.msk [vmem:[%s248 + $0x229] sm:$0xff] %vm138, %v116
    %292 = vst.msk [vmem:[%s248 + $0x231] sm:$0xff] %vm138, %v117
    %293 = vst.msk [vmem:[%s248 + $0x241] sm:$0xff] %vm138, %v118
    %294 = vst.msk [vmem:[%s248 + $0x249] sm:$0xff] %vm138, %v119
    %295 = vst.msk [vmem:[%s248 + $0x259] sm:$0xff] %vm138, %v120
    %296 = vst.msk [vmem:[%s248 + $0x261] sm:$0xff] %vm138, %v121
    %297 = vst.msk [vmem:[%s248 + $0x271] sm:$0xff] %vm138, %v122
    %298 = vst.msk [vmem:[%s248 + $0x279] sm:$0xff] %vm138, %v123
    %299 = vst.msk [vmem:[%s248 + $0x289] sm:$0xff] %vm138, %v124
    %300 = vst.msk [vmem:[%s248 + $0x291] sm:$0xff] %vm138, %v125
    %301 = vst.msk [vmem:[%s248 + $0x2a1] sm:$0xff] %vm138, %v126
    %302 = vst.msk [vmem:[%s248 + $0x2a9] sm:$0xff] %vm138, %v127
    %303 = vst.msk [vmem:[%s248 + $0x2b9] sm:$0xff] %vm138, %v128
    %304 = vst.msk [vmem:[%s248 + $0x2c1] sm:$0xff] %vm138, %v129
    %305 = vst.msk [vmem:[%s248 + $0x2d1] sm:$0xff] %vm138, %v130
    %306 = vst.msk [vmem:[%s248 + $0x2d9] sm:$0xff] %vm138, %v131
    %307 = vst.msk [vmem:[%s248 + $0x2e9] sm:$0xff] %vm138, %v132
    %308 = vst.msk [vmem:[%s248 + $0x2f1] sm:$0xff] %vm138, %v133
    %309 = vst.msk [vmem:[%s248 + $0x301] sm:$0xff] %vm138, %v134
    %310 = vst.msk [vmem:[%s248 + $0x309] sm:$0xff] %vm138, %v135
    %311 = vst.msk [vmem:[%s248 + $0x319] sm:$0xff] %vm138, %v136
    %312 = vst.msk [vmem:[%s248 + $0x321] sm:$0xff] %vm138, %v137
    %v313 = vld [vmem:[#allocation2] sm:$0xff]
    %v314 = vld [vmem:[#allocation2 + $0x8] sm:$0xff]
    %v315 = vld [vmem:[#allocation2 + $0x18] sm:$0xff]
    %v316 = vld [vmem:[#allocation2 + $0x20] sm:$0xff]
    %v317 = vld [vmem:[#allocation2 + $0x30] sm:$0xff]
    %v318 = vld [vmem:[#allocation2 + $0x38] sm:$0xff]
    %v319 = vld [vmem:[#allocation2 + $0x48] sm:$0xff]
    %v320 = vld [vmem:[#allocation2 + $0x50] sm:$0xff]
    %v321 = vld [vmem:[#allocation2 + $0x60] sm:$0xff]
    %v322 = vld [vmem:[#allocation2 + $0x68] sm:$0xff]
    %v323 = vld [vmem:[#allocation2 + $0x78] sm:$0xff]
    %v324 = vld [vmem:[#allocation2 + $0x80] sm:$0xff]
    %v325 = vld [vmem:[#allocation2 + $0x90] sm:$0xff]
    %v326 = vld [vmem:[#allocation2 + $0x98] sm:$0xff]
    %v327 = vld [vmem:[#allocation2 + $0xa8] sm:$0xff]
    %v328 = vld [vmem:[#allocation2 + $0xb0] sm:$0xff]
    %v329 = vld [vmem:[#allocation2 + $0xc0] sm:$0xff]
    %v330 = vld [vmem:[#allocation2 + $0xc8] sm:$0xff]
    %v331 = vld [vmem:[#allocation2 + $0xd8] sm:$0xff]
    %v332 = vld [vmem:[#allocation2 + $0xe0] sm:$0xff]
    %v333 = vld [vmem:[#allocation2 + $0xf0] sm:$0xff]
    %v334 = vld [vmem:[#allocation2 + $0xf8] sm:$0xff]
    %v335 = vld [vmem:[#allocation2 + $0x108] sm:$0xff]
    %v336 = vld [vmem:[#allocation2 + $0x110] sm:$0xff]
    %v337 = vld [vmem:[#allocation2 + $0x120] sm:$0xff]
    %v338 = vld [vmem:[#allocation2 + $0x128] sm:$0xff]
    %v339 = vld [vmem:[#allocation2 + $0x138] sm:$0xff]
    %v340 = vld [vmem:[#allocation2 + $0x140] sm:$0xff]
    %v341 = vld [vmem:[#allocation2 + $0x150] sm:$0xff]
    %v342 = vld [vmem:[#allocation2 + $0x158] sm:$0xff]
    %v343 = vld [vmem:[#allocation2 + $0x168] sm:$0xff]
    %v344 = vld [vmem:[#allocation2 + $0x170] sm:$0xff]
    %v345 = vld [vmem:[#allocation2 + $0x1b0] sm:$0xff]
    %v346 = vld [vmem:[#allocation2 + $0x1b8] sm:$0xff]
    %v347 = vld [vmem:[#allocation2 + $0x1c8] sm:$0xff]
    %v348 = vld [vmem:[#allocation2 + $0x1d0] sm:$0xff]
    %v349 = vld [vmem:[#allocation2 + $0x1e0] sm:$0xff]
    %v350 = vld [vmem:[#allocation2 + $0x1e8] sm:$0xff]
    %v351 = vld [vmem:[#allocation2 + $0x1f8] sm:$0xff]
    %v352 = vld [vmem:[#allocation2 + $0x200] sm:$0xff]
    %v353 = vld [vmem:[#allocation2 + $0x210] sm:$0xff]
    %v354 = vld [vmem:[#allocation2 + $0x218] sm:$0xff]
    %v355 = vld [vmem:[#allocation2 + $0x228] sm:$0xff]
    %v356 = vld [vmem:[#allocation2 + $0x230] sm:$0xff]
    %v357 = vld [vmem:[#allocation2 + $0x240] sm:$0xff]
    %v358 = vld [vmem:[#allocation2 + $0x248] sm:$0xff]
    %v359 = vld [vmem:[#allocation2 + $0x258] sm:$0xff]
    %v360 = vld [vmem:[#allocation2 + $0x260] sm:$0xff]
    %v361 = vld [vmem:[#allocation2 + $0x270] sm:$0xff]
    %v362 = vld [vmem:[#allocation2 + $0x278] sm:$0xff]
    %v363 = vld [vmem:[#allocation2 + $0x288] sm:$0xff]
    %v364 = vld [vmem:[#allocation2 + $0x290] sm:$0xff]
    %v365 = vld [vmem:[#allocation2 + $0x2a0] sm:$0xff]
    %v366 = vld [vmem:[#allocation2 + $0x2a8] sm:$0xff]
    %v367 = vld [vmem:[#allocation2 + $0x2b8] sm:$0xff]
    %v368 = vld [vmem:[#allocation2 + $0x2c0] sm:$0xff]
    %v369 = vld [vmem:[#allocation2 + $0x2d0] sm:$0xff]
    %v370 = vld [vmem:[#allocation2 + $0x2d8] sm:$0xff]
    %v371 = vld [vmem:[#allocation2 + $0x2e8] sm:$0xff]
    %v372 = vld [vmem:[#allocation2 + $0x2f0] sm:$0xff]
    %v373 = vld [vmem:[#allocation2 + $0x300] sm:$0xff]
    %v374 = vld [vmem:[#allocation2 + $0x308] sm:$0xff]
    %v375 = vld [vmem:[#allocation2 + $0x318] sm:$0xff]
    %v376 = vld [vmem:[#allocation2 + $0x320] sm:$0xff]
    %v377 = vld [vmem:[#allocation2 + $0x1] sm:$0xff]
    %v378 = vld [vmem:[#allocation2 + $0x9] sm:$0xff]
    %v379 = vld [vmem:[#allocation2 + $0x19] sm:$0xff]
    %v380 = vld [vmem:[#allocation2 + $0x21] sm:$0xff]
    %v381 = vld [vmem:[#allocation2 + $0x31] sm:$0xff]
    %v382 = vld [vmem:[#allocation2 + $0x39] sm:$0xff]
    %v383 = vld [vmem:[#allocation2 + $0x49] sm:$0xff]
    %v384 = vld [vmem:[#allocation2 + $0x51] sm:$0xff]
    %v385 = vld [vmem:[#allocation2 + $0x61] sm:$0xff]
    %v386 = vld [vmem:[#allocation2 + $0x69] sm:$0xff]
    %v387 = vld [vmem:[#allocation2 + $0x79] sm:$0xff]
    %v388 = vld [vmem:[#allocation2 + $0x81] sm:$0xff]
    %v389 = vld [vmem:[#allocation2 + $0x91] sm:$0xff]
    %v390 = vld [vmem:[#allocation2 + $0x99] sm:$0xff]
    %v391 = vld [vmem:[#allocation2 + $0xa9] sm:$0xff]
    %v392 = vld [vmem:[#allocation2 + $0xb1] sm:$0xff]
    %v393 = vld [vmem:[#allocation2 + $0xc1] sm:$0xff]
    %v394 = vld [vmem:[#allocation2 + $0xc9] sm:$0xff]
    %v395 = vld [vmem:[#allocation2 + $0xd9] sm:$0xff]
    %v396 = vld [vmem:[#allocation2 + $0xe1] sm:$0xff]
    %v397 = vld [vmem:[#allocation2 + $0xf1] sm:$0xff]
    %v398 = vld [vmem:[#allocation2 + $0xf9] sm:$0xff]
    %v399 = vld [vmem:[#allocation2 + $0x109] sm:$0xff]
    %v400 = vld [vmem:[#allocation2 + $0x111] sm:$0xff]
    %v401 = vld [vmem:[#allocation2 + $0x121] sm:$0xff]
    %v402 = vld [vmem:[#allocation2 + $0x129] sm:$0xff]
    %v403 = vld [vmem:[#allocation2 + $0x139] sm:$0xff]
    %v404 = vld [vmem:[#allocation2 + $0x141] sm:$0xff]
    %v405 = vld [vmem:[#allocation2 + $0x151] sm:$0xff]
    %v406 = vld [vmem:[#allocation2 + $0x159] sm:$0xff]
    %v407 = vld [vmem:[#allocation2 + $0x169] sm:$0xff]
    %v408 = vld [vmem:[#allocation2 + $0x171] sm:$0xff]
    %v409 = vld [vmem:[#allocation2 + $0x1b1] sm:$0xff]
    %v410 = vld [vmem:[#allocation2 + $0x1b9] sm:$0xff]
    %v411 = vld [vmem:[#allocation2 + $0x1c9] sm:$0xff]
    %v412 = vld [vmem:[#allocation2 + $0x1d1] sm:$0xff]
    %v413 = vld [vmem:[#allocation2 + $0x1e1] sm:$0xff]
    %v414 = vld [vmem:[#allocation2 + $0x1e9] sm:$0xff]
    %v415 = vld [vmem:[#allocation2 + $0x1f9] sm:$0xff]
    %v416 = vld [vmem:[#allocation2 + $0x201] sm:$0xff]
    %v417 = vld [vmem:[#allocation2 + $0x211] sm:$0xff]
    %v418 = vld [vmem:[#allocation2 + $0x219] sm:$0xff]
    %v419 = vld [vmem:[#allocation2 + $0x229] sm:$0xff]
    %v420 = vld [vmem:[#allocation2 + $0x231] sm:$0xff]
    %v421 = vld [vmem:[#allocation2 + $0x241] sm:$0xff]
    %v422 = vld [vmem:[#allocation2 + $0x249] sm:$0xff]
    %v423 = vld [vmem:[#allocation2 + $0x259] sm:$0xff]
    %v424 = vld [vmem:[#allocation2 + $0x261] sm:$0xff]
    %v425 = vld [vmem:[#allocation2 + $0x271] sm:$0xff]
    %v426 = vld [vmem:[#allocation2 + $0x279] sm:$0xff]
    %v427 = vld [vmem:[#allocation2 + $0x289] sm:$0xff]
    %v428 = vld [vmem:[#allocation2 + $0x291] sm:$0xff]
    %v429 = vld [vmem:[#allocation2 + $0x2a1] sm:$0xff]
    %v430 = vld [vmem:[#allocation2 + $0x2a9] sm:$0xff]
    %v431 = vld [vmem:[#allocation2 + $0x2b9] sm:$0xff]
    %v432 = vld [vmem:[#allocation2 + $0x2c1] sm:$0xff]
    %v433 = vld [vmem:[#allocation2 + $0x2d1] sm:$0xff]
    %v434 = vld [vmem:[#allocation2 + $0x2d9] sm:$0xff]
    %v435 = vld [vmem:[#allocation2 + $0x2e9] sm:$0xff]
    %v436 = vld [vmem:[#allocation2 + $0x2f1] sm:$0xff]
    %v437 = vld [vmem:[#allocation2 + $0x301] sm:$0xff]
    %v438 = vld [vmem:[#allocation2 + $0x309] sm:$0xff]
    %v439 = vld [vmem:[#allocation2 + $0x319] sm:$0xff]
    %v440 = vld [vmem:[#allocation2 + $0x321] sm:$0xff]
    %v441 = vld [vmem:[#allocation2 + $0x2] sm:$0xff]
    %v442 = vld [vmem:[#allocation2 + $0xa] sm:$0xff]
    %v443 = vld [vmem:[#allocation2 + $0x1a] sm:$0xff]
    %v444 = vld [vmem:[#allocation2 + $0x22] sm:$0xff]
    %v445 = vld [vmem:[#allocation2 + $0x32] sm:$0xff]
    %v446 = vld [vmem:[#allocation2 + $0x3a] sm:$0xff]
    %v447 = vld [vmem:[#allocation2 + $0x4a] sm:$0xff]
    %v448 = vld [vmem:[#allocation2 + $0x52] sm:$0xff]
    %v449 = vld [vmem:[#allocation2 + $0x62] sm:$0xff]
    %v450 = vld [vmem:[#allocation2 + $0x6a] sm:$0xff]
    %v451 = vld [vmem:[#allocation2 + $0x7a] sm:$0xff]
    %v452 = vld [vmem:[#allocation2 + $0x82] sm:$0xff]
    %v453 = vld [vmem:[#allocation2 + $0x92] sm:$0xff]
    %v454 = vld [vmem:[#allocation2 + $0x9a] sm:$0xff]
    %v455 = vld [vmem:[#allocation2 + $0xaa] sm:$0xff]
    %v456 = vld [vmem:[#allocation2 + $0xb2] sm:$0xff]
    %v457 = vld [vmem:[#allocation2 + $0xc2] sm:$0xff]
    %v458 = vld [vmem:[#allocation2 + $0xca] sm:$0xff]
    %v459 = vld [vmem:[#allocation2 + $0xda] sm:$0xff]
    %v460 = vld [vmem:[#allocation2 + $0xe2] sm:$0xff]
    %v461 = vld [vmem:[#allocation2 + $0xf2] sm:$0xff]
    %v462 = vld [vmem:[#allocation2 + $0xfa] sm:$0xff]
    %v463 = vld [vmem:[#allocation2 + $0x10a] sm:$0xff]
    %v464 = vld [vmem:[#allocation2 + $0x112] sm:$0xff]
    %v465 = vld [vmem:[#allocation2 + $0x122] sm:$0xff]
    %v466 = vld [vmem:[#allocation2 + $0x12a] sm:$0xff]
    %v467 = vld [vmem:[#allocation2 + $0x13a] sm:$0xff]
    %v468 = vld [vmem:[#allocation2 + $0x142] sm:$0xff]
    %v469 = vld [vmem:[#allocation2 + $0x152] sm:$0xff]
    %v470 = vld [vmem:[#allocation2 + $0x15a] sm:$0xff]
    %v471 = vld [vmem:[#allocation2 + $0x16a] sm:$0xff]
    %v472 = vld [vmem:[#allocation2 + $0x172] sm:$0xff]
    %v473 = vld [vmem:[#allocation2 + $0x1b2] sm:$0xff]
    %v474 = vld [vmem:[#allocation2 + $0x1ba] sm:$0xff]
    %v475 = vld [vmem:[#allocation2 + $0x1ca] sm:$0xff]
    %v476 = vld [vmem:[#allocation2 + $0x1d2] sm:$0xff]
    %v477 = vld [vmem:[#allocation2 + $0x1e2] sm:$0xff]
    %v478 = vld [vmem:[#allocation2 + $0x1ea] sm:$0xff]
    %v479 = vld [vmem:[#allocation2 + $0x1fa] sm:$0xff]
    %v480 = vld [vmem:[#allocation2 + $0x202] sm:$0xff]
    %v481 = vld [vmem:[#allocation2 + $0x212] sm:$0xff]
    %v482 = vld [vmem:[#allocation2 + $0x21a] sm:$0xff]
    %v483 = vld [vmem:[#allocation2 + $0x22a] sm:$0xff]
    %v484 = vld [vmem:[#allocation2 + $0x232] sm:$0xff]
    %v485 = vld [vmem:[#allocation2 + $0x242] sm:$0xff]
    %v486 = vld [vmem:[#allocation2 + $0x24a] sm:$0xff]
    %v487 = vld [vmem:[#allocation2 + $0x25a] sm:$0xff]
    %v488 = vld [vmem:[#allocation2 + $0x262] sm:$0xff]
    %v489 = vld [vmem:[#allocation2 + $0x272] sm:$0xff]
    %v490 = vld [vmem:[#allocation2 + $0x27a] sm:$0xff]
    %v491 = vld [vmem:[#allocation2 + $0x28a] sm:$0xff]
    %v492 = vld [vmem:[#allocation2 + $0x292] sm:$0xff]
    %v493 = vld [vmem:[#allocation2 + $0x2a2] sm:$0xff]
    %v494 = vld [vmem:[#allocation2 + $0x2aa] sm:$0xff]
    %v495 = vld [vmem:[#allocation2 + $0x2ba] sm:$0xff]
    %v496 = vld [vmem:[#allocation2 + $0x2c2] sm:$0xff]
    %v497 = vld [vmem:[#allocation2 + $0x2d2] sm:$0xff]
    %v498 = vld [vmem:[#allocation2 + $0x2da] sm:$0xff]
    %v499 = vld [vmem:[#allocation2 + $0x2ea] sm:$0xff]
    %v500 = vld [vmem:[#allocation2 + $0x2f2] sm:$0xff]
    %v501 = vld [vmem:[#allocation2 + $0x302] sm:$0xff]
    %v502 = vld [vmem:[#allocation2 + $0x30a] sm:$0xff]
    %v503 = vld [vmem:[#allocation2 + $0x31a] sm:$0xff]
    %v504 = vld [vmem:[#allocation2 + $0x322] sm:$0xff]
    %v505 = vld [vmem:[%s248] sm:$0xff]
    %v506 = vld [vmem:[%s248 + $0x8] sm:$0xff]
    %v507 = vld [vmem:[%s248 + $0x18] sm:$0xff]
    %v508 = vld [vmem:[%s248 + $0x20] sm:$0xff]
    %v509 = vld [vmem:[%s248 + $0x30] sm:$0xff]
    %v510 = vld [vmem:[%s248 + $0x38] sm:$0xff]
    %v511 = vld [vmem:[%s248 + $0x48] sm:$0xff]
    %v512 = vld [vmem:[%s248 + $0x50] sm:$0xff]
    %v513 = vld [vmem:[%s248 + $0x60] sm:$0xff]
    %v514 = vld [vmem:[%s248 + $0x68] sm:$0xff]
    %v515 = vld [vmem:[%s248 + $0x78] sm:$0xff]
    %v516 = vld [vmem:[%s248 + $0x80] sm:$0xff]
    %v517 = vld [vmem:[%s248 + $0x90] sm:$0xff]
    %v518 = vld [vmem:[%s248 + $0x98] sm:$0xff]
    %v519 = vld [vmem:[%s248 + $0xa8] sm:$0xff]
    %v520 = vld [vmem:[%s248 + $0xb0] sm:$0xff]
    %v521 = vld [vmem:[%s248 + $0xc0] sm:$0xff]
    %v522 = vld [vmem:[%s248 + $0xc8] sm:$0xff]
    %v523 = vld [vmem:[%s248 + $0xd8] sm:$0xff]
    %v524 = vld [vmem:[%s248 + $0xe0] sm:$0xff]
    %v525 = vld [vmem:[%s248 + $0xf0] sm:$0xff]
    %v526 = vld [vmem:[%s248 + $0xf8] sm:$0xff]
    %v527 = vld [vmem:[%s248 + $0x108] sm:$0xff]
    %v528 = vld [vmem:[%s248 + $0x110] sm:$0xff]
    %v529 = vld [vmem:[%s248 + $0x120] sm:$0xff]
    %v530 = vld [vmem:[%s248 + $0x128] sm:$0xff]
    %v531 = vld [vmem:[%s248 + $0x138] sm:$0xff]
    %v532 = vld [vmem:[%s248 + $0x140] sm:$0xff]
    %v533 = vld [vmem:[%s248 + $0x150] sm:$0xff]
    %v534 = vld [vmem:[%s248 + $0x158] sm:$0xff]
    %v535 = vld [vmem:[%s248 + $0x168] sm:$0xff]
    %v536 = vld [vmem:[%s248 + $0x170] sm:$0xff]
    %v537 = vld [vmem:[%s248 + $0x1b0] sm:$0xff]
    %v538 = vld [vmem:[%s248 + $0x1b8] sm:$0xff]
    %v539 = vld [vmem:[%s248 + $0x1c8] sm:$0xff]
    %v540 = vld [vmem:[%s248 + $0x1d0] sm:$0xff]
    %v541 = vld [vmem:[%s248 + $0x1e0] sm:$0xff]
    %v542 = vld [vmem:[%s248 + $0x1e8] sm:$0xff]
    %v543 = vld [vmem:[%s248 + $0x1f8] sm:$0xff]
    %v544 = vld [vmem:[%s248 + $0x200] sm:$0xff]
    %v545 = vld [vmem:[%s248 + $0x210] sm:$0xff]
    %v546 = vld [vmem:[%s248 + $0x218] sm:$0xff]
    %v547 = vld [vmem:[%s248 + $0x228] sm:$0xff]
    %v548 = vld [vmem:[%s248 + $0x230] sm:$0xff]
    %v549 = vld [vmem:[%s248 + $0x240] sm:$0xff]
    %v550 = vld [vmem:[%s248 + $0x248] sm:$0xff]
    %v551 = vld [vmem:[%s248 + $0x258] sm:$0xff]
    %v552 = vld [vmem:[%s248 + $0x260] sm:$0xff]
    %v553 = vld [vmem:[%s248 + $0x270] sm:$0xff]
    %v554 = vld [vmem:[%s248 + $0x278] sm:$0xff]
    %v555 = vld [vmem:[%s248 + $0x288] sm:$0xff]
    %v556 = vld [vmem:[%s248 + $0x290] sm:$0xff]
    %v557 = vld [vmem:[%s248 + $0x2a0] sm:$0xff]
    %v558 = vld [vmem:[%s248 + $0x2a8] sm:$0xff]
    %v559 = vld [vmem:[%s248 + $0x2b8] sm:$0xff]
    %v560 = vld [vmem:[%s248 + $0x2c0] sm:$0xff]
    %v561 = vld [vmem:[%s248 + $0x2d0] sm:$0xff]
    %v562 = vld [vmem:[%s248 + $0x2d8] sm:$0xff]
    %v563 = vld [vmem:[%s248 + $0x2e8] sm:$0xff]
    %v564 = vld [vmem:[%s248 + $0x2f0] sm:$0xff]
    %v565 = vld [vmem:[%s248 + $0x300] sm:$0xff]
    %v566 = vld [vmem:[%s248 + $0x308] sm:$0xff]
    %v567 = vld [vmem:[%s248 + $0x318] sm:$0xff]
    %v568 = vld [vmem:[%s248 + $0x320] sm:$0xff]
    %v569 = vld [vmem:[%s248 + $0x1] sm:$0xff]
    %v570 = vld [vmem:[%s248 + $0x9] sm:$0xff]
    %v571 = vld [vmem:[%s248 + $0x19] sm:$0xff]
    %v572 = vld [vmem:[%s248 + $0x21] sm:$0xff]
    %v573 = vld [vmem:[%s248 + $0x31] sm:$0xff]
    %v574 = vld [vmem:[%s248 + $0x39] sm:$0xff]
    %v575 = vld [vmem:[%s248 + $0x49] sm:$0xff]
    %v576 = vld [vmem:[%s248 + $0x51] sm:$0xff]
    %v577 = vld [vmem:[%s248 + $0x61] sm:$0xff]
    %v578 = vld [vmem:[%s248 + $0x69] sm:$0xff]
    %v579 = vld [vmem:[%s248 + $0x79] sm:$0xff]
    %v580 = vld [vmem:[%s248 + $0x81] sm:$0xff]
    %v581 = vld [vmem:[%s248 + $0x91] sm:$0xff]
    %v582 = vld [vmem:[%s248 + $0x99] sm:$0xff]
    %v583 = vld [vmem:[%s248 + $0xa9] sm:$0xff]
    %v584 = vld [vmem:[%s248 + $0xb1] sm:$0xff]
    %v585 = vld [vmem:[%s248 + $0xc1] sm:$0xff]
    %v586 = vld [vmem:[%s248 + $0xc9] sm:$0xff]
    %v587 = vld [vmem:[%s248 + $0xd9] sm:$0xff]
    %v588 = vld [vmem:[%s248 + $0xe1] sm:$0xff]
    %v589 = vld [vmem:[%s248 + $0xf1] sm:$0xff]
    %v590 = vld [vmem:[%s248 + $0xf9] sm:$0xff]
    %v591 = vld [vmem:[%s248 + $0x109] sm:$0xff]
    %v592 = vld [vmem:[%s248 + $0x111] sm:$0xff]
    %v593 = vld [vmem:[%s248 + $0x121] sm:$0xff]
    %v594 = vld [vmem:[%s248 + $0x129] sm:$0xff]
    %v595 = vld [vmem:[%s248 + $0x139] sm:$0xff]
    %v596 = vld [vmem:[%s248 + $0x141] sm:$0xff]
    %v597 = vld [vmem:[%s248 + $0x151] sm:$0xff]
    %v598 = vld [vmem:[%s248 + $0x159] sm:$0xff]
    %v599 = vld [vmem:[%s248 + $0x169] sm:$0xff]
    %v600 = vld [vmem:[%s248 + $0x171] sm:$0xff]
    %v601 = vld [vmem:[%s248 + $0x1b1] sm:$0xff]
    %v602 = vld [vmem:[%s248 + $0x1b9] sm:$0xff]
    %v603 = vld [vmem:[%s248 + $0x1c9] sm:$0xff]
    %v604 = vld [vmem:[%s248 + $0x1d1] sm:$0xff]
    %v605 = vld [vmem:[%s248 + $0x1e1] sm:$0xff]
    %v606 = vld [vmem:[%s248 + $0x1e9] sm:$0xff]
    %v607 = vld [vmem:[%s248 + $0x1f9] sm:$0xff]
    %v608 = vld [vmem:[%s248 + $0x201] sm:$0xff]
    %v609 = vld [vmem:[%s248 + $0x211] sm:$0xff]
    %v610 = vld [vmem:[%s248 + $0x219] sm:$0xff]
    %v611 = vld [vmem:[%s248 + $0x229] sm:$0xff]
    %v612 = vld [vmem:[%s248 + $0x231] sm:$0xff]
    %v613 = vld [vmem:[%s248 + $0x241] sm:$0xff]
    %v614 = vld [vmem:[%s248 + $0x249] sm:$0xff]
    %v615 = vld [vmem:[%s248 + $0x259] sm:$0xff]
    %v616 = vld [vmem:[%s248 + $0x261] sm:$0xff]
    %v617 = vld [vmem:[%s248 + $0x271] sm:$0xff]
    %v618 = vld [vmem:[%s248 + $0x279] sm:$0xff]
    %v619 = vld [vmem:[%s248 + $0x289] sm:$0xff]
    %v620 = vld [vmem:[%s248 + $0x291] sm:$0xff]
    %v621 = vld [vmem:[%s248 + $0x2a1] sm:$0xff]
    %v622 = vld [vmem:[%s248 + $0x2a9] sm:$0xff]
    %v623 = vld [vmem:[%s248 + $0x2b9] sm:$0xff]
    %v624 = vld [vmem:[%s248 + $0x2c1] sm:$0xff]
    %v625 = vld [vmem:[%s248 + $0x2d1] sm:$0xff]
    %v626 = vld [vmem:[%s248 + $0x2d9] sm:$0xff]
    %v627 = vld [vmem:[%s248 + $0x2e9] sm:$0xff]
    %v628 = vld [vmem:[%s248 + $0x2f1] sm:$0xff]
    %v629 = vld [vmem:[%s248 + $0x301] sm:$0xff]
    %v630 = vld [vmem:[%s248 + $0x309] sm:$0xff]
    %v631 = vld [vmem:[%s248 + $0x319] sm:$0xff]
    %v632 = vld [vmem:[%s248 + $0x321] sm:$0xff]
    %v633 = vld [vmem:[%s248 + $0x2] sm:$0xff]
    %v634 = vld [vmem:[%s248 + $0xa] sm:$0xff]
    %v635 = vld [vmem:[%s248 + $0x1a] sm:$0xff]
    %v636 = vld [vmem:[%s248 + $0x22] sm:$0xff]
    %v637 = vld [vmem:[%s248 + $0x32] sm:$0xff]
    %v638 = vld [vmem:[%s248 + $0x3a] sm:$0xff]
    %v639 = vld [vmem:[%s248 + $0x4a] sm:$0xff]
    %v640 = vld [vmem:[%s248 + $0x52] sm:$0xff]
    %v641 = vld [vmem:[%s248 + $0x62] sm:$0xff]
    %v642 = vld [vmem:[%s248 + $0x6a] sm:$0xff]
    %v643 = vld [vmem:[%s248 + $0x7a] sm:$0xff]
    %v644 = vld [vmem:[%s248 + $0x82] sm:$0xff]
    %v645 = vld [vmem:[%s248 + $0x92] sm:$0xff]
    %v646 = vld [vmem:[%s248 + $0x9a] sm:$0xff]
    %v647 = vld [vmem:[%s248 + $0xaa] sm:$0xff]
    %v648 = vld [vmem:[%s248 + $0xb2] sm:$0xff]
    %v649 = vld [vmem:[%s248 + $0xc2] sm:$0xff]
    %v650 = vld [vmem:[%s248 + $0xca] sm:$0xff]
    %v651 = vld [vmem:[%s248 + $0xda] sm:$0xff]
    %v652 = vld [vmem:[%s248 + $0xe2] sm:$0xff]
    %v653 = vld [vmem:[%s248 + $0xf2] sm:$0xff]
    %v654 = vld [vmem:[%s248 + $0xfa] sm:$0xff]
    %v655 = vld [vmem:[%s248 + $0x10a] sm:$0xff]
    %v656 = vld [vmem:[%s248 + $0x112] sm:$0xff]
    %v657 = vld [vmem:[%s248 + $0x122] sm:$0xff]
    %v658 = vld [vmem:[%s248 + $0x12a] sm:$0xff]
    %v659 = vld [vmem:[%s248 + $0x13a] sm:$0xff]
    %v660 = vld [vmem:[%s248 + $0x142] sm:$0xff]
    %v661 = vld [vmem:[%s248 + $0x152] sm:$0xff]
    %v662 = vld [vmem:[%s248 + $0x15a] sm:$0xff]
    %v663 = vld [vmem:[%s248 + $0x16a] sm:$0xff]
    %v664 = vld [vmem:[%s248 + $0x172] sm:$0xff]
    %v665 = vld [vmem:[%s248 + $0x1b2] sm:$0xff]
    %v666 = vld [vmem:[%s248 + $0x1ba] sm:$0xff]
    %v667 = vld [vmem:[%s248 + $0x1ca] sm:$0xff]
    %v668 = vld [vmem:[%s248 + $0x1d2] sm:$0xff]
    %v669 = vld [vmem:[%s248 + $0x1e2] sm:$0xff]
    %v670 = vld [vmem:[%s248 + $0x1ea] sm:$0xff]
    %v671 = vld [vmem:[%s248 + $0x1fa] sm:$0xff]
    %v672 = vld [vmem:[%s248 + $0x202] sm:$0xff]
    %v673 = vld [vmem:[%s248 + $0x212] sm:$0xff]
    %v674 = vld [vmem:[%s248 + $0x21a] sm:$0xff]
    %v675 = vld [vmem:[%s248 + $0x22a] sm:$0xff]
    %v676 = vld [vmem:[%s248 + $0x232] sm:$0xff]
    %v677 = vld [vmem:[%s248 + $0x242] sm:$0xff]
    %v678 = vld [vmem:[%s248 + $0x24a] sm:$0xff]
    %v679 = vld [vmem:[%s248 + $0x25a] sm:$0xff]
    %v680 = vld [vmem:[%s248 + $0x262] sm:$0xff]
    %v681 = vld [vmem:[%s248 + $0x272] sm:$0xff]
    %v682 = vld [vmem:[%s248 + $0x27a] sm:$0xff]
    %v683 = vld [vmem:[%s248 + $0x28a] sm:$0xff]
    %v684 = vld [vmem:[%s248 + $0x292] sm:$0xff]
    %v685 = vld [vmem:[%s248 + $0x2a2] sm:$0xff]
    %v686 = vld [vmem:[%s248 + $0x2aa] sm:$0xff]
    %v687 = vld [vmem:[%s248 + $0x2ba] sm:$0xff]
    %v688 = vld [vmem:[%s248 + $0x2c2] sm:$0xff]
    %v689 = vld [vmem:[%s248 + $0x2d2] sm:$0xff]
    %v690 = vld [vmem:[%s248 + $0x2da] sm:$0xff]
    %v691 = vld [vmem:[%s248 + $0x2ea] sm:$0xff]
    %v692 = vld [vmem:[%s248 + $0x2f2] sm:$0xff]
    %v693 = vld [vmem:[%s248 + $0x302] sm:$0xff]
    %v694 = vld [vmem:[%s248 + $0x30a] sm:$0xff]
    %v695 = vld [vmem:[%s248 + $0x31a] sm:$0xff]
    %v696 = vld [vmem:[%s248 + $0x322] sm:$0xff]
    %s697 = scalar_lea.vmem [#allocation2], 48
    %v698 = vld [vmem:[%s697] sm:$0xff]
    %v699 = vld [vmem:[%s697 + $0x8] sm:$0xff]
    %v700 = vld [vmem:[%s697 + $0x18] sm:$0xff]
    %v701 = vld [vmem:[%s697 + $0x20] sm:$0xff]
    %v702 = vld [vmem:[%s697 + $0x30] sm:$0xff]
    %v703 = vld [vmem:[%s697 + $0x38] sm:$0xff]
    %v704 = vld [vmem:[%s697 + $0x48] sm:$0xff]
    %v705 = vld [vmem:[%s697 + $0x50] sm:$0xff]
    %v706 = vld [vmem:[%s697 + $0x60] sm:$0xff]
    %v707 = vld [vmem:[%s697 + $0x68] sm:$0xff]
    %v708 = vld [vmem:[%s697 + $0x78] sm:$0xff]
    %v709 = vld [vmem:[%s697 + $0x80] sm:$0xff]
    %v710 = vld [vmem:[%s697 + $0x90] sm:$0xff]
    %v711 = vld [vmem:[%s697 + $0x98] sm:$0xff]
    %v712 = vld [vmem:[%s697 + $0xa8] sm:$0xff]
    %v713 = vld [vmem:[%s697 + $0xb0] sm:$0xff]
    %v714 = vld [vmem:[%s697 + $0xc0] sm:$0xff]
    %v715 = vld [vmem:[%s697 + $0xc8] sm:$0xff]
    %v716 = vld [vmem:[%s697 + $0xd8] sm:$0xff]
    %v717 = vld [vmem:[%s697 + $0xe0] sm:$0xff]
    %v718 = vld [vmem:[%s697 + $0xf0] sm:$0xff]
    %v719 = vld [vmem:[%s697 + $0xf8] sm:$0xff]
    %v720 = vld [vmem:[%s697 + $0x108] sm:$0xff]
    %v721 = vld [vmem:[%s697 + $0x110] sm:$0xff]
    %v722 = vld [vmem:[%s697 + $0x120] sm:$0xff]
    %v723 = vld [vmem:[%s697 + $0x128] sm:$0xff]
    %v724 = vld [vmem:[%s697 + $0x138] sm:$0xff]
    %v725 = vld [vmem:[%s697 + $0x140] sm:$0xff]
    %v726 = vld [vmem:[%s697 + $0x150] sm:$0xff]
    %v727 = vld [vmem:[%s697 + $0x158] sm:$0xff]
    %v728 = vld [vmem:[%s697 + $0x168] sm:$0xff]
    %v729 = vld [vmem:[%s697 + $0x170] sm:$0xff]
    %v730 = vld [vmem:[%s697 + $0x1b0] sm:$0xff]
    %v731 = vld [vmem:[%s697 + $0x1b8] sm:$0xff]
    %v732 = vld [vmem:[%s697 + $0x1c8] sm:$0xff]
    %v733 = vld [vmem:[%s697 + $0x1d0] sm:$0xff]
    %v734 = vld [vmem:[%s697 + $0x1e0] sm:$0xff]
    %v735 = vld [vmem:[%s697 + $0x1e8] sm:$0xff]
    %v736 = vld [vmem:[%s697 + $0x1f8] sm:$0xff]
    %v737 = vld [vmem:[%s697 + $0x200] sm:$0xff]
    %v738 = vld [vmem:[%s697 + $0x210] sm:$0xff]
    %v739 = vld [vmem:[%s697 + $0x218] sm:$0xff]
    %v740 = vld [vmem:[%s697 + $0x228] sm:$0xff]
    %v741 = vld [vmem:[%s697 + $0x230] sm:$0xff]
    %v742 = vld [vmem:[%s697 + $0x240] sm:$0xff]
    %v743 = vld [vmem:[%s697 + $0x248] sm:$0xff]
    %v744 = vld [vmem:[%s697 + $0x258] sm:$0xff]
    %v745 = vld [vmem:[%s697 + $0x260] sm:$0xff]
    %v746 = vld [vmem:[%s697 + $0x270] sm:$0xff]
    %v747 = vld [vmem:[%s697 + $0x278] sm:$0xff]
    %v748 = vld [vmem:[%s697 + $0x288] sm:$0xff]
    %v749 = vld [vmem:[%s697 + $0x290] sm:$0xff]
    %v750 = vld [vmem:[%s697 + $0x2a0] sm:$0xff]
    %v751 = vld [vmem:[%s697 + $0x2a8] sm:$0xff]
    %v752 = vld [vmem:[%s697 + $0x2b8] sm:$0xff]
    %v753 = vld [vmem:[%s697 + $0x2c0] sm:$0xff]
    %v754 = vld [vmem:[%s697 + $0x2d0] sm:$0xff]
    %v755 = vld [vmem:[%s697 + $0x2d8] sm:$0xff]
    %v756 = vld [vmem:[%s697 + $0x2e8] sm:$0xff]
    %v757 = vld [vmem:[%s697 + $0x2f0] sm:$0xff]
    %v758 = vld [vmem:[%s697 + $0x300] sm:$0xff]
    %v759 = vld [vmem:[%s697 + $0x308] sm:$0xff]
    %v760 = vld [vmem:[%s697 + $0x318] sm:$0xff]
    %v761 = vld [vmem:[%s697 + $0x320] sm:$0xff]
    %v762 = vld [vmem:[%s697 + $0x1] sm:$0xff]
    %v763 = vld [vmem:[%s697 + $0x9] sm:$0xff]
    %v764 = vld [vmem:[%s697 + $0x19] sm:$0xff]
    %v765 = vld [vmem:[%s697 + $0x21] sm:$0xff]
    %v766 = vld [vmem:[%s697 + $0x31] sm:$0xff]
    %v767 = vld [vmem:[%s697 + $0x39] sm:$0xff]
    %v768 = vld [vmem:[%s697 + $0x49] sm:$0xff]
    %v769 = vld [vmem:[%s697 + $0x51] sm:$0xff]
    %v770 = vld [vmem:[%s697 + $0x61] sm:$0xff]
    %v771 = vld [vmem:[%s697 + $0x69] sm:$0xff]
    %v772 = vld [vmem:[%s697 + $0x79] sm:$0xff]
    %v773 = vld [vmem:[%s697 + $0x81] sm:$0xff]
    %v774 = vld [vmem:[%s697 + $0x91] sm:$0xff]
    %v775 = vld [vmem:[%s697 + $0x99] sm:$0xff]
    %v776 = vld [vmem:[%s697 + $0xa9] sm:$0xff]
    %v777 = vld [vmem:[%s697 + $0xb1] sm:$0xff]
    %v778 = vld [vmem:[%s697 + $0xc1] sm:$0xff]
    %v779 = vld [vmem:[%s697 + $0xc9] sm:$0xff]
    %v780 = vld [vmem:[%s697 + $0xd9] sm:$0xff]
    %v781 = vld [vmem:[%s697 + $0xe1] sm:$0xff]
    %v782 = vld [vmem:[%s697 + $0xf1] sm:$0xff]
    %v783 = vld [vmem:[%s697 + $0xf9] sm:$0xff]
    %v784 = vld [vmem:[%s697 + $0x109] sm:$0xff]
    %v785 = vld [vmem:[%s697 + $0x111] sm:$0xff]
    %v786 = vld [vmem:[%s697 + $0x121] sm:$0xff]
    %v787 = vld [vmem:[%s697 + $0x129] sm:$0xff]
    %v788 = vld [vmem:[%s697 + $0x139] sm:$0xff]
    %v789 = vld [vmem:[%s697 + $0x141] sm:$0xff]
    %v790 = vld [vmem:[%s697 + $0x151] sm:$0xff]
    %v791 = vld [vmem:[%s697 + $0x159] sm:$0xff]
    %v792 = vld [vmem:[%s697 + $0x169] sm:$0xff]
    %v793 = vld [vmem:[%s697 + $0x171] sm:$0xff]
    %v794 = vld [vmem:[%s697 + $0x1b1] sm:$0xff]
    %v795 = vld [vmem:[%s697 + $0x1b9] sm:$0xff]
    %v796 = vld [vmem:[%s697 + $0x1c9] sm:$0xff]
    %v797 = vld [vmem:[%s697 + $0x1d1] sm:$0xff]
    %v798 = vld [vmem:[%s697 + $0x1e1] sm:$0xff]
    %v799 = vld [vmem:[%s697 + $0x1e9] sm:$0xff]
    %v800 = vld [vmem:[%s697 + $0x1f9] sm:$0xff]
    %v801 = vld [vmem:[%s697 + $0x201] sm:$0xff]
    %v802 = vld [vmem:[%s697 + $0x211] sm:$0xff]
    %v803 = vld [vmem:[%s697 + $0x219] sm:$0xff]
    %v804 = vld [vmem:[%s697 + $0x229] sm:$0xff]
    %v805 = vld [vmem:[%s697 + $0x231] sm:$0xff]
    %v806 = vld [vmem:[%s697 + $0x241] sm:$0xff]
    %v807 = vld [vmem:[%s697 + $0x249] sm:$0xff]
    %v808 = vld [vmem:[%s697 + $0x259] sm:$0xff]
    %v809 = vld [vmem:[%s697 + $0x261] sm:$0xff]
    %v810 = vld [vmem:[%s697 + $0x271] sm:$0xff]
    %v811 = vld [vmem:[%s697 + $0x279] sm:$0xff]
    %v812 = vld [vmem:[%s697 + $0x289] sm:$0xff]
    %v813 = vld [vmem:[%s697 + $0x291] sm:$0xff]
    %v814 = vld [vmem:[%s697 + $0x2a1] sm:$0xff]
    %v815 = vld [vmem:[%s697 + $0x2a9] sm:$0xff]
    %v816 = vld [vmem:[%s697 + $0x2b9] sm:$0xff]
    %v817 = vld [vmem:[%s697 + $0x2c1] sm:$0xff]
    %v818 = vld [vmem:[%s697 + $0x2d1] sm:$0xff]
    %v819 = vld [vmem:[%s697 + $0x2d9] sm:$0xff]
    %v820 = vld [vmem:[%s697 + $0x2e9] sm:$0xff]
    %v821 = vld [vmem:[%s697 + $0x2f1] sm:$0xff]
    %v822 = vld [vmem:[%s697 + $0x301] sm:$0xff]
    %v823 = vld [vmem:[%s697 + $0x309] sm:$0xff]
    %v824 = vld [vmem:[%s697 + $0x319] sm:$0xff]
    %v825 = vld [vmem:[%s697 + $0x321] sm:$0xff]
    %v826 = vld [vmem:[%s697 + $0x2] sm:$0xff]
    %v827 = vld [vmem:[%s697 + $0xa] sm:$0xff]
    %v828 = vld [vmem:[%s697 + $0x1a] sm:$0xff]
    %v829 = vld [vmem:[%s697 + $0x22] sm:$0xff]
    %v830 = vld [vmem:[%s697 + $0x32] sm:$0xff]
    %v831 = vld [vmem:[%s697 + $0x3a] sm:$0xff]
    %v832 = vld [vmem:[%s697 + $0x4a] sm:$0xff]
    %v833 = vld [vmem:[%s697 + $0x52] sm:$0xff]
    %v834 = vld [vmem:[%s697 + $0x62] sm:$0xff]
    %v835 = vld [vmem:[%s697 + $0x6a] sm:$0xff]
    %v836 = vld [vmem:[%s697 + $0x7a] sm:$0xff]
    %v837 = vld [vmem:[%s697 + $0x82] sm:$0xff]
    %v838 = vld [vmem:[%s697 + $0x92] sm:$0xff]
    %v839 = vld [vmem:[%s697 + $0x9a] sm:$0xff]
    %v840 = vld [vmem:[%s697 + $0xaa] sm:$0xff]
    %v841 = vld [vmem:[%s697 + $0xb2] sm:$0xff]
    %v842 = vld [vmem:[%s697 + $0xc2] sm:$0xff]
    %v843 = vld [vmem:[%s697 + $0xca] sm:$0xff]
    %v844 = vld [vmem:[%s697 + $0xda] sm:$0xff]
    %v845 = vld [vmem:[%s697 + $0xe2] sm:$0xff]
    %v846 = vld [vmem:[%s697 + $0xf2] sm:$0xff]
    %v847 = vld [vmem:[%s697 + $0xfa] sm:$0xff]
    %v848 = vld [vmem:[%s697 + $0x10a] sm:$0xff]
    %v849 = vld [vmem:[%s697 + $0x112] sm:$0xff]
    %v850 = vld [vmem:[%s697 + $0x122] sm:$0xff]
    %v851 = vld [vmem:[%s697 + $0x12a] sm:$0xff]
    %v852 = vld [vmem:[%s697 + $0x13a] sm:$0xff]
    %v853 = vld [vmem:[%s697 + $0x142] sm:$0xff]
    %v854 = vld [vmem:[%s697 + $0x152] sm:$0xff]
    %v855 = vld [vmem:[%s697 + $0x15a] sm:$0xff]
    %v856 = vld [vmem:[%s697 + $0x16a] sm:$0xff]
    %v857 = vld [vmem:[%s697 + $0x172] sm:$0xff]
    %v858 = vld [vmem:[%s697 + $0x1b2] sm:$0xff]
    %v859 = vld [vmem:[%s697 + $0x1ba] sm:$0xff]
    %v860 = vld [vmem:[%s697 + $0x1ca] sm:$0xff]
    %v861 = vld [vmem:[%s697 + $0x1d2] sm:$0xff]
    %v862 = vld [vmem:[%s697 + $0x1e2] sm:$0xff]
    %v863 = vld [vmem:[%s697 + $0x1ea] sm:$0xff]
    %v864 = vld [vmem:[%s697 + $0x1fa] sm:$0xff]
    %v865 = vld [vmem:[%s697 + $0x202] sm:$0xff]
    %v866 = vld [vmem:[%s697 + $0x212] sm:$0xff]
    %v867 = vld [vmem:[%s697 + $0x21a] sm:$0xff]
    %v868 = vld [vmem:[%s697 + $0x22a] sm:$0xff]
    %v869 = vld [vmem:[%s697 + $0x232] sm:$0xff]
    %v870 = vld [vmem:[%s697 + $0x242] sm:$0xff]
    %v871 = vld [vmem:[%s697 + $0x24a] sm:$0xff]
    %v872 = vld [vmem:[%s697 + $0x25a] sm:$0xff]
    %v873 = vld [vmem:[%s697 + $0x262] sm:$0xff]
    %v874 = vld [vmem:[%s697 + $0x272] sm:$0xff]
    %v875 = vld [vmem:[%s697 + $0x27a] sm:$0xff]
    %v876 = vld [vmem:[%s697 + $0x28a] sm:$0xff]
    %v877 = vld [vmem:[%s697 + $0x292] sm:$0xff]
    %v878 = vld [vmem:[%s697 + $0x2a2] sm:$0xff]
    %v879 = vld [vmem:[%s697 + $0x2aa] sm:$0xff]
    %v880 = vld [vmem:[%s697 + $0x2ba] sm:$0xff]
    %v881 = vld [vmem:[%s697 + $0x2c2] sm:$0xff]
    %v882 = vld [vmem:[%s697 + $0x2d2] sm:$0xff]
    %v883 = vld [vmem:[%s697 + $0x2da] sm:$0xff]
    %v884 = vld [vmem:[%s697 + $0x2ea] sm:$0xff]
    %v885 = vld [vmem:[%s697 + $0x2f2] sm:$0xff]
    %v886 = vld [vmem:[%s697 + $0x302] sm:$0xff]
    %v887 = vld [vmem:[%s697 + $0x30a] sm:$0xff]
    %v888 = vld [vmem:[%s697 + $0x31a] sm:$0xff]
    %v889 = vld [vmem:[%s697 + $0x322] sm:$0xff]
    %954 = vrot.lane.b32.xlu0 %v377, 1
    %v955 = vpop.permute.xlu0 %954
    %956 = vrot.lane.b32.xlu0 %v378, 1
    %v957 = vpop.permute.xlu0 %956
    %958 = vrot.lane.b32.xlu0 %v379, 1
    %v959 = vpop.permute.xlu0 %958
    %960 = vrot.lane.b32.xlu0 %v380, 1
    %v961 = vpop.permute.xlu0 %960
    %962 = vrot.lane.b32.xlu0 %v381, 1
    %v963 = vpop.permute.xlu0 %962
    %964 = vrot.lane.b32.xlu0 %v382, 1
    %v965 = vpop.permute.xlu0 %964
    %966 = vrot.lane.b32.xlu0 %v383, 1
    %v967 = vpop.permute.xlu0 %966
    %968 = vrot.lane.b32.xlu0 %v384, 1
    %v969 = vpop.permute.xlu0 %968
    %970 = vrot.lane.b32.xlu0 %v385, 1
    %v971 = vpop.permute.xlu0 %970
    %972 = vrot.lane.b32.xlu0 %v386, 1
    %v973 = vpop.permute.xlu0 %972
    %974 = vrot.lane.b32.xlu0 %v387, 1
    %v975 = vpop.permute.xlu0 %974
    %976 = vrot.lane.b32.xlu0 %v388, 1
    %v977 = vpop.permute.xlu0 %976
    %978 = vrot.lane.b32.xlu0 %v389, 1
    %v979 = vpop.permute.xlu0 %978
    %980 = vrot.lane.b32.xlu0 %v390, 1
    %v981 = vpop.permute.xlu0 %980
    %982 = vrot.lane.b32.xlu0 %v391, 1
    %v983 = vpop.permute.xlu0 %982
    %984 = vrot.lane.b32.xlu0 %v392, 1
    %v985 = vpop.permute.xlu0 %984
    %986 = vrot.lane.b32.xlu0 %v393, 1
    %v987 = vpop.permute.xlu0 %986
    %988 = vrot.lane.b32.xlu0 %v394, 1
    %v989 = vpop.permute.xlu0 %988
    %990 = vrot.lane.b32.xlu0 %v395, 1
    %v991 = vpop.permute.xlu0 %990
    %992 = vrot.lane.b32.xlu0 %v396, 1
    %v993 = vpop.permute.xlu0 %992
    %994 = vrot.lane.b32.xlu0 %v397, 1
    %v995 = vpop.permute.xlu0 %994
    %996 = vrot.lane.b32.xlu0 %v398, 1
    %v997 = vpop.permute.xlu0 %996
    %998 = vrot.lane.b32.xlu0 %v399, 1
    %v999 = vpop.permute.xlu0 %998
    %1000 = vrot.lane.b32.xlu0 %v400, 1
    %v1001 = vpop.permute.xlu0 %1000
    %1002 = vrot.lane.b32.xlu0 %v401, 1
    %v1003 = vpop.permute.xlu0 %1002
    %1004 = vrot.lane.b32.xlu0 %v402, 1
    %v1005 = vpop.permute.xlu0 %1004
    %1006 = vrot.lane.b32.xlu0 %v403, 1
    %v1007 = vpop.permute.xlu0 %1006
    %1008 = vrot.lane.b32.xlu0 %v404, 1
    %v1009 = vpop.permute.xlu0 %1008
    %1010 = vrot.lane.b32.xlu0 %v405, 1
    %v1011 = vpop.permute.xlu0 %1010
    %1012 = vrot.lane.b32.xlu0 %v406, 1
    %v1013 = vpop.permute.xlu0 %1012
    %1014 = vrot.lane.b32.xlu0 %v407, 1
    %v1015 = vpop.permute.xlu0 %1014
    %1016 = vrot.lane.b32.xlu0 %v408, 1
    %v1017 = vpop.permute.xlu0 %1016
    %1018 = vrot.lane.b32.xlu0 %v409, 1
    %v1019 = vpop.permute.xlu0 %1018
    %1020 = vrot.lane.b32.xlu0 %v410, 1
    %v1021 = vpop.permute.xlu0 %1020
    %1022 = vrot.lane.b32.xlu0 %v411, 1
    %v1023 = vpop.permute.xlu0 %1022
    %1024 = vrot.lane.b32.xlu0 %v412, 1
    %v1025 = vpop.permute.xlu0 %1024
    %1026 = vrot.lane.b32.xlu0 %v413, 1
    %v1027 = vpop.permute.xlu0 %1026
    %1028 = vrot.lane.b32.xlu0 %v414, 1
    %v1029 = vpop.permute.xlu0 %1028
    %1030 = vrot.lane.b32.xlu0 %v415, 1
    %v1031 = vpop.permute.xlu0 %1030
    %1032 = vrot.lane.b32.xlu0 %v416, 1
    %v1033 = vpop.permute.xlu0 %1032
    %1034 = vrot.lane.b32.xlu0 %v417, 1
    %v1035 = vpop.permute.xlu0 %1034
    %1036 = vrot.lane.b32.xlu0 %v418, 1
    %v1037 = vpop.permute.xlu0 %1036
    %1038 = vrot.lane.b32.xlu0 %v419, 1
    %v1039 = vpop.permute.xlu0 %1038
    %1040 = vrot.lane.b32.xlu0 %v420, 1
    %v1041 = vpop.permute.xlu0 %1040
    %1042 = vrot.lane.b32.xlu0 %v421, 1
    %v1043 = vpop.permute.xlu0 %1042
    %1044 = vrot.lane.b32.xlu0 %v422, 1
    %v1045 = vpop.permute.xlu0 %1044
    %1046 = vrot.lane.b32.xlu0 %v423, 1
    %v1047 = vpop.permute.xlu0 %1046
    %1048 = vrot.lane.b32.xlu0 %v424, 1
    %v1049 = vpop.permute.xlu0 %1048
    %1050 = vrot.lane.b32.xlu0 %v425, 1
    %v1051 = vpop.permute.xlu0 %1050
    %1052 = vrot.lane.b32.xlu0 %v426, 1
    %v1053 = vpop.permute.xlu0 %1052
    %1054 = vrot.lane.b32.xlu0 %v427, 1
    %v1055 = vpop.permute.xlu0 %1054
    %1056 = vrot.lane.b32.xlu0 %v428, 1
    %v1057 = vpop.permute.xlu0 %1056
    %1058 = vrot.lane.b32.xlu0 %v429, 1
    %v1059 = vpop.permute.xlu0 %1058
    %1060 = vrot.lane.b32.xlu0 %v430, 1
    %v1061 = vpop.permute.xlu0 %1060
    %1062 = vrot.lane.b32.xlu0 %v431, 1
    %v1063 = vpop.permute.xlu0 %1062
    %1064 = vrot.lane.b32.xlu0 %v432, 1
    %v1065 = vpop.permute.xlu0 %1064
    %1066 = vrot.lane.b32.xlu0 %v433, 1
    %v1067 = vpop.permute.xlu0 %1066
    %1068 = vrot.lane.b32.xlu0 %v434, 1
    %v1069 = vpop.permute.xlu0 %1068
    %1070 = vrot.lane.b32.xlu0 %v435, 1
    %v1071 = vpop.permute.xlu0 %1070
    %1072 = vrot.lane.b32.xlu0 %v436, 1
    %v1073 = vpop.permute.xlu0 %1072
    %1074 = vrot.lane.b32.xlu0 %v437, 1
    %v1075 = vpop.permute.xlu0 %1074
    %1076 = vrot.lane.b32.xlu0 %v438, 1
    %v1077 = vpop.permute.xlu0 %1076
    %1078 = vrot.lane.b32.xlu0 %v439, 1
    %v1079 = vpop.permute.xlu0 %1078
    %1080 = vrot.lane.b32.xlu0 %v440, 1
    %v1081 = vpop.permute.xlu0 %1080
    %1210 = vrot.lane.b32.xlu0 %v441, 2
    %v1211 = vpop.permute.xlu0 %1210
    %1212 = vrot.lane.b32.xlu0 %v442, 2
    %v1213 = vpop.permute.xlu0 %1212
    %1214 = vrot.lane.b32.xlu0 %v443, 2
    %v1215 = vpop.permute.xlu0 %1214
    %1216 = vrot.lane.b32.xlu0 %v444, 2
    %v1217 = vpop.permute.xlu0 %1216
    %1218 = vrot.lane.b32.xlu0 %v445, 2
    %v1219 = vpop.permute.xlu0 %1218
    %1220 = vrot.lane.b32.xlu0 %v446, 2
    %v1221 = vpop.permute.xlu0 %1220
    %1222 = vrot.lane.b32.xlu0 %v447, 2
    %v1223 = vpop.permute.xlu0 %1222
    %1224 = vrot.lane.b32.xlu0 %v448, 2
    %v1225 = vpop.permute.xlu0 %1224
    %1226 = vrot.lane.b32.xlu0 %v449, 2
    %v1227 = vpop.permute.xlu0 %1226
    %1228 = vrot.lane.b32.xlu0 %v450, 2
    %v1229 = vpop.permute.xlu0 %1228
    %1230 = vrot.lane.b32.xlu0 %v451, 2
    %v1231 = vpop.permute.xlu0 %1230
    %1232 = vrot.lane.b32.xlu0 %v452, 2
    %v1233 = vpop.permute.xlu0 %1232
    %1234 = vrot.lane.b32.xlu0 %v453, 2
    %v1235 = vpop.permute.xlu0 %1234
    %1236 = vrot.lane.b32.xlu0 %v454, 2
    %v1237 = vpop.permute.xlu0 %1236
    %1238 = vrot.lane.b32.xlu0 %v455, 2
    %v1239 = vpop.permute.xlu0 %1238
    %1240 = vrot.lane.b32.xlu0 %v456, 2
    %v1241 = vpop.permute.xlu0 %1240
    %1242 = vrot.lane.b32.xlu0 %v457, 2
    %v1243 = vpop.permute.xlu0 %1242
    %1244 = vrot.lane.b32.xlu0 %v458, 2
    %v1245 = vpop.permute.xlu0 %1244
    %1246 = vrot.lane.b32.xlu0 %v459, 2
    %v1247 = vpop.permute.xlu0 %1246
    %1248 = vrot.lane.b32.xlu0 %v460, 2
    %v1249 = vpop.permute.xlu0 %1248
    %1250 = vrot.lane.b32.xlu0 %v461, 2
    %v1251 = vpop.permute.xlu0 %1250
    %1252 = vrot.lane.b32.xlu0 %v462, 2
    %v1253 = vpop.permute.xlu0 %1252
    %1254 = vrot.lane.b32.xlu0 %v463, 2
    %v1255 = vpop.permute.xlu0 %1254
    %1256 = vrot.lane.b32.xlu0 %v464, 2
    %v1257 = vpop.permute.xlu0 %1256
    %1258 = vrot.lane.b32.xlu0 %v465, 2
    %v1259 = vpop.permute.xlu0 %1258
    %1260 = vrot.lane.b32.xlu0 %v466, 2
    %v1261 = vpop.permute.xlu0 %1260
    %1262 = vrot.lane.b32.xlu0 %v467, 2
    %v1263 = vpop.permute.xlu0 %1262
    %1264 = vrot.lane.b32.xlu0 %v468, 2
    %v1265 = vpop.permute.xlu0 %1264
    %1266 = vrot.lane.b32.xlu0 %v469, 2
    %v1267 = vpop.permute.xlu0 %1266
    %1268 = vrot.lane.b32.xlu0 %v470, 2
    %v1269 = vpop.permute.xlu0 %1268
    %1270 = vrot.lane.b32.xlu0 %v471, 2
    %v1271 = vpop.permute.xlu0 %1270
    %1272 = vrot.lane.b32.xlu0 %v472, 2
    %v1273 = vpop.permute.xlu0 %1272
    %1274 = vrot.lane.b32.xlu0 %v473, 2
    %v1275 = vpop.permute.xlu0 %1274
    %1276 = vrot.lane.b32.xlu0 %v474, 2
    %v1277 = vpop.permute.xlu0 %1276
    %1278 = vrot.lane.b32.xlu0 %v475, 2
    %v1279 = vpop.permute.xlu0 %1278
    %1280 = vrot.lane.b32.xlu0 %v476, 2
    %v1281 = vpop.permute.xlu0 %1280
    %1282 = vrot.lane.b32.xlu0 %v477, 2
    %v1283 = vpop.permute.xlu0 %1282
    %1284 = vrot.lane.b32.xlu0 %v478, 2
    %v1285 = vpop.permute.xlu0 %1284
    %1286 = vrot.lane.b32.xlu0 %v479, 2
    %v1287 = vpop.permute.xlu0 %1286
    %1288 = vrot.lane.b32.xlu0 %v480, 2
    %v1289 = vpop.permute.xlu0 %1288
    %1290 = vrot.lane.b32.xlu0 %v481, 2
    %v1291 = vpop.permute.xlu0 %1290
    %1292 = vrot.lane.b32.xlu0 %v482, 2
    %v1293 = vpop.permute.xlu0 %1292
    %1294 = vrot.lane.b32.xlu0 %v483, 2
    %v1295 = vpop.permute.xlu0 %1294
    %1296 = vrot.lane.b32.xlu0 %v484, 2
    %v1297 = vpop.permute.xlu0 %1296
    %1298 = vrot.lane.b32.xlu0 %v485, 2
    %v1299 = vpop.permute.xlu0 %1298
    %1300 = vrot.lane.b32.xlu0 %v486, 2
    %v1301 = vpop.permute.xlu0 %1300
    %1302 = vrot.lane.b32.xlu0 %v487, 2
    %v1303 = vpop.permute.xlu0 %1302
    %1304 = vrot.lane.b32.xlu0 %v488, 2
    %v1305 = vpop.permute.xlu0 %1304
    %1306 = vrot.lane.b32.xlu0 %v489, 2
    %v1307 = vpop.permute.xlu0 %1306
    %1308 = vrot.lane.b32.xlu0 %v490, 2
    %v1309 = vpop.permute.xlu0 %1308
    %1310 = vrot.lane.b32.xlu0 %v491, 2
    %v1311 = vpop.permute.xlu0 %1310
    %1312 = vrot.lane.b32.xlu0 %v492, 2
    %v1313 = vpop.permute.xlu0 %1312
    %1314 = vrot.lane.b32.xlu0 %v493, 2
    %v1315 = vpop.permute.xlu0 %1314
    %1316 = vrot.lane.b32.xlu0 %v494, 2
    %v1317 = vpop.permute.xlu0 %1316
    %1318 = vrot.lane.b32.xlu0 %v495, 2
    %v1319 = vpop.permute.xlu0 %1318
    %1320 = vrot.lane.b32.xlu0 %v496, 2
    %v1321 = vpop.permute.xlu0 %1320
    %1322 = vrot.lane.b32.xlu0 %v497, 2
    %v1323 = vpop.permute.xlu0 %1322
    %1324 = vrot.lane.b32.xlu0 %v498, 2
    %v1325 = vpop.permute.xlu0 %1324
    %1326 = vrot.lane.b32.xlu0 %v499, 2
    %v1327 = vpop.permute.xlu0 %1326
    %1328 = vrot.lane.b32.xlu0 %v500, 2
    %v1329 = vpop.permute.xlu0 %1328
    %1330 = vrot.lane.b32.xlu0 %v501, 2
    %v1331 = vpop.permute.xlu0 %1330
    %1332 = vrot.lane.b32.xlu0 %v502, 2
    %v1333 = vpop.permute.xlu0 %1332
    %1334 = vrot.lane.b32.xlu0 %v503, 2
    %v1335 = vpop.permute.xlu0 %1334
    %1336 = vrot.lane.b32.xlu0 %v504, 2
    %v1337 = vpop.permute.xlu0 %1336
    %1466 = vrot.lane.b32.xlu0 %v505, 3
    %v1467 = vpop.permute.xlu0 %1466
    %1468 = vrot.lane.b32.xlu0 %v506, 3
    %v1469 = vpop.permute.xlu0 %1468
    %1470 = vrot.lane.b32.xlu0 %v507, 3
    %v1471 = vpop.permute.xlu0 %1470
    %1472 = vrot.lane.b32.xlu0 %v508, 3
    %v1473 = vpop.permute.xlu0 %1472
    %1474 = vrot.lane.b32.xlu0 %v509, 3
    %v1475 = vpop.permute.xlu0 %1474
    %1476 = vrot.lane.b32.xlu0 %v510, 3
    %v1477 = vpop.permute.xlu0 %1476
    %1478 = vrot.lane.b32.xlu0 %v511, 3
    %v1479 = vpop.permute.xlu0 %1478
    %1480 = vrot.lane.b32.xlu0 %v512, 3
    %v1481 = vpop.permute.xlu0 %1480
    %1482 = vrot.lane.b32.xlu0 %v513, 3
    %v1483 = vpop.permute.xlu0 %1482
    %1484 = vrot.lane.b32.xlu0 %v514, 3
    %v1485 = vpop.permute.xlu0 %1484
    %1486 = vrot.lane.b32.xlu0 %v515, 3
    %v1487 = vpop.permute.xlu0 %1486
    %1488 = vrot.lane.b32.xlu0 %v516, 3
    %v1489 = vpop.permute.xlu0 %1488
    %1490 = vrot.lane.b32.xlu0 %v517, 3
    %v1491 = vpop.permute.xlu0 %1490
    %1492 = vrot.lane.b32.xlu0 %v518, 3
    %v1493 = vpop.permute.xlu0 %1492
    %1494 = vrot.lane.b32.xlu0 %v519, 3
    %v1495 = vpop.permute.xlu0 %1494
    %1496 = vrot.lane.b32.xlu0 %v520, 3
    %v1497 = vpop.permute.xlu0 %1496
    %1498 = vrot.lane.b32.xlu0 %v521, 3
    %v1499 = vpop.permute.xlu0 %1498
    %1500 = vrot.lane.b32.xlu0 %v522, 3
    %v1501 = vpop.permute.xlu0 %1500
    %1502 = vrot.lane.b32.xlu0 %v523, 3
    %v1503 = vpop.permute.xlu0 %1502
    %1504 = vrot.lane.b32.xlu0 %v524, 3
    %v1505 = vpop.permute.xlu0 %1504
    %1506 = vrot.lane.b32.xlu0 %v525, 3
    %v1507 = vpop.permute.xlu0 %1506
    %1508 = vrot.lane.b32.xlu0 %v526, 3
    %v1509 = vpop.permute.xlu0 %1508
    %1510 = vrot.lane.b32.xlu0 %v527, 3
    %v1511 = vpop.permute.xlu0 %1510
    %1512 = vrot.lane.b32.xlu0 %v528, 3
    %v1513 = vpop.permute.xlu0 %1512
    %1514 = vrot.lane.b32.xlu0 %v529, 3
    %v1515 = vpop.permute.xlu0 %1514
    %1516 = vrot.lane.b32.xlu0 %v530, 3
    %v1517 = vpop.permute.xlu0 %1516
    %1518 = vrot.lane.b32.xlu0 %v531, 3
    %v1519 = vpop.permute.xlu0 %1518
    %1520 = vrot.lane.b32.xlu0 %v532, 3
    %v1521 = vpop.permute.xlu0 %1520
    %1522 = vrot.lane.b32.xlu0 %v533, 3
    %v1523 = vpop.permute.xlu0 %1522
    %1524 = vrot.lane.b32.xlu0 %v534, 3
    %v1525 = vpop.permute.xlu0 %1524
    %1526 = vrot.lane.b32.xlu0 %v535, 3
    %v1527 = vpop.permute.xlu0 %1526
    %1528 = vrot.lane.b32.xlu0 %v536, 3
    %v1529 = vpop.permute.xlu0 %1528
    %1530 = vrot.lane.b32.xlu0 %v537, 3
    %v1531 = vpop.permute.xlu0 %1530
    %1532 = vrot.lane.b32.xlu0 %v538, 3
    %v1533 = vpop.permute.xlu0 %1532
    %1534 = vrot.lane.b32.xlu0 %v539, 3
    %v1535 = vpop.permute.xlu0 %1534
    %1536 = vrot.lane.b32.xlu0 %v540, 3
    %v1537 = vpop.permute.xlu0 %1536
    %1538 = vrot.lane.b32.xlu0 %v541, 3
    %v1539 = vpop.permute.xlu0 %1538
    %1540 = vrot.lane.b32.xlu0 %v542, 3
    %v1541 = vpop.permute.xlu0 %1540
    %1542 = vrot.lane.b32.xlu0 %v543, 3
    %v1543 = vpop.permute.xlu0 %1542
    %1544 = vrot.lane.b32.xlu0 %v544, 3
    %v1545 = vpop.permute.xlu0 %1544
    %1546 = vrot.lane.b32.xlu0 %v545, 3
    %v1547 = vpop.permute.xlu0 %1546
    %1548 = vrot.lane.b32.xlu0 %v546, 3
    %v1549 = vpop.permute.xlu0 %1548
    %1550 = vrot.lane.b32.xlu0 %v547, 3
    %v1551 = vpop.permute.xlu0 %1550
    %1552 = vrot.lane.b32.xlu0 %v548, 3
    %v1553 = vpop.permute.xlu0 %1552
    %1554 = vrot.lane.b32.xlu0 %v549, 3
    %v1555 = vpop.permute.xlu0 %1554
    %1556 = vrot.lane.b32.xlu0 %v550, 3
    %v1557 = vpop.permute.xlu0 %1556
    %1558 = vrot.lane.b32.xlu0 %v551, 3
    %v1559 = vpop.permute.xlu0 %1558
    %1560 = vrot.lane.b32.xlu0 %v552, 3
    %v1561 = vpop.permute.xlu0 %1560
    %1562 = vrot.lane.b32.xlu0 %v553, 3
    %v1563 = vpop.permute.xlu0 %1562
    %1564 = vrot.lane.b32.xlu0 %v554, 3
    %v1565 = vpop.permute.xlu0 %1564
    %1566 = vrot.lane.b32.xlu0 %v555, 3
    %v1567 = vpop.permute.xlu0 %1566
    %1568 = vrot.lane.b32.xlu0 %v556, 3
    %v1569 = vpop.permute.xlu0 %1568
    %1570 = vrot.lane.b32.xlu0 %v557, 3
    %v1571 = vpop.permute.xlu0 %1570
    %1572 = vrot.lane.b32.xlu0 %v558, 3
    %v1573 = vpop.permute.xlu0 %1572
    %1574 = vrot.lane.b32.xlu0 %v559, 3
    %v1575 = vpop.permute.xlu0 %1574
    %1576 = vrot.lane.b32.xlu0 %v560, 3
    %v1577 = vpop.permute.xlu0 %1576
    %1578 = vrot.lane.b32.xlu0 %v561, 3
    %v1579 = vpop.permute.xlu0 %1578
    %1580 = vrot.lane.b32.xlu0 %v562, 3
    %v1581 = vpop.permute.xlu0 %1580
    %1582 = vrot.lane.b32.xlu0 %v563, 3
    %v1583 = vpop.permute.xlu0 %1582
    %1584 = vrot.lane.b32.xlu0 %v564, 3
    %v1585 = vpop.permute.xlu0 %1584
    %1586 = vrot.lane.b32.xlu0 %v565, 3
    %v1587 = vpop.permute.xlu0 %1586
    %1588 = vrot.lane.b32.xlu0 %v566, 3
    %v1589 = vpop.permute.xlu0 %1588
    %1590 = vrot.lane.b32.xlu0 %v567, 3
    %v1591 = vpop.permute.xlu0 %1590
    %1592 = vrot.lane.b32.xlu0 %v568, 3
    %v1593 = vpop.permute.xlu0 %1592
    %1722 = vrot.lane.b32.xlu0 %v569, 4
    %v1723 = vpop.permute.xlu0 %1722
    %1724 = vrot.lane.b32.xlu0 %v570, 4
    %v1725 = vpop.permute.xlu0 %1724
    %1726 = vrot.lane.b32.xlu0 %v571, 4
    %v1727 = vpop.permute.xlu0 %1726
    %1728 = vrot.lane.b32.xlu0 %v572, 4
    %v1729 = vpop.permute.xlu0 %1728
    %1730 = vrot.lane.b32.xlu0 %v573, 4
    %v1731 = vpop.permute.xlu0 %1730
    %1732 = vrot.lane.b32.xlu0 %v574, 4
    %v1733 = vpop.permute.xlu0 %1732
    %1734 = vrot.lane.b32.xlu0 %v575, 4
    %v1735 = vpop.permute.xlu0 %1734
    %1736 = vrot.lane.b32.xlu0 %v576, 4
    %v1737 = vpop.permute.xlu0 %1736
    %1738 = vrot.lane.b32.xlu0 %v577, 4
    %v1739 = vpop.permute.xlu0 %1738
    %1740 = vrot.lane.b32.xlu0 %v578, 4
    %v1741 = vpop.permute.xlu0 %1740
    %1742 = vrot.lane.b32.xlu0 %v579, 4
    %v1743 = vpop.permute.xlu0 %1742
    %1744 = vrot.lane.b32.xlu0 %v580, 4
    %v1745 = vpop.permute.xlu0 %1744
    %1746 = vrot.lane.b32.xlu0 %v581, 4
    %v1747 = vpop.permute.xlu0 %1746
    %1748 = vrot.lane.b32.xlu0 %v582, 4
    %v1749 = vpop.permute.xlu0 %1748
    %1750 = vrot.lane.b32.xlu0 %v583, 4
    %v1751 = vpop.permute.xlu0 %1750
    %1752 = vrot.lane.b32.xlu0 %v584, 4
    %v1753 = vpop.permute.xlu0 %1752
    %1754 = vrot.lane.b32.xlu0 %v585, 4
    %v1755 = vpop.permute.xlu0 %1754
    %1756 = vrot.lane.b32.xlu0 %v586, 4
    %v1757 = vpop.permute.xlu0 %1756
    %1758 = vrot.lane.b32.xlu0 %v587, 4
    %v1759 = vpop.permute.xlu0 %1758
    %1760 = vrot.lane.b32.xlu0 %v588, 4
    %v1761 = vpop.permute.xlu0 %1760
    %1762 = vrot.lane.b32.xlu0 %v589, 4
    %v1763 = vpop.permute.xlu0 %1762
    %1764 = vrot.lane.b32.xlu0 %v590, 4
    %v1765 = vpop.permute.xlu0 %1764
    %1766 = vrot.lane.b32.xlu0 %v591, 4
    %v1767 = vpop.permute.xlu0 %1766
    %1768 = vrot.lane.b32.xlu0 %v592, 4
    %v1769 = vpop.permute.xlu0 %1768
    %1770 = vrot.lane.b32.xlu0 %v593, 4
    %v1771 = vpop.permute.xlu0 %1770
    %1772 = vrot.lane.b32.xlu0 %v594, 4
    %v1773 = vpop.permute.xlu0 %1772
    %1774 = vrot.lane.b32.xlu0 %v595, 4
    %v1775 = vpop.permute.xlu0 %1774
    %1776 = vrot.lane.b32.xlu0 %v596, 4
    %v1777 = vpop.permute.xlu0 %1776
    %1778 = vrot.lane.b32.xlu0 %v597, 4
    %v1779 = vpop.permute.xlu0 %1778
    %1780 = vrot.lane.b32.xlu0 %v598, 4
    %v1781 = vpop.permute.xlu0 %1780
    %1782 = vrot.lane.b32.xlu0 %v599, 4
    %v1783 = vpop.permute.xlu0 %1782
    %1784 = vrot.lane.b32.xlu0 %v600, 4
    %v1785 = vpop.permute.xlu0 %1784
    %1786 = vrot.lane.b32.xlu0 %v601, 4
    %v1787 = vpop.permute.xlu0 %1786
    %1788 = vrot.lane.b32.xlu0 %v602, 4
    %v1789 = vpop.permute.xlu0 %1788
    %1790 = vrot.lane.b32.xlu0 %v603, 4
    %v1791 = vpop.permute.xlu0 %1790
    %1792 = vrot.lane.b32.xlu0 %v604, 4
    %v1793 = vpop.permute.xlu0 %1792
    %1794 = vrot.lane.b32.xlu0 %v605, 4
    %v1795 = vpop.permute.xlu0 %1794
    %1796 = vrot.lane.b32.xlu0 %v606, 4
    %v1797 = vpop.permute.xlu0 %1796
    %1798 = vrot.lane.b32.xlu0 %v607, 4
    %v1799 = vpop.permute.xlu0 %1798
    %1800 = vrot.lane.b32.xlu0 %v608, 4
    %v1801 = vpop.permute.xlu0 %1800
    %1802 = vrot.lane.b32.xlu0 %v609, 4
    %v1803 = vpop.permute.xlu0 %1802
    %1804 = vrot.lane.b32.xlu0 %v610, 4
    %v1805 = vpop.permute.xlu0 %1804
    %1806 = vrot.lane.b32.xlu0 %v611, 4
    %v1807 = vpop.permute.xlu0 %1806
    %1808 = vrot.lane.b32.xlu0 %v612, 4
    %v1809 = vpop.permute.xlu0 %1808
    %1810 = vrot.lane.b32.xlu0 %v613, 4
    %v1811 = vpop.permute.xlu0 %1810
    %1812 = vrot.lane.b32.xlu0 %v614, 4
    %v1813 = vpop.permute.xlu0 %1812
    %1814 = vrot.lane.b32.xlu0 %v615, 4
    %v1815 = vpop.permute.xlu0 %1814
    %1816 = vrot.lane.b32.xlu0 %v616, 4
    %v1817 = vpop.permute.xlu0 %1816
    %1818 = vrot.lane.b32.xlu0 %v617, 4
    %v1819 = vpop.permute.xlu0 %1818
    %1820 = vrot.lane.b32.xlu0 %v618, 4
    %v1821 = vpop.permute.xlu0 %1820
    %1822 = vrot.lane.b32.xlu0 %v619, 4
    %v1823 = vpop.permute.xlu0 %1822
    %1824 = vrot.lane.b32.xlu0 %v620, 4
    %v1825 = vpop.permute.xlu0 %1824
    %1826 = vrot.lane.b32.xlu0 %v621, 4
    %v1827 = vpop.permute.xlu0 %1826
    %1828 = vrot.lane.b32.xlu0 %v622, 4
    %v1829 = vpop.permute.xlu0 %1828
    %1830 = vrot.lane.b32.xlu0 %v623, 4
    %v1831 = vpop.permute.xlu0 %1830
    %1832 = vrot.lane.b32.xlu0 %v624, 4
    %v1833 = vpop.permute.xlu0 %1832
    %1834 = vrot.lane.b32.xlu0 %v625, 4
    %v1835 = vpop.permute.xlu0 %1834
    %1836 = vrot.lane.b32.xlu0 %v626, 4
    %v1837 = vpop.permute.xlu0 %1836
    %1838 = vrot.lane.b32.xlu0 %v627, 4
    %v1839 = vpop.permute.xlu0 %1838
    %1840 = vrot.lane.b32.xlu0 %v628, 4
    %v1841 = vpop.permute.xlu0 %1840
    %1842 = vrot.lane.b32.xlu0 %v629, 4
    %v1843 = vpop.permute.xlu0 %1842
    %1844 = vrot.lane.b32.xlu0 %v630, 4
    %v1845 = vpop.permute.xlu0 %1844
    %1846 = vrot.lane.b32.xlu0 %v631, 4
    %v1847 = vpop.permute.xlu0 %1846
    %1848 = vrot.lane.b32.xlu0 %v632, 4
    %v1849 = vpop.permute.xlu0 %1848
    %1978 = vrot.lane.b32.xlu0 %v633, 5
    %v1979 = vpop.permute.xlu0 %1978
    %1980 = vrot.lane.b32.xlu0 %v634, 5
    %v1981 = vpop.permute.xlu0 %1980
    %1982 = vrot.lane.b32.xlu0 %v635, 5
    %v1983 = vpop.permute.xlu0 %1982
    %1984 = vrot.lane.b32.xlu0 %v636, 5
    %v1985 = vpop.permute.xlu0 %1984
    %1986 = vrot.lane.b32.xlu0 %v637, 5
    %v1987 = vpop.permute.xlu0 %1986
    %1988 = vrot.lane.b32.xlu0 %v638, 5
    %v1989 = vpop.permute.xlu0 %1988
    %1990 = vrot.lane.b32.xlu0 %v639, 5
    %v1991 = vpop.permute.xlu0 %1990
    %1992 = vrot.lane.b32.xlu0 %v640, 5
    %v1993 = vpop.permute.xlu0 %1992
    %1994 = vrot.lane.b32.xlu0 %v641, 5
    %v1995 = vpop.permute.xlu0 %1994
    %1996 = vrot.lane.b32.xlu0 %v642, 5
    %v1997 = vpop.permute.xlu0 %1996
    %1998 = vrot.lane.b32.xlu0 %v643, 5
    %v1999 = vpop.permute.xlu0 %1998
    %2000 = vrot.lane.b32.xlu0 %v644, 5
    %v2001 = vpop.permute.xlu0 %2000
    %2002 = vrot.lane.b32.xlu0 %v645, 5
    %v2003 = vpop.permute.xlu0 %2002
    %2004 = vrot.lane.b32.xlu0 %v646, 5
    %v2005 = vpop.permute.xlu0 %2004
    %2006 = vrot.lane.b32.xlu0 %v647, 5
    %v2007 = vpop.permute.xlu0 %2006
    %2008 = vrot.lane.b32.xlu0 %v648, 5
    %v2009 = vpop.permute.xlu0 %2008
    %2010 = vrot.lane.b32.xlu0 %v649, 5
    %v2011 = vpop.permute.xlu0 %2010
    %2012 = vrot.lane.b32.xlu0 %v650, 5
    %v2013 = vpop.permute.xlu0 %2012
    %2014 = vrot.lane.b32.xlu0 %v651, 5
    %v2015 = vpop.permute.xlu0 %2014
    %2016 = vrot.lane.b32.xlu0 %v652, 5
    %v2017 = vpop.permute.xlu0 %2016
    %2018 = vrot.lane.b32.xlu0 %v653, 5
    %v2019 = vpop.permute.xlu0 %2018
    %2020 = vrot.lane.b32.xlu0 %v654, 5
    %v2021 = vpop.permute.xlu0 %2020
    %2022 = vrot.lane.b32.xlu0 %v655, 5
    %v2023 = vpop.permute.xlu0 %2022
    %2024 = vrot.lane.b32.xlu0 %v656, 5
    %v2025 = vpop.permute.xlu0 %2024
    %2026 = vrot.lane.b32.xlu0 %v657, 5
    %v2027 = vpop.permute.xlu0 %2026
    %2028 = vrot.lane.b32.xlu0 %v658, 5
    %v2029 = vpop.permute.xlu0 %2028
    %2030 = vrot.lane.b32.xlu0 %v659, 5
    %v2031 = vpop.permute.xlu0 %2030
    %2032 = vrot.lane.b32.xlu0 %v660, 5
    %v2033 = vpop.permute.xlu0 %2032
    %2034 = vrot.lane.b32.xlu0 %v661, 5
    %v2035 = vpop.permute.xlu0 %2034
    %2036 = vrot.lane.b32.xlu0 %v662, 5
    %v2037 = vpop.permute.xlu0 %2036
    %2038 = vrot.lane.b32.xlu0 %v663, 5
    %v2039 = vpop.permute.xlu0 %2038
    %2040 = vrot.lane.b32.xlu0 %v664, 5
    %v2041 = vpop.permute.xlu0 %2040
    %2042 = vrot.lane.b32.xlu0 %v665, 5
    %v2043 = vpop.permute.xlu0 %2042
    %2044 = vrot.lane.b32.xlu0 %v666, 5
    %v2045 = vpop.permute.xlu0 %2044
    %2046 = vrot.lane.b32.xlu0 %v667, 5
    %v2047 = vpop.permute.xlu0 %2046
    %2048 = vrot.lane.b32.xlu0 %v668, 5
    %v2049 = vpop.permute.xlu0 %2048
    %2050 = vrot.lane.b32.xlu0 %v669, 5
    %v2051 = vpop.permute.xlu0 %2050
    %2052 = vrot.lane.b32.xlu0 %v670, 5
    %v2053 = vpop.permute.xlu0 %2052
    %2054 = vrot.lane.b32.xlu0 %v671, 5
    %v2055 = vpop.permute.xlu0 %2054
    %2056 = vrot.lane.b32.xlu0 %v672, 5
    %v2057 = vpop.permute.xlu0 %2056
    %2058 = vrot.lane.b32.xlu0 %v673, 5
    %v2059 = vpop.permute.xlu0 %2058
    %2060 = vrot.lane.b32.xlu0 %v674, 5
    %v2061 = vpop.permute.xlu0 %2060
    %2062 = vrot.lane.b32.xlu0 %v675, 5
    %v2063 = vpop.permute.xlu0 %2062
    %2064 = vrot.lane.b32.xlu0 %v676, 5
    %v2065 = vpop.permute.xlu0 %2064
    %2066 = vrot.lane.b32.xlu0 %v677, 5
    %v2067 = vpop.permute.xlu0 %2066
    %2068 = vrot.lane.b32.xlu0 %v678, 5
    %v2069 = vpop.permute.xlu0 %2068
    %2070 = vrot.lane.b32.xlu0 %v679, 5
    %v2071 = vpop.permute.xlu0 %2070
    %2072 = vrot.lane.b32.xlu0 %v680, 5
    %v2073 = vpop.permute.xlu0 %2072
    %2074 = vrot.lane.b32.xlu0 %v681, 5
    %v2075 = vpop.permute.xlu0 %2074
    %2076 = vrot.lane.b32.xlu0 %v682, 5
    %v2077 = vpop.permute.xlu0 %2076
    %2078 = vrot.lane.b32.xlu0 %v683, 5
    %v2079 = vpop.permute.xlu0 %2078
    %2080 = vrot.lane.b32.xlu0 %v684, 5
    %v2081 = vpop.permute.xlu0 %2080
    %2082 = vrot.lane.b32.xlu0 %v685, 5
    %v2083 = vpop.permute.xlu0 %2082
    %2084 = vrot.lane.b32.xlu0 %v686, 5
    %v2085 = vpop.permute.xlu0 %2084
    %2086 = vrot.lane.b32.xlu0 %v687, 5
    %v2087 = vpop.permute.xlu0 %2086
    %2088 = vrot.lane.b32.xlu0 %v688, 5
    %v2089 = vpop.permute.xlu0 %2088
    %2090 = vrot.lane.b32.xlu0 %v689, 5
    %v2091 = vpop.permute.xlu0 %2090
    %2092 = vrot.lane.b32.xlu0 %v690, 5
    %v2093 = vpop.permute.xlu0 %2092
    %2094 = vrot.lane.b32.xlu0 %v691, 5
    %v2095 = vpop.permute.xlu0 %2094
    %2096 = vrot.lane.b32.xlu0 %v692, 5
    %v2097 = vpop.permute.xlu0 %2096
    %2098 = vrot.lane.b32.xlu0 %v693, 5
    %v2099 = vpop.permute.xlu0 %2098
    %2100 = vrot.lane.b32.xlu0 %v694, 5
    %v2101 = vpop.permute.xlu0 %2100
    %2102 = vrot.lane.b32.xlu0 %v695, 5
    %v2103 = vpop.permute.xlu0 %2102
    %2104 = vrot.lane.b32.xlu0 %v696, 5
    %v2105 = vpop.permute.xlu0 %2104
    %2234 = vrot.lane.b32.xlu0 %v698, 6
    %v2235 = vpop.permute.xlu0 %2234
    %2236 = vrot.lane.b32.xlu0 %v699, 6
    %v2237 = vpop.permute.xlu0 %2236
    %2238 = vrot.lane.b32.xlu0 %v700, 6
    %v2239 = vpop.permute.xlu0 %2238
    %2240 = vrot.lane.b32.xlu0 %v701, 6
    %v2241 = vpop.permute.xlu0 %2240
    %2242 = vrot.lane.b32.xlu0 %v702, 6
    %v2243 = vpop.permute.xlu0 %2242
    %2244 = vrot.lane.b32.xlu0 %v703, 6
    %v2245 = vpop.permute.xlu0 %2244
    %2246 = vrot.lane.b32.xlu0 %v704, 6
    %v2247 = vpop.permute.xlu0 %2246
    %2248 = vrot.lane.b32.xlu0 %v705, 6
    %v2249 = vpop.permute.xlu0 %2248
    %2250 = vrot.lane.b32.xlu0 %v706, 6
    %v2251 = vpop.permute.xlu0 %2250
    %2252 = vrot.lane.b32.xlu0 %v707, 6
    %v2253 = vpop.permute.xlu0 %2252
    %2254 = vrot.lane.b32.xlu0 %v708, 6
    %v2255 = vpop.permute.xlu0 %2254
    %2256 = vrot.lane.b32.xlu0 %v709, 6
    %v2257 = vpop.permute.xlu0 %2256
    %2258 = vrot.lane.b32.xlu0 %v710, 6
    %v2259 = vpop.permute.xlu0 %2258
    %2260 = vrot.lane.b32.xlu0 %v711, 6
    %v2261 = vpop.permute.xlu0 %2260
    %2262 = vrot.lane.b32.xlu0 %v712, 6
    %v2263 = vpop.permute.xlu0 %2262
    %2264 = vrot.lane.b32.xlu0 %v713, 6
    %v2265 = vpop.permute.xlu0 %2264
    %2266 = vrot.lane.b32.xlu0 %v714, 6
    %v2267 = vpop.permute.xlu0 %2266
    %2268 = vrot.lane.b32.xlu0 %v715, 6
    %v2269 = vpop.permute.xlu0 %2268
    %2270 = vrot.lane.b32.xlu0 %v716, 6
    %v2271 = vpop.permute.xlu0 %2270
    %2272 = vrot.lane.b32.xlu0 %v717, 6
    %v2273 = vpop.permute.xlu0 %2272
    %2274 = vrot.lane.b32.xlu0 %v718, 6
    %v2275 = vpop.permute.xlu0 %2274
    %2276 = vrot.lane.b32.xlu0 %v719, 6
    %v2277 = vpop.permute.xlu0 %2276
    %2278 = vrot.lane.b32.xlu0 %v720, 6
    %v2279 = vpop.permute.xlu0 %2278
    %2280 = vrot.lane.b32.xlu0 %v721, 6
    %v2281 = vpop.permute.xlu0 %2280
    %2282 = vrot.lane.b32.xlu0 %v722, 6
    %v2283 = vpop.permute.xlu0 %2282
    %2284 = vrot.lane.b32.xlu0 %v723, 6
    %v2285 = vpop.permute.xlu0 %2284
    %2286 = vrot.lane.b32.xlu0 %v724, 6
    %v2287 = vpop.permute.xlu0 %2286
    %2288 = vrot.lane.b32.xlu0 %v725, 6
    %v2289 = vpop.permute.xlu0 %2288
    %2290 = vrot.lane.b32.xlu0 %v726, 6
    %v2291 = vpop.permute.xlu0 %2290
    %2292 = vrot.lane.b32.xlu0 %v727, 6
    %v2293 = vpop.permute.xlu0 %2292
    %2294 = vrot.lane.b32.xlu0 %v728, 6
    %v2295 = vpop.permute.xlu0 %2294
    %2296 = vrot.lane.b32.xlu0 %v729, 6
    %v2297 = vpop.permute.xlu0 %2296
    %2298 = vrot.lane.b32.xlu0 %v730, 6
    %v2299 = vpop.permute.xlu0 %2298
    %2300 = vrot.lane.b32.xlu0 %v731, 6
    %v2301 = vpop.permute.xlu0 %2300
    %2302 = vrot.lane.b32.xlu0 %v732, 6
    %v2303 = vpop.permute.xlu0 %2302
    %2304 = vrot.lane.b32.xlu0 %v733, 6
    %v2305 = vpop.permute.xlu0 %2304
    %2306 = vrot.lane.b32.xlu0 %v734, 6
    %v2307 = vpop.permute.xlu0 %2306
    %2308 = vrot.lane.b32.xlu0 %v735, 6
    %v2309 = vpop.permute.xlu0 %2308
    %2310 = vrot.lane.b32.xlu0 %v736, 6
    %v2311 = vpop.permute.xlu0 %2310
    %2312 = vrot.lane.b32.xlu0 %v737, 6
    %v2313 = vpop.permute.xlu0 %2312
    %2314 = vrot.lane.b32.xlu0 %v738, 6
    %v2315 = vpop.permute.xlu0 %2314
    %2316 = vrot.lane.b32.xlu0 %v739, 6
    %v2317 = vpop.permute.xlu0 %2316
    %2318 = vrot.lane.b32.xlu0 %v740, 6
    %v2319 = vpop.permute.xlu0 %2318
    %2320 = vrot.lane.b32.xlu0 %v741, 6
    %v2321 = vpop.permute.xlu0 %2320
    %2322 = vrot.lane.b32.xlu0 %v742, 6
    %v2323 = vpop.permute.xlu0 %2322
    %2324 = vrot.lane.b32.xlu0 %v743, 6
    %v2325 = vpop.permute.xlu0 %2324
    %2326 = vrot.lane.b32.xlu0 %v744, 6
    %v2327 = vpop.permute.xlu0 %2326
    %2328 = vrot.lane.b32.xlu0 %v745, 6
    %v2329 = vpop.permute.xlu0 %2328
    %2330 = vrot.lane.b32.xlu0 %v746, 6
    %v2331 = vpop.permute.xlu0 %2330
    %2332 = vrot.lane.b32.xlu0 %v747, 6
    %v2333 = vpop.permute.xlu0 %2332
    %2334 = vrot.lane.b32.xlu0 %v748, 6
    %v2335 = vpop.permute.xlu0 %2334
    %2336 = vrot.lane.b32.xlu0 %v749, 6
    %v2337 = vpop.permute.xlu0 %2336
    %2338 = vrot.lane.b32.xlu0 %v750, 6
    %v2339 = vpop.permute.xlu0 %2338
    %2340 = vrot.lane.b32.xlu0 %v751, 6
    %v2341 = vpop.permute.xlu0 %2340
    %2342 = vrot.lane.b32.xlu0 %v752, 6
    %v2343 = vpop.permute.xlu0 %2342
    %2344 = vrot.lane.b32.xlu0 %v753, 6
    %v2345 = vpop.permute.xlu0 %2344
    %2346 = vrot.lane.b32.xlu0 %v754, 6
    %v2347 = vpop.permute.xlu0 %2346
    %2348 = vrot.lane.b32.xlu0 %v755, 6
    %v2349 = vpop.permute.xlu0 %2348
    %2350 = vrot.lane.b32.xlu0 %v756, 6
    %v2351 = vpop.permute.xlu0 %2350
    %2352 = vrot.lane.b32.xlu0 %v757, 6
    %v2353 = vpop.permute.xlu0 %2352
    %2354 = vrot.lane.b32.xlu0 %v758, 6
    %v2355 = vpop.permute.xlu0 %2354
    %2356 = vrot.lane.b32.xlu0 %v759, 6
    %v2357 = vpop.permute.xlu0 %2356
    %2358 = vrot.lane.b32.xlu0 %v760, 6
    %v2359 = vpop.permute.xlu0 %2358
    %2360 = vrot.lane.b32.xlu0 %v761, 6
    %v2361 = vpop.permute.xlu0 %2360
    %2490 = vrot.lane.b32.xlu0 %v762, 7
    %v2491 = vpop.permute.xlu0 %2490
    %2492 = vrot.lane.b32.xlu0 %v763, 7
    %v2493 = vpop.permute.xlu0 %2492
    %2494 = vrot.lane.b32.xlu0 %v764, 7
    %v2495 = vpop.permute.xlu0 %2494
    %2496 = vrot.lane.b32.xlu0 %v765, 7
    %v2497 = vpop.permute.xlu0 %2496
    %2498 = vrot.lane.b32.xlu0 %v766, 7
    %v2499 = vpop.permute.xlu0 %2498
    %2500 = vrot.lane.b32.xlu0 %v767, 7
    %v2501 = vpop.permute.xlu0 %2500
    %2502 = vrot.lane.b32.xlu0 %v768, 7
    %v2503 = vpop.permute.xlu0 %2502
    %2504 = vrot.lane.b32.xlu0 %v769, 7
    %v2505 = vpop.permute.xlu0 %2504
    %2506 = vrot.lane.b32.xlu0 %v770, 7
    %v2507 = vpop.permute.xlu0 %2506
    %2508 = vrot.lane.b32.xlu0 %v771, 7
    %v2509 = vpop.permute.xlu0 %2508
    %2510 = vrot.lane.b32.xlu0 %v772, 7
    %v2511 = vpop.permute.xlu0 %2510
    %2512 = vrot.lane.b32.xlu0 %v773, 7
    %v2513 = vpop.permute.xlu0 %2512
    %2514 = vrot.lane.b32.xlu0 %v774, 7
    %v2515 = vpop.permute.xlu0 %2514
    %2516 = vrot.lane.b32.xlu0 %v775, 7
    %v2517 = vpop.permute.xlu0 %2516
    %2518 = vrot.lane.b32.xlu0 %v776, 7
    %v2519 = vpop.permute.xlu0 %2518
    %2520 = vrot.lane.b32.xlu0 %v777, 7
    %v2521 = vpop.permute.xlu0 %2520
    %2522 = vrot.lane.b32.xlu0 %v778, 7
    %v2523 = vpop.permute.xlu0 %2522
    %2524 = vrot.lane.b32.xlu0 %v779, 7
    %v2525 = vpop.permute.xlu0 %2524
    %2526 = vrot.lane.b32.xlu0 %v780, 7
    %v2527 = vpop.permute.xlu0 %2526
    %2528 = vrot.lane.b32.xlu0 %v781, 7
    %v2529 = vpop.permute.xlu0 %2528
    %2530 = vrot.lane.b32.xlu0 %v782, 7
    %v2531 = vpop.permute.xlu0 %2530
    %2532 = vrot.lane.b32.xlu0 %v783, 7
    %v2533 = vpop.permute.xlu0 %2532
    %2534 = vrot.lane.b32.xlu0 %v784, 7
    %v2535 = vpop.permute.xlu0 %2534
    %2536 = vrot.lane.b32.xlu0 %v785, 7
    %v2537 = vpop.permute.xlu0 %2536
    %2538 = vrot.lane.b32.xlu0 %v786, 7
    %v2539 = vpop.permute.xlu0 %2538
    %2540 = vrot.lane.b32.xlu0 %v787, 7
    %v2541 = vpop.permute.xlu0 %2540
    %2542 = vrot.lane.b32.xlu0 %v788, 7
    %v2543 = vpop.permute.xlu0 %2542
    %2544 = vrot.lane.b32.xlu0 %v789, 7
    %v2545 = vpop.permute.xlu0 %2544
    %2546 = vrot.lane.b32.xlu0 %v790, 7
    %v2547 = vpop.permute.xlu0 %2546
    %2548 = vrot.lane.b32.xlu0 %v791, 7
    %v2549 = vpop.permute.xlu0 %2548
    %2550 = vrot.lane.b32.xlu0 %v792, 7
    %v2551 = vpop.permute.xlu0 %2550
    %2552 = vrot.lane.b32.xlu0 %v793, 7
    %v2553 = vpop.permute.xlu0 %2552
    %2554 = vrot.lane.b32.xlu0 %v794, 7
    %v2555 = vpop.permute.xlu0 %2554
    %2556 = vrot.lane.b32.xlu0 %v795, 7
    %v2557 = vpop.permute.xlu0 %2556
    %2558 = vrot.lane.b32.xlu0 %v796, 7
    %v2559 = vpop.permute.xlu0 %2558
    %2560 = vrot.lane.b32.xlu0 %v797, 7
    %v2561 = vpop.permute.xlu0 %2560
    %2562 = vrot.lane.b32.xlu0 %v798, 7
    %v2563 = vpop.permute.xlu0 %2562
    %2564 = vrot.lane.b32.xlu0 %v799, 7
    %v2565 = vpop.permute.xlu0 %2564
    %2566 = vrot.lane.b32.xlu0 %v800, 7
    %v2567 = vpop.permute.xlu0 %2566
    %2568 = vrot.lane.b32.xlu0 %v801, 7
    %v2569 = vpop.permute.xlu0 %2568
    %2570 = vrot.lane.b32.xlu0 %v802, 7
    %v2571 = vpop.permute.xlu0 %2570
    %2572 = vrot.lane.b32.xlu0 %v803, 7
    %v2573 = vpop.permute.xlu0 %2572
    %2574 = vrot.lane.b32.xlu0 %v804, 7
    %v2575 = vpop.permute.xlu0 %2574
    %2576 = vrot.lane.b32.xlu0 %v805, 7
    %v2577 = vpop.permute.xlu0 %2576
    %2578 = vrot.lane.b32.xlu0 %v806, 7
    %v2579 = vpop.permute.xlu0 %2578
    %2580 = vrot.lane.b32.xlu0 %v807, 7
    %v2581 = vpop.permute.xlu0 %2580
    %2582 = vrot.lane.b32.xlu0 %v808, 7
    %v2583 = vpop.permute.xlu0 %2582
    %2584 = vrot.lane.b32.xlu0 %v809, 7
    %v2585 = vpop.permute.xlu0 %2584
    %2586 = vrot.lane.b32.xlu0 %v810, 7
    %v2587 = vpop.permute.xlu0 %2586
    %2588 = vrot.lane.b32.xlu0 %v811, 7
    %v2589 = vpop.permute.xlu0 %2588
    %2590 = vrot.lane.b32.xlu0 %v812, 7
    %v2591 = vpop.permute.xlu0 %2590
    %2592 = vrot.lane.b32.xlu0 %v813, 7
    %v2593 = vpop.permute.xlu0 %2592
    %2594 = vrot.lane.b32.xlu0 %v814, 7
    %v2595 = vpop.permute.xlu0 %2594
    %2596 = vrot.lane.b32.xlu0 %v815, 7
    %v2597 = vpop.permute.xlu0 %2596
    %2598 = vrot.lane.b32.xlu0 %v816, 7
    %v2599 = vpop.permute.xlu0 %2598
    %2600 = vrot.lane.b32.xlu0 %v817, 7
    %v2601 = vpop.permute.xlu0 %2600
    %2602 = vrot.lane.b32.xlu0 %v818, 7
    %v2603 = vpop.permute.xlu0 %2602
    %2604 = vrot.lane.b32.xlu0 %v819, 7
    %v2605 = vpop.permute.xlu0 %2604
    %2606 = vrot.lane.b32.xlu0 %v820, 7
    %v2607 = vpop.permute.xlu0 %2606
    %2608 = vrot.lane.b32.xlu0 %v821, 7
    %v2609 = vpop.permute.xlu0 %2608
    %2610 = vrot.lane.b32.xlu0 %v822, 7
    %v2611 = vpop.permute.xlu0 %2610
    %2612 = vrot.lane.b32.xlu0 %v823, 7
    %v2613 = vpop.permute.xlu0 %2612
    %2614 = vrot.lane.b32.xlu0 %v824, 7
    %v2615 = vpop.permute.xlu0 %2614
    %2616 = vrot.lane.b32.xlu0 %v825, 7
    %v2617 = vpop.permute.xlu0 %2616
    %2746 = vrot.lane.b32.xlu0 %v826, 8
    %v2747 = vpop.permute.xlu0 %2746
    %2748 = vrot.lane.b32.xlu0 %v827, 8
    %v2749 = vpop.permute.xlu0 %2748
    %2750 = vrot.lane.b32.xlu0 %v828, 8
    %v2751 = vpop.permute.xlu0 %2750
    %2752 = vrot.lane.b32.xlu0 %v829, 8
    %v2753 = vpop.permute.xlu0 %2752
    %2754 = vrot.lane.b32.xlu0 %v830, 8
    %v2755 = vpop.permute.xlu0 %2754
    %2756 = vrot.lane.b32.xlu0 %v831, 8
    %v2757 = vpop.permute.xlu0 %2756
    %2758 = vrot.lane.b32.xlu0 %v832, 8
    %v2759 = vpop.permute.xlu0 %2758
    %2760 = vrot.lane.b32.xlu0 %v833, 8
    %v2761 = vpop.permute.xlu0 %2760
    %2762 = vrot.lane.b32.xlu0 %v834, 8
    %v2763 = vpop.permute.xlu0 %2762
    %2764 = vrot.lane.b32.xlu0 %v835, 8
    %v2765 = vpop.permute.xlu0 %2764
    %2766 = vrot.lane.b32.xlu0 %v836, 8
    %v2767 = vpop.permute.xlu0 %2766
    %2768 = vrot.lane.b32.xlu0 %v837, 8
    %v2769 = vpop.permute.xlu0 %2768
    %2770 = vrot.lane.b32.xlu0 %v838, 8
    %v2771 = vpop.permute.xlu0 %2770
    %2772 = vrot.lane.b32.xlu0 %v839, 8
    %v2773 = vpop.permute.xlu0 %2772
    %2774 = vrot.lane.b32.xlu0 %v840, 8
    %v2775 = vpop.permute.xlu0 %2774
    %2776 = vrot.lane.b32.xlu0 %v841, 8
    %v2777 = vpop.permute.xlu0 %2776
    %2778 = vrot.lane.b32.xlu0 %v842, 8
    %v2779 = vpop.permute.xlu0 %2778
    %2780 = vrot.lane.b32.xlu0 %v843, 8
    %v2781 = vpop.permute.xlu0 %2780
    %2782 = vrot.lane.b32.xlu0 %v844, 8
    %v2783 = vpop.permute.xlu0 %2782
    %2784 = vrot.lane.b32.xlu0 %v845, 8
    %v2785 = vpop.permute.xlu0 %2784
    %2786 = vrot.lane.b32.xlu0 %v846, 8
    %v2787 = vpop.permute.xlu0 %2786
    %2788 = vrot.lane.b32.xlu0 %v847, 8
    %v2789 = vpop.permute.xlu0 %2788
    %2790 = vrot.lane.b32.xlu0 %v848, 8
    %v2791 = vpop.permute.xlu0 %2790
    %2792 = vrot.lane.b32.xlu0 %v849, 8
    %v2793 = vpop.permute.xlu0 %2792
    %2794 = vrot.lane.b32.xlu0 %v850, 8
    %v2795 = vpop.permute.xlu0 %2794
    %2796 = vrot.lane.b32.xlu0 %v851, 8
    %v2797 = vpop.permute.xlu0 %2796
    %2798 = vrot.lane.b32.xlu0 %v852, 8
    %v2799 = vpop.permute.xlu0 %2798
    %2800 = vrot.lane.b32.xlu0 %v853, 8
    %v2801 = vpop.permute.xlu0 %2800
    %2802 = vrot.lane.b32.xlu0 %v854, 8
    %v2803 = vpop.permute.xlu0 %2802
    %2804 = vrot.lane.b32.xlu0 %v855, 8
    %v2805 = vpop.permute.xlu0 %2804
    %2806 = vrot.lane.b32.xlu0 %v856, 8
    %v2807 = vpop.permute.xlu0 %2806
    %2808 = vrot.lane.b32.xlu0 %v857, 8
    %v2809 = vpop.permute.xlu0 %2808
    %2810 = vrot.lane.b32.xlu0 %v858, 8
    %v2811 = vpop.permute.xlu0 %2810
    %2812 = vrot.lane.b32.xlu0 %v859, 8
    %v2813 = vpop.permute.xlu0 %2812
    %2814 = vrot.lane.b32.xlu0 %v860, 8
    %v2815 = vpop.permute.xlu0 %2814
    %2816 = vrot.lane.b32.xlu0 %v861, 8
    %v2817 = vpop.permute.xlu0 %2816
    %2818 = vrot.lane.b32.xlu0 %v862, 8
    %v2819 = vpop.permute.xlu0 %2818
    %2820 = vrot.lane.b32.xlu0 %v863, 8
    %v2821 = vpop.permute.xlu0 %2820
    %2822 = vrot.lane.b32.xlu0 %v864, 8
    %v2823 = vpop.permute.xlu0 %2822
    %2824 = vrot.lane.b32.xlu0 %v865, 8
    %v2825 = vpop.permute.xlu0 %2824
    %2826 = vrot.lane.b32.xlu0 %v866, 8
    %v2827 = vpop.permute.xlu0 %2826
    %2828 = vrot.lane.b32.xlu0 %v867, 8
    %v2829 = vpop.permute.xlu0 %2828
    %2830 = vrot.lane.b32.xlu0 %v868, 8
    %v2831 = vpop.permute.xlu0 %2830
    %2832 = vrot.lane.b32.xlu0 %v869, 8
    %v2833 = vpop.permute.xlu0 %2832
    %2834 = vrot.lane.b32.xlu0 %v870, 8
    %v2835 = vpop.permute.xlu0 %2834
    %2836 = vrot.lane.b32.xlu0 %v871, 8
    %v2837 = vpop.permute.xlu0 %2836
    %2838 = vrot.lane.b32.xlu0 %v872, 8
    %v2839 = vpop.permute.xlu0 %2838
    %2840 = vrot.lane.b32.xlu0 %v873, 8
    %v2841 = vpop.permute.xlu0 %2840
    %2842 = vrot.lane.b32.xlu0 %v874, 8
    %v2843 = vpop.permute.xlu0 %2842
    %2844 = vrot.lane.b32.xlu0 %v875, 8
    %v2845 = vpop.permute.xlu0 %2844
    %2846 = vrot.lane.b32.xlu0 %v876, 8
    %v2847 = vpop.permute.xlu0 %2846
    %2848 = vrot.lane.b32.xlu0 %v877, 8
    %v2849 = vpop.permute.xlu0 %2848
    %2850 = vrot.lane.b32.xlu0 %v878, 8
    %v2851 = vpop.permute.xlu0 %2850
    %2852 = vrot.lane.b32.xlu0 %v879, 8
    %v2853 = vpop.permute.xlu0 %2852
    %2854 = vrot.lane.b32.xlu0 %v880, 8
    %v2855 = vpop.permute.xlu0 %2854
    %2856 = vrot.lane.b32.xlu0 %v881, 8
    %v2857 = vpop.permute.xlu0 %2856
    %2858 = vrot.lane.b32.xlu0 %v882, 8
    %v2859 = vpop.permute.xlu0 %2858
    %2860 = vrot.lane.b32.xlu0 %v883, 8
    %v2861 = vpop.permute.xlu0 %2860
    %2862 = vrot.lane.b32.xlu0 %v884, 8
    %v2863 = vpop.permute.xlu0 %2862
    %2864 = vrot.lane.b32.xlu0 %v885, 8
    %v2865 = vpop.permute.xlu0 %2864
    %2866 = vrot.lane.b32.xlu0 %v886, 8
    %v2867 = vpop.permute.xlu0 %2866
    %2868 = vrot.lane.b32.xlu0 %v887, 8
    %v2869 = vpop.permute.xlu0 %2868
    %2870 = vrot.lane.b32.xlu0 %v888, 8
    %v2871 = vpop.permute.xlu0 %2870
    %2872 = vrot.lane.b32.xlu0 %v889, 8
    %v2873 = vpop.permute.xlu0 %2872
    %v2938 = vsel %vm138, %v313, %v955
    %v2939 = vsel %vm138, %v314, %v957
    %v2940 = vsel %vm138, %v315, %v959
    %v2941 = vsel %vm138, %v316, %v961
    %v2942 = vsel %vm138, %v317, %v963
    %v2943 = vsel %vm138, %v318, %v965
    %v2944 = vsel %vm138, %v319, %v967
    %v2945 = vsel %vm138, %v320, %v969
    %v2946 = vsel %vm138, %v321, %v971
    %v2947 = vsel %vm138, %v322, %v973
    %v2948 = vsel %vm138, %v323, %v975
    %v2949 = vsel %vm138, %v324, %v977
    %v2950 = vsel %vm138, %v325, %v979
    %v2951 = vsel %vm138, %v326, %v981
    %v2952 = vsel %vm138, %v327, %v983
    %v2953 = vsel %vm138, %v328, %v985
    %v2954 = vsel %vm138, %v329, %v987
    %v2955 = vsel %vm138, %v330, %v989
    %v2956 = vsel %vm138, %v331, %v991
    %v2957 = vsel %vm138, %v332, %v993
    %v2958 = vsel %vm138, %v333, %v995
    %v2959 = vsel %vm138, %v334, %v997
    %v2960 = vsel %vm138, %v335, %v999
    %v2961 = vsel %vm138, %v336, %v1001
    %v2962 = vsel %vm138, %v337, %v1003
    %v2963 = vsel %vm138, %v338, %v1005
    %v2964 = vsel %vm138, %v339, %v1007
    %v2965 = vsel %vm138, %v340, %v1009
    %v2966 = vsel %vm138, %v341, %v1011
    %v2967 = vsel %vm138, %v342, %v1013
    %v2968 = vsel %vm138, %v343, %v1015
    %v2969 = vsel %vm138, %v344, %v1017
    %v2970 = vsel %vm138, %v345, %v1019
    %v2971 = vsel %vm138, %v346, %v1021
    %v2972 = vsel %vm138, %v347, %v1023
    %v2973 = vsel %vm138, %v348, %v1025
    %v2974 = vsel %vm138, %v349, %v1027
    %v2975 = vsel %vm138, %v350, %v1029
    %v2976 = vsel %vm138, %v351, %v1031
    %v2977 = vsel %vm138, %v352, %v1033
    %v2978 = vsel %vm138, %v353, %v1035
    %v2979 = vsel %vm138, %v354, %v1037
    %v2980 = vsel %vm138, %v355, %v1039
    %v2981 = vsel %vm138, %v356, %v1041
    %v2982 = vsel %vm138, %v357, %v1043
    %v2983 = vsel %vm138, %v358, %v1045
    %v2984 = vsel %vm138, %v359, %v1047
    %v2985 = vsel %vm138, %v360, %v1049
    %v2986 = vsel %vm138, %v361, %v1051
    %v2987 = vsel %vm138, %v362, %v1053
    %v2988 = vsel %vm138, %v363, %v1055
    %v2989 = vsel %vm138, %v364, %v1057
    %v2990 = vsel %vm138, %v365, %v1059
    %v2991 = vsel %vm138, %v366, %v1061
    %v2992 = vsel %vm138, %v367, %v1063
    %v2993 = vsel %vm138, %v368, %v1065
    %v2994 = vsel %vm138, %v369, %v1067
    %v2995 = vsel %vm138, %v370, %v1069
    %v2996 = vsel %vm138, %v371, %v1071
    %v2997 = vsel %vm138, %v372, %v1073
    %v2998 = vsel %vm138, %v373, %v1075
    %v2999 = vsel %vm138, %v374, %v1077
    %v3000 = vsel %vm138, %v375, %v1079
    %v3001 = vsel %vm138, %v376, %v1081
    %vm3002 = vcmask 15360
    %v3003 = vsel %vm3002, %v2938, %v1211
    %v3004 = vsel %vm3002, %v2939, %v1213
    %v3005 = vsel %vm3002, %v2940, %v1215
    %v3006 = vsel %vm3002, %v2941, %v1217
    %v3007 = vsel %vm3002, %v2942, %v1219
    %v3008 = vsel %vm3002, %v2943, %v1221
    %v3009 = vsel %vm3002, %v2944, %v1223
    %v3010 = vsel %vm3002, %v2945, %v1225
    %v3011 = vsel %vm3002, %v2946, %v1227
    %v3012 = vsel %vm3002, %v2947, %v1229
    %v3013 = vsel %vm3002, %v2948, %v1231
    %v3014 = vsel %vm3002, %v2949, %v1233
    %v3015 = vsel %vm3002, %v2950, %v1235
    %v3016 = vsel %vm3002, %v2951, %v1237
    %v3017 = vsel %vm3002, %v2952, %v1239
    %v3018 = vsel %vm3002, %v2953, %v1241
    %v3019 = vsel %vm3002, %v2954, %v1243
    %v3020 = vsel %vm3002, %v2955, %v1245
    %v3021 = vsel %vm3002, %v2956, %v1247
    %v3022 = vsel %vm3002, %v2957, %v1249
    %v3023 = vsel %vm3002, %v2958, %v1251
    %v3024 = vsel %vm3002, %v2959, %v1253
    %v3025 = vsel %vm3002, %v2960, %v1255
    %v3026 = vsel %vm3002, %v2961, %v1257
    %v3027 = vsel %vm3002, %v2962, %v1259
    %v3028 = vsel %vm3002, %v2963, %v1261
    %v3029 = vsel %vm3002, %v2964, %v1263
    %v3030 = vsel %vm3002, %v2965, %v1265
    %v3031 = vsel %vm3002, %v2966, %v1267
    %v3032 = vsel %vm3002, %v2967, %v1269
    %v3033 = vsel %vm3002, %v2968, %v1271
    %v3034 = vsel %vm3002, %v2969, %v1273
    %v3035 = vsel %vm3002, %v2970, %v1275
    %v3036 = vsel %vm3002, %v2971, %v1277
    %v3037 = vsel %vm3002, %v2972, %v1279
    %v3038 = vsel %vm3002, %v2973, %v1281
    %v3039 = vsel %vm3002, %v2974, %v1283
    %v3040 = vsel %vm3002, %v2975, %v1285
    %v3041 = vsel %vm3002, %v2976, %v1287
    %v3042 = vsel %vm3002, %v2977, %v1289
    %v3043 = vsel %vm3002, %v2978, %v1291
    %v3044 = vsel %vm3002, %v2979, %v1293
    %v3045 = vsel %vm3002, %v2980, %v1295
    %v3046 = vsel %vm3002, %v2981, %v1297
    %v3047 = vsel %vm3002, %v2982, %v1299
    %v3048 = vsel %vm3002, %v2983, %v1301
    %v3049 = vsel %vm3002, %v2984, %v1303
    %v3050 = vsel %vm3002, %v2985, %v1305
    %v3051 = vsel %vm3002, %v2986, %v1307
    %v3052 = vsel %vm3002, %v2987, %v1309
    %v3053 = vsel %vm3002, %v2988, %v1311
    %v3054 = vsel %vm3002, %v2989, %v1313
    %v3055 = vsel %vm3002, %v2990, %v1315
    %v3056 = vsel %vm3002, %v2991, %v1317
    %v3057 = vsel %vm3002, %v2992, %v1319
    %v3058 = vsel %vm3002, %v2993, %v1321
    %v3059 = vsel %vm3002, %v2994, %v1323
    %v3060 = vsel %vm3002, %v2995, %v1325
    %v3061 = vsel %vm3002, %v2996, %v1327
    %v3062 = vsel %vm3002, %v2997, %v1329
    %v3063 = vsel %vm3002, %v2998, %v1331
    %v3064 = vsel %vm3002, %v2999, %v1333
    %v3065 = vsel %vm3002, %v3000, %v1335
    %v3066 = vsel %vm3002, %v3001, %v1337
    %vm3067 = vcmask 23552
    %v3068 = vsel %vm3067, %v3003, %v1467
    %v3069 = vsel %vm3067, %v3004, %v1469
    %v3070 = vsel %vm3067, %v3005, %v1471
    %v3071 = vsel %vm3067, %v3006, %v1473
    %v3072 = vsel %vm3067, %v3007, %v1475
    %v3073 = vsel %vm3067, %v3008, %v1477
    %v3074 = vsel %vm3067, %v3009, %v1479
    %v3075 = vsel %vm3067, %v3010, %v1481
    %v3076 = vsel %vm3067, %v3011, %v1483
    %v3077 = vsel %vm3067, %v3012, %v1485
    %v3078 = vsel %vm3067, %v3013, %v1487
    %v3079 = vsel %vm3067, %v3014, %v1489
    %v3080 = vsel %vm3067, %v3015, %v1491
    %v3081 = vsel %vm3067, %v3016, %v1493
    %v3082 = vsel %vm3067, %v3017, %v1495
    %v3083 = vsel %vm3067, %v3018, %v1497
    %v3084 = vsel %vm3067, %v3019, %v1499
    %v3085 = vsel %vm3067, %v3020, %v1501
    %v3086 = vsel %vm3067, %v3021, %v1503
    %v3087 = vsel %vm3067, %v3022, %v1505
    %v3088 = vsel %vm3067, %v3023, %v1507
    %v3089 = vsel %vm3067, %v3024, %v1509
    %v3090 = vsel %vm3067, %v3025, %v1511
    %v3091 = vsel %vm3067, %v3026, %v1513
    %v3092 = vsel %vm3067, %v3027, %v1515
    %v3093 = vsel %vm3067, %v3028, %v1517
    %v3094 = vsel %vm3067, %v3029, %v1519
    %v3095 = vsel %vm3067, %v3030, %v1521
    %v3096 = vsel %vm3067, %v3031, %v1523
    %v3097 = vsel %vm3067, %v3032, %v1525
    %v3098 = vsel %vm3067, %v3033, %v1527
    %v3099 = vsel %vm3067, %v3034, %v1529
    %v3100 = vsel %vm3067, %v3035, %v1531
    %v3101 = vsel %vm3067, %v3036, %v1533
    %v3102 = vsel %vm3067, %v3037, %v1535
    %v3103 = vsel %vm3067, %v3038, %v1537
    %v3104 = vsel %vm3067, %v3039, %v1539
    %v3105 = vsel %vm3067, %v3040, %v1541
    %v3106 = vsel %vm3067, %v3041, %v1543
    %v3107 = vsel %vm3067, %v3042, %v1545
    %v3108 = vsel %vm3067, %v3043, %v1547
    %v3109 = vsel %vm3067, %v3044, %v1549
    %v3110 = vsel %vm3067, %v3045, %v1551
    %v3111 = vsel %vm3067, %v3046, %v1553
    %v3112 = vsel %vm3067, %v3047, %v1555
    %v3113 = vsel %vm3067, %v3048, %v1557
    %v3114 = vsel %vm3067, %v3049, %v1559
    %v3115 = vsel %vm3067, %v3050, %v1561
    %v3116 = vsel %vm3067, %v3051, %v1563
    %v3117 = vsel %vm3067, %v3052, %v1565
    %v3118 = vsel %vm3067, %v3053, %v1567
    %v3119 = vsel %vm3067, %v3054, %v1569
    %v3120 = vsel %vm3067, %v3055, %v1571
    %v3121 = vsel %vm3067, %v3056, %v1573
    %v3122 = vsel %vm3067, %v3057, %v1575
    %v3123 = vsel %vm3067, %v3058, %v1577
    %v3124 = vsel %vm3067, %v3059, %v1579
    %v3125 = vsel %vm3067, %v3060, %v1581
    %v3126 = vsel %vm3067, %v3061, %v1583
    %v3127 = vsel %vm3067, %v3062, %v1585
    %v3128 = vsel %vm3067, %v3063, %v1587
    %v3129 = vsel %vm3067, %v3064, %v1589
    %v3130 = vsel %vm3067, %v3065, %v1591
    %v3131 = vsel %vm3067, %v3066, %v1593
    %vm3132 = vcmask 31744
    %v3133 = vsel %vm3132, %v3068, %v1723
    %v3134 = vsel %vm3132, %v3069, %v1725
    %v3135 = vsel %vm3132, %v3070, %v1727
    %v3136 = vsel %vm3132, %v3071, %v1729
    %v3137 = vsel %vm3132, %v3072, %v1731
    %v3138 = vsel %vm3132, %v3073, %v1733
    %v3139 = vsel %vm3132, %v3074, %v1735
    %v3140 = vsel %vm3132, %v3075, %v1737
    %v3141 = vsel %vm3132, %v3076, %v1739
    %v3142 = vsel %vm3132, %v3077, %v1741
    %v3143 = vsel %vm3132, %v3078, %v1743
    %v3144 = vsel %vm3132, %v3079, %v1745
    %v3145 = vsel %vm3132, %v3080, %v1747
    %v3146 = vsel %vm3132, %v3081, %v1749
    %v3147 = vsel %vm3132, %v3082, %v1751
    %v3148 = vsel %vm3132, %v3083, %v1753
    %v3149 = vsel %vm3132, %v3084, %v1755
    %v3150 = vsel %vm3132, %v3085, %v1757
    %v3151 = vsel %vm3132, %v3086, %v1759
    %v3152 = vsel %vm3132, %v3087, %v1761
    %v3153 = vsel %vm3132, %v3088, %v1763
    %v3154 = vsel %vm3132, %v3089, %v1765
    %v3155 = vsel %vm3132, %v3090, %v1767
    %v3156 = vsel %vm3132, %v3091, %v1769
    %v3157 = vsel %vm3132, %v3092, %v1771
    %v3158 = vsel %vm3132, %v3093, %v1773
    %v3159 = vsel %vm3132, %v3094, %v1775
    %v3160 = vsel %vm3132, %v3095, %v1777
    %v3161 = vsel %vm3132, %v3096, %v1779
    %v3162 = vsel %vm3132, %v3097, %v1781
    %v3163 = vsel %vm3132, %v3098, %v1783
    %v3164 = vsel %vm3132, %v3099, %v1785
    %v3165 = vsel %vm3132, %v3100, %v1787
    %v3166 = vsel %vm3132, %v3101, %v1789
    %v3167 = vsel %vm3132, %v3102, %v1791
    %v3168 = vsel %vm3132, %v3103, %v1793
    %v3169 = vsel %vm3132, %v3104, %v1795
    %v3170 = vsel %vm3132, %v3105, %v1797
    %v3171 = vsel %vm3132, %v3106, %v1799
    %v3172 = vsel %vm3132, %v3107, %v1801
    %v3173 = vsel %vm3132, %v3108, %v1803
    %v3174 = vsel %vm3132, %v3109, %v1805
    %v3175 = vsel %vm3132, %v3110, %v1807
    %v3176 = vsel %vm3132, %v3111, %v1809
    %v3177 = vsel %vm3132, %v3112, %v1811
    %v3178 = vsel %vm3132, %v3113, %v1813
    %v3179 = vsel %vm3132, %v3114, %v1815
    %v3180 = vsel %vm3132, %v3115, %v1817
    %v3181 = vsel %vm3132, %v3116, %v1819
    %v3182 = vsel %vm3132, %v3117, %v1821
    %v3183 = vsel %vm3132, %v3118, %v1823
    %v3184 = vsel %vm3132, %v3119, %v1825
    %v3185 = vsel %vm3132, %v3120, %v1827
    %v3186 = vsel %vm3132, %v3121, %v1829
    %v3187 = vsel %vm3132, %v3122, %v1831
    %v3188 = vsel %vm3132, %v3123, %v1833
    %v3189 = vsel %vm3132, %v3124, %v1835
    %v3190 = vsel %vm3132, %v3125, %v1837
    %v3191 = vsel %vm3132, %v3126, %v1839
    %v3192 = vsel %vm3132, %v3127, %v1841
    %v3193 = vsel %vm3132, %v3128, %v1843
    %v3194 = vsel %vm3132, %v3129, %v1845
    %v3195 = vsel %vm3132, %v3130, %v1847
    %v3196 = vsel %vm3132, %v3131, %v1849
    %vm3197 = vcmask 39936
    %v3198 = vsel %vm3197, %v3133, %v1979
    %v3199 = vsel %vm3197, %v3134, %v1981
    %v3200 = vsel %vm3197, %v3135, %v1983
    %v3201 = vsel %vm3197, %v3136, %v1985
    %v3202 = vsel %vm3197, %v3137, %v1987
    %v3203 = vsel %vm3197, %v3138, %v1989
    %v3204 = vsel %vm3197, %v3139, %v1991
    %v3205 = vsel %vm3197, %v3140, %v1993
    %v3206 = vsel %vm3197, %v3141, %v1995
    %v3207 = vsel %vm3197, %v3142, %v1997
    %v3208 = vsel %vm3197, %v3143, %v1999
    %v3209 = vsel %vm3197, %v3144, %v2001
    %v3210 = vsel %vm3197, %v3145, %v2003
    %v3211 = vsel %vm3197, %v3146, %v2005
    %v3212 = vsel %vm3197, %v3147, %v2007
    %v3213 = vsel %vm3197, %v3148, %v2009
    %v3214 = vsel %vm3197, %v3149, %v2011
    %v3215 = vsel %vm3197, %v3150, %v2013
    %v3216 = vsel %vm3197, %v3151, %v2015
    %v3217 = vsel %vm3197, %v3152, %v2017
    %v3218 = vsel %vm3197, %v3153, %v2019
    %v3219 = vsel %vm3197, %v3154, %v2021
    %v3220 = vsel %vm3197, %v3155, %v2023
    %v3221 = vsel %vm3197, %v3156, %v2025
    %v3222 = vsel %vm3197, %v3157, %v2027
    %v3223 = vsel %vm3197, %v3158, %v2029
    %v3224 = vsel %vm3197, %v3159, %v2031
    %v3225 = vsel %vm3197, %v3160, %v2033
    %v3226 = vsel %vm3197, %v3161, %v2035
    %v3227 = vsel %vm3197, %v3162, %v2037
    %v3228 = vsel %vm3197, %v3163, %v2039
    %v3229 = vsel %vm3197, %v3164, %v2041
    %v3230 = vsel %vm3197, %v3165, %v2043
    %v3231 = vsel %vm3197, %v3166, %v2045
    %v3232 = vsel %vm3197, %v3167, %v2047
    %v3233 = vsel %vm3197, %v3168, %v2049
    %v3234 = vsel %vm3197, %v3169, %v2051
    %v3235 = vsel %vm3197, %v3170, %v2053
    %v3236 = vsel %vm3197, %v3171, %v2055
    %v3237 = vsel %vm3197, %v3172, %v2057
    %v3238 = vsel %vm3197, %v3173, %v2059
    %v3239 = vsel %vm3197, %v3174, %v2061
    %v3240 = vsel %vm3197, %v3175, %v2063
    %v3241 = vsel %vm3197, %v3176, %v2065
    %v3242 = vsel %vm3197, %v3177, %v2067
    %v3243 = vsel %vm3197, %v3178, %v2069
    %v3244 = vsel %vm3197, %v3179, %v2071
    %v3245 = vsel %vm3197, %v3180, %v2073
    %v3246 = vsel %vm3197, %v3181, %v2075
    %v3247 = vsel %vm3197, %v3182, %v2077
    %v3248 = vsel %vm3197, %v3183, %v2079
    %v3249 = vsel %vm3197, %v3184, %v2081
    %v3250 = vsel %vm3197, %v3185, %v2083
    %v3251 = vsel %vm3197, %v3186, %v2085
    %v3252 = vsel %vm3197, %v3187, %v2087
    %v3253 = vsel %vm3197, %v3188, %v2089
    %v3254 = vsel %vm3197, %v3189, %v2091
    %v3255 = vsel %vm3197, %v3190, %v2093
    %v3256 = vsel %vm3197, %v3191, %v2095
    %v3257 = vsel %vm3197, %v3192, %v2097
    %v3258 = vsel %vm3197, %v3193, %v2099
    %v3259 = vsel %vm3197, %v3194, %v2101
    %v3260 = vsel %vm3197, %v3195, %v2103
    %v3261 = vsel %vm3197, %v3196, %v2105
    %vm3262 = vcmask 48128
    %v3263 = vsel %vm3262, %v3198, %v2235
    %v3264 = vsel %vm3262, %v3199, %v2237
    %v3265 = vsel %vm3262, %v3200, %v2239
    %v3266 = vsel %vm3262, %v3201, %v2241
    %v3267 = vsel %vm3262, %v3202, %v2243
    %v3268 = vsel %vm3262, %v3203, %v2245
    %v3269 = vsel %vm3262, %v3204, %v2247
    %v3270 = vsel %vm3262, %v3205, %v2249
    %v3271 = vsel %vm3262, %v3206, %v2251
    %v3272 = vsel %vm3262, %v3207, %v2253
    %v3273 = vsel %vm3262, %v3208, %v2255
    %v3274 = vsel %vm3262, %v3209, %v2257
    %v3275 = vsel %vm3262, %v3210, %v2259
    %v3276 = vsel %vm3262, %v3211, %v2261
    %v3277 = vsel %vm3262, %v3212, %v2263
    %v3278 = vsel %vm3262, %v3213, %v2265
    %v3279 = vsel %vm3262, %v3214, %v2267
    %v3280 = vsel %vm3262, %v3215, %v2269
    %v3281 = vsel %vm3262, %v3216, %v2271
    %v3282 = vsel %vm3262, %v3217, %v2273
    %v3283 = vsel %vm3262, %v3218, %v2275
    %v3284 = vsel %vm3262, %v3219, %v2277
    %v3285 = vsel %vm3262, %v3220, %v2279
    %v3286 = vsel %vm3262, %v3221, %v2281
    %v3287 = vsel %vm3262, %v3222, %v2283
    %v3288 = vsel %vm3262, %v3223, %v2285
    %v3289 = vsel %vm3262, %v3224, %v2287
    %v3290 = vsel %vm3262, %v3225, %v2289
    %v3291 = vsel %vm3262, %v3226, %v2291
    %v3292 = vsel %vm3262, %v3227, %v2293
    %v3293 = vsel %vm3262, %v3228, %v2295
    %v3294 = vsel %vm3262, %v3229, %v2297
    %v3295 = vsel %vm3262, %v3230, %v2299
    %v3296 = vsel %vm3262, %v3231, %v2301
    %v3297 = vsel %vm3262, %v3232, %v2303
    %v3298 = vsel %vm3262, %v3233, %v2305
    %v3299 = vsel %vm3262, %v3234, %v2307
    %v3300 = vsel %vm3262, %v3235, %v2309
    %v3301 = vsel %vm3262, %v3236, %v2311
    %v3302 = vsel %vm3262, %v3237, %v2313
    %v3303 = vsel %vm3262, %v3238, %v2315
    %v3304 = vsel %vm3262, %v3239, %v2317
    %v3305 = vsel %vm3262, %v3240, %v2319
    %v3306 = vsel %vm3262, %v3241, %v2321
    %v3307 = vsel %vm3262, %v3242, %v2323
    %v3308 = vsel %vm3262, %v3243, %v2325
    %v3309 = vsel %vm3262, %v3244, %v2327
    %v3310 = vsel %vm3262, %v3245, %v2329
    %v3311 = vsel %vm3262, %v3246, %v2331
    %v3312 = vsel %vm3262, %v3247, %v2333
    %v3313 = vsel %vm3262, %v3248, %v2335
    %v3314 = vsel %vm3262, %v3249, %v2337
    %v3315 = vsel %vm3262, %v3250, %v2339
    %v3316 = vsel %vm3262, %v3251, %v2341
    %v3317 = vsel %vm3262, %v3252, %v2343
    %v3318 = vsel %vm3262, %v3253, %v2345
    %v3319 = vsel %vm3262, %v3254, %v2347
    %v3320 = vsel %vm3262, %v3255, %v2349
    %v3321 = vsel %vm3262, %v3256, %v2351
    %v3322 = vsel %vm3262, %v3257, %v2353
    %v3323 = vsel %vm3262, %v3258, %v2355
    %v3324 = vsel %vm3262, %v3259, %v2357
    %v3325 = vsel %vm3262, %v3260, %v2359
    %v3326 = vsel %vm3262, %v3261, %v2361
    %vm3327 = vcmask 56320
    %v3328 = vsel %vm3327, %v3263, %v2491
    %v3329 = vsel %vm3327, %v3264, %v2493
    %v3330 = vsel %vm3327, %v3265, %v2495
    %v3331 = vsel %vm3327, %v3266, %v2497
    %v3332 = vsel %vm3327, %v3267, %v2499
    %v3333 = vsel %vm3327, %v3268, %v2501
    %v3334 = vsel %vm3327, %v3269, %v2503
    %v3335 = vsel %vm3327, %v3270, %v2505
    %v3336 = vsel %vm3327, %v3271, %v2507
    %v3337 = vsel %vm3327, %v3272, %v2509
    %v3338 = vsel %vm3327, %v3273, %v2511
    %v3339 = vsel %vm3327, %v3274, %v2513
    %v3340 = vsel %vm3327, %v3275, %v2515
    %v3341 = vsel %vm3327, %v3276, %v2517
    %v3342 = vsel %vm3327, %v3277, %v2519
    %v3343 = vsel %vm3327, %v3278, %v2521
    %v3344 = vsel %vm3327, %v3279, %v2523
    %v3345 = vsel %vm3327, %v3280, %v2525
    %v3346 = vsel %vm3327, %v3281, %v2527
    %v3347 = vsel %vm3327, %v3282, %v2529
    %v3348 = vsel %vm3327, %v3283, %v2531
    %v3349 = vsel %vm3327, %v3284, %v2533
    %v3350 = vsel %vm3327, %v3285, %v2535
    %v3351 = vsel %vm3327, %v3286, %v2537
    %v3352 = vsel %vm3327, %v3287, %v2539
    %v3353 = vsel %vm3327, %v3288, %v2541
    %v3354 = vsel %vm3327, %v3289, %v2543
    %v3355 = vsel %vm3327, %v3290, %v2545
    %v3356 = vsel %vm3327, %v3291, %v2547
    %v3357 = vsel %vm3327, %v3292, %v2549
    %v3358 = vsel %vm3327, %v3293, %v2551
    %v3359 = vsel %vm3327, %v3294, %v2553
    %v3360 = vsel %vm3327, %v3295, %v2555
    %v3361 = vsel %vm3327, %v3296, %v2557
    %v3362 = vsel %vm3327, %v3297, %v2559
    %v3363 = vsel %vm3327, %v3298, %v2561
    %v3364 = vsel %vm3327, %v3299, %v2563
    %v3365 = vsel %vm3327, %v3300, %v2565
    %v3366 = vsel %vm3327, %v3301, %v2567
    %v3367 = vsel %vm3327, %v3302, %v2569
    %v3368 = vsel %vm3327, %v3303, %v2571
    %v3369 = vsel %vm3327, %v3304, %v2573
    %v3370 = vsel %vm3327, %v3305, %v2575
    %v3371 = vsel %vm3327, %v3306, %v2577
    %v3372 = vsel %vm3327, %v3307, %v2579
    %v3373 = vsel %vm3327, %v3308, %v2581
    %v3374 = vsel %vm3327, %v3309, %v2583
    %v3375 = vsel %vm3327, %v3310, %v2585
    %v3376 = vsel %vm3327, %v3311, %v2587
    %v3377 = vsel %vm3327, %v3312, %v2589
    %v3378 = vsel %vm3327, %v3313, %v2591
    %v3379 = vsel %vm3327, %v3314, %v2593
    %v3380 = vsel %vm3327, %v3315, %v2595
    %v3381 = vsel %vm3327, %v3316, %v2597
    %v3382 = vsel %vm3327, %v3317, %v2599
    %v3383 = vsel %vm3327, %v3318, %v2601
    %v3384 = vsel %vm3327, %v3319, %v2603
    %v3385 = vsel %vm3327, %v3320, %v2605
    %v3386 = vsel %vm3327, %v3321, %v2607
    %v3387 = vsel %vm3327, %v3322, %v2609
    %v3388 = vsel %vm3327, %v3323, %v2611
    %v3389 = vsel %vm3327, %v3324, %v2613
    %v3390 = vsel %vm3327, %v3325, %v2615
    %v3391 = vsel %vm3327, %v3326, %v2617
    %vm3392 = vcmask 64512
    %v3393 = vsel %vm3392, %v3328, %v2747
    %v3394 = vsel %vm3392, %v3329, %v2749
    %v3395 = vsel %vm3392, %v3330, %v2751
    %v3396 = vsel %vm3392, %v3331, %v2753
    %v3397 = vsel %vm3392, %v3332, %v2755
    %v3398 = vsel %vm3392, %v3333, %v2757
    %v3399 = vsel %vm3392, %v3334, %v2759
    %v3400 = vsel %vm3392, %v3335, %v2761
    %v3401 = vsel %vm3392, %v3336, %v2763
    %v3402 = vsel %vm3392, %v3337, %v2765
    %v3403 = vsel %vm3392, %v3338, %v2767
    %v3404 = vsel %vm3392, %v3339, %v2769
    %v3405 = vsel %vm3392, %v3340, %v2771
    %v3406 = vsel %vm3392, %v3341, %v2773
    %v3407 = vsel %vm3392, %v3342, %v2775
    %v3408 = vsel %vm3392, %v3343, %v2777
    %v3409 = vsel %vm3392, %v3344, %v2779
    %v3410 = vsel %vm3392, %v3345, %v2781
    %v3411 = vsel %vm3392, %v3346, %v2783
    %v3412 = vsel %vm3392, %v3347, %v2785
    %v3413 = vsel %vm3392, %v3348, %v2787
    %v3414 = vsel %vm3392, %v3349, %v2789
    %v3415 = vsel %vm3392, %v3350, %v2791
    %v3416 = vsel %vm3392, %v3351, %v2793
    %v3417 = vsel %vm3392, %v3352, %v2795
    %v3418 = vsel %vm3392, %v3353, %v2797
    %v3419 = vsel %vm3392, %v3354, %v2799
    %v3420 = vsel %vm3392, %v3355, %v2801
    %v3421 = vsel %vm3392, %v3356, %v2803
    %v3422 = vsel %vm3392, %v3357, %v2805
    %v3423 = vsel %vm3392, %v3358, %v2807
    %v3424 = vsel %vm3392, %v3359, %v2809
    %v3425 = vsel %vm3392, %v3360, %v2811
    %v3426 = vsel %vm3392, %v3361, %v2813
    %v3427 = vsel %vm3392, %v3362, %v2815
    %v3428 = vsel %vm3392, %v3363, %v2817
    %v3429 = vsel %vm3392, %v3364, %v2819
    %v3430 = vsel %vm3392, %v3365, %v2821
    %v3431 = vsel %vm3392, %v3366, %v2823
    %v3432 = vsel %vm3392, %v3367, %v2825
    %v3433 = vsel %vm3392, %v3368, %v2827
    %v3434 = vsel %vm3392, %v3369, %v2829
    %v3435 = vsel %vm3392, %v3370, %v2831
    %v3436 = vsel %vm3392, %v3371, %v2833
    %v3437 = vsel %vm3392, %v3372, %v2835
    %v3438 = vsel %vm3392, %v3373, %v2837
    %v3439 = vsel %vm3392, %v3374, %v2839
    %v3440 = vsel %vm3392, %v3375, %v2841
    %v3441 = vsel %vm3392, %v3376, %v2843
    %v3442 = vsel %vm3392, %v3377, %v2845
    %v3443 = vsel %vm3392, %v3378, %v2847
    %v3444 = vsel %vm3392, %v3379, %v2849
    %v3445 = vsel %vm3392, %v3380, %v2851
    %v3446 = vsel %vm3392, %v3381, %v2853
    %v3447 = vsel %vm3392, %v3382, %v2855
    %v3448 = vsel %vm3392, %v3383, %v2857
    %v3449 = vsel %vm3392, %v3384, %v2859
    %v3450 = vsel %vm3392, %v3385, %v2861
    %v3451 = vsel %vm3392, %v3386, %v2863
    %v3452 = vsel %vm3392, %v3387, %v2865
    %v3453 = vsel %vm3392, %v3388, %v2867
    %v3454 = vsel %vm3392, %v3389, %v2869
    %v3455 = vsel %vm3392, %v3390, %v2871
    %v3456 = vsel %vm3392, %v3391, %v2873
    %v3457 = vld [vmem:[%s1] sm:$0xff]
    %v3458 = vld [vmem:[%s1 + $0x8] sm:$0x1]
    %vm3459 = vcmask 72704
    %v3461 = vsel %vm3459, %v3393, 0
    %v3464 = vsel %vm3459, %v3394, 0
    %v3467 = vsel %vm3459, %v3395, 0
    %v3470 = vsel %vm3459, %v3396, 0
    %v3473 = vsel %vm3459, %v3397, 0
    %v3476 = vsel %vm3459, %v3398, 0
    %v3479 = vsel %vm3459, %v3399, 0
    %v3482 = vsel %vm3459, %v3400, 0
    %v3485 = vsel %vm3459, %v3401, 0
    %v3488 = vsel %vm3459, %v3402, 0
    %v3491 = vsel %vm3459, %v3403, 0
    %v3494 = vsel %vm3459, %v3404, 0
    %v3497 = vsel %vm3459, %v3405, 0
    %v3500 = vsel %vm3459, %v3406, 0
    %v3503 = vsel %vm3459, %v3407, 0
    %v3506 = vsel %vm3459, %v3408, 0
    %v3509 = vsel %vm3459, %v3409, 0
    %v3512 = vsel %vm3459, %v3410, 0
    %v3515 = vsel %vm3459, %v3411, 0
    %v3518 = vsel %vm3459, %v3412, 0
    %v3521 = vsel %vm3459, %v3413, 0
    %v3524 = vsel %vm3459, %v3414, 0
    %v3527 = vsel %vm3459, %v3415, 0
    %v3530 = vsel %vm3459, %v3416, 0
    %v3533 = vsel %vm3459, %v3417, 0
    %v3536 = vsel %vm3459, %v3418, 0
    %v3539 = vsel %vm3459, %v3419, 0
    %v3542 = vsel %vm3459, %v3420, 0
    %v3545 = vsel %vm3459, %v3421, 0
    %v3548 = vsel %vm3459, %v3422, 0
    %v3551 = vsel %vm3459, %v3423, 0
    %v3554 = vsel %vm3459, %v3424, 0
    %v3557 = vsel %vm3459, %v3425, 0
    %v3560 = vsel %vm3459, %v3426, 0
    %v3563 = vsel %vm3459, %v3427, 0
    %v3566 = vsel %vm3459, %v3428, 0
    %v3569 = vsel %vm3459, %v3429, 0
    %v3572 = vsel %vm3459, %v3430, 0
    %v3575 = vsel %vm3459, %v3431, 0
    %v3578 = vsel %vm3459, %v3432, 0
    %v3581 = vsel %vm3459, %v3433, 0
    %v3584 = vsel %vm3459, %v3434, 0
    %v3587 = vsel %vm3459, %v3435, 0
    %v3590 = vsel %vm3459, %v3436, 0
    %v3593 = vsel %vm3459, %v3437, 0
    %v3596 = vsel %vm3459, %v3438, 0
    %v3599 = vsel %vm3459, %v3439, 0
    %v3602 = vsel %vm3459, %v3440, 0
    %v3605 = vsel %vm3459, %v3441, 0
    %v3608 = vsel %vm3459, %v3442, 0
    %v3611 = vsel %vm3459, %v3443, 0
    %v3614 = vsel %vm3459, %v3444, 0
    %v3617 = vsel %vm3459, %v3445, 0
    %v3620 = vsel %vm3459, %v3446, 0
    %v3623 = vsel %vm3459, %v3447, 0
    %v3626 = vsel %vm3459, %v3448, 0
    %v3629 = vsel %vm3459, %v3449, 0
    %v3632 = vsel %vm3459, %v3450, 0
    %v3635 = vsel %vm3459, %v3451, 0
    %v3638 = vsel %vm3459, %v3452, 0
    %v3641 = vsel %vm3459, %v3453, 0
    %v3644 = vsel %vm3459, %v3454, 0
    %v3647 = vsel %vm3459, %v3455, 0
    %v3650 = vsel %vm3459, %v3456, 0
    %vm3652 = vcmask 1040384
    %v3654 = vsel %vm3652, %v3458, 0
    %3656 = vmatpush.msra.mxu0 0.0
    %3657 = vmatpush.msra.mxu0 0.0
    %3658 = vmatpush.msra.mxu0 0.0
    %3659 = vmatpush.msra.mxu0 0.0
    %3660 = vmatpush.msra.mxu0 0.0
    %3661 = vmatpush.msra.mxu0 0.0
    %3662 = vmatpush.msra.mxu0 0.0
    %3663 = vmatpush.msra.mxu0 0.0
    %3664 = vmatpush.msra.mxu0 0.0
    %3665 = vmatpush.msra.mxu0 0.0
    %3666 = vmatpush.msra.mxu0 0.0
    %3667 = vmatpush.msra.mxu0 0.0
    %3668 = vmatpush.msra.mxu0 0.0
    %3669 = vmatpush.msra.mxu0 0.0
    %3670 = vmatpush.msra.mxu0 %v3654
    %3671 = vmatpush.msra.mxu0 %v3457
    %3672 = vmatmul.f32.gmra.mxu0 %v3461
    %v3673 = vpop.f32.mrf.mxu0
    %v3674 = vadd.f32 0.0, %v3673
    %3675 = vmatmul.f32.gmra.mxu0 %v3464
    %v3676 = vpop.f32.mrf.mxu0
    %v3677 = vadd.f32 0.0, %v3676
    %3678 = vmatmul.f32.gmra.mxu0 %v3467
    %v3679 = vpop.f32.mrf.mxu0
    %v3680 = vadd.f32 0.0, %v3679
    %3681 = vmatmul.f32.gmra.mxu0 %v3470
    %v3682 = vpop.f32.mrf.mxu0
    %v3683 = vadd.f32 0.0, %v3682
    %3684 = vmatmul.f32.gmra.mxu0 %v3473
    %v3685 = vpop.f32.mrf.mxu0
    %v3686 = vadd.f32 0.0, %v3685
    %3687 = vmatmul.f32.gmra.mxu0 %v3476
    %v3688 = vpop.f32.mrf.mxu0
    %v3689 = vadd.f32 0.0, %v3688
    %3690 = vmatmul.f32.gmra.mxu0 %v3479
    %v3691 = vpop.f32.mrf.mxu0
    %v3692 = vadd.f32 0.0, %v3691
    %3693 = vmatmul.f32.gmra.mxu0 %v3482
    %v3694 = vpop.f32.mrf.mxu0
    %v3695 = vadd.f32 0.0, %v3694
    %3696 = vmatmul.f32.gmra.mxu0 %v3485
    %v3697 = vpop.f32.mrf.mxu0
    %v3698 = vadd.f32 0.0, %v3697
    %3699 = vmatmul.f32.gmra.mxu0 %v3488
    %v3700 = vpop.f32.mrf.mxu0
    %v3701 = vadd.f32 0.0, %v3700
    %3702 = vmatmul.f32.gmra.mxu0 %v3491
    %v3703 = vpop.f32.mrf.mxu0
    %v3704 = vadd.f32 0.0, %v3703
    %3705 = vmatmul.f32.gmra.mxu0 %v3494
    %v3706 = vpop.f32.mrf.mxu0
    %v3707 = vadd.f32 0.0, %v3706
    %3708 = vmatmul.f32.gmra.mxu0 %v3497
    %v3709 = vpop.f32.mrf.mxu0
    %v3710 = vadd.f32 0.0, %v3709
    %3711 = vmatmul.f32.gmra.mxu0 %v3500
    %v3712 = vpop.f32.mrf.mxu0
    %v3713 = vadd.f32 0.0, %v3712
    %3714 = vmatmul.f32.gmra.mxu0 %v3503
    %v3715 = vpop.f32.mrf.mxu0
    %v3716 = vadd.f32 0.0, %v3715
    %3717 = vmatmul.f32.gmra.mxu0 %v3506
    %v3718 = vpop.f32.mrf.mxu0
    %v3719 = vadd.f32 0.0, %v3718
    %3720 = vmatmul.f32.gmra.mxu0 %v3509
    %v3721 = vpop.f32.mrf.mxu0
    %v3722 = vadd.f32 0.0, %v3721
    %3723 = vmatmul.f32.gmra.mxu0 %v3512
    %v3724 = vpop.f32.mrf.mxu0
    %v3725 = vadd.f32 0.0, %v3724
    %3726 = vmatmul.f32.gmra.mxu0 %v3515
    %v3727 = vpop.f32.mrf.mxu0
    %v3728 = vadd.f32 0.0, %v3727
    %3729 = vmatmul.f32.gmra.mxu0 %v3518
    %v3730 = vpop.f32.mrf.mxu0
    %v3731 = vadd.f32 0.0, %v3730
    %3732 = vmatmul.f32.gmra.mxu0 %v3521
    %v3733 = vpop.f32.mrf.mxu0
    %v3734 = vadd.f32 0.0, %v3733
    %3735 = vmatmul.f32.gmra.mxu0 %v3524
    %v3736 = vpop.f32.mrf.mxu0
    %v3737 = vadd.f32 0.0, %v3736
    %3738 = vmatmul.f32.gmra.mxu0 %v3527
    %v3739 = vpop.f32.mrf.mxu0
    %v3740 = vadd.f32 0.0, %v3739
    %3741 = vmatmul.f32.gmra.mxu0 %v3530
    %v3742 = vpop.f32.mrf.mxu0
    %v3743 = vadd.f32 0.0, %v3742
    %3744 = vmatmul.f32.gmra.mxu0 %v3533
    %v3745 = vpop.f32.mrf.mxu0
    %v3746 = vadd.f32 0.0, %v3745
    %3747 = vmatmul.f32.gmra.mxu0 %v3536
    %v3748 = vpop.f32.mrf.mxu0
    %v3749 = vadd.f32 0.0, %v3748
    %3750 = vmatmul.f32.gmra.mxu0 %v3539
    %v3751 = vpop.f32.mrf.mxu0
    %v3752 = vadd.f32 0.0, %v3751
    %3753 = vmatmul.f32.gmra.mxu0 %v3542
    %v3754 = vpop.f32.mrf.mxu0
    %v3755 = vadd.f32 0.0, %v3754
    %3756 = vmatmul.f32.gmra.mxu0 %v3545
    %v3757 = vpop.f32.mrf.mxu0
    %v3758 = vadd.f32 0.0, %v3757
    %3759 = vmatmul.f32.gmra.mxu0 %v3548
    %v3760 = vpop.f32.mrf.mxu0
    %v3761 = vadd.f32 0.0, %v3760
    %3762 = vmatmul.f32.gmra.mxu0 %v3551
    %v3763 = vpop.f32.mrf.mxu0
    %v3764 = vadd.f32 0.0, %v3763
    %3765 = vmatmul.f32.gmra.mxu0 %v3554
    %v3766 = vpop.f32.mrf.mxu0
    %v3767 = vadd.f32 0.0, %v3766
    %3768 = vmatmul.f32.gmra.mxu0 %v3557
    %v3769 = vpop.f32.mrf.mxu0
    %v3770 = vadd.f32 0.0, %v3769
    %3771 = vmatmul.f32.gmra.mxu0 %v3560
    %v3772 = vpop.f32.mrf.mxu0
    %v3773 = vadd.f32 0.0, %v3772
    %3774 = vmatmul.f32.gmra.mxu0 %v3563
    %v3775 = vpop.f32.mrf.mxu0
    %v3776 = vadd.f32 0.0, %v3775
    %3777 = vmatmul.f32.gmra.mxu0 %v3566
    %v3778 = vpop.f32.mrf.mxu0
    %v3779 = vadd.f32 0.0, %v3778
    %3780 = vmatmul.f32.gmra.mxu0 %v3569
    %v3781 = vpop.f32.mrf.mxu0
    %v3782 = vadd.f32 0.0, %v3781
    %3783 = vmatmul.f32.gmra.mxu0 %v3572
    %v3784 = vpop.f32.mrf.mxu0
    %v3785 = vadd.f32 0.0, %v3784
    %3786 = vmatmul.f32.gmra.mxu0 %v3575
    %v3787 = vpop.f32.mrf.mxu0
    %v3788 = vadd.f32 0.0, %v3787
    %3789 = vmatmul.f32.gmra.mxu0 %v3578
    %v3790 = vpop.f32.mrf.mxu0
    %v3791 = vadd.f32 0.0, %v3790
    %3792 = vmatmul.f32.gmra.mxu0 %v3581
    %v3793 = vpop.f32.mrf.mxu0
    %v3794 = vadd.f32 0.0, %v3793
    %3795 = vmatmul.f32.gmra.mxu0 %v3584
    %v3796 = vpop.f32.mrf.mxu0
    %v3797 = vadd.f32 0.0, %v3796
    %3798 = vmatmul.f32.gmra.mxu0 %v3587
    %v3799 = vpop.f32.mrf.mxu0
    %v3800 = vadd.f32 0.0, %v3799
    %3801 = vmatmul.f32.gmra.mxu0 %v3590
    %v3802 = vpop.f32.mrf.mxu0
    %v3803 = vadd.f32 0.0, %v3802
    %3804 = vmatmul.f32.gmra.mxu0 %v3593
    %v3805 = vpop.f32.mrf.mxu0
    %v3806 = vadd.f32 0.0, %v3805
    %3807 = vmatmul.f32.gmra.mxu0 %v3596
    %v3808 = vpop.f32.mrf.mxu0
    %v3809 = vadd.f32 0.0, %v3808
    %3810 = vmatmul.f32.gmra.mxu0 %v3599
    %v3811 = vpop.f32.mrf.mxu0
    %v3812 = vadd.f32 0.0, %v3811
    %3813 = vmatmul.f32.gmra.mxu0 %v3602
    %v3814 = vpop.f32.mrf.mxu0
    %v3815 = vadd.f32 0.0, %v3814
    %3816 = vmatmul.f32.gmra.mxu0 %v3605
    %v3817 = vpop.f32.mrf.mxu0
    %v3818 = vadd.f32 0.0, %v3817
    %3819 = vmatmul.f32.gmra.mxu0 %v3608
    %v3820 = vpop.f32.mrf.mxu0
    %v3821 = vadd.f32 0.0, %v3820
    %3822 = vmatmul.f32.gmra.mxu0 %v3611
    %v3823 = vpop.f32.mrf.mxu0
    %v3824 = vadd.f32 0.0, %v3823
    %3825 = vmatmul.f32.gmra.mxu0 %v3614
    %v3826 = vpop.f32.mrf.mxu0
    %v3827 = vadd.f32 0.0, %v3826
    %3828 = vmatmul.f32.gmra.mxu0 %v3617
    %v3829 = vpop.f32.mrf.mxu0
    %v3830 = vadd.f32 0.0, %v3829
    %3831 = vmatmul.f32.gmra.mxu0 %v3620
    %v3832 = vpop.f32.mrf.mxu0
    %v3833 = vadd.f32 0.0, %v3832
    %3834 = vmatmul.f32.gmra.mxu0 %v3623
    %v3835 = vpop.f32.mrf.mxu0
    %v3836 = vadd.f32 0.0, %v3835
    %3837 = vmatmul.f32.gmra.mxu0 %v3626
    %v3838 = vpop.f32.mrf.mxu0
    %v3839 = vadd.f32 0.0, %v3838
    %3840 = vmatmul.f32.gmra.mxu0 %v3629
    %v3841 = vpop.f32.mrf.mxu0
    %v3842 = vadd.f32 0.0, %v3841
    %3843 = vmatmul.f32.gmra.mxu0 %v3632
    %v3844 = vpop.f32.mrf.mxu0
    %v3845 = vadd.f32 0.0, %v3844
    %3846 = vmatmul.f32.gmra.mxu0 %v3635
    %v3847 = vpop.f32.mrf.mxu0
    %v3848 = vadd.f32 0.0, %v3847
    %3849 = vmatmul.f32.gmra.mxu0 %v3638
    %v3850 = vpop.f32.mrf.mxu0
    %v3851 = vadd.f32 0.0, %v3850
    %3852 = vmatmul.f32.gmra.mxu0 %v3641
    %v3853 = vpop.f32.mrf.mxu0
    %v3854 = vadd.f32 0.0, %v3853
    %3855 = vmatmul.f32.gmra.mxu0 %v3644
    %v3856 = vpop.f32.mrf.mxu0
    %v3857 = vadd.f32 0.0, %v3856
    %3858 = vmatmul.f32.gmra.mxu0 %v3647
    %v3859 = vpop.f32.mrf.mxu0
    %v3860 = vadd.f32 0.0, %v3859
    %3861 = vmatmul.f32.gmra.mxu0 %v3650
    %v3862 = vpop.f32.mrf.mxu0
    %v3863 = vadd.f32 0.0, %v3862
    %3864 = vdwg.mxu0
    %v3865 = vld [vmem:[%s2] sm:$0x1]
    %v3867 = vperm.slane %v3865, 0
    %v3869 = vmul.f32 %v3674, %v3867
    %v3870 = vmul.f32 %v3677, %v3867
    %v3871 = vmul.f32 %v3680, %v3867
    %v3872 = vmul.f32 %v3683, %v3867
    %v3873 = vmul.f32 %v3686, %v3867
    %v3874 = vmul.f32 %v3689, %v3867
    %v3875 = vmul.f32 %v3692, %v3867
    %v3876 = vmul.f32 %v3695, %v3867
    %v3877 = vmul.f32 %v3698, %v3867
    %v3878 = vmul.f32 %v3701, %v3867
    %v3879 = vmul.f32 %v3704, %v3867
    %v3880 = vmul.f32 %v3707, %v3867
    %v3881 = vmul.f32 %v3710, %v3867
    %v3882 = vmul.f32 %v3713, %v3867
    %v3883 = vmul.f32 %v3716, %v3867
    %v3884 = vmul.f32 %v3719, %v3867
    %v3885 = vmul.f32 %v3722, %v3867
    %v3886 = vmul.f32 %v3725, %v3867
    %v3887 = vmul.f32 %v3728, %v3867
    %v3888 = vmul.f32 %v3731, %v3867
    %v3889 = vmul.f32 %v3734, %v3867
    %v3890 = vmul.f32 %v3737, %v3867
    %v3891 = vmul.f32 %v3740, %v3867
    %v3892 = vmul.f32 %v3743, %v3867
    %v3893 = vmul.f32 %v3746, %v3867
    %v3894 = vmul.f32 %v3749, %v3867
    %v3895 = vmul.f32 %v3752, %v3867
    %v3896 = vmul.f32 %v3755, %v3867
    %v3897 = vmul.f32 %v3758, %v3867
    %v3898 = vmul.f32 %v3761, %v3867
    %v3899 = vmul.f32 %v3764, %v3867
    %v3900 = vmul.f32 %v3767, %v3867
    %v3901 = vmul.f32 %v3770, %v3867
    %v3902 = vmul.f32 %v3773, %v3867
    %v3903 = vmul.f32 %v3776, %v3867
    %v3904 = vmul.f32 %v3779, %v3867
    %v3905 = vmul.f32 %v3782, %v3867
    %v3906 = vmul.f32 %v3785, %v3867
    %v3907 = vmul.f32 %v3788, %v3867
    %v3908 = vmul.f32 %v3791, %v3867
    %v3909 = vmul.f32 %v3794, %v3867
    %v3910 = vmul.f32 %v3797, %v3867
    %v3911 = vmul.f32 %v3800, %v3867
    %v3912 = vmul.f32 %v3803, %v3867
    %v3913 = vmul.f32 %v3806, %v3867
    %v3914 = vmul.f32 %v3809, %v3867
    %v3915 = vmul.f32 %v3812, %v3867
    %v3916 = vmul.f32 %v3815, %v3867
    %v3917 = vmul.f32 %v3818, %v3867
    %v3918 = vmul.f32 %v3821, %v3867
    %v3919 = vmul.f32 %v3824, %v3867
    %v3920 = vmul.f32 %v3827, %v3867
    %v3921 = vmul.f32 %v3830, %v3867
    %v3922 = vmul.f32 %v3833, %v3867
    %v3923 = vmul.f32 %v3836, %v3867
    %v3924 = vmul.f32 %v3839, %v3867
    %v3925 = vmul.f32 %v3842, %v3867
    %v3926 = vmul.f32 %v3845, %v3867
    %v3927 = vmul.f32 %v3848, %v3867
    %v3928 = vmul.f32 %v3851, %v3867
    %v3929 = vmul.f32 %v3854, %v3867
    %v3930 = vmul.f32 %v3857, %v3867
    %v3931 = vmul.f32 %v3860, %v3867
    %v3932 = vmul.f32 %v3863, %v3867
    %v3933 = vld [vmem:[%s3] sm:$0x1]
    %v3935 = vperm.slane %v3933, 0
    %v3937 = vadd.f32 %v3869, %v3935
    %v3938 = vadd.f32 %v3870, %v3935
    %v3939 = vadd.f32 %v3871, %v3935
    %v3940 = vadd.f32 %v3872, %v3935
    %v3941 = vadd.f32 %v3873, %v3935
    %v3942 = vadd.f32 %v3874, %v3935
    %v3943 = vadd.f32 %v3875, %v3935
    %v3944 = vadd.f32 %v3876, %v3935
    %v3945 = vadd.f32 %v3877, %v3935
    %v3946 = vadd.f32 %v3878, %v3935
    %v3947 = vadd.f32 %v3879, %v3935
    %v3948 = vadd.f32 %v3880, %v3935
    %v3949 = vadd.f32 %v3881, %v3935
    %v3950 = vadd.f32 %v3882, %v3935
    %v3951 = vadd.f32 %v3883, %v3935
    %v3952 = vadd.f32 %v3884, %v3935
    %v3953 = vadd.f32 %v3885, %v3935
    %v3954 = vadd.f32 %v3886, %v3935
    %v3955 = vadd.f32 %v3887, %v3935
    %v3956 = vadd.f32 %v3888, %v3935
    %v3957 = vadd.f32 %v3889, %v3935
    %v3958 = vadd.f32 %v3890, %v3935
    %v3959 = vadd.f32 %v3891, %v3935
    %v3960 = vadd.f32 %v3892, %v3935
    %v3961 = vadd.f32 %v3893, %v3935
    %v3962 = vadd.f32 %v3894, %v3935
    %v3963 = vadd.f32 %v3895, %v3935
    %v3964 = vadd.f32 %v3896, %v3935
    %v3965 = vadd.f32 %v3897, %v3935
    %v3966 = vadd.f32 %v3898, %v3935
    %v3967 = vadd.f32 %v3899, %v3935
    %v3968 = vadd.f32 %v3900, %v3935
    %v3969 = vadd.f32 %v3901, %v3935
    %v3970 = vadd.f32 %v3902, %v3935
    %v3971 = vadd.f32 %v3903, %v3935
    %v3972 = vadd.f32 %v3904, %v3935
    %v3973 = vadd.f32 %v3905, %v3935
    %v3974 = vadd.f32 %v3906, %v3935
    %v3975 = vadd.f32 %v3907, %v3935
    %v3976 = vadd.f32 %v3908, %v3935
    %v3977 = vadd.f32 %v3909, %v3935
    %v3978 = vadd.f32 %v3910, %v3935
    %v3979 = vadd.f32 %v3911, %v3935
    %v3980 = vadd.f32 %v3912, %v3935
    %v3981 = vadd.f32 %v3913, %v3935
    %v3982 = vadd.f32 %v3914, %v3935
    %v3983 = vadd.f32 %v3915, %v3935
    %v3984 = vadd.f32 %v3916, %v3935
    %v3985 = vadd.f32 %v3917, %v3935
    %v3986 = vadd.f32 %v3918, %v3935
    %v3987 = vadd.f32 %v3919, %v3935
    %v3988 = vadd.f32 %v3920, %v3935
    %v3989 = vadd.f32 %v3921, %v3935
    %v3990 = vadd.f32 %v3922, %v3935
    %v3991 = vadd.f32 %v3923, %v3935
    %v3992 = vadd.f32 %v3924, %v3935
    %v3993 = vadd.f32 %v3925, %v3935
    %v3994 = vadd.f32 %v3926, %v3935
    %v3995 = vadd.f32 %v3927, %v3935
    %v3996 = vadd.f32 %v3928, %v3935
    %v3997 = vadd.f32 %v3929, %v3935
    %v3998 = vadd.f32 %v3930, %v3935
    %v3999 = vadd.f32 %v3931, %v3935
    %v4000 = vadd.f32 %v3932, %v3935
    %v4001 = vxor.u32 %v3937, 2147483648
    %v4002 = vxor.u32 %v3938, 2147483648
    %v4003 = vxor.u32 %v3939, 2147483648
    %v4004 = vxor.u32 %v3940, 2147483648
    %v4005 = vxor.u32 %v3941, 2147483648
    %v4006 = vxor.u32 %v3942, 2147483648
    %v4007 = vxor.u32 %v3943, 2147483648
    %v4008 = vxor.u32 %v3944, 2147483648
    %v4009 = vxor.u32 %v3945, 2147483648
    %v4010 = vxor.u32 %v3946, 2147483648
    %v4011 = vxor.u32 %v3947, 2147483648
    %v4012 = vxor.u32 %v3948, 2147483648
    %v4013 = vxor.u32 %v3949, 2147483648
    %v4014 = vxor.u32 %v3950, 2147483648
    %v4015 = vxor.u32 %v3951, 2147483648
    %v4016 = vxor.u32 %v3952, 2147483648
    %v4017 = vxor.u32 %v3953, 2147483648
    %v4018 = vxor.u32 %v3954, 2147483648
    %v4019 = vxor.u32 %v3955, 2147483648
    %v4020 = vxor.u32 %v3956, 2147483648
    %v4021 = vxor.u32 %v3957, 2147483648
    %v4022 = vxor.u32 %v3958, 2147483648
    %v4023 = vxor.u32 %v3959, 2147483648
    %v4024 = vxor.u32 %v3960, 2147483648
    %v4025 = vxor.u32 %v3961, 2147483648
    %v4026 = vxor.u32 %v3962, 2147483648
    %v4027 = vxor.u32 %v3963, 2147483648
    %v4028 = vxor.u32 %v3964, 2147483648
    %v4029 = vxor.u32 %v3965, 2147483648
    %v4030 = vxor.u32 %v3966, 2147483648
    %v4031 = vxor.u32 %v3967, 2147483648
    %v4032 = vxor.u32 %v3968, 2147483648
    %v4033 = vxor.u32 %v3969, 2147483648
    %v4034 = vxor.u32 %v3970, 2147483648
    %v4035 = vxor.u32 %v3971, 2147483648
    %v4036 = vxor.u32 %v3972, 2147483648
    %v4037 = vxor.u32 %v3973, 2147483648
    %v4038 = vxor.u32 %v3974, 2147483648
    %v4039 = vxor.u32 %v3975, 2147483648
    %v4040 = vxor.u32 %v3976, 2147483648
    %v4041 = vxor.u32 %v3977, 2147483648
    %v4042 = vxor.u32 %v3978, 2147483648
    %v4043 = vxor.u32 %v3979, 2147483648
    %v4044 = vxor.u32 %v3980, 2147483648
    %v4045 = vxor.u32 %v3981, 2147483648
    %v4046 = vxor.u32 %v3982, 2147483648
    %v4047 = vxor.u32 %v3983, 2147483648
    %v4048 = vxor.u32 %v3984, 2147483648
    %v4049 = vxor.u32 %v3985, 2147483648
    %v4050 = vxor.u32 %v3986, 2147483648
    %v4051 = vxor.u32 %v3987, 2147483648
    %v4052 = vxor.u32 %v3988, 2147483648
    %v4053 = vxor.u32 %v3989, 2147483648
    %v4054 = vxor.u32 %v3990, 2147483648
    %v4055 = vxor.u32 %v3991, 2147483648
    %v4056 = vxor.u32 %v3992, 2147483648
    %v4057 = vxor.u32 %v3993, 2147483648
    %v4058 = vxor.u32 %v3994, 2147483648
    %v4059 = vxor.u32 %v3995, 2147483648
    %v4060 = vxor.u32 %v3996, 2147483648
    %v4061 = vxor.u32 %v3997, 2147483648
    %v4062 = vxor.u32 %v3998, 2147483648
    %v4063 = vxor.u32 %v3999, 2147483648
    %v4064 = vxor.u32 %v4000, 2147483648
    %v4065 = vmul.f32 %v4001, 1.442695
    %v4066 = vpow.pop %v4065
    %v4067 = vmul.f32 %v4002, 1.442695
    %v4068 = vpow.pop %v4067
    %v4069 = vmul.f32 %v4003, 1.442695
    %v4070 = vpow.pop %v4069
    %v4071 = vmul.f32 %v4004, 1.442695
    %v4072 = vpow.pop %v4071
    %v4073 = vmul.f32 %v4005, 1.442695
    %v4074 = vpow.pop %v4073
    %v4075 = vmul.f32 %v4006, 1.442695
    %v4076 = vpow.pop %v4075
    %v4077 = vmul.f32 %v4007, 1.442695
    %v4078 = vpow.pop %v4077
    %v4079 = vmul.f32 %v4008, 1.442695
    %v4080 = vpow.pop %v4079
    %v4081 = vmul.f32 %v4009, 1.442695
    %v4082 = vpow.pop %v4081
    %v4083 = vmul.f32 %v4010, 1.442695
    %v4084 = vpow.pop %v4083
    %v4085 = vmul.f32 %v4011, 1.442695
    %v4086 = vpow.pop %v4085
    %v4087 = vmul.f32 %v4012, 1.442695
    %v4088 = vpow.pop %v4087
    %v4089 = vmul.f32 %v4013, 1.442695
    %v4090 = vpow.pop %v4089
    %v4091 = vmul.f32 %v4014, 1.442695
    %v4092 = vpow.pop %v4091
    %v4093 = vmul.f32 %v4015, 1.442695
    %v4094 = vpow.pop %v4093
    %v4095 = vmul.f32 %v4016, 1.442695
    %v4096 = vpow.pop %v4095
    %v4097 = vmul.f32 %v4017, 1.442695
    %v4098 = vpow.pop %v4097
    %v4099 = vmul.f32 %v4018, 1.442695
    %v4100 = vpow.pop %v4099
    %v4101 = vmul.f32 %v4019, 1.442695
    %v4102 = vpow.pop %v4101
    %v4103 = vmul.f32 %v4020, 1.442695
    %v4104 = vpow.pop %v4103
    %v4105 = vmul.f32 %v4021, 1.442695
    %v4106 = vpow.pop %v4105
    %v4107 = vmul.f32 %v4022, 1.442695
    %v4108 = vpow.pop %v4107
    %v4109 = vmul.f32 %v4023, 1.442695
    %v4110 = vpow.pop %v4109
    %v4111 = vmul.f32 %v4024, 1.442695
    %v4112 = vpow.pop %v4111
    %v4113 = vmul.f32 %v4025, 1.442695
    %v4114 = vpow.pop %v4113
    %v4115 = vmul.f32 %v4026, 1.442695
    %v4116 = vpow.pop %v4115
    %v4117 = vmul.f32 %v4027, 1.442695
    %v4118 = vpow.pop %v4117
    %v4119 = vmul.f32 %v4028, 1.442695
    %v4120 = vpow.pop %v4119
    %v4121 = vmul.f32 %v4029, 1.442695
    %v4122 = vpow.pop %v4121
    %v4123 = vmul.f32 %v4030, 1.442695
    %v4124 = vpow.pop %v4123
    %v4125 = vmul.f32 %v4031, 1.442695
    %v4126 = vpow.pop %v4125
    %v4127 = vmul.f32 %v4032, 1.442695
    %v4128 = vpow.pop %v4127
    %v4129 = vmul.f32 %v4033, 1.442695
    %v4130 = vpow.pop %v4129
    %v4131 = vmul.f32 %v4034, 1.442695
    %v4132 = vpow.pop %v4131
    %v4133 = vmul.f32 %v4035, 1.442695
    %v4134 = vpow.pop %v4133
    %v4135 = vmul.f32 %v4036, 1.442695
    %v4136 = vpow.pop %v4135
    %v4137 = vmul.f32 %v4037, 1.442695
    %v4138 = vpow.pop %v4137
    %v4139 = vmul.f32 %v4038, 1.442695
    %v4140 = vpow.pop %v4139
    %v4141 = vmul.f32 %v4039, 1.442695
    %v4142 = vpow.pop %v4141
    %v4143 = vmul.f32 %v4040, 1.442695
    %v4144 = vpow.pop %v4143
    %v4145 = vmul.f32 %v4041, 1.442695
    %v4146 = vpow.pop %v4145
    %v4147 = vmul.f32 %v4042, 1.442695
    %v4148 = vpow.pop %v4147
    %v4149 = vmul.f32 %v4043, 1.442695
    %v4150 = vpow.pop %v4149
    %v4151 = vmul.f32 %v4044, 1.442695
    %v4152 = vpow.pop %v4151
    %v4153 = vmul.f32 %v4045, 1.442695
    %v4154 = vpow.pop %v4153
    %v4155 = vmul.f32 %v4046, 1.442695
    %v4156 = vpow.pop %v4155
    %v4157 = vmul.f32 %v4047, 1.442695
    %v4158 = vpow.pop %v4157
    %v4159 = vmul.f32 %v4048, 1.442695
    %v4160 = vpow.pop %v4159
    %v4161 = vmul.f32 %v4049, 1.442695
    %v4162 = vpow.pop %v4161
    %v4163 = vmul.f32 %v4050, 1.442695
    %v4164 = vpow.pop %v4163
    %v4165 = vmul.f32 %v4051, 1.442695
    %v4166 = vpow.pop %v4165
    %v4167 = vmul.f32 %v4052, 1.442695
    %v4168 = vpow.pop %v4167
    %v4169 = vmul.f32 %v4053, 1.442695
    %v4170 = vpow.pop %v4169
    %v4171 = vmul.f32 %v4054, 1.442695
    %v4172 = vpow.pop %v4171
    %v4173 = vmul.f32 %v4055, 1.442695
    %v4174 = vpow.pop %v4173
    %v4175 = vmul.f32 %v4056, 1.442695
    %v4176 = vpow.pop %v4175
    %v4177 = vmul.f32 %v4057, 1.442695
    %v4178 = vpow.pop %v4177
    %v4179 = vmul.f32 %v4058, 1.442695
    %v4180 = vpow.pop %v4179
    %v4181 = vmul.f32 %v4059, 1.442695
    %v4182 = vpow.pop %v4181
    %v4183 = vmul.f32 %v4060, 1.442695
    %v4184 = vpow.pop %v4183
    %v4185 = vmul.f32 %v4061, 1.442695
    %v4186 = vpow.pop %v4185
    %v4187 = vmul.f32 %v4062, 1.442695
    %v4188 = vpow.pop %v4187
    %v4189 = vmul.f32 %v4063, 1.442695
    %v4190 = vpow.pop %v4189
    %v4191 = vmul.f32 %v4064, 1.442695
    %v4192 = vpow.pop %v4191
    %v4193 = vadd.f32 %v4066, 1.0
    %v4194 = vadd.f32 %v4068, 1.0
    %v4195 = vadd.f32 %v4070, 1.0
    %v4196 = vadd.f32 %v4072, 1.0
    %v4197 = vadd.f32 %v4074, 1.0
    %v4198 = vadd.f32 %v4076, 1.0
    %v4199 = vadd.f32 %v4078, 1.0
    %v4200 = vadd.f32 %v4080, 1.0
    %v4201 = vadd.f32 %v4082, 1.0
    %v4202 = vadd.f32 %v4084, 1.0
    %v4203 = vadd.f32 %v4086, 1.0
    %v4204 = vadd.f32 %v4088, 1.0
    %v4205 = vadd.f32 %v4090, 1.0
    %v4206 = vadd.f32 %v4092, 1.0
    %v4207 = vadd.f32 %v4094, 1.0
    %v4208 = vadd.f32 %v4096, 1.0
    %v4209 = vadd.f32 %v4098, 1.0
    %v4210 = vadd.f32 %v4100, 1.0
    %v4211 = vadd.f32 %v4102, 1.0
    %v4212 = vadd.f32 %v4104, 1.0
    %v4213 = vadd.f32 %v4106, 1.0
    %v4214 = vadd.f32 %v4108, 1.0
    %v4215 = vadd.f32 %v4110, 1.0
    %v4216 = vadd.f32 %v4112, 1.0
    %v4217 = vadd.f32 %v4114, 1.0
    %v4218 = vadd.f32 %v4116, 1.0
    %v4219 = vadd.f32 %v4118, 1.0
    %v4220 = vadd.f32 %v4120, 1.0
    %v4221 = vadd.f32 %v4122, 1.0
    %v4222 = vadd.f32 %v4124, 1.0
    %v4223 = vadd.f32 %v4126, 1.0
    %v4224 = vadd.f32 %v4128, 1.0
    %v4225 = vadd.f32 %v4130, 1.0
    %v4226 = vadd.f32 %v4132, 1.0
    %v4227 = vadd.f32 %v4134, 1.0
    %v4228 = vadd.f32 %v4136, 1.0
    %v4229 = vadd.f32 %v4138, 1.0
    %v4230 = vadd.f32 %v4140, 1.0
    %v4231 = vadd.f32 %v4142, 1.0
    %v4232 = vadd.f32 %v4144, 1.0
    %v4233 = vadd.f32 %v4146, 1.0
    %v4234 = vadd.f32 %v4148, 1.0
    %v4235 = vadd.f32 %v4150, 1.0
    %v4236 = vadd.f32 %v4152, 1.0
    %v4237 = vadd.f32 %v4154, 1.0
    %v4238 = vadd.f32 %v4156, 1.0
    %v4239 = vadd.f32 %v4158, 1.0
    %v4240 = vadd.f32 %v4160, 1.0
    %v4241 = vadd.f32 %v4162, 1.0
    %v4242 = vadd.f32 %v4164, 1.0
    %v4243 = vadd.f32 %v4166, 1.0
    %v4244 = vadd.f32 %v4168, 1.0
    %v4245 = vadd.f32 %v4170, 1.0
    %v4246 = vadd.f32 %v4172, 1.0
    %v4247 = vadd.f32 %v4174, 1.0
    %v4248 = vadd.f32 %v4176, 1.0
    %v4249 = vadd.f32 %v4178, 1.0
    %v4250 = vadd.f32 %v4180, 1.0
    %v4251 = vadd.f32 %v4182, 1.0
    %v4252 = vadd.f32 %v4184, 1.0
    %v4253 = vadd.f32 %v4186, 1.0
    %v4254 = vadd.f32 %v4188, 1.0
    %v4255 = vadd.f32 %v4190, 1.0
    %v4256 = vadd.f32 %v4192, 1.0
    %v4257 = vrcp.pop %v4193
    %v4258 = vmul.f32 %v4193, %v4257
    %v4259 = vsub.f32 1.0, %v4258
    %v4260 = vmul.f32 %v4257, %v4259
    %v4261 = vadd.f32 %v4257, %v4260
    %vm4262 = vweird.f32 %v4193
    %vm4263 = vweird.f32 %v4257
    %vm4264 = vmor %vm4262, %vm4263
    %v4265 = vsel %vm4264, %v4257, %v4261
    %v4266 = vand.u32 2147483647, %v4193
    %vm4267 = vcmp.eq.f32.partialorder %v4266, 8.507059e+37
    %v4268 = vand.u32 %v4193, 2147483648
    %v4269 = vor.u32 1.1754944e-38, %v4268
    %v4270 = vsel %vm4267, %v4269, %v4265
    %v4271 = vmul.f32 1.0, %v4270
    %v4272 = vrcp.pop %v4194
    %v4273 = vmul.f32 %v4194, %v4272
    %v4274 = vsub.f32 1.0, %v4273
    %v4275 = vmul.f32 %v4272, %v4274
    %v4276 = vadd.f32 %v4272, %v4275
    %vm4277 = vweird.f32 %v4194
    %vm4278 = vweird.f32 %v4272
    %vm4279 = vmor %vm4277, %vm4278
    %v4280 = vsel %vm4279, %v4272, %v4276
    %v4281 = vand.u32 2147483647, %v4194
    %vm4282 = vcmp.eq.f32.partialorder %v4281, 8.507059e+37
    %v4283 = vand.u32 %v4194, 2147483648
    %v4284 = vor.u32 1.1754944e-38, %v4283
    %v4285 = vsel %vm4282, %v4284, %v4280
    %v4286 = vmul.f32 1.0, %v4285
    %v4287 = vrcp.pop %v4195
    %v4288 = vmul.f32 %v4195, %v4287
    %v4289 = vsub.f32 1.0, %v4288
    %v4290 = vmul.f32 %v4287, %v4289
    %v4291 = vadd.f32 %v4287, %v4290
    %vm4292 = vweird.f32 %v4195
    %vm4293 = vweird.f32 %v4287
    %vm4294 = vmor %vm4292, %vm4293
    %v4295 = vsel %vm4294, %v4287, %v4291
    %v4296 = vand.u32 2147483647, %v4195
    %vm4297 = vcmp.eq.f32.partialorder %v4296, 8.507059e+37
    %v4298 = vand.u32 %v4195, 2147483648
    %v4299 = vor.u32 1.1754944e-38, %v4298
    %v4300 = vsel %vm4297, %v4299, %v4295
    %v4301 = vmul.f32 1.0, %v4300
    %v4302 = vrcp.pop %v4196
    %v4303 = vmul.f32 %v4196, %v4302
    %v4304 = vsub.f32 1.0, %v4303
    %v4305 = vmul.f32 %v4302, %v4304
    %v4306 = vadd.f32 %v4302, %v4305
    %vm4307 = vweird.f32 %v4196
    %vm4308 = vweird.f32 %v4302
    %vm4309 = vmor %vm4307, %vm4308
    %v4310 = vsel %vm4309, %v4302, %v4306
    %v4311 = vand.u32 2147483647, %v4196
    %vm4312 = vcmp.eq.f32.partialorder %v4311, 8.507059e+37
    %v4313 = vand.u32 %v4196, 2147483648
    %v4314 = vor.u32 1.1754944e-38, %v4313
    %v4315 = vsel %vm4312, %v4314, %v4310
    %v4316 = vmul.f32 1.0, %v4315
    %v4317 = vrcp.pop %v4197
    %v4318 = vmul.f32 %v4197, %v4317
    %v4319 = vsub.f32 1.0, %v4318
    %v4320 = vmul.f32 %v4317, %v4319
    %v4321 = vadd.f32 %v4317, %v4320
    %vm4322 = vweird.f32 %v4197
    %vm4323 = vweird.f32 %v4317
    %vm4324 = vmor %vm4322, %vm4323
    %v4325 = vsel %vm4324, %v4317, %v4321
    %v4326 = vand.u32 2147483647, %v4197
    %vm4327 = vcmp.eq.f32.partialorder %v4326, 8.507059e+37
    %v4328 = vand.u32 %v4197, 2147483648
    %v4329 = vor.u32 1.1754944e-38, %v4328
    %v4330 = vsel %vm4327, %v4329, %v4325
    %v4331 = vmul.f32 1.0, %v4330
    %v4332 = vrcp.pop %v4198
    %v4333 = vmul.f32 %v4198, %v4332
    %v4334 = vsub.f32 1.0, %v4333
    %v4335 = vmul.f32 %v4332, %v4334
    %v4336 = vadd.f32 %v4332, %v4335
    %vm4337 = vweird.f32 %v4198
    %vm4338 = vweird.f32 %v4332
    %vm4339 = vmor %vm4337, %vm4338
    %v4340 = vsel %vm4339, %v4332, %v4336
    %v4341 = vand.u32 2147483647, %v4198
    %vm4342 = vcmp.eq.f32.partialorder %v4341, 8.507059e+37
    %v4343 = vand.u32 %v4198, 2147483648
    %v4344 = vor.u32 1.1754944e-38, %v4343
    %v4345 = vsel %vm4342, %v4344, %v4340
    %v4346 = vmul.f32 1.0, %v4345
    %v4347 = vrcp.pop %v4199
    %v4348 = vmul.f32 %v4199, %v4347
    %v4349 = vsub.f32 1.0, %v4348
    %v4350 = vmul.f32 %v4347, %v4349
    %v4351 = vadd.f32 %v4347, %v4350
    %vm4352 = vweird.f32 %v4199
    %vm4353 = vweird.f32 %v4347
    %vm4354 = vmor %vm4352, %vm4353
    %v4355 = vsel %vm4354, %v4347, %v4351
    %v4356 = vand.u32 2147483647, %v4199
    %vm4357 = vcmp.eq.f32.partialorder %v4356, 8.507059e+37
    %v4358 = vand.u32 %v4199, 2147483648
    %v4359 = vor.u32 1.1754944e-38, %v4358
    %v4360 = vsel %vm4357, %v4359, %v4355
    %v4361 = vmul.f32 1.0, %v4360
    %v4362 = vrcp.pop %v4200
    %v4363 = vmul.f32 %v4200, %v4362
    %v4364 = vsub.f32 1.0, %v4363
    %v4365 = vmul.f32 %v4362, %v4364
    %v4366 = vadd.f32 %v4362, %v4365
    %vm4367 = vweird.f32 %v4200
    %vm4368 = vweird.f32 %v4362
    %vm4369 = vmor %vm4367, %vm4368
    %v4370 = vsel %vm4369, %v4362, %v4366
    %v4371 = vand.u32 2147483647, %v4200
    %vm4372 = vcmp.eq.f32.partialorder %v4371, 8.507059e+37
    %v4373 = vand.u32 %v4200, 2147483648
    %v4374 = vor.u32 1.1754944e-38, %v4373
    %v4375 = vsel %vm4372, %v4374, %v4370
    %v4376 = vmul.f32 1.0, %v4375
    %v4377 = vrcp.pop %v4201
    %v4378 = vmul.f32 %v4201, %v4377
    %v4379 = vsub.f32 1.0, %v4378
    %v4380 = vmul.f32 %v4377, %v4379
    %v4381 = vadd.f32 %v4377, %v4380
    %vm4382 = vweird.f32 %v4201
    %vm4383 = vweird.f32 %v4377
    %vm4384 = vmor %vm4382, %vm4383
    %v4385 = vsel %vm4384, %v4377, %v4381
    %v4386 = vand.u32 2147483647, %v4201
    %vm4387 = vcmp.eq.f32.partialorder %v4386, 8.507059e+37
    %v4388 = vand.u32 %v4201, 2147483648
    %v4389 = vor.u32 1.1754944e-38, %v4388
    %v4390 = vsel %vm4387, %v4389, %v4385
    %v4391 = vmul.f32 1.0, %v4390
    %v4392 = vrcp.pop %v4202
    %v4393 = vmul.f32 %v4202, %v4392
    %v4394 = vsub.f32 1.0, %v4393
    %v4395 = vmul.f32 %v4392, %v4394
    %v4396 = vadd.f32 %v4392, %v4395
    %vm4397 = vweird.f32 %v4202
    %vm4398 = vweird.f32 %v4392
    %vm4399 = vmor %vm4397, %vm4398
    %v4400 = vsel %vm4399, %v4392, %v4396
    %v4401 = vand.u32 2147483647, %v4202
    %vm4402 = vcmp.eq.f32.partialorder %v4401, 8.507059e+37
    %v4403 = vand.u32 %v4202, 2147483648
    %v4404 = vor.u32 1.1754944e-38, %v4403
    %v4405 = vsel %vm4402, %v4404, %v4400
    %v4406 = vmul.f32 1.0, %v4405
    %v4407 = vrcp.pop %v4203
    %v4408 = vmul.f32 %v4203, %v4407
    %v4409 = vsub.f32 1.0, %v4408
    %v4410 = vmul.f32 %v4407, %v4409
    %v4411 = vadd.f32 %v4407, %v4410
    %vm4412 = vweird.f32 %v4203
    %vm4413 = vweird.f32 %v4407
    %vm4414 = vmor %vm4412, %vm4413
    %v4415 = vsel %vm4414, %v4407, %v4411
    %v4416 = vand.u32 2147483647, %v4203
    %vm4417 = vcmp.eq.f32.partialorder %v4416, 8.507059e+37
    %v4418 = vand.u32 %v4203, 2147483648
    %v4419 = vor.u32 1.1754944e-38, %v4418
    %v4420 = vsel %vm4417, %v4419, %v4415
    %v4421 = vmul.f32 1.0, %v4420
    %v4422 = vrcp.pop %v4204
    %v4423 = vmul.f32 %v4204, %v4422
    %v4424 = vsub.f32 1.0, %v4423
    %v4425 = vmul.f32 %v4422, %v4424
    %v4426 = vadd.f32 %v4422, %v4425
    %vm4427 = vweird.f32 %v4204
    %vm4428 = vweird.f32 %v4422
    %vm4429 = vmor %vm4427, %vm4428
    %v4430 = vsel %vm4429, %v4422, %v4426
    %v4431 = vand.u32 2147483647, %v4204
    %vm4432 = vcmp.eq.f32.partialorder %v4431, 8.507059e+37
    %v4433 = vand.u32 %v4204, 2147483648
    %v4434 = vor.u32 1.1754944e-38, %v4433
    %v4435 = vsel %vm4432, %v4434, %v4430
    %v4436 = vmul.f32 1.0, %v4435
    %v4437 = vrcp.pop %v4205
    %v4438 = vmul.f32 %v4205, %v4437
    %v4439 = vsub.f32 1.0, %v4438
    %v4440 = vmul.f32 %v4437, %v4439
    %v4441 = vadd.f32 %v4437, %v4440
    %vm4442 = vweird.f32 %v4205
    %vm4443 = vweird.f32 %v4437
    %vm4444 = vmor %vm4442, %vm4443
    %v4445 = vsel %vm4444, %v4437, %v4441
    %v4446 = vand.u32 2147483647, %v4205
    %vm4447 = vcmp.eq.f32.partialorder %v4446, 8.507059e+37
    %v4448 = vand.u32 %v4205, 2147483648
    %v4449 = vor.u32 1.1754944e-38, %v4448
    %v4450 = vsel %vm4447, %v4449, %v4445
    %v4451 = vmul.f32 1.0, %v4450
    %v4452 = vrcp.pop %v4206
    %v4453 = vmul.f32 %v4206, %v4452
    %v4454 = vsub.f32 1.0, %v4453
    %v4455 = vmul.f32 %v4452, %v4454
    %v4456 = vadd.f32 %v4452, %v4455
    %vm4457 = vweird.f32 %v4206
    %vm4458 = vweird.f32 %v4452
    %vm4459 = vmor %vm4457, %vm4458
    %v4460 = vsel %vm4459, %v4452, %v4456
    %v4461 = vand.u32 2147483647, %v4206
    %vm4462 = vcmp.eq.f32.partialorder %v4461, 8.507059e+37
    %v4463 = vand.u32 %v4206, 2147483648
    %v4464 = vor.u32 1.1754944e-38, %v4463
    %v4465 = vsel %vm4462, %v4464, %v4460
    %v4466 = vmul.f32 1.0, %v4465
    %v4467 = vrcp.pop %v4207
    %v4468 = vmul.f32 %v4207, %v4467
    %v4469 = vsub.f32 1.0, %v4468
    %v4470 = vmul.f32 %v4467, %v4469
    %v4471 = vadd.f32 %v4467, %v4470
    %vm4472 = vweird.f32 %v4207
    %vm4473 = vweird.f32 %v4467
    %vm4474 = vmor %vm4472, %vm4473
    %v4475 = vsel %vm4474, %v4467, %v4471
    %v4476 = vand.u32 2147483647, %v4207
    %vm4477 = vcmp.eq.f32.partialorder %v4476, 8.507059e+37
    %v4478 = vand.u32 %v4207, 2147483648
    %v4479 = vor.u32 1.1754944e-38, %v4478
    %v4480 = vsel %vm4477, %v4479, %v4475
    %v4481 = vmul.f32 1.0, %v4480
    %v4482 = vrcp.pop %v4208
    %v4483 = vmul.f32 %v4208, %v4482
    %v4484 = vsub.f32 1.0, %v4483
    %v4485 = vmul.f32 %v4482, %v4484
    %v4486 = vadd.f32 %v4482, %v4485
    %vm4487 = vweird.f32 %v4208
    %vm4488 = vweird.f32 %v4482
    %vm4489 = vmor %vm4487, %vm4488
    %v4490 = vsel %vm4489, %v4482, %v4486
    %v4491 = vand.u32 2147483647, %v4208
    %vm4492 = vcmp.eq.f32.partialorder %v4491, 8.507059e+37
    %v4493 = vand.u32 %v4208, 2147483648
    %v4494 = vor.u32 1.1754944e-38, %v4493
    %v4495 = vsel %vm4492, %v4494, %v4490
    %v4496 = vmul.f32 1.0, %v4495
    %v4497 = vrcp.pop %v4209
    %v4498 = vmul.f32 %v4209, %v4497
    %v4499 = vsub.f32 1.0, %v4498
    %v4500 = vmul.f32 %v4497, %v4499
    %v4501 = vadd.f32 %v4497, %v4500
    %vm4502 = vweird.f32 %v4209
    %vm4503 = vweird.f32 %v4497
    %vm4504 = vmor %vm4502, %vm4503
    %v4505 = vsel %vm4504, %v4497, %v4501
    %v4506 = vand.u32 2147483647, %v4209
    %vm4507 = vcmp.eq.f32.partialorder %v4506, 8.507059e+37
    %v4508 = vand.u32 %v4209, 2147483648
    %v4509 = vor.u32 1.1754944e-38, %v4508
    %v4510 = vsel %vm4507, %v4509, %v4505
    %v4511 = vmul.f32 1.0, %v4510
    %v4512 = vrcp.pop %v4210
    %v4513 = vmul.f32 %v4210, %v4512
    %v4514 = vsub.f32 1.0, %v4513
    %v4515 = vmul.f32 %v4512, %v4514
    %v4516 = vadd.f32 %v4512, %v4515
    %vm4517 = vweird.f32 %v4210
    %vm4518 = vweird.f32 %v4512
    %vm4519 = vmor %vm4517, %vm4518
    %v4520 = vsel %vm4519, %v4512, %v4516
    %v4521 = vand.u32 2147483647, %v4210
    %vm4522 = vcmp.eq.f32.partialorder %v4521, 8.507059e+37
    %v4523 = vand.u32 %v4210, 2147483648
    %v4524 = vor.u32 1.1754944e-38, %v4523
    %v4525 = vsel %vm4522, %v4524, %v4520
    %v4526 = vmul.f32 1.0, %v4525
    %v4527 = vrcp.pop %v4211
    %v4528 = vmul.f32 %v4211, %v4527
    %v4529 = vsub.f32 1.0, %v4528
    %v4530 = vmul.f32 %v4527, %v4529
    %v4531 = vadd.f32 %v4527, %v4530
    %vm4532 = vweird.f32 %v4211
    %vm4533 = vweird.f32 %v4527
    %vm4534 = vmor %vm4532, %vm4533
    %v4535 = vsel %vm4534, %v4527, %v4531
    %v4536 = vand.u32 2147483647, %v4211
    %vm4537 = vcmp.eq.f32.partialorder %v4536, 8.507059e+37
    %v4538 = vand.u32 %v4211, 2147483648
    %v4539 = vor.u32 1.1754944e-38, %v4538
    %v4540 = vsel %vm4537, %v4539, %v4535
    %v4541 = vmul.f32 1.0, %v4540
    %v4542 = vrcp.pop %v4212
    %v4543 = vmul.f32 %v4212, %v4542
    %v4544 = vsub.f32 1.0, %v4543
    %v4545 = vmul.f32 %v4542, %v4544
    %v4546 = vadd.f32 %v4542, %v4545
    %vm4547 = vweird.f32 %v4212
    %vm4548 = vweird.f32 %v4542
    %vm4549 = vmor %vm4547, %vm4548
    %v4550 = vsel %vm4549, %v4542, %v4546
    %v4551 = vand.u32 2147483647, %v4212
    %vm4552 = vcmp.eq.f32.partialorder %v4551, 8.507059e+37
    %v4553 = vand.u32 %v4212, 2147483648
    %v4554 = vor.u32 1.1754944e-38, %v4553
    %v4555 = vsel %vm4552, %v4554, %v4550
    %v4556 = vmul.f32 1.0, %v4555
    %v4557 = vrcp.pop %v4213
    %v4558 = vmul.f32 %v4213, %v4557
    %v4559 = vsub.f32 1.0, %v4558
    %v4560 = vmul.f32 %v4557, %v4559
    %v4561 = vadd.f32 %v4557, %v4560
    %vm4562 = vweird.f32 %v4213
    %vm4563 = vweird.f32 %v4557
    %vm4564 = vmor %vm4562, %vm4563
    %v4565 = vsel %vm4564, %v4557, %v4561
    %v4566 = vand.u32 2147483647, %v4213
    %vm4567 = vcmp.eq.f32.partialorder %v4566, 8.507059e+37
    %v4568 = vand.u32 %v4213, 2147483648
    %v4569 = vor.u32 1.1754944e-38, %v4568
    %v4570 = vsel %vm4567, %v4569, %v4565
    %v4571 = vmul.f32 1.0, %v4570
    %v4572 = vrcp.pop %v4214
    %v4573 = vmul.f32 %v4214, %v4572
    %v4574 = vsub.f32 1.0, %v4573
    %v4575 = vmul.f32 %v4572, %v4574
    %v4576 = vadd.f32 %v4572, %v4575
    %vm4577 = vweird.f32 %v4214
    %vm4578 = vweird.f32 %v4572
    %vm4579 = vmor %vm4577, %vm4578
    %v4580 = vsel %vm4579, %v4572, %v4576
    %v4581 = vand.u32 2147483647, %v4214
    %vm4582 = vcmp.eq.f32.partialorder %v4581, 8.507059e+37
    %v4583 = vand.u32 %v4214, 2147483648
    %v4584 = vor.u32 1.1754944e-38, %v4583
    %v4585 = vsel %vm4582, %v4584, %v4580
    %v4586 = vmul.f32 1.0, %v4585
    %v4587 = vrcp.pop %v4215
    %v4588 = vmul.f32 %v4215, %v4587
    %v4589 = vsub.f32 1.0, %v4588
    %v4590 = vmul.f32 %v4587, %v4589
    %v4591 = vadd.f32 %v4587, %v4590
    %vm4592 = vweird.f32 %v4215
    %vm4593 = vweird.f32 %v4587
    %vm4594 = vmor %vm4592, %vm4593
    %v4595 = vsel %vm4594, %v4587, %v4591
    %v4596 = vand.u32 2147483647, %v4215
    %vm4597 = vcmp.eq.f32.partialorder %v4596, 8.507059e+37
    %v4598 = vand.u32 %v4215, 2147483648
    %v4599 = vor.u32 1.1754944e-38, %v4598
    %v4600 = vsel %vm4597, %v4599, %v4595
    %v4601 = vmul.f32 1.0, %v4600
    %v4602 = vrcp.pop %v4216
    %v4603 = vmul.f32 %v4216, %v4602
    %v4604 = vsub.f32 1.0, %v4603
    %v4605 = vmul.f32 %v4602, %v4604
    %v4606 = vadd.f32 %v4602, %v4605
    %vm4607 = vweird.f32 %v4216
    %vm4608 = vweird.f32 %v4602
    %vm4609 = vmor %vm4607, %vm4608
    %v4610 = vsel %vm4609, %v4602, %v4606
    %v4611 = vand.u32 2147483647, %v4216
    %vm4612 = vcmp.eq.f32.partialorder %v4611, 8.507059e+37
    %v4613 = vand.u32 %v4216, 2147483648
    %v4614 = vor.u32 1.1754944e-38, %v4613
    %v4615 = vsel %vm4612, %v4614, %v4610
    %v4616 = vmul.f32 1.0, %v4615
    %v4617 = vrcp.pop %v4217
    %v4618 = vmul.f32 %v4217, %v4617
    %v4619 = vsub.f32 1.0, %v4618
    %v4620 = vmul.f32 %v4617, %v4619
    %v4621 = vadd.f32 %v4617, %v4620
    %vm4622 = vweird.f32 %v4217
    %vm4623 = vweird.f32 %v4617
    %vm4624 = vmor %vm4622, %vm4623
    %v4625 = vsel %vm4624, %v4617, %v4621
    %v4626 = vand.u32 2147483647, %v4217
    %vm4627 = vcmp.eq.f32.partialorder %v4626, 8.507059e+37
    %v4628 = vand.u32 %v4217, 2147483648
    %v4629 = vor.u32 1.1754944e-38, %v4628
    %v4630 = vsel %vm4627, %v4629, %v4625
    %v4631 = vmul.f32 1.0, %v4630
    %v4632 = vrcp.pop %v4218
    %v4633 = vmul.f32 %v4218, %v4632
    %v4634 = vsub.f32 1.0, %v4633
    %v4635 = vmul.f32 %v4632, %v4634
    %v4636 = vadd.f32 %v4632, %v4635
    %vm4637 = vweird.f32 %v4218
    %vm4638 = vweird.f32 %v4632
    %vm4639 = vmor %vm4637, %vm4638
    %v4640 = vsel %vm4639, %v4632, %v4636
    %v4641 = vand.u32 2147483647, %v4218
    %vm4642 = vcmp.eq.f32.partialorder %v4641, 8.507059e+37
    %v4643 = vand.u32 %v4218, 2147483648
    %v4644 = vor.u32 1.1754944e-38, %v4643
    %v4645 = vsel %vm4642, %v4644, %v4640
    %v4646 = vmul.f32 1.0, %v4645
    %v4647 = vrcp.pop %v4219
    %v4648 = vmul.f32 %v4219, %v4647
    %v4649 = vsub.f32 1.0, %v4648
    %v4650 = vmul.f32 %v4647, %v4649
    %v4651 = vadd.f32 %v4647, %v4650
    %vm4652 = vweird.f32 %v4219
    %vm4653 = vweird.f32 %v4647
    %vm4654 = vmor %vm4652, %vm4653
    %v4655 = vsel %vm4654, %v4647, %v4651
    %v4656 = vand.u32 2147483647, %v4219
    %vm4657 = vcmp.eq.f32.partialorder %v4656, 8.507059e+37
    %v4658 = vand.u32 %v4219, 2147483648
    %v4659 = vor.u32 1.1754944e-38, %v4658
    %v4660 = vsel %vm4657, %v4659, %v4655
    %v4661 = vmul.f32 1.0, %v4660
    %v4662 = vrcp.pop %v4220
    %v4663 = vmul.f32 %v4220, %v4662
    %v4664 = vsub.f32 1.0, %v4663
    %v4665 = vmul.f32 %v4662, %v4664
    %v4666 = vadd.f32 %v4662, %v4665
    %vm4667 = vweird.f32 %v4220
    %vm4668 = vweird.f32 %v4662
    %vm4669 = vmor %vm4667, %vm4668
    %v4670 = vsel %vm4669, %v4662, %v4666
    %v4671 = vand.u32 2147483647, %v4220
    %vm4672 = vcmp.eq.f32.partialorder %v4671, 8.507059e+37
    %v4673 = vand.u32 %v4220, 2147483648
    %v4674 = vor.u32 1.1754944e-38, %v4673
    %v4675 = vsel %vm4672, %v4674, %v4670
    %v4676 = vmul.f32 1.0, %v4675
    %v4677 = vrcp.pop %v4221
    %v4678 = vmul.f32 %v4221, %v4677
    %v4679 = vsub.f32 1.0, %v4678
    %v4680 = vmul.f32 %v4677, %v4679
    %v4681 = vadd.f32 %v4677, %v4680
    %vm4682 = vweird.f32 %v4221
    %vm4683 = vweird.f32 %v4677
    %vm4684 = vmor %vm4682, %vm4683
    %v4685 = vsel %vm4684, %v4677, %v4681
    %v4686 = vand.u32 2147483647, %v4221
    %vm4687 = vcmp.eq.f32.partialorder %v4686, 8.507059e+37
    %v4688 = vand.u32 %v4221, 2147483648
    %v4689 = vor.u32 1.1754944e-38, %v4688
    %v4690 = vsel %vm4687, %v4689, %v4685
    %v4691 = vmul.f32 1.0, %v4690
    %v4692 = vrcp.pop %v4222
    %v4693 = vmul.f32 %v4222, %v4692
    %v4694 = vsub.f32 1.0, %v4693
    %v4695 = vmul.f32 %v4692, %v4694
    %v4696 = vadd.f32 %v4692, %v4695
    %vm4697 = vweird.f32 %v4222
    %vm4698 = vweird.f32 %v4692
    %vm4699 = vmor %vm4697, %vm4698
    %v4700 = vsel %vm4699, %v4692, %v4696
    %v4701 = vand.u32 2147483647, %v4222
    %vm4702 = vcmp.eq.f32.partialorder %v4701, 8.507059e+37
    %v4703 = vand.u32 %v4222, 2147483648
    %v4704 = vor.u32 1.1754944e-38, %v4703
    %v4705 = vsel %vm4702, %v4704, %v4700
    %v4706 = vmul.f32 1.0, %v4705
    %v4707 = vrcp.pop %v4223
    %v4708 = vmul.f32 %v4223, %v4707
    %v4709 = vsub.f32 1.0, %v4708
    %v4710 = vmul.f32 %v4707, %v4709
    %v4711 = vadd.f32 %v4707, %v4710
    %vm4712 = vweird.f32 %v4223
    %vm4713 = vweird.f32 %v4707
    %vm4714 = vmor %vm4712, %vm4713
    %v4715 = vsel %vm4714, %v4707, %v4711
    %v4716 = vand.u32 2147483647, %v4223
    %vm4717 = vcmp.eq.f32.partialorder %v4716, 8.507059e+37
    %v4718 = vand.u32 %v4223, 2147483648
    %v4719 = vor.u32 1.1754944e-38, %v4718
    %v4720 = vsel %vm4717, %v4719, %v4715
    %v4721 = vmul.f32 1.0, %v4720
    %v4722 = vrcp.pop %v4224
    %v4723 = vmul.f32 %v4224, %v4722
    %v4724 = vsub.f32 1.0, %v4723
    %v4725 = vmul.f32 %v4722, %v4724
    %v4726 = vadd.f32 %v4722, %v4725
    %vm4727 = vweird.f32 %v4224
    %vm4728 = vweird.f32 %v4722
    %vm4729 = vmor %vm4727, %vm4728
    %v4730 = vsel %vm4729, %v4722, %v4726
    %v4731 = vand.u32 2147483647, %v4224
    %vm4732 = vcmp.eq.f32.partialorder %v4731, 8.507059e+37
    %v4733 = vand.u32 %v4224, 2147483648
    %v4734 = vor.u32 1.1754944e-38, %v4733
    %v4735 = vsel %vm4732, %v4734, %v4730
    %v4736 = vmul.f32 1.0, %v4735
    %v4737 = vrcp.pop %v4225
    %v4738 = vmul.f32 %v4225, %v4737
    %v4739 = vsub.f32 1.0, %v4738
    %v4740 = vmul.f32 %v4737, %v4739
    %v4741 = vadd.f32 %v4737, %v4740
    %vm4742 = vweird.f32 %v4225
    %vm4743 = vweird.f32 %v4737
    %vm4744 = vmor %vm4742, %vm4743
    %v4745 = vsel %vm4744, %v4737, %v4741
    %v4746 = vand.u32 2147483647, %v4225
    %vm4747 = vcmp.eq.f32.partialorder %v4746, 8.507059e+37
    %v4748 = vand.u32 %v4225, 2147483648
    %v4749 = vor.u32 1.1754944e-38, %v4748
    %v4750 = vsel %vm4747, %v4749, %v4745
    %v4751 = vmul.f32 1.0, %v4750
    %v4752 = vrcp.pop %v4226
    %v4753 = vmul.f32 %v4226, %v4752
    %v4754 = vsub.f32 1.0, %v4753
    %v4755 = vmul.f32 %v4752, %v4754
    %v4756 = vadd.f32 %v4752, %v4755
    %vm4757 = vweird.f32 %v4226
    %vm4758 = vweird.f32 %v4752
    %vm4759 = vmor %vm4757, %vm4758
    %v4760 = vsel %vm4759, %v4752, %v4756
    %v4761 = vand.u32 2147483647, %v4226
    %vm4762 = vcmp.eq.f32.partialorder %v4761, 8.507059e+37
    %v4763 = vand.u32 %v4226, 2147483648
    %v4764 = vor.u32 1.1754944e-38, %v4763
    %v4765 = vsel %vm4762, %v4764, %v4760
    %v4766 = vmul.f32 1.0, %v4765
    %v4767 = vrcp.pop %v4227
    %v4768 = vmul.f32 %v4227, %v4767
    %v4769 = vsub.f32 1.0, %v4768
    %v4770 = vmul.f32 %v4767, %v4769
    %v4771 = vadd.f32 %v4767, %v4770
    %vm4772 = vweird.f32 %v4227
    %vm4773 = vweird.f32 %v4767
    %vm4774 = vmor %vm4772, %vm4773
    %v4775 = vsel %vm4774, %v4767, %v4771
    %v4776 = vand.u32 2147483647, %v4227
    %vm4777 = vcmp.eq.f32.partialorder %v4776, 8.507059e+37
    %v4778 = vand.u32 %v4227, 2147483648
    %v4779 = vor.u32 1.1754944e-38, %v4778
    %v4780 = vsel %vm4777, %v4779, %v4775
    %v4781 = vmul.f32 1.0, %v4780
    %v4782 = vrcp.pop %v4228
    %v4783 = vmul.f32 %v4228, %v4782
    %v4784 = vsub.f32 1.0, %v4783
    %v4785 = vmul.f32 %v4782, %v4784
    %v4786 = vadd.f32 %v4782, %v4785
    %vm4787 = vweird.f32 %v4228
    %vm4788 = vweird.f32 %v4782
    %vm4789 = vmor %vm4787, %vm4788
    %v4790 = vsel %vm4789, %v4782, %v4786
    %v4791 = vand.u32 2147483647, %v4228
    %vm4792 = vcmp.eq.f32.partialorder %v4791, 8.507059e+37
    %v4793 = vand.u32 %v4228, 2147483648
    %v4794 = vor.u32 1.1754944e-38, %v4793
    %v4795 = vsel %vm4792, %v4794, %v4790
    %v4796 = vmul.f32 1.0, %v4795
    %v4797 = vrcp.pop %v4229
    %v4798 = vmul.f32 %v4229, %v4797
    %v4799 = vsub.f32 1.0, %v4798
    %v4800 = vmul.f32 %v4797, %v4799
    %v4801 = vadd.f32 %v4797, %v4800
    %vm4802 = vweird.f32 %v4229
    %vm4803 = vweird.f32 %v4797
    %vm4804 = vmor %vm4802, %vm4803
    %v4805 = vsel %vm4804, %v4797, %v4801
    %v4806 = vand.u32 2147483647, %v4229
    %vm4807 = vcmp.eq.f32.partialorder %v4806, 8.507059e+37
    %v4808 = vand.u32 %v4229, 2147483648
    %v4809 = vor.u32 1.1754944e-38, %v4808
    %v4810 = vsel %vm4807, %v4809, %v4805
    %v4811 = vmul.f32 1.0, %v4810
    %v4812 = vrcp.pop %v4230
    %v4813 = vmul.f32 %v4230, %v4812
    %v4814 = vsub.f32 1.0, %v4813
    %v4815 = vmul.f32 %v4812, %v4814
    %v4816 = vadd.f32 %v4812, %v4815
    %vm4817 = vweird.f32 %v4230
    %vm4818 = vweird.f32 %v4812
    %vm4819 = vmor %vm4817, %vm4818
    %v4820 = vsel %vm4819, %v4812, %v4816
    %v4821 = vand.u32 2147483647, %v4230
    %vm4822 = vcmp.eq.f32.partialorder %v4821, 8.507059e+37
    %v4823 = vand.u32 %v4230, 2147483648
    %v4824 = vor.u32 1.1754944e-38, %v4823
    %v4825 = vsel %vm4822, %v4824, %v4820
    %v4826 = vmul.f32 1.0, %v4825
    %v4827 = vrcp.pop %v4231
    %v4828 = vmul.f32 %v4231, %v4827
    %v4829 = vsub.f32 1.0, %v4828
    %v4830 = vmul.f32 %v4827, %v4829
    %v4831 = vadd.f32 %v4827, %v4830
    %vm4832 = vweird.f32 %v4231
    %vm4833 = vweird.f32 %v4827
    %vm4834 = vmor %vm4832, %vm4833
    %v4835 = vsel %vm4834, %v4827, %v4831
    %v4836 = vand.u32 2147483647, %v4231
    %vm4837 = vcmp.eq.f32.partialorder %v4836, 8.507059e+37
    %v4838 = vand.u32 %v4231, 2147483648
    %v4839 = vor.u32 1.1754944e-38, %v4838
    %v4840 = vsel %vm4837, %v4839, %v4835
    %v4841 = vmul.f32 1.0, %v4840
    %v4842 = vrcp.pop %v4232
    %v4843 = vmul.f32 %v4232, %v4842
    %v4844 = vsub.f32 1.0, %v4843
    %v4845 = vmul.f32 %v4842, %v4844
    %v4846 = vadd.f32 %v4842, %v4845
    %vm4847 = vweird.f32 %v4232
    %vm4848 = vweird.f32 %v4842
    %vm4849 = vmor %vm4847, %vm4848
    %v4850 = vsel %vm4849, %v4842, %v4846
    %v4851 = vand.u32 2147483647, %v4232
    %vm4852 = vcmp.eq.f32.partialorder %v4851, 8.507059e+37
    %v4853 = vand.u32 %v4232, 2147483648
    %v4854 = vor.u32 1.1754944e-38, %v4853
    %v4855 = vsel %vm4852, %v4854, %v4850
    %v4856 = vmul.f32 1.0, %v4855
    %v4857 = vrcp.pop %v4233
    %v4858 = vmul.f32 %v4233, %v4857
    %v4859 = vsub.f32 1.0, %v4858
    %v4860 = vmul.f32 %v4857, %v4859
    %v4861 = vadd.f32 %v4857, %v4860
    %vm4862 = vweird.f32 %v4233
    %vm4863 = vweird.f32 %v4857
    %vm4864 = vmor %vm4862, %vm4863
    %v4865 = vsel %vm4864, %v4857, %v4861
    %v4866 = vand.u32 2147483647, %v4233
    %vm4867 = vcmp.eq.f32.partialorder %v4866, 8.507059e+37
    %v4868 = vand.u32 %v4233, 2147483648
    %v4869 = vor.u32 1.1754944e-38, %v4868
    %v4870 = vsel %vm4867, %v4869, %v4865
    %v4871 = vmul.f32 1.0, %v4870
    %v4872 = vrcp.pop %v4234
    %v4873 = vmul.f32 %v4234, %v4872
    %v4874 = vsub.f32 1.0, %v4873
    %v4875 = vmul.f32 %v4872, %v4874
    %v4876 = vadd.f32 %v4872, %v4875
    %vm4877 = vweird.f32 %v4234
    %vm4878 = vweird.f32 %v4872
    %vm4879 = vmor %vm4877, %vm4878
    %v4880 = vsel %vm4879, %v4872, %v4876
    %v4881 = vand.u32 2147483647, %v4234
    %vm4882 = vcmp.eq.f32.partialorder %v4881, 8.507059e+37
    %v4883 = vand.u32 %v4234, 2147483648
    %v4884 = vor.u32 1.1754944e-38, %v4883
    %v4885 = vsel %vm4882, %v4884, %v4880
    %v4886 = vmul.f32 1.0, %v4885
    %v4887 = vrcp.pop %v4235
    %v4888 = vmul.f32 %v4235, %v4887
    %v4889 = vsub.f32 1.0, %v4888
    %v4890 = vmul.f32 %v4887, %v4889
    %v4891 = vadd.f32 %v4887, %v4890
    %vm4892 = vweird.f32 %v4235
    %vm4893 = vweird.f32 %v4887
    %vm4894 = vmor %vm4892, %vm4893
    %v4895 = vsel %vm4894, %v4887, %v4891
    %v4896 = vand.u32 2147483647, %v4235
    %vm4897 = vcmp.eq.f32.partialorder %v4896, 8.507059e+37
    %v4898 = vand.u32 %v4235, 2147483648
    %v4899 = vor.u32 1.1754944e-38, %v4898
    %v4900 = vsel %vm4897, %v4899, %v4895
    %v4901 = vmul.f32 1.0, %v4900
    %v4902 = vrcp.pop %v4236
    %v4903 = vmul.f32 %v4236, %v4902
    %v4904 = vsub.f32 1.0, %v4903
    %v4905 = vmul.f32 %v4902, %v4904
    %v4906 = vadd.f32 %v4902, %v4905
    %vm4907 = vweird.f32 %v4236
    %vm4908 = vweird.f32 %v4902
    %vm4909 = vmor %vm4907, %vm4908
    %v4910 = vsel %vm4909, %v4902, %v4906
    %v4911 = vand.u32 2147483647, %v4236
    %vm4912 = vcmp.eq.f32.partialorder %v4911, 8.507059e+37
    %v4913 = vand.u32 %v4236, 2147483648
    %v4914 = vor.u32 1.1754944e-38, %v4913
    %v4915 = vsel %vm4912, %v4914, %v4910
    %v4916 = vmul.f32 1.0, %v4915
    %v4917 = vrcp.pop %v4237
    %v4918 = vmul.f32 %v4237, %v4917
    %v4919 = vsub.f32 1.0, %v4918
    %v4920 = vmul.f32 %v4917, %v4919
    %v4921 = vadd.f32 %v4917, %v4920
    %vm4922 = vweird.f32 %v4237
    %vm4923 = vweird.f32 %v4917
    %vm4924 = vmor %vm4922, %vm4923
    %v4925 = vsel %vm4924, %v4917, %v4921
    %v4926 = vand.u32 2147483647, %v4237
    %vm4927 = vcmp.eq.f32.partialorder %v4926, 8.507059e+37
    %v4928 = vand.u32 %v4237, 2147483648
    %v4929 = vor.u32 1.1754944e-38, %v4928
    %v4930 = vsel %vm4927, %v4929, %v4925
    %v4931 = vmul.f32 1.0, %v4930
    %v4932 = vrcp.pop %v4238
    %v4933 = vmul.f32 %v4238, %v4932
    %v4934 = vsub.f32 1.0, %v4933
    %v4935 = vmul.f32 %v4932, %v4934
    %v4936 = vadd.f32 %v4932, %v4935
    %vm4937 = vweird.f32 %v4238
    %vm4938 = vweird.f32 %v4932
    %vm4939 = vmor %vm4937, %vm4938
    %v4940 = vsel %vm4939, %v4932, %v4936
    %v4941 = vand.u32 2147483647, %v4238
    %vm4942 = vcmp.eq.f32.partialorder %v4941, 8.507059e+37
    %v4943 = vand.u32 %v4238, 2147483648
    %v4944 = vor.u32 1.1754944e-38, %v4943
    %v4945 = vsel %vm4942, %v4944, %v4940
    %v4946 = vmul.f32 1.0, %v4945
    %v4947 = vrcp.pop %v4239
    %v4948 = vmul.f32 %v4239, %v4947
    %v4949 = vsub.f32 1.0, %v4948
    %v4950 = vmul.f32 %v4947, %v4949
    %v4951 = vadd.f32 %v4947, %v4950
    %vm4952 = vweird.f32 %v4239
    %vm4953 = vweird.f32 %v4947
    %vm4954 = vmor %vm4952, %vm4953
    %v4955 = vsel %vm4954, %v4947, %v4951
    %v4956 = vand.u32 2147483647, %v4239
    %vm4957 = vcmp.eq.f32.partialorder %v4956, 8.507059e+37
    %v4958 = vand.u32 %v4239, 2147483648
    %v4959 = vor.u32 1.1754944e-38, %v4958
    %v4960 = vsel %vm4957, %v4959, %v4955
    %v4961 = vmul.f32 1.0, %v4960
    %v4962 = vrcp.pop %v4240
    %v4963 = vmul.f32 %v4240, %v4962
    %v4964 = vsub.f32 1.0, %v4963
    %v4965 = vmul.f32 %v4962, %v4964
    %v4966 = vadd.f32 %v4962, %v4965
    %vm4967 = vweird.f32 %v4240
    %vm4968 = vweird.f32 %v4962
    %vm4969 = vmor %vm4967, %vm4968
    %v4970 = vsel %vm4969, %v4962, %v4966
    %v4971 = vand.u32 2147483647, %v4240
    %vm4972 = vcmp.eq.f32.partialorder %v4971, 8.507059e+37
    %v4973 = vand.u32 %v4240, 2147483648
    %v4974 = vor.u32 1.1754944e-38, %v4973
    %v4975 = vsel %vm4972, %v4974, %v4970
    %v4976 = vmul.f32 1.0, %v4975
    %v4977 = vrcp.pop %v4241
    %v4978 = vmul.f32 %v4241, %v4977
    %v4979 = vsub.f32 1.0, %v4978
    %v4980 = vmul.f32 %v4977, %v4979
    %v4981 = vadd.f32 %v4977, %v4980
    %vm4982 = vweird.f32 %v4241
    %vm4983 = vweird.f32 %v4977
    %vm4984 = vmor %vm4982, %vm4983
    %v4985 = vsel %vm4984, %v4977, %v4981
    %v4986 = vand.u32 2147483647, %v4241
    %vm4987 = vcmp.eq.f32.partialorder %v4986, 8.507059e+37
    %v4988 = vand.u32 %v4241, 2147483648
    %v4989 = vor.u32 1.1754944e-38, %v4988
    %v4990 = vsel %vm4987, %v4989, %v4985
    %v4991 = vmul.f32 1.0, %v4990
    %v4992 = vrcp.pop %v4242
    %v4993 = vmul.f32 %v4242, %v4992
    %v4994 = vsub.f32 1.0, %v4993
    %v4995 = vmul.f32 %v4992, %v4994
    %v4996 = vadd.f32 %v4992, %v4995
    %vm4997 = vweird.f32 %v4242
    %vm4998 = vweird.f32 %v4992
    %vm4999 = vmor %vm4997, %vm4998
    %v5000 = vsel %vm4999, %v4992, %v4996
    %v5001 = vand.u32 2147483647, %v4242
    %vm5002 = vcmp.eq.f32.partialorder %v5001, 8.507059e+37
    %v5003 = vand.u32 %v4242, 2147483648
    %v5004 = vor.u32 1.1754944e-38, %v5003
    %v5005 = vsel %vm5002, %v5004, %v5000
    %v5006 = vmul.f32 1.0, %v5005
    %v5007 = vrcp.pop %v4243
    %v5008 = vmul.f32 %v4243, %v5007
    %v5009 = vsub.f32 1.0, %v5008
    %v5010 = vmul.f32 %v5007, %v5009
    %v5011 = vadd.f32 %v5007, %v5010
    %vm5012 = vweird.f32 %v4243
    %vm5013 = vweird.f32 %v5007
    %vm5014 = vmor %vm5012, %vm5013
    %v5015 = vsel %vm5014, %v5007, %v5011
    %v5016 = vand.u32 2147483647, %v4243
    %vm5017 = vcmp.eq.f32.partialorder %v5016, 8.507059e+37
    %v5018 = vand.u32 %v4243, 2147483648
    %v5019 = vor.u32 1.1754944e-38, %v5018
    %v5020 = vsel %vm5017, %v5019, %v5015
    %v5021 = vmul.f32 1.0, %v5020
    %v5022 = vrcp.pop %v4244
    %v5023 = vmul.f32 %v4244, %v5022
    %v5024 = vsub.f32 1.0, %v5023
    %v5025 = vmul.f32 %v5022, %v5024
    %v5026 = vadd.f32 %v5022, %v5025
    %vm5027 = vweird.f32 %v4244
    %vm5028 = vweird.f32 %v5022
    %vm5029 = vmor %vm5027, %vm5028
    %v5030 = vsel %vm5029, %v5022, %v5026
    %v5031 = vand.u32 2147483647, %v4244
    %vm5032 = vcmp.eq.f32.partialorder %v5031, 8.507059e+37
    %v5033 = vand.u32 %v4244, 2147483648
    %v5034 = vor.u32 1.1754944e-38, %v5033
    %v5035 = vsel %vm5032, %v5034, %v5030
    %v5036 = vmul.f32 1.0, %v5035
    %v5037 = vrcp.pop %v4245
    %v5038 = vmul.f32 %v4245, %v5037
    %v5039 = vsub.f32 1.0, %v5038
    %v5040 = vmul.f32 %v5037, %v5039
    %v5041 = vadd.f32 %v5037, %v5040
    %vm5042 = vweird.f32 %v4245
    %vm5043 = vweird.f32 %v5037
    %vm5044 = vmor %vm5042, %vm5043
    %v5045 = vsel %vm5044, %v5037, %v5041
    %v5046 = vand.u32 2147483647, %v4245
    %vm5047 = vcmp.eq.f32.partialorder %v5046, 8.507059e+37
    %v5048 = vand.u32 %v4245, 2147483648
    %v5049 = vor.u32 1.1754944e-38, %v5048
    %v5050 = vsel %vm5047, %v5049, %v5045
    %v5051 = vmul.f32 1.0, %v5050
    %v5052 = vrcp.pop %v4246
    %v5053 = vmul.f32 %v4246, %v5052
    %v5054 = vsub.f32 1.0, %v5053
    %v5055 = vmul.f32 %v5052, %v5054
    %v5056 = vadd.f32 %v5052, %v5055
    %vm5057 = vweird.f32 %v4246
    %vm5058 = vweird.f32 %v5052
    %vm5059 = vmor %vm5057, %vm5058
    %v5060 = vsel %vm5059, %v5052, %v5056
    %v5061 = vand.u32 2147483647, %v4246
    %vm5062 = vcmp.eq.f32.partialorder %v5061, 8.507059e+37
    %v5063 = vand.u32 %v4246, 2147483648
    %v5064 = vor.u32 1.1754944e-38, %v5063
    %v5065 = vsel %vm5062, %v5064, %v5060
    %v5066 = vmul.f32 1.0, %v5065
    %v5067 = vrcp.pop %v4247
    %v5068 = vmul.f32 %v4247, %v5067
    %v5069 = vsub.f32 1.0, %v5068
    %v5070 = vmul.f32 %v5067, %v5069
    %v5071 = vadd.f32 %v5067, %v5070
    %vm5072 = vweird.f32 %v4247
    %vm5073 = vweird.f32 %v5067
    %vm5074 = vmor %vm5072, %vm5073
    %v5075 = vsel %vm5074, %v5067, %v5071
    %v5076 = vand.u32 2147483647, %v4247
    %vm5077 = vcmp.eq.f32.partialorder %v5076, 8.507059e+37
    %v5078 = vand.u32 %v4247, 2147483648
    %v5079 = vor.u32 1.1754944e-38, %v5078
    %v5080 = vsel %vm5077, %v5079, %v5075
    %v5081 = vmul.f32 1.0, %v5080
    %v5082 = vrcp.pop %v4248
    %v5083 = vmul.f32 %v4248, %v5082
    %v5084 = vsub.f32 1.0, %v5083
    %v5085 = vmul.f32 %v5082, %v5084
    %v5086 = vadd.f32 %v5082, %v5085
    %vm5087 = vweird.f32 %v4248
    %vm5088 = vweird.f32 %v5082
    %vm5089 = vmor %vm5087, %vm5088
    %v5090 = vsel %vm5089, %v5082, %v5086
    %v5091 = vand.u32 2147483647, %v4248
    %vm5092 = vcmp.eq.f32.partialorder %v5091, 8.507059e+37
    %v5093 = vand.u32 %v4248, 2147483648
    %v5094 = vor.u32 1.1754944e-38, %v5093
    %v5095 = vsel %vm5092, %v5094, %v5090
    %v5096 = vmul.f32 1.0, %v5095
    %v5097 = vrcp.pop %v4249
    %v5098 = vmul.f32 %v4249, %v5097
    %v5099 = vsub.f32 1.0, %v5098
    %v5100 = vmul.f32 %v5097, %v5099
    %v5101 = vadd.f32 %v5097, %v5100
    %vm5102 = vweird.f32 %v4249
    %vm5103 = vweird.f32 %v5097
    %vm5104 = vmor %vm5102, %vm5103
    %v5105 = vsel %vm5104, %v5097, %v5101
    %v5106 = vand.u32 2147483647, %v4249
    %vm5107 = vcmp.eq.f32.partialorder %v5106, 8.507059e+37
    %v5108 = vand.u32 %v4249, 2147483648
    %v5109 = vor.u32 1.1754944e-38, %v5108
    %v5110 = vsel %vm5107, %v5109, %v5105
    %v5111 = vmul.f32 1.0, %v5110
    %v5112 = vrcp.pop %v4250
    %v5113 = vmul.f32 %v4250, %v5112
    %v5114 = vsub.f32 1.0, %v5113
    %v5115 = vmul.f32 %v5112, %v5114
    %v5116 = vadd.f32 %v5112, %v5115
    %vm5117 = vweird.f32 %v4250
    %vm5118 = vweird.f32 %v5112
    %vm5119 = vmor %vm5117, %vm5118
    %v5120 = vsel %vm5119, %v5112, %v5116
    %v5121 = vand.u32 2147483647, %v4250
    %vm5122 = vcmp.eq.f32.partialorder %v5121, 8.507059e+37
    %v5123 = vand.u32 %v4250, 2147483648
    %v5124 = vor.u32 1.1754944e-38, %v5123
    %v5125 = vsel %vm5122, %v5124, %v5120
    %v5126 = vmul.f32 1.0, %v5125
    %v5127 = vrcp.pop %v4251
    %v5128 = vmul.f32 %v4251, %v5127
    %v5129 = vsub.f32 1.0, %v5128
    %v5130 = vmul.f32 %v5127, %v5129
    %v5131 = vadd.f32 %v5127, %v5130
    %vm5132 = vweird.f32 %v4251
    %vm5133 = vweird.f32 %v5127
    %vm5134 = vmor %vm5132, %vm5133
    %v5135 = vsel %vm5134, %v5127, %v5131
    %v5136 = vand.u32 2147483647, %v4251
    %vm5137 = vcmp.eq.f32.partialorder %v5136, 8.507059e+37
    %v5138 = vand.u32 %v4251, 2147483648
    %v5139 = vor.u32 1.1754944e-38, %v5138
    %v5140 = vsel %vm5137, %v5139, %v5135
    %v5141 = vmul.f32 1.0, %v5140
    %v5142 = vrcp.pop %v4252
    %v5143 = vmul.f32 %v4252, %v5142
    %v5144 = vsub.f32 1.0, %v5143
    %v5145 = vmul.f32 %v5142, %v5144
    %v5146 = vadd.f32 %v5142, %v5145
    %vm5147 = vweird.f32 %v4252
    %vm5148 = vweird.f32 %v5142
    %vm5149 = vmor %vm5147, %vm5148
    %v5150 = vsel %vm5149, %v5142, %v5146
    %v5151 = vand.u32 2147483647, %v4252
    %vm5152 = vcmp.eq.f32.partialorder %v5151, 8.507059e+37
    %v5153 = vand.u32 %v4252, 2147483648
    %v5154 = vor.u32 1.1754944e-38, %v5153
    %v5155 = vsel %vm5152, %v5154, %v5150
    %v5156 = vmul.f32 1.0, %v5155
    %v5157 = vrcp.pop %v4253
    %v5158 = vmul.f32 %v4253, %v5157
    %v5159 = vsub.f32 1.0, %v5158
    %v5160 = vmul.f32 %v5157, %v5159
    %v5161 = vadd.f32 %v5157, %v5160
    %vm5162 = vweird.f32 %v4253
    %vm5163 = vweird.f32 %v5157
    %vm5164 = vmor %vm5162, %vm5163
    %v5165 = vsel %vm5164, %v5157, %v5161
    %v5166 = vand.u32 2147483647, %v4253
    %vm5167 = vcmp.eq.f32.partialorder %v5166, 8.507059e+37
    %v5168 = vand.u32 %v4253, 2147483648
    %v5169 = vor.u32 1.1754944e-38, %v5168
    %v5170 = vsel %vm5167, %v5169, %v5165
    %v5171 = vmul.f32 1.0, %v5170
    %v5172 = vrcp.pop %v4254
    %v5173 = vmul.f32 %v4254, %v5172
    %v5174 = vsub.f32 1.0, %v5173
    %v5175 = vmul.f32 %v5172, %v5174
    %v5176 = vadd.f32 %v5172, %v5175
    %vm5177 = vweird.f32 %v4254
    %vm5178 = vweird.f32 %v5172
    %vm5179 = vmor %vm5177, %vm5178
    %v5180 = vsel %vm5179, %v5172, %v5176
    %v5181 = vand.u32 2147483647, %v4254
    %vm5182 = vcmp.eq.f32.partialorder %v5181, 8.507059e+37
    %v5183 = vand.u32 %v4254, 2147483648
    %v5184 = vor.u32 1.1754944e-38, %v5183
    %v5185 = vsel %vm5182, %v5184, %v5180
    %v5186 = vmul.f32 1.0, %v5185
    %v5187 = vrcp.pop %v4255
    %v5188 = vmul.f32 %v4255, %v5187
    %v5189 = vsub.f32 1.0, %v5188
    %v5190 = vmul.f32 %v5187, %v5189
    %v5191 = vadd.f32 %v5187, %v5190
    %vm5192 = vweird.f32 %v4255
    %vm5193 = vweird.f32 %v5187
    %vm5194 = vmor %vm5192, %vm5193
    %v5195 = vsel %vm5194, %v5187, %v5191
    %v5196 = vand.u32 2147483647, %v4255
    %vm5197 = vcmp.eq.f32.partialorder %v5196, 8.507059e+37
    %v5198 = vand.u32 %v4255, 2147483648
    %v5199 = vor.u32 1.1754944e-38, %v5198
    %v5200 = vsel %vm5197, %v5199, %v5195
    %v5201 = vmul.f32 1.0, %v5200
    %v5202 = vrcp.pop %v4256
    %v5203 = vmul.f32 %v4256, %v5202
    %v5204 = vsub.f32 1.0, %v5203
    %v5205 = vmul.f32 %v5202, %v5204
    %v5206 = vadd.f32 %v5202, %v5205
    %vm5207 = vweird.f32 %v4256
    %vm5208 = vweird.f32 %v5202
    %vm5209 = vmor %vm5207, %vm5208
    %v5210 = vsel %vm5209, %v5202, %v5206
    %v5211 = vand.u32 2147483647, %v4256
    %vm5212 = vcmp.eq.f32.partialorder %v5211, 8.507059e+37
    %v5213 = vand.u32 %v4256, 2147483648
    %v5214 = vor.u32 1.1754944e-38, %v5213
    %v5215 = vsel %vm5212, %v5214, %v5210
    %v5216 = vmul.f32 1.0, %v5215
    %v5217 = vmul.f32 %v3937, %v4271
    %v5218 = vmul.f32 %v3938, %v4286
    %v5219 = vmul.f32 %v3939, %v4301
    %v5220 = vmul.f32 %v3940, %v4316
    %v5221 = vmul.f32 %v3941, %v4331
    %v5222 = vmul.f32 %v3942, %v4346
    %v5223 = vmul.f32 %v3943, %v4361
    %v5224 = vmul.f32 %v3944, %v4376
    %v5225 = vmul.f32 %v3945, %v4391
    %v5226 = vmul.f32 %v3946, %v4406
    %v5227 = vmul.f32 %v3947, %v4421
    %v5228 = vmul.f32 %v3948, %v4436
    %v5229 = vmul.f32 %v3949, %v4451
    %v5230 = vmul.f32 %v3950, %v4466
    %v5231 = vmul.f32 %v3951, %v4481
    %v5232 = vmul.f32 %v3952, %v4496
    %v5233 = vmul.f32 %v3953, %v4511
    %v5234 = vmul.f32 %v3954, %v4526
    %v5235 = vmul.f32 %v3955, %v4541
    %v5236 = vmul.f32 %v3956, %v4556
    %v5237 = vmul.f32 %v3957, %v4571
    %v5238 = vmul.f32 %v3958, %v4586
    %v5239 = vmul.f32 %v3959, %v4601
    %v5240 = vmul.f32 %v3960, %v4616
    %v5241 = vmul.f32 %v3961, %v4631
    %v5242 = vmul.f32 %v3962, %v4646
    %v5243 = vmul.f32 %v3963, %v4661
    %v5244 = vmul.f32 %v3964, %v4676
    %v5245 = vmul.f32 %v3965, %v4691
    %v5246 = vmul.f32 %v3966, %v4706
    %v5247 = vmul.f32 %v3967, %v4721
    %v5248 = vmul.f32 %v3968, %v4736
    %v5249 = vmul.f32 %v3969, %v4751
    %v5250 = vmul.f32 %v3970, %v4766
    %v5251 = vmul.f32 %v3971, %v4781
    %v5252 = vmul.f32 %v3972, %v4796
    %v5253 = vmul.f32 %v3973, %v4811
    %v5254 = vmul.f32 %v3974, %v4826
    %v5255 = vmul.f32 %v3975, %v4841
    %v5256 = vmul.f32 %v3976, %v4856
    %v5257 = vmul.f32 %v3977, %v4871
    %v5258 = vmul.f32 %v3978, %v4886
    %v5259 = vmul.f32 %v3979, %v4901
    %v5260 = vmul.f32 %v3980, %v4916
    %v5261 = vmul.f32 %v3981, %v4931
    %v5262 = vmul.f32 %v3982, %v4946
    %v5263 = vmul.f32 %v3983, %v4961
    %v5264 = vmul.f32 %v3984, %v4976
    %v5265 = vmul.f32 %v3985, %v4991
    %v5266 = vmul.f32 %v3986, %v5006
    %v5267 = vmul.f32 %v3987, %v5021
    %v5268 = vmul.f32 %v3988, %v5036
    %v5269 = vmul.f32 %v3989, %v5051
    %v5270 = vmul.f32 %v3990, %v5066
    %v5271 = vmul.f32 %v3991, %v5081
    %v5272 = vmul.f32 %v3992, %v5096
    %v5273 = vmul.f32 %v3993, %v5111
    %v5274 = vmul.f32 %v3994, %v5126
    %v5275 = vmul.f32 %v3995, %v5141
    %v5276 = vmul.f32 %v3996, %v5156
    %v5277 = vmul.f32 %v3997, %v5171
    %v5278 = vmul.f32 %v3998, %v5186
    %v5279 = vmul.f32 %v3999, %v5201
    %v5280 = vmul.f32 %v4000, %v5216
    %5281 = vst.msk [vmem:[#allocation4] sm:$0xff] %vm3392, %v5217
    %5282 = vst.msk [vmem:[#allocation4 + $0x8] sm:$0xff] %vm3392, %v5218
    %5283 = vst.msk [vmem:[#allocation4 + $0x10] sm:$0xff] %vm3392, %v5219
    %5284 = vst.msk [vmem:[#allocation4 + $0x18] sm:$0xff] %vm3392, %v5220
    %5285 = vst.msk [vmem:[#allocation4 + $0x20] sm:$0xff] %vm3392, %v5221
    %5286 = vst.msk [vmem:[#allocation4 + $0x28] sm:$0xff] %vm3392, %v5222
    %5287 = vst.msk [vmem:[#allocation4 + $0x30] sm:$0xff] %vm3392, %v5223
    %5288 = vst.msk [vmem:[#allocation4 + $0x38] sm:$0xff] %vm3392, %v5224
    %5289 = vst.msk [vmem:[#allocation4 + $0x40] sm:$0xff] %vm3392, %v5225
    %5290 = vst.msk [vmem:[#allocation4 + $0x48] sm:$0xff] %vm3392, %v5226
    %5291 = vst.msk [vmem:[#allocation4 + $0x50] sm:$0xff] %vm3392, %v5227
    %5292 = vst.msk [vmem:[#allocation4 + $0x58] sm:$0xff] %vm3392, %v5228
    %5293 = vst.msk [vmem:[#allocation4 + $0x60] sm:$0xff] %vm3392, %v5229
    %5294 = vst.msk [vmem:[#allocation4 + $0x68] sm:$0xff] %vm3392, %v5230
    %5295 = vst.msk [vmem:[#allocation4 + $0x70] sm:$0xff] %vm3392, %v5231
    %5296 = vst.msk [vmem:[#allocation4 + $0x78] sm:$0xff] %vm3392, %v5232
    %5297 = vst.msk [vmem:[#allocation4 + $0x80] sm:$0xff] %vm3392, %v5233
    %5298 = vst.msk [vmem:[#allocation4 + $0x88] sm:$0xff] %vm3392, %v5234
    %5299 = vst.msk [vmem:[#allocation4 + $0x90] sm:$0xff] %vm3392, %v5235
    %5300 = vst.msk [vmem:[#allocation4 + $0x98] sm:$0xff] %vm3392, %v5236
    %5301 = vst.msk [vmem:[#allocation4 + $0xa0] sm:$0xff] %vm3392, %v5237
    %5302 = vst.msk [vmem:[#allocation4 + $0xa8] sm:$0xff] %vm3392, %v5238
    %5303 = vst.msk [vmem:[#allocation4 + $0xb0] sm:$0xff] %vm3392, %v5239
    %5304 = vst.msk [vmem:[#allocation4 + $0xb8] sm:$0xff] %vm3392, %v5240
    %5305 = vst.msk [vmem:[#allocation4 + $0xc0] sm:$0xff] %vm3392, %v5241
    %5306 = vst.msk [vmem:[#allocation4 + $0xc8] sm:$0xff] %vm3392, %v5242
    %5307 = vst.msk [vmem:[#allocation4 + $0xd0] sm:$0xff] %vm3392, %v5243
    %5308 = vst.msk [vmem:[#allocation4 + $0xd8] sm:$0xff] %vm3392, %v5244
    %5309 = vst.msk [vmem:[#allocation4 + $0xe0] sm:$0xff] %vm3392, %v5245
    %5310 = vst.msk [vmem:[#allocation4 + $0xe8] sm:$0xff] %vm3392, %v5246
    %5311 = vst.msk [vmem:[#allocation4 + $0xf0] sm:$0xff] %vm3392, %v5247
    %5312 = vst.msk [vmem:[#allocation4 + $0xf8] sm:$0xff] %vm3392, %v5248
    %5313 = vst.msk [vmem:[#allocation4 + $0x100] sm:$0xff] %vm3392, %v5249
    %5314 = vst.msk [vmem:[#allocation4 + $0x108] sm:$0xff] %vm3392, %v5250
    %5315 = vst.msk [vmem:[#allocation4 + $0x110] sm:$0xff] %vm3392, %v5251
    %5316 = vst.msk [vmem:[#allocation4 + $0x118] sm:$0xff] %vm3392, %v5252
    %5317 = vst.msk [vmem:[#allocation4 + $0x120] sm:$0xff] %vm3392, %v5253
    %5318 = vst.msk [vmem:[#allocation4 + $0x128] sm:$0xff] %vm3392, %v5254
    %5319 = vst.msk [vmem:[#allocation4 + $0x130] sm:$0xff] %vm3392, %v5255
    %5320 = vst.msk [vmem:[#allocation4 + $0x138] sm:$0xff] %vm3392, %v5256
    %5321 = vst.msk [vmem:[#allocation4 + $0x140] sm:$0xff] %vm3392, %v5257
    %5322 = vst.msk [vmem:[#allocation4 + $0x148] sm:$0xff] %vm3392, %v5258
    %5323 = vst.msk [vmem:[#allocation4 + $0x150] sm:$0xff] %vm3392, %v5259
    %5324 = vst.msk [vmem:[#allocation4 + $0x158] sm:$0xff] %vm3392, %v5260
    %5325 = vst.msk [vmem:[#allocation4 + $0x160] sm:$0xff] %vm3392, %v5261
    %5326 = vst.msk [vmem:[#allocation4 + $0x168] sm:$0xff] %vm3392, %v5262
    %5327 = vst.msk [vmem:[#allocation4 + $0x170] sm:$0xff] %vm3392, %v5263
    %5328 = vst.msk [vmem:[#allocation4 + $0x178] sm:$0xff] %vm3392, %v5264
    %5329 = vst.msk [vmem:[#allocation4 + $0x180] sm:$0xff] %vm3392, %v5265
    %5330 = vst.msk [vmem:[#allocation4 + $0x188] sm:$0xff] %vm3392, %v5266
    %5331 = vst.msk [vmem:[#allocation4 + $0x190] sm:$0xff] %vm3392, %v5267
    %5332 = vst.msk [vmem:[#allocation4 + $0x198] sm:$0xff] %vm3392, %v5268
    %5333 = vst.msk [vmem:[#allocation4 + $0x1a0] sm:$0xff] %vm3392, %v5269
    %5334 = vst.msk [vmem:[#allocation4 + $0x1a8] sm:$0xff] %vm3392, %v5270
    %5335 = vst.msk [vmem:[#allocation4 + $0x1b0] sm:$0xff] %vm3392, %v5271
    %5336 = vst.msk [vmem:[#allocation4 + $0x1b8] sm:$0xff] %vm3392, %v5272
    %5337 = vst.msk [vmem:[#allocation4 + $0x1c0] sm:$0xff] %vm3392, %v5273
    %5338 = vst.msk [vmem:[#allocation4 + $0x1c8] sm:$0xff] %vm3392, %v5274
    %5339 = vst.msk [vmem:[#allocation4 + $0x1d0] sm:$0xff] %vm3392, %v5275
    %5340 = vst.msk [vmem:[#allocation4 + $0x1d8] sm:$0xff] %vm3392, %v5276
    %5341 = vst.msk [vmem:[#allocation4 + $0x1e0] sm:$0xff] %vm3392, %v5277
    %5342 = vst.msk [vmem:[#allocation4 + $0x1e8] sm:$0xff] %vm3392, %v5278
    %5343 = vst.msk [vmem:[#allocation4 + $0x1f0] sm:$0xff] %vm3392, %v5279
    %5344 = vst.msk [vmem:[#allocation4 + $0x1f8] sm:$0xff] %vm3392, %v5280
    %v5345 = vld [vmem:[#allocation4] ss:$2 sm:$0xff]
    %s5346 = scalar_lea.vmem [#allocation4], 16
    %v5347 = vld [vmem:[%s5346] ss:$2 sm:$0xff]
    %s5348 = scalar_lea.vmem [#allocation4], 32
    %v5349 = vld [vmem:[%s5348] ss:$2 sm:$0xff]
    %s5350 = scalar_lea.vmem [#allocation4], 48
    %v5351 = vld [vmem:[%s5350] ss:$2 sm:$0xff]
    %s5352 = scalar_lea.vmem [#allocation4], 64
    %v5353 = vld [vmem:[%s5352] ss:$2 sm:$0xff]
    %s5354 = scalar_lea.vmem [#allocation4], 80
    %v5355 = vld [vmem:[%s5354] ss:$2 sm:$0xff]
    %s5356 = scalar_lea.vmem [#allocation4], 96
    %v5357 = vld [vmem:[%s5356] ss:$2 sm:$0xff]
    %s5358 = scalar_lea.vmem [#allocation4], 112
    %v5359 = vld [vmem:[%s5358] ss:$2 sm:$0xff]
    %s5360 = scalar_lea.vmem [#allocation4], 128
    %v5361 = vld [vmem:[%s5360] ss:$2 sm:$0xff]
    %s5362 = scalar_lea.vmem [#allocation4], 144
    %v5363 = vld [vmem:[%s5362] ss:$2 sm:$0xff]
    %s5364 = scalar_lea.vmem [#allocation4], 160
    %v5365 = vld [vmem:[%s5364] ss:$2 sm:$0xff]
    %s5366 = scalar_lea.vmem [#allocation4], 176
    %v5367 = vld [vmem:[%s5366] ss:$2 sm:$0xff]
    %s5368 = scalar_lea.vmem [#allocation4], 192
    %v5369 = vld [vmem:[%s5368] ss:$2 sm:$0xff]
    %s5370 = scalar_lea.vmem [#allocation4], 208
    %v5371 = vld [vmem:[%s5370] ss:$2 sm:$0xff]
    %s5372 = scalar_lea.vmem [#allocation4], 224
    %v5373 = vld [vmem:[%s5372] ss:$2 sm:$0xff]
    %s5374 = scalar_lea.vmem [#allocation4], 240
    %v5375 = vld [vmem:[%s5374] ss:$2 sm:$0xff]
    %s5376 = scalar_lea.vmem [#allocation4], 256
    %v5377 = vld [vmem:[%s5376] ss:$2 sm:$0xff]
    %s5378 = scalar_lea.vmem [#allocation4], 272
    %v5379 = vld [vmem:[%s5378] ss:$2 sm:$0xff]
    %s5380 = scalar_lea.vmem [#allocation4], 288
    %v5381 = vld [vmem:[%s5380] ss:$2 sm:$0xff]
    %s5382 = scalar_lea.vmem [#allocation4], 304
    %v5383 = vld [vmem:[%s5382] ss:$2 sm:$0xff]
    %s5384 = scalar_lea.vmem [#allocation4], 320
    %v5385 = vld [vmem:[%s5384] ss:$2 sm:$0xff]
    %s5386 = scalar_lea.vmem [#allocation4], 336
    %v5387 = vld [vmem:[%s5386] ss:$2 sm:$0xff]
    %s5388 = scalar_lea.vmem [#allocation4], 352
    %v5389 = vld [vmem:[%s5388] ss:$2 sm:$0xff]
    %s5390 = scalar_lea.vmem [#allocation4], 368
    %v5391 = vld [vmem:[%s5390] ss:$2 sm:$0xff]
    %s5392 = scalar_lea.vmem [#allocation4], 384
    %v5393 = vld [vmem:[%s5392] ss:$2 sm:$0xff]
    %s5394 = scalar_lea.vmem [#allocation4], 400
    %v5395 = vld [vmem:[%s5394] ss:$2 sm:$0xff]
    %s5396 = scalar_lea.vmem [#allocation4], 416
    %v5397 = vld [vmem:[%s5396] ss:$2 sm:$0xff]
    %s5398 = scalar_lea.vmem [#allocation4], 432
    %v5399 = vld [vmem:[%s5398] ss:$2 sm:$0xff]
    %s5400 = scalar_lea.vmem [#allocation4], 448
    %v5401 = vld [vmem:[%s5400] ss:$2 sm:$0xff]
    %s5402 = scalar_lea.vmem [#allocation4], 464
    %v5403 = vld [vmem:[%s5402] ss:$2 sm:$0xff]
    %s5404 = scalar_lea.vmem [#allocation4], 480
    %v5405 = vld [vmem:[%s5404] ss:$2 sm:$0xff]
    %s5406 = scalar_lea.vmem [#allocation4], 496
    %v5407 = vld [vmem:[%s5406] ss:$2 sm:$0xff]
    %s5408 = scalar_lea.vmem [#allocation4], 1
    %v5409 = vld [vmem:[%s5408] ss:$2 sm:$0xff]
    %s5410 = scalar_lea.vmem [#allocation4], 17
    %v5411 = vld [vmem:[%s5410] ss:$2 sm:$0xff]
    %s5412 = scalar_lea.vmem [#allocation4], 33
    %v5413 = vld [vmem:[%s5412] ss:$2 sm:$0xff]
    %s5414 = scalar_lea.vmem [#allocation4], 49
    %v5415 = vld [vmem:[%s5414] ss:$2 sm:$0xff]
    %s5416 = scalar_lea.vmem [#allocation4], 65
    %v5417 = vld [vmem:[%s5416] ss:$2 sm:$0xff]
    %s5418 = scalar_lea.vmem [#allocation4], 81
    %v5419 = vld [vmem:[%s5418] ss:$2 sm:$0xff]
    %s5420 = scalar_lea.vmem [#allocation4], 97
    %v5421 = vld [vmem:[%s5420] ss:$2 sm:$0xff]
    %s5422 = scalar_lea.vmem [#allocation4], 113
    %v5423 = vld [vmem:[%s5422] ss:$2 sm:$0xff]
    %s5424 = scalar_lea.vmem [#allocation4], 129
    %v5425 = vld [vmem:[%s5424] ss:$2 sm:$0xff]
    %s5426 = scalar_lea.vmem [#allocation4], 145
    %v5427 = vld [vmem:[%s5426] ss:$2 sm:$0xff]
    %s5428 = scalar_lea.vmem [#allocation4], 161
    %v5429 = vld [vmem:[%s5428] ss:$2 sm:$0xff]
    %s5430 = scalar_lea.vmem [#allocation4], 177
    %v5431 = vld [vmem:[%s5430] ss:$2 sm:$0xff]
    %s5432 = scalar_lea.vmem [#allocation4], 193
    %v5433 = vld [vmem:[%s5432] ss:$2 sm:$0xff]
    %s5434 = scalar_lea.vmem [#allocation4], 209
    %v5435 = vld [vmem:[%s5434] ss:$2 sm:$0xff]
    %s5436 = scalar_lea.vmem [#allocation4], 225
    %v5437 = vld [vmem:[%s5436] ss:$2 sm:$0xff]
    %s5438 = scalar_lea.vmem [#allocation4], 241
    %v5439 = vld [vmem:[%s5438] ss:$2 sm:$0xff]
    %s5440 = scalar_lea.vmem [#allocation4], 257
    %v5441 = vld [vmem:[%s5440] ss:$2 sm:$0xff]
    %s5442 = scalar_lea.vmem [#allocation4], 273
    %v5443 = vld [vmem:[%s5442] ss:$2 sm:$0xff]
    %s5444 = scalar_lea.vmem [#allocation4], 289
    %v5445 = vld [vmem:[%s5444] ss:$2 sm:$0xff]
    %s5446 = scalar_lea.vmem [#allocation4], 305
    %v5447 = vld [vmem:[%s5446] ss:$2 sm:$0xff]
    %s5448 = scalar_lea.vmem [#allocation4], 321
    %v5449 = vld [vmem:[%s5448] ss:$2 sm:$0xff]
    %s5450 = scalar_lea.vmem [#allocation4], 337
    %v5451 = vld [vmem:[%s5450] ss:$2 sm:$0xff]
    %s5452 = scalar_lea.vmem [#allocation4], 353
    %v5453 = vld [vmem:[%s5452] ss:$2 sm:$0xff]
    %s5454 = scalar_lea.vmem [#allocation4], 369
    %v5455 = vld [vmem:[%s5454] ss:$2 sm:$0xff]
    %s5456 = scalar_lea.vmem [#allocation4], 385
    %v5457 = vld [vmem:[%s5456] ss:$2 sm:$0xff]
    %s5458 = scalar_lea.vmem [#allocation4], 401
    %v5459 = vld [vmem:[%s5458] ss:$2 sm:$0xff]
    %s5460 = scalar_lea.vmem [#allocation4], 417
    %v5461 = vld [vmem:[%s5460] ss:$2 sm:$0xff]
    %s5462 = scalar_lea.vmem [#allocation4], 433
    %v5463 = vld [vmem:[%s5462] ss:$2 sm:$0xff]
    %s5464 = scalar_lea.vmem [#allocation4], 449
    %v5465 = vld [vmem:[%s5464] ss:$2 sm:$0xff]
    %s5466 = scalar_lea.vmem [#allocation4], 465
    %v5467 = vld [vmem:[%s5466] ss:$2 sm:$0xff]
    %s5468 = scalar_lea.vmem [#allocation4], 481
    %v5469 = vld [vmem:[%s5468] ss:$2 sm:$0xff]
    %s5470 = scalar_lea.vmem [#allocation4], 497
    %v5471 = vld [vmem:[%s5470] ss:$2 sm:$0xff]
    %v5472 = vmax.f32 %v5345, %v5409
    %v5473 = vmax.f32 %v5347, %v5411
    %v5474 = vmax.f32 %v5349, %v5413
    %v5475 = vmax.f32 %v5351, %v5415
    %v5476 = vmax.f32 %v5353, %v5417
    %v5477 = vmax.f32 %v5355, %v5419
    %v5478 = vmax.f32 %v5357, %v5421
    %v5479 = vmax.f32 %v5359, %v5423
    %v5480 = vmax.f32 %v5361, %v5425
    %v5481 = vmax.f32 %v5363, %v5427
    %v5482 = vmax.f32 %v5365, %v5429
    %v5483 = vmax.f32 %v5367, %v5431
    %v5484 = vmax.f32 %v5369, %v5433
    %v5485 = vmax.f32 %v5371, %v5435
    %v5486 = vmax.f32 %v5373, %v5437
    %v5487 = vmax.f32 %v5375, %v5439
    %v5488 = vmax.f32 %v5377, %v5441
    %v5489 = vmax.f32 %v5379, %v5443
    %v5490 = vmax.f32 %v5381, %v5445
    %v5491 = vmax.f32 %v5383, %v5447
    %v5492 = vmax.f32 %v5385, %v5449
    %v5493 = vmax.f32 %v5387, %v5451
    %v5494 = vmax.f32 %v5389, %v5453
    %v5495 = vmax.f32 %v5391, %v5455
    %v5496 = vmax.f32 %v5393, %v5457
    %v5497 = vmax.f32 %v5395, %v5459
    %v5498 = vmax.f32 %v5397, %v5461
    %v5499 = vmax.f32 %v5399, %v5463
    %v5500 = vmax.f32 %v5401, %v5465
    %v5501 = vmax.f32 %v5403, %v5467
    %v5502 = vmax.f32 %v5405, %v5469
    %v5503 = vmax.f32 %v5407, %v5471
    %v5504 = vmax.f32 %v5472, %v5473
    %v5505 = vmax.f32 %v5474, %v5475
    %v5506 = vmax.f32 %v5476, %v5477
    %v5507 = vmax.f32 %v5478, %v5479
    %v5508 = vmax.f32 %v5480, %v5481
    %v5509 = vmax.f32 %v5482, %v5483
    %v5510 = vmax.f32 %v5484, %v5485
    %v5511 = vmax.f32 %v5486, %v5487
    %v5512 = vmax.f32 %v5488, %v5489
    %v5513 = vmax.f32 %v5490, %v5491
    %v5514 = vmax.f32 %v5492, %v5493
    %v5515 = vmax.f32 %v5494, %v5495
    %v5516 = vmax.f32 %v5496, %v5497
    %v5517 = vmax.f32 %v5498, %v5499
    %v5518 = vmax.f32 %v5500, %v5501
    %v5519 = vmax.f32 %v5502, %v5503
    %5520 = vst.msk [vmem:[#allocation3] sm:$0xff] %vm3392, 0.0
    %vm5521 = vcmask 58368
    %5522 = vst.msk [vmem:[#allocation3 + $0x8] sm:$0x3] %vm5521, 0.0
    %5523 = vst.msk [vmem:[#allocation3 + $0x10] sm:$0xff] %vm3392, 0.0
    %5524 = vst.msk [vmem:[#allocation3 + $0x18] sm:$0x3] %vm5521, 0.0
    %5525 = vst.msk [vmem:[#allocation3 + $0x20] sm:$0xff] %vm3392, 0.0
    %5526 = vst.msk [vmem:[#allocation3 + $0x28] sm:$0x3] %vm5521, 0.0
    %5527 = vst.msk [vmem:[#allocation3 + $0x30] sm:$0xff] %vm3392, 0.0
    %5528 = vst.msk [vmem:[#allocation3 + $0x38] sm:$0x3] %vm5521, 0.0
    %5529 = vst.msk [vmem:[#allocation3 + $0x40] sm:$0xff] %vm3392, 0.0
    %5530 = vst.msk [vmem:[#allocation3 + $0x48] sm:$0x3] %vm5521, 0.0
    %5531 = vst.msk [vmem:[#allocation3 + $0x50] sm:$0xff] %vm3392, 0.0
    %5532 = vst.msk [vmem:[#allocation3 + $0x58] sm:$0x3] %vm5521, 0.0
    %5533 = vst.msk [vmem:[#allocation3 + $0x60] sm:$0xff] %vm3392, 0.0
    %5534 = vst.msk [vmem:[#allocation3 + $0x68] sm:$0x3] %vm5521, 0.0
    %5535 = vst.msk [vmem:[#allocation3 + $0x70] sm:$0xff] %vm3392, 0.0
    %5536 = vst.msk [vmem:[#allocation3 + $0x78] sm:$0x3] %vm5521, 0.0
    %5537 = vst.msk [vmem:[#allocation3 + $0x80] sm:$0xff] %vm3392, 0.0
    %5538 = vst.msk [vmem:[#allocation3 + $0x88] sm:$0x3] %vm5521, 0.0
    %5539 = vst.msk [vmem:[#allocation3 + $0x90] sm:$0xff] %vm3392, 0.0
    %5540 = vst.msk [vmem:[#allocation3 + $0x98] sm:$0x3] %vm5521, 0.0
    %5541 = vst.msk [vmem:[#allocation3 + $0xa0] sm:$0xff] %vm3392, 0.0
    %5542 = vst.msk [vmem:[#allocation3 + $0xa8] sm:$0x3] %vm5521, 0.0
    %5543 = vst.msk [vmem:[#allocation3 + $0xb0] sm:$0xff] %vm3392, 0.0
    %5544 = vst.msk [vmem:[#allocation3 + $0xb8] sm:$0x3] %vm5521, 0.0
    %5545 = vst.msk [vmem:[#allocation3 + $0xc0] sm:$0xff] %vm3392, 0.0
    %5546 = vst.msk [vmem:[#allocation3 + $0xc8] sm:$0x3] %vm5521, 0.0
    %5547 = vst.msk [vmem:[#allocation3 + $0xd0] sm:$0xff] %vm3392, 0.0
    %5548 = vst.msk [vmem:[#allocation3 + $0xd8] sm:$0x3] %vm5521, 0.0
    %5549 = vst.msk [vmem:[#allocation3 + $0xe0] sm:$0xff] %vm3392, 0.0
    %5550 = vst.msk [vmem:[#allocation3 + $0xe8] sm:$0x3] %vm5521, 0.0
    %5551 = vst.msk [vmem:[#allocation3 + $0xf0] sm:$0xff] %vm3392, 0.0
    %5552 = vst.msk [vmem:[#allocation3 + $0xf8] sm:$0x3] %vm5521, 0.0
    %5553 = vst.msk [vmem:[#allocation3 + $0x100] sm:$0xff] %vm3392, 0.0
    %5554 = vst.msk [vmem:[#allocation3 + $0x108] sm:$0x3] %vm5521, 0.0
    %5555 = vst.msk [vmem:[#allocation3 + $0x110] sm:$0xff] %vm3392, 0.0
    %5556 = vst.msk [vmem:[#allocation3 + $0x118] sm:$0x3] %vm5521, 0.0
    %5557 = vst.msk [vmem:[#allocation3 + $0x120] sm:$0xff] %vm3392, 0.0
    %5558 = vst.msk [vmem:[#allocation3 + $0x128] sm:$0x3] %vm5521, 0.0
    %5559 = vst.msk [vmem:[#allocation3 + $0x130] sm:$0xff] %vm3392, 0.0
    %5560 = vst.msk [vmem:[#allocation3 + $0x138] sm:$0x3] %vm5521, 0.0
    %s5561 = scalar_lea.vmem [#allocation3], 16
    %5562 = vst.msk [vmem:[%s5561 + $0x1] sm:$0xff] %vm3392, %v5504
    %5563 = vst.msk [vmem:[%s5561 + $0x11] sm:$0xff] %vm3392, %v5505
    %5564 = vst.msk [vmem:[%s5561 + $0x21] sm:$0xff] %vm3392, %v5506
    %5565 = vst.msk [vmem:[%s5561 + $0x31] sm:$0xff] %vm3392, %v5507
    %5566 = vst.msk [vmem:[%s5561 + $0x41] sm:$0xff] %vm3392, %v5508
    %5567 = vst.msk [vmem:[%s5561 + $0x51] sm:$0xff] %vm3392, %v5509
    %5568 = vst.msk [vmem:[%s5561 + $0x61] sm:$0xff] %vm3392, %v5510
    %5569 = vst.msk [vmem:[%s5561 + $0x71] sm:$0xff] %vm3392, %v5511
    %5570 = vst.msk [vmem:[%s5561 + $0xa1] sm:$0xff] %vm3392, %v5512
    %5571 = vst.msk [vmem:[%s5561 + $0xb1] sm:$0xff] %vm3392, %v5513
    %5572 = vst.msk [vmem:[%s5561 + $0xc1] sm:$0xff] %vm3392, %v5514
    %5573 = vst.msk [vmem:[%s5561 + $0xd1] sm:$0xff] %vm3392, %v5515
    %5574 = vst.msk [vmem:[%s5561 + $0xe1] sm:$0xff] %vm3392, %v5516
    %5575 = vst.msk [vmem:[%s5561 + $0xf1] sm:$0xff] %vm3392, %v5517
    %5576 = vst.msk [vmem:[%s5561 + $0x101] sm:$0xff] %vm3392, %v5518
    %5577 = vst.msk [vmem:[%s5561 + $0x111] sm:$0xff] %vm3392, %v5519
    %v5578 = vld [vmem:[#allocation3] sm:$0xff]
    %v5579 = vld [vmem:[#allocation3 + $0x10] sm:$0xff]
    %v5580 = vld [vmem:[#allocation3 + $0x20] sm:$0xff]
    %v5581 = vld [vmem:[#allocation3 + $0x30] sm:$0xff]
    %v5582 = vld [vmem:[#allocation3 + $0x40] sm:$0xff]
    %v5583 = vld [vmem:[#allocation3 + $0x50] sm:$0xff]
    %v5584 = vld [vmem:[#allocation3 + $0x60] sm:$0xff]
    %v5585 = vld [vmem:[#allocation3 + $0x70] sm:$0xff]
    %v5586 = vld [vmem:[#allocation3 + $0xa0] sm:$0xff]
    %v5587 = vld [vmem:[#allocation3 + $0xb0] sm:$0xff]
    %v5588 = vld [vmem:[#allocation3 + $0xc0] sm:$0xff]
    %v5589 = vld [vmem:[#allocation3 + $0xd0] sm:$0xff]
    %v5590 = vld [vmem:[#allocation3 + $0xe0] sm:$0xff]
    %v5591 = vld [vmem:[#allocation3 + $0xf0] sm:$0xff]
    %v5592 = vld [vmem:[#allocation3 + $0x100] sm:$0xff]
    %v5593 = vld [vmem:[#allocation3 + $0x110] sm:$0xff]
    %v5594 = vld [vmem:[#allocation3 + $0x1] sm:$0xff]
    %v5595 = vld [vmem:[#allocation3 + $0x11] sm:$0xff]
    %v5596 = vld [vmem:[#allocation3 + $0x21] sm:$0xff]
    %v5597 = vld [vmem:[#allocation3 + $0x31] sm:$0xff]
    %v5598 = vld [vmem:[#allocation3 + $0x41] sm:$0xff]
    %v5599 = vld [vmem:[#allocation3 + $0x51] sm:$0xff]
    %v5600 = vld [vmem:[#allocation3 + $0x61] sm:$0xff]
    %v5601 = vld [vmem:[#allocation3 + $0x71] sm:$0xff]
    %v5602 = vld [vmem:[#allocation3 + $0xa1] sm:$0xff]
    %v5603 = vld [vmem:[#allocation3 + $0xb1] sm:$0xff]
    %v5604 = vld [vmem:[#allocation3 + $0xc1] sm:$0xff]
    %v5605 = vld [vmem:[#allocation3 + $0xd1] sm:$0xff]
    %v5606 = vld [vmem:[#allocation3 + $0xe1] sm:$0xff]
    %v5607 = vld [vmem:[#allocation3 + $0xf1] sm:$0xff]
    %v5608 = vld [vmem:[#allocation3 + $0x101] sm:$0xff]
    %v5609 = vld [vmem:[#allocation3 + $0x111] sm:$0xff]
    %v5610 = vld [vmem:[#allocation3 + $0x2] sm:$0xff]
    %v5611 = vld [vmem:[#allocation3 + $0x12] sm:$0xff]
    %v5612 = vld [vmem:[#allocation3 + $0x22] sm:$0xff]
    %v5613 = vld [vmem:[#allocation3 + $0x32] sm:$0xff]
    %v5614 = vld [vmem:[#allocation3 + $0x42] sm:$0xff]
    %v5615 = vld [vmem:[#allocation3 + $0x52] sm:$0xff]
    %v5616 = vld [vmem:[#allocation3 + $0x62] sm:$0xff]
    %v5617 = vld [vmem:[#allocation3 + $0x72] sm:$0xff]
    %v5618 = vld [vmem:[#allocation3 + $0xa2] sm:$0xff]
    %v5619 = vld [vmem:[#allocation3 + $0xb2] sm:$0xff]
    %v5620 = vld [vmem:[#allocation3 + $0xc2] sm:$0xff]
    %v5621 = vld [vmem:[#allocation3 + $0xd2] sm:$0xff]
    %v5622 = vld [vmem:[#allocation3 + $0xe2] sm:$0xff]
    %v5623 = vld [vmem:[#allocation3 + $0xf2] sm:$0xff]
    %v5624 = vld [vmem:[#allocation3 + $0x102] sm:$0xff]
    %v5625 = vld [vmem:[#allocation3 + $0x112] sm:$0xff]
    %v5626 = vld [vmem:[%s5561] sm:$0xff]
    %v5627 = vld [vmem:[%s5561 + $0x10] sm:$0xff]
    %v5628 = vld [vmem:[%s5561 + $0x20] sm:$0xff]
    %v5629 = vld [vmem:[%s5561 + $0x30] sm:$0xff]
    %v5630 = vld [vmem:[%s5561 + $0x40] sm:$0xff]
    %v5631 = vld [vmem:[%s5561 + $0x50] sm:$0xff]
    %v5632 = vld [vmem:[%s5561 + $0x60] sm:$0xff]
    %v5633 = vld [vmem:[%s5561 + $0x70] sm:$0xff]
    %v5634 = vld [vmem:[%s5561 + $0xa0] sm:$0xff]
    %v5635 = vld [vmem:[%s5561 + $0xb0] sm:$0xff]
    %v5636 = vld [vmem:[%s5561 + $0xc0] sm:$0xff]
    %v5637 = vld [vmem:[%s5561 + $0xd0] sm:$0xff]
    %v5638 = vld [vmem:[%s5561 + $0xe0] sm:$0xff]
    %v5639 = vld [vmem:[%s5561 + $0xf0] sm:$0xff]
    %v5640 = vld [vmem:[%s5561 + $0x100] sm:$0xff]
    %v5641 = vld [vmem:[%s5561 + $0x110] sm:$0xff]
    %v5642 = vld [vmem:[%s5561 + $0x1] sm:$0xff]
    %v5643 = vld [vmem:[%s5561 + $0x11] sm:$0xff]
    %v5644 = vld [vmem:[%s5561 + $0x21] sm:$0xff]
    %v5645 = vld [vmem:[%s5561 + $0x31] sm:$0xff]
    %v5646 = vld [vmem:[%s5561 + $0x41] sm:$0xff]
    %v5647 = vld [vmem:[%s5561 + $0x51] sm:$0xff]
    %v5648 = vld [vmem:[%s5561 + $0x61] sm:$0xff]
    %v5649 = vld [vmem:[%s5561 + $0x71] sm:$0xff]
    %v5650 = vld [vmem:[%s5561 + $0xa1] sm:$0xff]
    %v5651 = vld [vmem:[%s5561 + $0xb1] sm:$0xff]
    %v5652 = vld [vmem:[%s5561 + $0xc1] sm:$0xff]
    %v5653 = vld [vmem:[%s5561 + $0xd1] sm:$0xff]
    %v5654 = vld [vmem:[%s5561 + $0xe1] sm:$0xff]
    %v5655 = vld [vmem:[%s5561 + $0xf1] sm:$0xff]
    %v5656 = vld [vmem:[%s5561 + $0x101] sm:$0xff]
    %v5657 = vld [vmem:[%s5561 + $0x111] sm:$0xff]
    %v5658 = vld [vmem:[%s5561 + $0x2] sm:$0xff]
    %v5659 = vld [vmem:[%s5561 + $0x12] sm:$0xff]
    %v5660 = vld [vmem:[%s5561 + $0x22] sm:$0xff]
    %v5661 = vld [vmem:[%s5561 + $0x32] sm:$0xff]
    %v5662 = vld [vmem:[%s5561 + $0x42] sm:$0xff]
    %v5663 = vld [vmem:[%s5561 + $0x52] sm:$0xff]
    %v5664 = vld [vmem:[%s5561 + $0x62] sm:$0xff]
    %v5665 = vld [vmem:[%s5561 + $0x72] sm:$0xff]
    %v5666 = vld [vmem:[%s5561 + $0xa2] sm:$0xff]
    %v5667 = vld [vmem:[%s5561 + $0xb2] sm:$0xff]
    %v5668 = vld [vmem:[%s5561 + $0xc2] sm:$0xff]
    %v5669 = vld [vmem:[%s5561 + $0xd2] sm:$0xff]
    %v5670 = vld [vmem:[%s5561 + $0xe2] sm:$0xff]
    %v5671 = vld [vmem:[%s5561 + $0xf2] sm:$0xff]
    %v5672 = vld [vmem:[%s5561 + $0x102] sm:$0xff]
    %v5673 = vld [vmem:[%s5561 + $0x112] sm:$0xff]
    %s5674 = scalar_lea.vmem [#allocation3], 32
    %v5675 = vld [vmem:[%s5674] sm:$0xff]
    %v5676 = vld [vmem:[%s5674 + $0x10] sm:$0xff]
    %v5677 = vld [vmem:[%s5674 + $0x20] sm:$0xff]
    %v5678 = vld [vmem:[%s5674 + $0x30] sm:$0xff]
    %v5679 = vld [vmem:[%s5674 + $0x40] sm:$0xff]
    %v5680 = vld [vmem:[%s5674 + $0x50] sm:$0xff]
    %v5681 = vld [vmem:[%s5674 + $0x60] sm:$0xff]
    %v5682 = vld [vmem:[%s5674 + $0x70] sm:$0xff]
    %v5683 = vld [vmem:[%s5674 + $0xa0] sm:$0xff]
    %v5684 = vld [vmem:[%s5674 + $0xb0] sm:$0xff]
    %v5685 = vld [vmem:[%s5674 + $0xc0] sm:$0xff]
    %v5686 = vld [vmem:[%s5674 + $0xd0] sm:$0xff]
    %v5687 = vld [vmem:[%s5674 + $0xe0] sm:$0xff]
    %v5688 = vld [vmem:[%s5674 + $0xf0] sm:$0xff]
    %v5689 = vld [vmem:[%s5674 + $0x100] sm:$0xff]
    %v5690 = vld [vmem:[%s5674 + $0x110] sm:$0xff]
    %v5691 = vld [vmem:[%s5674 + $0x1] sm:$0xff]
    %v5692 = vld [vmem:[%s5674 + $0x11] sm:$0xff]
    %v5693 = vld [vmem:[%s5674 + $0x21] sm:$0xff]
    %v5694 = vld [vmem:[%s5674 + $0x31] sm:$0xff]
    %v5695 = vld [vmem:[%s5674 + $0x41] sm:$0xff]
    %v5696 = vld [vmem:[%s5674 + $0x51] sm:$0xff]
    %v5697 = vld [vmem:[%s5674 + $0x61] sm:$0xff]
    %v5698 = vld [vmem:[%s5674 + $0x71] sm:$0xff]
    %v5699 = vld [vmem:[%s5674 + $0xa1] sm:$0xff]
    %v5700 = vld [vmem:[%s5674 + $0xb1] sm:$0xff]
    %v5701 = vld [vmem:[%s5674 + $0xc1] sm:$0xff]
    %v5702 = vld [vmem:[%s5674 + $0xd1] sm:$0xff]
    %v5703 = vld [vmem:[%s5674 + $0xe1] sm:$0xff]
    %v5704 = vld [vmem:[%s5674 + $0xf1] sm:$0xff]
    %v5705 = vld [vmem:[%s5674 + $0x101] sm:$0xff]
    %v5706 = vld [vmem:[%s5674 + $0x111] sm:$0xff]
    %v5707 = vld [vmem:[%s5674 + $0x2] sm:$0xff]
    %v5708 = vld [vmem:[%s5674 + $0x12] sm:$0xff]
    %v5709 = vld [vmem:[%s5674 + $0x22] sm:$0xff]
    %v5710 = vld [vmem:[%s5674 + $0x32] sm:$0xff]
    %v5711 = vld [vmem:[%s5674 + $0x42] sm:$0xff]
    %v5712 = vld [vmem:[%s5674 + $0x52] sm:$0xff]
    %v5713 = vld [vmem:[%s5674 + $0x62] sm:$0xff]
    %v5714 = vld [vmem:[%s5674 + $0x72] sm:$0xff]
    %v5715 = vld [vmem:[%s5674 + $0xa2] sm:$0xff]
    %v5716 = vld [vmem:[%s5674 + $0xb2] sm:$0xff]
    %v5717 = vld [vmem:[%s5674 + $0xc2] sm:$0xff]
    %v5718 = vld [vmem:[%s5674 + $0xd2] sm:$0xff]
    %v5719 = vld [vmem:[%s5674 + $0xe2] sm:$0xff]
    %v5720 = vld [vmem:[%s5674 + $0xf2] sm:$0xff]
    %v5721 = vld [vmem:[%s5674 + $0x102] sm:$0xff]
    %v5722 = vld [vmem:[%s5674 + $0x112] sm:$0xff]
    %5739 = vrot.lane.b32.xlu0 %v5594, 8
    %v5740 = vpop.permute.xlu0 %5739
    %5741 = vrot.lane.b32.xlu0 %v5595, 8
    %v5742 = vpop.permute.xlu0 %5741
    %5743 = vrot.lane.b32.xlu0 %v5596, 8
    %v5744 = vpop.permute.xlu0 %5743
    %5745 = vrot.lane.b32.xlu0 %v5597, 8
    %v5746 = vpop.permute.xlu0 %5745
    %5747 = vrot.lane.b32.xlu0 %v5598, 8
    %v5748 = vpop.permute.xlu0 %5747
    %5749 = vrot.lane.b32.xlu0 %v5599, 8
    %v5750 = vpop.permute.xlu0 %5749
    %5751 = vrot.lane.b32.xlu0 %v5600, 8
    %v5752 = vpop.permute.xlu0 %5751
    %5753 = vrot.lane.b32.xlu0 %v5601, 8
    %v5754 = vpop.permute.xlu0 %5753
    %5755 = vrot.lane.b32.xlu0 %v5602, 8
    %v5756 = vpop.permute.xlu0 %5755
    %5757 = vrot.lane.b32.xlu0 %v5603, 8
    %v5758 = vpop.permute.xlu0 %5757
    %5759 = vrot.lane.b32.xlu0 %v5604, 8
    %v5760 = vpop.permute.xlu0 %5759
    %5761 = vrot.lane.b32.xlu0 %v5605, 8
    %v5762 = vpop.permute.xlu0 %5761
    %5763 = vrot.lane.b32.xlu0 %v5606, 8
    %v5764 = vpop.permute.xlu0 %5763
    %5765 = vrot.lane.b32.xlu0 %v5607, 8
    %v5766 = vpop.permute.xlu0 %5765
    %5767 = vrot.lane.b32.xlu0 %v5608, 8
    %v5768 = vpop.permute.xlu0 %5767
    %5769 = vrot.lane.b32.xlu0 %v5609, 8
    %v5770 = vpop.permute.xlu0 %5769
    %5803 = vrot.lane.b32.xlu0 %v5610, 16
    %v5804 = vpop.permute.xlu0 %5803
    %5805 = vrot.lane.b32.xlu0 %v5611, 16
    %v5806 = vpop.permute.xlu0 %5805
    %5807 = vrot.lane.b32.xlu0 %v5612, 16
    %v5808 = vpop.permute.xlu0 %5807
    %5809 = vrot.lane.b32.xlu0 %v5613, 16
    %v5810 = vpop.permute.xlu0 %5809
    %5811 = vrot.lane.b32.xlu0 %v5614, 16
    %v5812 = vpop.permute.xlu0 %5811
    %5813 = vrot.lane.b32.xlu0 %v5615, 16
    %v5814 = vpop.permute.xlu0 %5813
    %5815 = vrot.lane.b32.xlu0 %v5616, 16
    %v5816 = vpop.permute.xlu0 %5815
    %5817 = vrot.lane.b32.xlu0 %v5617, 16
    %v5818 = vpop.permute.xlu0 %5817
    %5819 = vrot.lane.b32.xlu0 %v5618, 16
    %v5820 = vpop.permute.xlu0 %5819
    %5821 = vrot.lane.b32.xlu0 %v5619, 16
    %v5822 = vpop.permute.xlu0 %5821
    %5823 = vrot.lane.b32.xlu0 %v5620, 16
    %v5824 = vpop.permute.xlu0 %5823
    %5825 = vrot.lane.b32.xlu0 %v5621, 16
    %v5826 = vpop.permute.xlu0 %5825
    %5827 = vrot.lane.b32.xlu0 %v5622, 16
    %v5828 = vpop.permute.xlu0 %5827
    %5829 = vrot.lane.b32.xlu0 %v5623, 16
    %v5830 = vpop.permute.xlu0 %5829
    %5831 = vrot.lane.b32.xlu0 %v5624, 16
    %v5832 = vpop.permute.xlu0 %5831
    %5833 = vrot.lane.b32.xlu0 %v5625, 16
    %v5834 = vpop.permute.xlu0 %5833
    %5867 = vrot.lane.b32.xlu0 %v5626, 24
    %v5868 = vpop.permute.xlu0 %5867
    %5869 = vrot.lane.b32.xlu0 %v5627, 24
    %v5870 = vpop.permute.xlu0 %5869
    %5871 = vrot.lane.b32.xlu0 %v5628, 24
    %v5872 = vpop.permute.xlu0 %5871
    %5873 = vrot.lane.b32.xlu0 %v5629, 24
    %v5874 = vpop.permute.xlu0 %5873
    %5875 = vrot.lane.b32.xlu0 %v5630, 24
    %v5876 = vpop.permute.xlu0 %5875
    %5877 = vrot.lane.b32.xlu0 %v5631, 24
    %v5878 = vpop.permute.xlu0 %5877
    %5879 = vrot.lane.b32.xlu0 %v5632, 24
    %v5880 = vpop.permute.xlu0 %5879
    %5881 = vrot.lane.b32.xlu0 %v5633, 24
    %v5882 = vpop.permute.xlu0 %5881
    %5883 = vrot.lane.b32.xlu0 %v5634, 24
    %v5884 = vpop.permute.xlu0 %5883
    %5885 = vrot.lane.b32.xlu0 %v5635, 24
    %v5886 = vpop.permute.xlu0 %5885
    %5887 = vrot.lane.b32.xlu0 %v5636, 24
    %v5888 = vpop.permute.xlu0 %5887
    %5889 = vrot.lane.b32.xlu0 %v5637, 24
    %v5890 = vpop.permute.xlu0 %5889
    %5891 = vrot.lane.b32.xlu0 %v5638, 24
    %v5892 = vpop.permute.xlu0 %5891
    %5893 = vrot.lane.b32.xlu0 %v5639, 24
    %v5894 = vpop.permute.xlu0 %5893
    %5895 = vrot.lane.b32.xlu0 %v5640, 24
    %v5896 = vpop.permute.xlu0 %5895
    %5897 = vrot.lane.b32.xlu0 %v5641, 24
    %v5898 = vpop.permute.xlu0 %5897
    %5931 = vrot.lane.b32.xlu0 %v5642, 32
    %v5932 = vpop.permute.xlu0 %5931
    %5933 = vrot.lane.b32.xlu0 %v5643, 32
    %v5934 = vpop.permute.xlu0 %5933
    %5935 = vrot.lane.b32.xlu0 %v5644, 32
    %v5936 = vpop.permute.xlu0 %5935
    %5937 = vrot.lane.b32.xlu0 %v5645, 32
    %v5938 = vpop.permute.xlu0 %5937
    %5939 = vrot.lane.b32.xlu0 %v5646, 32
    %v5940 = vpop.permute.xlu0 %5939
    %5941 = vrot.lane.b32.xlu0 %v5647, 32
    %v5942 = vpop.permute.xlu0 %5941
    %5943 = vrot.lane.b32.xlu0 %v5648, 32
    %v5944 = vpop.permute.xlu0 %5943
    %5945 = vrot.lane.b32.xlu0 %v5649, 32
    %v5946 = vpop.permute.xlu0 %5945
    %5947 = vrot.lane.b32.xlu0 %v5650, 32
    %v5948 = vpop.permute.xlu0 %5947
    %5949 = vrot.lane.b32.xlu0 %v5651, 32
    %v5950 = vpop.permute.xlu0 %5949
    %5951 = vrot.lane.b32.xlu0 %v5652, 32
    %v5952 = vpop.permute.xlu0 %5951
    %5953 = vrot.lane.b32.xlu0 %v5653, 32
    %v5954 = vpop.permute.xlu0 %5953
    %5955 = vrot.lane.b32.xlu0 %v5654, 32
    %v5956 = vpop.permute.xlu0 %5955
    %5957 = vrot.lane.b32.xlu0 %v5655, 32
    %v5958 = vpop.permute.xlu0 %5957
    %5959 = vrot.lane.b32.xlu0 %v5656, 32
    %v5960 = vpop.permute.xlu0 %5959
    %5961 = vrot.lane.b32.xlu0 %v5657, 32
    %v5962 = vpop.permute.xlu0 %5961
    %5995 = vrot.lane.b32.xlu0 %v5658, 40
    %v5996 = vpop.permute.xlu0 %5995
    %5997 = vrot.lane.b32.xlu0 %v5659, 40
    %v5998 = vpop.permute.xlu0 %5997
    %5999 = vrot.lane.b32.xlu0 %v5660, 40
    %v6000 = vpop.permute.xlu0 %5999
    %6001 = vrot.lane.b32.xlu0 %v5661, 40
    %v6002 = vpop.permute.xlu0 %6001
    %6003 = vrot.lane.b32.xlu0 %v5662, 40
    %v6004 = vpop.permute.xlu0 %6003
    %6005 = vrot.lane.b32.xlu0 %v5663, 40
    %v6006 = vpop.permute.xlu0 %6005
    %6007 = vrot.lane.b32.xlu0 %v5664, 40
    %v6008 = vpop.permute.xlu0 %6007
    %6009 = vrot.lane.b32.xlu0 %v5665, 40
    %v6010 = vpop.permute.xlu0 %6009
    %6011 = vrot.lane.b32.xlu0 %v5666, 40
    %v6012 = vpop.permute.xlu0 %6011
    %6013 = vrot.lane.b32.xlu0 %v5667, 40
    %v6014 = vpop.permute.xlu0 %6013
    %6015 = vrot.lane.b32.xlu0 %v5668, 40
    %v6016 = vpop.permute.xlu0 %6015
    %6017 = vrot.lane.b32.xlu0 %v5669, 40
    %v6018 = vpop.permute.xlu0 %6017
    %6019 = vrot.lane.b32.xlu0 %v5670, 40
    %v6020 = vpop.permute.xlu0 %6019
    %6021 = vrot.lane.b32.xlu0 %v5671, 40
    %v6022 = vpop.permute.xlu0 %6021
    %6023 = vrot.lane.b32.xlu0 %v5672, 40
    %v6024 = vpop.permute.xlu0 %6023
    %6025 = vrot.lane.b32.xlu0 %v5673, 40
    %v6026 = vpop.permute.xlu0 %6025
    %6059 = vrot.lane.b32.xlu0 %v5675, 48
    %v6060 = vpop.permute.xlu0 %6059
    %6061 = vrot.lane.b32.xlu0 %v5676, 48
    %v6062 = vpop.permute.xlu0 %6061
    %6063 = vrot.lane.b32.xlu0 %v5677, 48
    %v6064 = vpop.permute.xlu0 %6063
    %6065 = vrot.lane.b32.xlu0 %v5678, 48
    %v6066 = vpop.permute.xlu0 %6065
    %6067 = vrot.lane.b32.xlu0 %v5679, 48
    %v6068 = vpop.permute.xlu0 %6067
    %6069 = vrot.lane.b32.xlu0 %v5680, 48
    %v6070 = vpop.permute.xlu0 %6069
    %6071 = vrot.lane.b32.xlu0 %v5681, 48
    %v6072 = vpop.permute.xlu0 %6071
    %6073 = vrot.lane.b32.xlu0 %v5682, 48
    %v6074 = vpop.permute.xlu0 %6073
    %6075 = vrot.lane.b32.xlu0 %v5683, 48
    %v6076 = vpop.permute.xlu0 %6075
    %6077 = vrot.lane.b32.xlu0 %v5684, 48
    %v6078 = vpop.permute.xlu0 %6077
    %6079 = vrot.lane.b32.xlu0 %v5685, 48
    %v6080 = vpop.permute.xlu0 %6079
    %6081 = vrot.lane.b32.xlu0 %v5686, 48
    %v6082 = vpop.permute.xlu0 %6081
    %6083 = vrot.lane.b32.xlu0 %v5687, 48
    %v6084 = vpop.permute.xlu0 %6083
    %6085 = vrot.lane.b32.xlu0 %v5688, 48
    %v6086 = vpop.permute.xlu0 %6085
    %6087 = vrot.lane.b32.xlu0 %v5689, 48
    %v6088 = vpop.permute.xlu0 %6087
    %6089 = vrot.lane.b32.xlu0 %v5690, 48
    %v6090 = vpop.permute.xlu0 %6089
    %6123 = vrot.lane.b32.xlu0 %v5691, 56
    %v6124 = vpop.permute.xlu0 %6123
    %6125 = vrot.lane.b32.xlu0 %v5692, 56
    %v6126 = vpop.permute.xlu0 %6125
    %6127 = vrot.lane.b32.xlu0 %v5693, 56
    %v6128 = vpop.permute.xlu0 %6127
    %6129 = vrot.lane.b32.xlu0 %v5694, 56
    %v6130 = vpop.permute.xlu0 %6129
    %6131 = vrot.lane.b32.xlu0 %v5695, 56
    %v6132 = vpop.permute.xlu0 %6131
    %6133 = vrot.lane.b32.xlu0 %v5696, 56
    %v6134 = vpop.permute.xlu0 %6133
    %6135 = vrot.lane.b32.xlu0 %v5697, 56
    %v6136 = vpop.permute.xlu0 %6135
    %6137 = vrot.lane.b32.xlu0 %v5698, 56
    %v6138 = vpop.permute.xlu0 %6137
    %6139 = vrot.lane.b32.xlu0 %v5699, 56
    %v6140 = vpop.permute.xlu0 %6139
    %6141 = vrot.lane.b32.xlu0 %v5700, 56
    %v6142 = vpop.permute.xlu0 %6141
    %6143 = vrot.lane.b32.xlu0 %v5701, 56
    %v6144 = vpop.permute.xlu0 %6143
    %6145 = vrot.lane.b32.xlu0 %v5702, 56
    %v6146 = vpop.permute.xlu0 %6145
    %6147 = vrot.lane.b32.xlu0 %v5703, 56
    %v6148 = vpop.permute.xlu0 %6147
    %6149 = vrot.lane.b32.xlu0 %v5704, 56
    %v6150 = vpop.permute.xlu0 %6149
    %6151 = vrot.lane.b32.xlu0 %v5705, 56
    %v6152 = vpop.permute.xlu0 %6151
    %6153 = vrot.lane.b32.xlu0 %v5706, 56
    %v6154 = vpop.permute.xlu0 %6153
    %6187 = vrot.lane.b32.xlu0 %v5707, 64
    %v6188 = vpop.permute.xlu0 %6187
    %6189 = vrot.lane.b32.xlu0 %v5708, 64
    %v6190 = vpop.permute.xlu0 %6189
    %6191 = vrot.lane.b32.xlu0 %v5709, 64
    %v6192 = vpop.permute.xlu0 %6191
    %6193 = vrot.lane.b32.xlu0 %v5710, 64
    %v6194 = vpop.permute.xlu0 %6193
    %6195 = vrot.lane.b32.xlu0 %v5711, 64
    %v6196 = vpop.permute.xlu0 %6195
    %6197 = vrot.lane.b32.xlu0 %v5712, 64
    %v6198 = vpop.permute.xlu0 %6197
    %6199 = vrot.lane.b32.xlu0 %v5713, 64
    %v6200 = vpop.permute.xlu0 %6199
    %6201 = vrot.lane.b32.xlu0 %v5714, 64
    %v6202 = vpop.permute.xlu0 %6201
    %6203 = vrot.lane.b32.xlu0 %v5715, 64
    %v6204 = vpop.permute.xlu0 %6203
    %6205 = vrot.lane.b32.xlu0 %v5716, 64
    %v6206 = vpop.permute.xlu0 %6205
    %6207 = vrot.lane.b32.xlu0 %v5717, 64
    %v6208 = vpop.permute.xlu0 %6207
    %6209 = vrot.lane.b32.xlu0 %v5718, 64
    %v6210 = vpop.permute.xlu0 %6209
    %6211 = vrot.lane.b32.xlu0 %v5719, 64
    %v6212 = vpop.permute.xlu0 %6211
    %6213 = vrot.lane.b32.xlu0 %v5720, 64
    %v6214 = vpop.permute.xlu0 %6213
    %6215 = vrot.lane.b32.xlu0 %v5721, 64
    %v6216 = vpop.permute.xlu0 %6215
    %6217 = vrot.lane.b32.xlu0 %v5722, 64
    %v6218 = vpop.permute.xlu0 %6217
    %v6235 = vsel %vm3392, %v5578, %v5740
    %v6236 = vsel %vm3392, %v5579, %v5742
    %v6237 = vsel %vm3392, %v5580, %v5744
    %v6238 = vsel %vm3392, %v5581, %v5746
    %v6239 = vsel %vm3392, %v5582, %v5748
    %v6240 = vsel %vm3392, %v5583, %v5750
    %v6241 = vsel %vm3392, %v5584, %v5752
    %v6242 = vsel %vm3392, %v5585, %v5754
    %v6243 = vsel %vm3392, %v5586, %v5756
    %v6244 = vsel %vm3392, %v5587, %v5758
    %v6245 = vsel %vm3392, %v5588, %v5760
    %v6246 = vsel %vm3392, %v5589, %v5762
    %v6247 = vsel %vm3392, %v5590, %v5764
    %v6248 = vsel %vm3392, %v5591, %v5766
    %v6249 = vsel %vm3392, %v5592, %v5768
    %v6250 = vsel %vm3392, %v5593, %v5770
    %vm6251 = vcmask 130048
    %v6252 = vsel %vm6251, %v6235, %v5804
    %v6253 = vsel %vm6251, %v6236, %v5806
    %v6254 = vsel %vm6251, %v6237, %v5808
    %v6255 = vsel %vm6251, %v6238, %v5810
    %v6256 = vsel %vm6251, %v6239, %v5812
    %v6257 = vsel %vm6251, %v6240, %v5814
    %v6258 = vsel %vm6251, %v6241, %v5816
    %v6259 = vsel %vm6251, %v6242, %v5818
    %v6260 = vsel %vm6251, %v6243, %v5820
    %v6261 = vsel %vm6251, %v6244, %v5822
    %v6262 = vsel %vm6251, %v6245, %v5824
    %v6263 = vsel %vm6251, %v6246, %v5826
    %v6264 = vsel %vm6251, %v6247, %v5828
    %v6265 = vsel %vm6251, %v6248, %v5830
    %v6266 = vsel %vm6251, %v6249, %v5832
    %v6267 = vsel %vm6251, %v6250, %v5834
    %vm6268 = vcmask 195584
    %v6269 = vsel %vm6268, %v6252, %v5868
    %v6270 = vsel %vm6268, %v6253, %v5870
    %v6271 = vsel %vm6268, %v6254, %v5872
    %v6272 = vsel %vm6268, %v6255, %v5874
    %v6273 = vsel %vm6268, %v6256, %v5876
    %v6274 = vsel %vm6268, %v6257, %v5878
    %v6275 = vsel %vm6268, %v6258, %v5880
    %v6276 = vsel %vm6268, %v6259, %v5882
    %v6277 = vsel %vm6268, %v6260, %v5884
    %v6278 = vsel %vm6268, %v6261, %v5886
    %v6279 = vsel %vm6268, %v6262, %v5888
    %v6280 = vsel %vm6268, %v6263, %v5890
    %v6281 = vsel %vm6268, %v6264, %v5892
    %v6282 = vsel %vm6268, %v6265, %v5894
    %v6283 = vsel %vm6268, %v6266, %v5896
    %v6284 = vsel %vm6268, %v6267, %v5898
    %vm6285 = vcmask 261120
    %v6286 = vsel %vm6285, %v6269, %v5932
    %v6287 = vsel %vm6285, %v6270, %v5934
    %v6288 = vsel %vm6285, %v6271, %v5936
    %v6289 = vsel %vm6285, %v6272, %v5938
    %v6290 = vsel %vm6285, %v6273, %v5940
    %v6291 = vsel %vm6285, %v6274, %v5942
    %v6292 = vsel %vm6285, %v6275, %v5944
    %v6293 = vsel %vm6285, %v6276, %v5946
    %v6294 = vsel %vm6285, %v6277, %v5948
    %v6295 = vsel %vm6285, %v6278, %v5950
    %v6296 = vsel %vm6285, %v6279, %v5952
    %v6297 = vsel %vm6285, %v6280, %v5954
    %v6298 = vsel %vm6285, %v6281, %v5956
    %v6299 = vsel %vm6285, %v6282, %v5958
    %v6300 = vsel %vm6285, %v6283, %v5960
    %v6301 = vsel %vm6285, %v6284, %v5962
    %vm6302 = vcmask 326656
    %v6303 = vsel %vm6302, %v6286, %v5996
    %v6304 = vsel %vm6302, %v6287, %v5998
    %v6305 = vsel %vm6302, %v6288, %v6000
    %v6306 = vsel %vm6302, %v6289, %v6002
    %v6307 = vsel %vm6302, %v6290, %v6004
    %v6308 = vsel %vm6302, %v6291, %v6006
    %v6309 = vsel %vm6302, %v6292, %v6008
    %v6310 = vsel %vm6302, %v6293, %v6010
    %v6311 = vsel %vm6302, %v6294, %v6012
    %v6312 = vsel %vm6302, %v6295, %v6014
    %v6313 = vsel %vm6302, %v6296, %v6016
    %v6314 = vsel %vm6302, %v6297, %v6018
    %v6315 = vsel %vm6302, %v6298, %v6020
    %v6316 = vsel %vm6302, %v6299, %v6022
    %v6317 = vsel %vm6302, %v6300, %v6024
    %v6318 = vsel %vm6302, %v6301, %v6026
    %vm6319 = vcmask 392192
    %v6320 = vsel %vm6319, %v6303, %v6060
    %v6321 = vsel %vm6319, %v6304, %v6062
    %v6322 = vsel %vm6319, %v6305, %v6064
    %v6323 = vsel %vm6319, %v6306, %v6066
    %v6324 = vsel %vm6319, %v6307, %v6068
    %v6325 = vsel %vm6319, %v6308, %v6070
    %v6326 = vsel %vm6319, %v6309, %v6072
    %v6327 = vsel %vm6319, %v6310, %v6074
    %v6328 = vsel %vm6319, %v6311, %v6076
    %v6329 = vsel %vm6319, %v6312, %v6078
    %v6330 = vsel %vm6319, %v6313, %v6080
    %v6331 = vsel %vm6319, %v6314, %v6082
    %v6332 = vsel %vm6319, %v6315, %v6084
    %v6333 = vsel %vm6319, %v6316, %v6086
    %v6334 = vsel %vm6319, %v6317, %v6088
    %v6335 = vsel %vm6319, %v6318, %v6090
    %vm6336 = vcmask 457728
    %v6337 = vsel %vm6336, %v6320, %v6124
    %v6338 = vsel %vm6336, %v6321, %v6126
    %v6339 = vsel %vm6336, %v6322, %v6128
    %v6340 = vsel %vm6336, %v6323, %v6130
    %v6341 = vsel %vm6336, %v6324, %v6132
    %v6342 = vsel %vm6336, %v6325, %v6134
    %v6343 = vsel %vm6336, %v6326, %v6136
    %v6344 = vsel %vm6336, %v6327, %v6138
    %v6345 = vsel %vm6336, %v6328, %v6140
    %v6346 = vsel %vm6336, %v6329, %v6142
    %v6347 = vsel %vm6336, %v6330, %v6144
    %v6348 = vsel %vm6336, %v6331, %v6146
    %v6349 = vsel %vm6336, %v6332, %v6148
    %v6350 = vsel %vm6336, %v6333, %v6150
    %v6351 = vsel %vm6336, %v6334, %v6152
    %v6352 = vsel %vm6336, %v6335, %v6154
    %vm6353 = vcmask 523264
    %v6354 = vsel %vm6353, %v6337, %v6188
    %v6355 = vsel %vm6353, %v6338, %v6190
    %v6356 = vsel %vm6353, %v6339, %v6192
    %v6357 = vsel %vm6353, %v6340, %v6194
    %v6358 = vsel %vm6353, %v6341, %v6196
    %v6359 = vsel %vm6353, %v6342, %v6198
    %v6360 = vsel %vm6353, %v6343, %v6200
    %v6361 = vsel %vm6353, %v6344, %v6202
    %v6362 = vsel %vm6353, %v6345, %v6204
    %v6363 = vsel %vm6353, %v6346, %v6206
    %v6364 = vsel %vm6353, %v6347, %v6208
    %v6365 = vsel %vm6353, %v6348, %v6210
    %v6366 = vsel %vm6353, %v6349, %v6212
    %v6367 = vsel %vm6353, %v6350, %v6214
    %v6368 = vsel %vm6353, %v6351, %v6216
    %v6369 = vsel %vm6353, %v6352, %v6218
    %v6370 = vld [vmem:[%s4] sm:$0xff]
    %v6371 = vld [vmem:[%s4 + $0x8] sm:$0xff]
    %v6372 = vld [vmem:[%s4 + $0x10] sm:$0xff]
    %v6373 = vld [vmem:[%s4 + $0x18] sm:$0xff]
    %v6374 = vld [vmem:[%s4 + $0x20] sm:$0xff]
    %v6375 = vld [vmem:[%s4 + $0x28] sm:$0xff]
    %v6376 = vld [vmem:[%s4 + $0x30] sm:$0xff]
    %v6377 = vld [vmem:[%s4 + $0x38] sm:$0xff]
    %v6378 = vld [vmem:[%s4 + $0x40] sm:$0xff]
    %vm6379 = vcmask 588800
    %v6381 = vsel %vm6379, %v6354, 0
    %v6384 = vsel %vm6379, %v6355, 0
    %v6387 = vsel %vm6379, %v6356, 0
    %v6390 = vsel %vm6379, %v6357, 0
    %v6393 = vsel %vm6379, %v6358, 0
    %v6396 = vsel %vm6379, %v6359, 0
    %v6399 = vsel %vm6379, %v6360, 0
    %v6402 = vsel %vm6379, %v6361, 0
    %v6405 = vsel %vm6379, %v6362, 0
    %v6408 = vsel %vm6379, %v6363, 0
    %v6411 = vsel %vm6379, %v6364, 0
    %v6414 = vsel %vm6379, %v6365, 0
    %v6417 = vsel %vm6379, %v6366, 0
    %v6420 = vsel %vm6379, %v6367, 0
    %v6423 = vsel %vm6379, %v6368, 0
    %v6426 = vsel %vm6379, %v6369, 0
    %6428 = vmatpush.msra.mxu0 0.0
    %6429 = vmatpush.msra.mxu0 0.0
    %6430 = vmatpush.msra.mxu0 0.0
    %6431 = vmatpush.msra.mxu0 0.0
    %6432 = vmatpush.msra.mxu0 0.0
    %6433 = vmatpush.msra.mxu0 0.0
    %6434 = vmatpush.msra.mxu0 0.0
    %6435 = vmatpush.msra.mxu0 %v6378
    %6436 = vmatpush.msra.mxu0 %v6377
    %6437 = vmatpush.msra.mxu0 %v6376
    %6438 = vmatpush.msra.mxu0 %v6375
    %6439 = vmatpush.msra.mxu0 %v6374
    %6440 = vmatpush.msra.mxu0 %v6373
    %6441 = vmatpush.msra.mxu0 %v6372
    %6442 = vmatpush.msra.mxu0 %v6371
    %6443 = vmatpush.msra.mxu0 %v6370
    %6444 = vmatmul.f32.gmra.mxu0 %v6381
    %v6445 = vpop.f32.mrf.mxu0
    %v6446 = vadd.f32 0.0, %v6445
    %6447 = vmatmul.f32.gmra.mxu0 %v6384
    %v6448 = vpop.f32.mrf.mxu0
    %v6449 = vadd.f32 0.0, %v6448
    %6450 = vmatmul.f32.gmra.mxu0 %v6387
    %v6451 = vpop.f32.mrf.mxu0
    %v6452 = vadd.f32 0.0, %v6451
    %6453 = vmatmul.f32.gmra.mxu0 %v6390
    %v6454 = vpop.f32.mrf.mxu0
    %v6455 = vadd.f32 0.0, %v6454
    %6456 = vmatmul.f32.gmra.mxu0 %v6393
    %v6457 = vpop.f32.mrf.mxu0
    %v6458 = vadd.f32 0.0, %v6457
    %6459 = vmatmul.f32.gmra.mxu0 %v6396
    %v6460 = vpop.f32.mrf.mxu0
    %v6461 = vadd.f32 0.0, %v6460
    %6462 = vmatmul.f32.gmra.mxu0 %v6399
    %v6463 = vpop.f32.mrf.mxu0
    %v6464 = vadd.f32 0.0, %v6463
    %6465 = vmatmul.f32.gmra.mxu0 %v6402
    %v6466 = vpop.f32.mrf.mxu0
    %v6467 = vadd.f32 0.0, %v6466
    %6468 = vmatmul.f32.gmra.mxu0 %v6405
    %v6469 = vpop.f32.mrf.mxu0
    %v6470 = vadd.f32 0.0, %v6469
    %6471 = vmatmul.f32.gmra.mxu0 %v6408
    %v6472 = vpop.f32.mrf.mxu0
    %v6473 = vadd.f32 0.0, %v6472
    %6474 = vmatmul.f32.gmra.mxu0 %v6411
    %v6475 = vpop.f32.mrf.mxu0
    %v6476 = vadd.f32 0.0, %v6475
    %6477 = vmatmul.f32.gmra.mxu0 %v6414
    %v6478 = vpop.f32.mrf.mxu0
    %v6479 = vadd.f32 0.0, %v6478
    %6480 = vmatmul.f32.gmra.mxu0 %v6417
    %v6481 = vpop.f32.mrf.mxu0
    %v6482 = vadd.f32 0.0, %v6481
    %6483 = vmatmul.f32.gmra.mxu0 %v6420
    %v6484 = vpop.f32.mrf.mxu0
    %v6485 = vadd.f32 0.0, %v6484
    %6486 = vmatmul.f32.gmra.mxu0 %v6423
    %v6487 = vpop.f32.mrf.mxu0
    %v6488 = vadd.f32 0.0, %v6487
    %6489 = vmatmul.f32.gmra.mxu0 %v6426
    %v6490 = vpop.f32.mrf.mxu0
    %v6491 = vadd.f32 0.0, %v6490
    %6492 = vdwg.mxu0
    %v6493 = vld [vmem:[%s5] sm:$0x1]
    %v6495 = vperm.slane %v6493, 0
    %v6497 = vmul.f32 %v6446, %v6495
    %v6498 = vmul.f32 %v6449, %v6495
    %v6499 = vmul.f32 %v6452, %v6495
    %v6500 = vmul.f32 %v6455, %v6495
    %v6501 = vmul.f32 %v6458, %v6495
    %v6502 = vmul.f32 %v6461, %v6495
    %v6503 = vmul.f32 %v6464, %v6495
    %v6504 = vmul.f32 %v6467, %v6495
    %v6505 = vmul.f32 %v6470, %v6495
    %v6506 = vmul.f32 %v6473, %v6495
    %v6507 = vmul.f32 %v6476, %v6495
    %v6508 = vmul.f32 %v6479, %v6495
    %v6509 = vmul.f32 %v6482, %v6495
    %v6510 = vmul.f32 %v6485, %v6495
    %v6511 = vmul.f32 %v6488, %v6495
    %v6512 = vmul.f32 %v6491, %v6495
    %v6513 = vld [vmem:[%s6] sm:$0x1]
    %v6515 = vperm.slane %v6513, 0
    %v6517 = vadd.f32 %v6497, %v6515
    %v6518 = vadd.f32 %v6498, %v6515
    %v6519 = vadd.f32 %v6499, %v6515
    %v6520 = vadd.f32 %v6500, %v6515
    %v6521 = vadd.f32 %v6501, %v6515
    %v6522 = vadd.f32 %v6502, %v6515
    %v6523 = vadd.f32 %v6503, %v6515
    %v6524 = vadd.f32 %v6504, %v6515
    %v6525 = vadd.f32 %v6505, %v6515
    %v6526 = vadd.f32 %v6506, %v6515
    %v6527 = vadd.f32 %v6507, %v6515
    %v6528 = vadd.f32 %v6508, %v6515
    %v6529 = vadd.f32 %v6509, %v6515
    %v6530 = vadd.f32 %v6510, %v6515
    %v6531 = vadd.f32 %v6511, %v6515
    %v6532 = vadd.f32 %v6512, %v6515
    %v6533 = vxor.u32 %v6517, 2147483648
    %v6534 = vxor.u32 %v6518, 2147483648
    %v6535 = vxor.u32 %v6519, 2147483648
    %v6536 = vxor.u32 %v6520, 2147483648
    %v6537 = vxor.u32 %v6521, 2147483648
    %v6538 = vxor.u32 %v6522, 2147483648
    %v6539 = vxor.u32 %v6523, 2147483648
    %v6540 = vxor.u32 %v6524, 2147483648
    %v6541 = vxor.u32 %v6525, 2147483648
    %v6542 = vxor.u32 %v6526, 2147483648
    %v6543 = vxor.u32 %v6527, 2147483648
    %v6544 = vxor.u32 %v6528, 2147483648
    %v6545 = vxor.u32 %v6529, 2147483648
    %v6546 = vxor.u32 %v6530, 2147483648
    %v6547 = vxor.u32 %v6531, 2147483648
    %v6548 = vxor.u32 %v6532, 2147483648
    %v6549 = vmul.f32 %v6533, 1.442695
    %v6550 = vpow.pop %v6549
    %v6551 = vmul.f32 %v6534, 1.442695
    %v6552 = vpow.pop %v6551
    %v6553 = vmul.f32 %v6535, 1.442695
    %v6554 = vpow.pop %v6553
    %v6555 = vmul.f32 %v6536, 1.442695
    %v6556 = vpow.pop %v6555
    %v6557 = vmul.f32 %v6537, 1.442695
    %v6558 = vpow.pop %v6557
    %v6559 = vmul.f32 %v6538, 1.442695
    %v6560 = vpow.pop %v6559
    %v6561 = vmul.f32 %v6539, 1.442695
    %v6562 = vpow.pop %v6561
    %v6563 = vmul.f32 %v6540, 1.442695
    %v6564 = vpow.pop %v6563
    %v6565 = vmul.f32 %v6541, 1.442695
    %v6566 = vpow.pop %v6565
    %v6567 = vmul.f32 %v6542, 1.442695
    %v6568 = vpow.pop %v6567
    %v6569 = vmul.f32 %v6543, 1.442695
    %v6570 = vpow.pop %v6569
    %v6571 = vmul.f32 %v6544, 1.442695
    %v6572 = vpow.pop %v6571
    %v6573 = vmul.f32 %v6545, 1.442695
    %v6574 = vpow.pop %v6573
    %v6575 = vmul.f32 %v6546, 1.442695
    %v6576 = vpow.pop %v6575
    %v6577 = vmul.f32 %v6547, 1.442695
    %v6578 = vpow.pop %v6577
    %v6579 = vmul.f32 %v6548, 1.442695
    %v6580 = vpow.pop %v6579
    %v6581 = vadd.f32 %v6550, 1.0
    %v6582 = vadd.f32 %v6552, 1.0
    %v6583 = vadd.f32 %v6554, 1.0
    %v6584 = vadd.f32 %v6556, 1.0
    %v6585 = vadd.f32 %v6558, 1.0
    %v6586 = vadd.f32 %v6560, 1.0
    %v6587 = vadd.f32 %v6562, 1.0
    %v6588 = vadd.f32 %v6564, 1.0
    %v6589 = vadd.f32 %v6566, 1.0
    %v6590 = vadd.f32 %v6568, 1.0
    %v6591 = vadd.f32 %v6570, 1.0
    %v6592 = vadd.f32 %v6572, 1.0
    %v6593 = vadd.f32 %v6574, 1.0
    %v6594 = vadd.f32 %v6576, 1.0
    %v6595 = vadd.f32 %v6578, 1.0
    %v6596 = vadd.f32 %v6580, 1.0
    %v6597 = vrcp.pop %v6581
    %v6598 = vmul.f32 %v6581, %v6597
    %v6599 = vsub.f32 1.0, %v6598
    %v6600 = vmul.f32 %v6597, %v6599
    %v6601 = vadd.f32 %v6597, %v6600
    %vm6602 = vweird.f32 %v6581
    %vm6603 = vweird.f32 %v6597
    %vm6604 = vmor %vm6602, %vm6603
    %v6605 = vsel %vm6604, %v6597, %v6601
    %v6606 = vand.u32 2147483647, %v6581
    %vm6607 = vcmp.eq.f32.partialorder %v6606, 8.507059e+37
    %v6608 = vand.u32 %v6581, 2147483648
    %v6609 = vor.u32 1.1754944e-38, %v6608
    %v6610 = vsel %vm6607, %v6609, %v6605
    %v6611 = vmul.f32 1.0, %v6610
    %v6612 = vrcp.pop %v6582
    %v6613 = vmul.f32 %v6582, %v6612
    %v6614 = vsub.f32 1.0, %v6613
    %v6615 = vmul.f32 %v6612, %v6614
    %v6616 = vadd.f32 %v6612, %v6615
    %vm6617 = vweird.f32 %v6582
    %vm6618 = vweird.f32 %v6612
    %vm6619 = vmor %vm6617, %vm6618
    %v6620 = vsel %vm6619, %v6612, %v6616
    %v6621 = vand.u32 2147483647, %v6582
    %vm6622 = vcmp.eq.f32.partialorder %v6621, 8.507059e+37
    %v6623 = vand.u32 %v6582, 2147483648
    %v6624 = vor.u32 1.1754944e-38, %v6623
    %v6625 = vsel %vm6622, %v6624, %v6620
    %v6626 = vmul.f32 1.0, %v6625
    %v6627 = vrcp.pop %v6583
    %v6628 = vmul.f32 %v6583, %v6627
    %v6629 = vsub.f32 1.0, %v6628
    %v6630 = vmul.f32 %v6627, %v6629
    %v6631 = vadd.f32 %v6627, %v6630
    %vm6632 = vweird.f32 %v6583
    %vm6633 = vweird.f32 %v6627
    %vm6634 = vmor %vm6632, %vm6633
    %v6635 = vsel %vm6634, %v6627, %v6631
    %v6636 = vand.u32 2147483647, %v6583
    %vm6637 = vcmp.eq.f32.partialorder %v6636, 8.507059e+37
    %v6638 = vand.u32 %v6583, 2147483648
    %v6639 = vor.u32 1.1754944e-38, %v6638
    %v6640 = vsel %vm6637, %v6639, %v6635
    %v6641 = vmul.f32 1.0, %v6640
    %v6642 = vrcp.pop %v6584
    %v6643 = vmul.f32 %v6584, %v6642
    %v6644 = vsub.f32 1.0, %v6643
    %v6645 = vmul.f32 %v6642, %v6644
    %v6646 = vadd.f32 %v6642, %v6645
    %vm6647 = vweird.f32 %v6584
    %vm6648 = vweird.f32 %v6642
    %vm6649 = vmor %vm6647, %vm6648
    %v6650 = vsel %vm6649, %v6642, %v6646
    %v6651 = vand.u32 2147483647, %v6584
    %vm6652 = vcmp.eq.f32.partialorder %v6651, 8.507059e+37
    %v6653 = vand.u32 %v6584, 2147483648
    %v6654 = vor.u32 1.1754944e-38, %v6653
    %v6655 = vsel %vm6652, %v6654, %v6650
    %v6656 = vmul.f32 1.0, %v6655
    %v6657 = vrcp.pop %v6585
    %v6658 = vmul.f32 %v6585, %v6657
    %v6659 = vsub.f32 1.0, %v6658
    %v6660 = vmul.f32 %v6657, %v6659
    %v6661 = vadd.f32 %v6657, %v6660
    %vm6662 = vweird.f32 %v6585
    %vm6663 = vweird.f32 %v6657
    %vm6664 = vmor %vm6662, %vm6663
    %v6665 = vsel %vm6664, %v6657, %v6661
    %v6666 = vand.u32 2147483647, %v6585
    %vm6667 = vcmp.eq.f32.partialorder %v6666, 8.507059e+37
    %v6668 = vand.u32 %v6585, 2147483648
    %v6669 = vor.u32 1.1754944e-38, %v6668
    %v6670 = vsel %vm6667, %v6669, %v6665
    %v6671 = vmul.f32 1.0, %v6670
    %v6672 = vrcp.pop %v6586
    %v6673 = vmul.f32 %v6586, %v6672
    %v6674 = vsub.f32 1.0, %v6673
    %v6675 = vmul.f32 %v6672, %v6674
    %v6676 = vadd.f32 %v6672, %v6675
    %vm6677 = vweird.f32 %v6586
    %vm6678 = vweird.f32 %v6672
    %vm6679 = vmor %vm6677, %vm6678
    %v6680 = vsel %vm6679, %v6672, %v6676
    %v6681 = vand.u32 2147483647, %v6586
    %vm6682 = vcmp.eq.f32.partialorder %v6681, 8.507059e+37
    %v6683 = vand.u32 %v6586, 2147483648
    %v6684 = vor.u32 1.1754944e-38, %v6683
    %v6685 = vsel %vm6682, %v6684, %v6680
    %v6686 = vmul.f32 1.0, %v6685
    %v6687 = vrcp.pop %v6587
    %v6688 = vmul.f32 %v6587, %v6687
    %v6689 = vsub.f32 1.0, %v6688
    %v6690 = vmul.f32 %v6687, %v6689
    %v6691 = vadd.f32 %v6687, %v6690
    %vm6692 = vweird.f32 %v6587
    %vm6693 = vweird.f32 %v6687
    %vm6694 = vmor %vm6692, %vm6693
    %v6695 = vsel %vm6694, %v6687, %v6691
    %v6696 = vand.u32 2147483647, %v6587
    %vm6697 = vcmp.eq.f32.partialorder %v6696, 8.507059e+37
    %v6698 = vand.u32 %v6587, 2147483648
    %v6699 = vor.u32 1.1754944e-38, %v6698
    %v6700 = vsel %vm6697, %v6699, %v6695
    %v6701 = vmul.f32 1.0, %v6700
    %v6702 = vrcp.pop %v6588
    %v6703 = vmul.f32 %v6588, %v6702
    %v6704 = vsub.f32 1.0, %v6703
    %v6705 = vmul.f32 %v6702, %v6704
    %v6706 = vadd.f32 %v6702, %v6705
    %vm6707 = vweird.f32 %v6588
    %vm6708 = vweird.f32 %v6702
    %vm6709 = vmor %vm6707, %vm6708
    %v6710 = vsel %vm6709, %v6702, %v6706
    %v6711 = vand.u32 2147483647, %v6588
    %vm6712 = vcmp.eq.f32.partialorder %v6711, 8.507059e+37
    %v6713 = vand.u32 %v6588, 2147483648
    %v6714 = vor.u32 1.1754944e-38, %v6713
    %v6715 = vsel %vm6712, %v6714, %v6710
    %v6716 = vmul.f32 1.0, %v6715
    %v6717 = vrcp.pop %v6589
    %v6718 = vmul.f32 %v6589, %v6717
    %v6719 = vsub.f32 1.0, %v6718
    %v6720 = vmul.f32 %v6717, %v6719
    %v6721 = vadd.f32 %v6717, %v6720
    %vm6722 = vweird.f32 %v6589
    %vm6723 = vweird.f32 %v6717
    %vm6724 = vmor %vm6722, %vm6723
    %v6725 = vsel %vm6724, %v6717, %v6721
    %v6726 = vand.u32 2147483647, %v6589
    %vm6727 = vcmp.eq.f32.partialorder %v6726, 8.507059e+37
    %v6728 = vand.u32 %v6589, 2147483648
    %v6729 = vor.u32 1.1754944e-38, %v6728
    %v6730 = vsel %vm6727, %v6729, %v6725
    %v6731 = vmul.f32 1.0, %v6730
    %v6732 = vrcp.pop %v6590
    %v6733 = vmul.f32 %v6590, %v6732
    %v6734 = vsub.f32 1.0, %v6733
    %v6735 = vmul.f32 %v6732, %v6734
    %v6736 = vadd.f32 %v6732, %v6735
    %vm6737 = vweird.f32 %v6590
    %vm6738 = vweird.f32 %v6732
    %vm6739 = vmor %vm6737, %vm6738
    %v6740 = vsel %vm6739, %v6732, %v6736
    %v6741 = vand.u32 2147483647, %v6590
    %vm6742 = vcmp.eq.f32.partialorder %v6741, 8.507059e+37
    %v6743 = vand.u32 %v6590, 2147483648
    %v6744 = vor.u32 1.1754944e-38, %v6743
    %v6745 = vsel %vm6742, %v6744, %v6740
    %v6746 = vmul.f32 1.0, %v6745
    %v6747 = vrcp.pop %v6591
    %v6748 = vmul.f32 %v6591, %v6747
    %v6749 = vsub.f32 1.0, %v6748
    %v6750 = vmul.f32 %v6747, %v6749
    %v6751 = vadd.f32 %v6747, %v6750
    %vm6752 = vweird.f32 %v6591
    %vm6753 = vweird.f32 %v6747
    %vm6754 = vmor %vm6752, %vm6753
    %v6755 = vsel %vm6754, %v6747, %v6751
    %v6756 = vand.u32 2147483647, %v6591
    %vm6757 = vcmp.eq.f32.partialorder %v6756, 8.507059e+37
    %v6758 = vand.u32 %v6591, 2147483648
    %v6759 = vor.u32 1.1754944e-38, %v6758
    %v6760 = vsel %vm6757, %v6759, %v6755
    %v6761 = vmul.f32 1.0, %v6760
    %v6762 = vrcp.pop %v6592
    %v6763 = vmul.f32 %v6592, %v6762
    %v6764 = vsub.f32 1.0, %v6763
    %v6765 = vmul.f32 %v6762, %v6764
    %v6766 = vadd.f32 %v6762, %v6765
    %vm6767 = vweird.f32 %v6592
    %vm6768 = vweird.f32 %v6762
    %vm6769 = vmor %vm6767, %vm6768
    %v6770 = vsel %vm6769, %v6762, %v6766
    %v6771 = vand.u32 2147483647, %v6592
    %vm6772 = vcmp.eq.f32.partialorder %v6771, 8.507059e+37
    %v6773 = vand.u32 %v6592, 2147483648
    %v6774 = vor.u32 1.1754944e-38, %v6773
    %v6775 = vsel %vm6772, %v6774, %v6770
    %v6776 = vmul.f32 1.0, %v6775
    %v6777 = vrcp.pop %v6593
    %v6778 = vmul.f32 %v6593, %v6777
    %v6779 = vsub.f32 1.0, %v6778
    %v6780 = vmul.f32 %v6777, %v6779
    %v6781 = vadd.f32 %v6777, %v6780
    %vm6782 = vweird.f32 %v6593
    %vm6783 = vweird.f32 %v6777
    %vm6784 = vmor %vm6782, %vm6783
    %v6785 = vsel %vm6784, %v6777, %v6781
    %v6786 = vand.u32 2147483647, %v6593
    %vm6787 = vcmp.eq.f32.partialorder %v6786, 8.507059e+37
    %v6788 = vand.u32 %v6593, 2147483648
    %v6789 = vor.u32 1.1754944e-38, %v6788
    %v6790 = vsel %vm6787, %v6789, %v6785
    %v6791 = vmul.f32 1.0, %v6790
    %v6792 = vrcp.pop %v6594
    %v6793 = vmul.f32 %v6594, %v6792
    %v6794 = vsub.f32 1.0, %v6793
    %v6795 = vmul.f32 %v6792, %v6794
    %v6796 = vadd.f32 %v6792, %v6795
    %vm6797 = vweird.f32 %v6594
    %vm6798 = vweird.f32 %v6792
    %vm6799 = vmor %vm6797, %vm6798
    %v6800 = vsel %vm6799, %v6792, %v6796
    %v6801 = vand.u32 2147483647, %v6594
    %vm6802 = vcmp.eq.f32.partialorder %v6801, 8.507059e+37
    %v6803 = vand.u32 %v6594, 2147483648
    %v6804 = vor.u32 1.1754944e-38, %v6803
    %v6805 = vsel %vm6802, %v6804, %v6800
    %v6806 = vmul.f32 1.0, %v6805
    %v6807 = vrcp.pop %v6595
    %v6808 = vmul.f32 %v6595, %v6807
    %v6809 = vsub.f32 1.0, %v6808
    %v6810 = vmul.f32 %v6807, %v6809
    %v6811 = vadd.f32 %v6807, %v6810
    %vm6812 = vweird.f32 %v6595
    %vm6813 = vweird.f32 %v6807
    %vm6814 = vmor %vm6812, %vm6813
    %v6815 = vsel %vm6814, %v6807, %v6811
    %v6816 = vand.u32 2147483647, %v6595
    %vm6817 = vcmp.eq.f32.partialorder %v6816, 8.507059e+37
    %v6818 = vand.u32 %v6595, 2147483648
    %v6819 = vor.u32 1.1754944e-38, %v6818
    %v6820 = vsel %vm6817, %v6819, %v6815
    %v6821 = vmul.f32 1.0, %v6820
    %v6822 = vrcp.pop %v6596
    %v6823 = vmul.f32 %v6596, %v6822
    %v6824 = vsub.f32 1.0, %v6823
    %v6825 = vmul.f32 %v6822, %v6824
    %v6826 = vadd.f32 %v6822, %v6825
    %vm6827 = vweird.f32 %v6596
    %vm6828 = vweird.f32 %v6822
    %vm6829 = vmor %vm6827, %vm6828
    %v6830 = vsel %vm6829, %v6822, %v6826
    %v6831 = vand.u32 2147483647, %v6596
    %vm6832 = vcmp.eq.f32.partialorder %v6831, 8.507059e+37
    %v6833 = vand.u32 %v6596, 2147483648
    %v6834 = vor.u32 1.1754944e-38, %v6833
    %v6835 = vsel %vm6832, %v6834, %v6830
    %v6836 = vmul.f32 1.0, %v6835
    %v6837 = vmul.f32 %v6517, %v6611
    %v6838 = vmul.f32 %v6518, %v6626
    %v6839 = vmul.f32 %v6519, %v6641
    %v6840 = vmul.f32 %v6520, %v6656
    %v6841 = vmul.f32 %v6521, %v6671
    %v6842 = vmul.f32 %v6522, %v6686
    %v6843 = vmul.f32 %v6523, %v6701
    %v6844 = vmul.f32 %v6524, %v6716
    %v6845 = vmul.f32 %v6525, %v6731
    %v6846 = vmul.f32 %v6526, %v6746
    %v6847 = vmul.f32 %v6527, %v6761
    %v6848 = vmul.f32 %v6528, %v6776
    %v6849 = vmul.f32 %v6529, %v6791
    %v6850 = vmul.f32 %v6530, %v6806
    %v6851 = vmul.f32 %v6531, %v6821
    %v6852 = vmul.f32 %v6532, %v6836
    %v6853 = vld [vmem:[%s7] sm:$0xff]
    %v6854 = vld [vmem:[%s7 + $0x8] sm:$0xff]
    %v6855 = vld [vmem:[%s7 + $0x10] sm:$0xff]
    %v6856 = vld [vmem:[%s7 + $0x18] sm:$0xff]
    %v6857 = vld [vmem:[%s7 + $0x20] sm:$0xff]
    %v6858 = vld [vmem:[%s7 + $0x28] sm:$0xff]
    %v6859 = vld [vmem:[%s7 + $0x30] sm:$0xff]
    %v6860 = vld [vmem:[%s7 + $0x38] sm:$0xff]
    %v6861 = vld [vmem:[%s7 + $0x40] sm:$0xff]
    %v6862 = vld [vmem:[%s7 + $0x48] sm:$0xff]
    %v6863 = vld [vmem:[%s7 + $0x50] sm:$0xff]
    %v6864 = vld [vmem:[%s7 + $0x58] sm:$0xff]
    %v6865 = vld [vmem:[%s7 + $0x60] sm:$0xff]
    %v6866 = vld [vmem:[%s7 + $0x68] sm:$0xff]
    %v6867 = vld [vmem:[%s7 + $0x70] sm:$0xff]
    %v6868 = vld [vmem:[%s7 + $0x78] sm:$0xff]
    %v6870 = vsel %vm6251, %v6837, 0
    %v6873 = vsel %vm6251, %v6838, 0
    %v6876 = vsel %vm6251, %v6839, 0
    %v6879 = vsel %vm6251, %v6840, 0
    %v6882 = vsel %vm6251, %v6841, 0
    %v6885 = vsel %vm6251, %v6842, 0
    %v6888 = vsel %vm6251, %v6843, 0
    %v6891 = vsel %vm6251, %v6844, 0
    %v6894 = vsel %vm6251, %v6845, 0
    %v6897 = vsel %vm6251, %v6846, 0
    %v6900 = vsel %vm6251, %v6847, 0
    %v6903 = vsel %vm6251, %v6848, 0
    %v6906 = vsel %vm6251, %v6849, 0
    %v6909 = vsel %vm6251, %v6850, 0
    %v6912 = vsel %vm6251, %v6851, 0
    %v6915 = vsel %vm6251, %v6852, 0
    %6917 = vmatpush.msra.mxu0 0.0
    %6918 = vmatpush.msra.mxu0 0.0
    %6919 = vmatpush.msra.mxu0 0.0
    %6920 = vmatpush.msra.mxu0 0.0
    %6921 = vmatpush.msra.mxu0 0.0
    %6922 = vmatpush.msra.mxu0 0.0
    %6923 = vmatpush.msra.mxu0 0.0
    %6924 = vmatpush.msra.mxu0 0.0
    %6925 = vmatpush.msra.mxu0 0.0
    %6926 = vmatpush.msra.mxu0 0.0
    %6927 = vmatpush.msra.mxu0 0.0
    %6928 = vmatpush.msra.mxu0 0.0
    %6929 = vmatpush.msra.mxu0 0.0
    %6930 = vmatpush.msra.mxu0 0.0
    %6931 = vmatpush.msra.mxu0 %v6861
    %6932 = vmatpush.msra.mxu0 %v6853
    %6933 = vmatmul.f32.gmra.mxu0 %v6870
    %v6934 = vpop.f32.mrf.mxu0
    %v6935 = vadd.f32 0.0, %v6934
    %6936 = vmatmul.f32.gmra.mxu0 %v6873
    %v6937 = vpop.f32.mrf.mxu0
    %v6938 = vadd.f32 0.0, %v6937
    %6939 = vmatmul.f32.gmra.mxu0 %v6876
    %v6940 = vpop.f32.mrf.mxu0
    %v6941 = vadd.f32 0.0, %v6940
    %6942 = vmatmul.f32.gmra.mxu0 %v6879
    %v6943 = vpop.f32.mrf.mxu0
    %v6944 = vadd.f32 0.0, %v6943
    %6945 = vmatmul.f32.gmra.mxu0 %v6882
    %v6946 = vpop.f32.mrf.mxu0
    %v6947 = vadd.f32 0.0, %v6946
    %6948 = vmatmul.f32.gmra.mxu0 %v6885
    %v6949 = vpop.f32.mrf.mxu0
    %v6950 = vadd.f32 0.0, %v6949
    %6951 = vmatmul.f32.gmra.mxu0 %v6888
    %v6952 = vpop.f32.mrf.mxu0
    %v6953 = vadd.f32 0.0, %v6952
    %6954 = vmatmul.f32.gmra.mxu0 %v6891
    %v6955 = vpop.f32.mrf.mxu0
    %v6956 = vadd.f32 0.0, %v6955
    %6957 = vmatmul.f32.gmra.mxu0 %v6894
    %v6958 = vpop.f32.mrf.mxu0
    %v6959 = vadd.f32 0.0, %v6958
    %6960 = vmatmul.f32.gmra.mxu0 %v6897
    %v6961 = vpop.f32.mrf.mxu0
    %v6962 = vadd.f32 0.0, %v6961
    %6963 = vmatmul.f32.gmra.mxu0 %v6900
    %v6964 = vpop.f32.mrf.mxu0
    %v6965 = vadd.f32 0.0, %v6964
    %6966 = vmatmul.f32.gmra.mxu0 %v6903
    %v6967 = vpop.f32.mrf.mxu0
    %v6968 = vadd.f32 0.0, %v6967
    %6969 = vmatmul.f32.gmra.mxu0 %v6906
    %v6970 = vpop.f32.mrf.mxu0
    %v6971 = vadd.f32 0.0, %v6970
    %6972 = vmatmul.f32.gmra.mxu0 %v6909
    %v6973 = vpop.f32.mrf.mxu0
    %v6974 = vadd.f32 0.0, %v6973
    %6975 = vmatmul.f32.gmra.mxu0 %v6912
    %v6976 = vpop.f32.mrf.mxu0
    %v6977 = vadd.f32 0.0, %v6976
    %6978 = vmatmul.f32.gmra.mxu0 %v6915
    %v6979 = vpop.f32.mrf.mxu0
    %v6980 = vadd.f32 0.0, %v6979
    %6981 = vdwg.mxu0
    %6982 = vmatpush.msra.mxu0 0.0
    %6983 = vmatpush.msra.mxu0 0.0
    %6984 = vmatpush.msra.mxu0 0.0
    %6985 = vmatpush.msra.mxu0 0.0
    %6986 = vmatpush.msra.mxu0 0.0
    %6987 = vmatpush.msra.mxu0 0.0
    %6988 = vmatpush.msra.mxu0 0.0
    %6989 = vmatpush.msra.mxu0 0.0
    %6990 = vmatpush.msra.mxu0 0.0
    %6991 = vmatpush.msra.mxu0 0.0
    %6992 = vmatpush.msra.mxu0 0.0
    %6993 = vmatpush.msra.mxu0 0.0
    %6994 = vmatpush.msra.mxu0 0.0
    %6995 = vmatpush.msra.mxu0 0.0
    %6996 = vmatpush.msra.mxu0 %v6862
    %6997 = vmatpush.msra.mxu0 %v6854
    %6998 = vmatmul.f32.gmra.mxu0 %v6870
    %v6999 = vpop.f32.mrf.mxu0
    %v7000 = vadd.f32 0.0, %v6999
    %7001 = vmatmul.f32.gmra.mxu0 %v6873
    %v7002 = vpop.f32.mrf.mxu0
    %v7003 = vadd.f32 0.0, %v7002
    %7004 = vmatmul.f32.gmra.mxu0 %v6876
    %v7005 = vpop.f32.mrf.mxu0
    %v7006 = vadd.f32 0.0, %v7005
    %7007 = vmatmul.f32.gmra.mxu0 %v6879
    %v7008 = vpop.f32.mrf.mxu0
    %v7009 = vadd.f32 0.0, %v7008
    %7010 = vmatmul.f32.gmra.mxu0 %v6882
    %v7011 = vpop.f32.mrf.mxu0
    %v7012 = vadd.f32 0.0, %v7011
    %7013 = vmatmul.f32.gmra.mxu0 %v6885
    %v7014 = vpop.f32.mrf.mxu0
    %v7015 = vadd.f32 0.0, %v7014
    %7016 = vmatmul.f32.gmra.mxu0 %v6888
    %v7017 = vpop.f32.mrf.mxu0
    %v7018 = vadd.f32 0.0, %v7017
    %7019 = vmatmul.f32.gmra.mxu0 %v6891
    %v7020 = vpop.f32.mrf.mxu0
    %v7021 = vadd.f32 0.0, %v7020
    %7022 = vmatmul.f32.gmra.mxu0 %v6894
    %v7023 = vpop.f32.mrf.mxu0
    %v7024 = vadd.f32 0.0, %v7023
    %7025 = vmatmul.f32.gmra.mxu0 %v6897
    %v7026 = vpop.f32.mrf.mxu0
    %v7027 = vadd.f32 0.0, %v7026
    %7028 = vmatmul.f32.gmra.mxu0 %v6900
    %v7029 = vpop.f32.mrf.mxu0
    %v7030 = vadd.f32 0.0, %v7029
    %7031 = vmatmul.f32.gmra.mxu0 %v6903
    %v7032 = vpop.f32.mrf.mxu0
    %v7033 = vadd.f32 0.0, %v7032
    %7034 = vmatmul.f32.gmra.mxu0 %v6906
    %v7035 = vpop.f32.mrf.mxu0
    %v7036 = vadd.f32 0.0, %v7035
    %7037 = vmatmul.f32.gmra.mxu0 %v6909
    %v7038 = vpop.f32.mrf.mxu0
    %v7039 = vadd.f32 0.0, %v7038
    %7040 = vmatmul.f32.gmra.mxu0 %v6912
    %v7041 = vpop.f32.mrf.mxu0
    %v7042 = vadd.f32 0.0, %v7041
    %7043 = vmatmul.f32.gmra.mxu0 %v6915
    %v7044 = vpop.f32.mrf.mxu0
    %v7045 = vadd.f32 0.0, %v7044
    %7046 = vdwg.mxu0
    %7047 = vmatpush.msra.mxu0 0.0
    %7048 = vmatpush.msra.mxu0 0.0
    %7049 = vmatpush.msra.mxu0 0.0
    %7050 = vmatpush.msra.mxu0 0.0
    %7051 = vmatpush.msra.mxu0 0.0
    %7052 = vmatpush.msra.mxu0 0.0
    %7053 = vmatpush.msra.mxu0 0.0
    %7054 = vmatpush.msra.mxu0 0.0
    %7055 = vmatpush.msra.mxu0 0.0
    %7056 = vmatpush.msra.mxu0 0.0
    %7057 = vmatpush.msra.mxu0 0.0
    %7058 = vmatpush.msra.mxu0 0.0
    %7059 = vmatpush.msra.mxu0 0.0
    %7060 = vmatpush.msra.mxu0 0.0
    %7061 = vmatpush.msra.mxu0 %v6863
    %7062 = vmatpush.msra.mxu0 %v6855
    %7063 = vmatmul.f32.gmra.mxu0 %v6870
    %v7064 = vpop.f32.mrf.mxu0
    %v7065 = vadd.f32 0.0, %v7064
    %7066 = vmatmul.f32.gmra.mxu0 %v6873
    %v7067 = vpop.f32.mrf.mxu0
    %v7068 = vadd.f32 0.0, %v7067
    %7069 = vmatmul.f32.gmra.mxu0 %v6876
    %v7070 = vpop.f32.mrf.mxu0
    %v7071 = vadd.f32 0.0, %v7070
    %7072 = vmatmul.f32.gmra.mxu0 %v6879
    %v7073 = vpop.f32.mrf.mxu0
    %v7074 = vadd.f32 0.0, %v7073
    %7075 = vmatmul.f32.gmra.mxu0 %v6882
    %v7076 = vpop.f32.mrf.mxu0
    %v7077 = vadd.f32 0.0, %v7076
    %7078 = vmatmul.f32.gmra.mxu0 %v6885
    %v7079 = vpop.f32.mrf.mxu0
    %v7080 = vadd.f32 0.0, %v7079
    %7081 = vmatmul.f32.gmra.mxu0 %v6888
    %v7082 = vpop.f32.mrf.mxu0
    %v7083 = vadd.f32 0.0, %v7082
    %7084 = vmatmul.f32.gmra.mxu0 %v6891
    %v7085 = vpop.f32.mrf.mxu0
    %v7086 = vadd.f32 0.0, %v7085
    %7087 = vmatmul.f32.gmra.mxu0 %v6894
    %v7088 = vpop.f32.mrf.mxu0
    %v7089 = vadd.f32 0.0, %v7088
    %7090 = vmatmul.f32.gmra.mxu0 %v6897
    %v7091 = vpop.f32.mrf.mxu0
    %v7092 = vadd.f32 0.0, %v7091
    %7093 = vmatmul.f32.gmra.mxu0 %v6900
    %v7094 = vpop.f32.mrf.mxu0
    %v7095 = vadd.f32 0.0, %v7094
    %7096 = vmatmul.f32.gmra.mxu0 %v6903
    %v7097 = vpop.f32.mrf.mxu0
    %v7098 = vadd.f32 0.0, %v7097
    %7099 = vmatmul.f32.gmra.mxu0 %v6906
    %v7100 = vpop.f32.mrf.mxu0
    %v7101 = vadd.f32 0.0, %v7100
    %7102 = vmatmul.f32.gmra.mxu0 %v6909
    %v7103 = vpop.f32.mrf.mxu0
    %v7104 = vadd.f32 0.0, %v7103
    %7105 = vmatmul.f32.gmra.mxu0 %v6912
    %v7106 = vpop.f32.mrf.mxu0
    %v7107 = vadd.f32 0.0, %v7106
    %7108 = vmatmul.f32.gmra.mxu0 %v6915
    %v7109 = vpop.f32.mrf.mxu0
    %v7110 = vadd.f32 0.0, %v7109
    %7111 = vdwg.mxu0
    %7112 = vmatpush.msra.mxu0 0.0
    %7113 = vmatpush.msra.mxu0 0.0
    %7114 = vmatpush.msra.mxu0 0.0
    %7115 = vmatpush.msra.mxu0 0.0
    %7116 = vmatpush.msra.mxu0 0.0
    %7117 = vmatpush.msra.mxu0 0.0
    %7118 = vmatpush.msra.mxu0 0.0
    %7119 = vmatpush.msra.mxu0 0.0
    %7120 = vmatpush.msra.mxu0 0.0
    %7121 = vmatpush.msra.mxu0 0.0
    %7122 = vmatpush.msra.mxu0 0.0
    %7123 = vmatpush.msra.mxu0 0.0
    %7124 = vmatpush.msra.mxu0 0.0
    %7125 = vmatpush.msra.mxu0 0.0
    %7126 = vmatpush.msra.mxu0 %v6864
    %7127 = vmatpush.msra.mxu0 %v6856
    %7128 = vmatmul.f32.gmra.mxu0 %v6870
    %v7129 = vpop.f32.mrf.mxu0
    %v7130 = vadd.f32 0.0, %v7129
    %7131 = vmatmul.f32.gmra.mxu0 %v6873
    %v7132 = vpop.f32.mrf.mxu0
    %v7133 = vadd.f32 0.0, %v7132
    %7134 = vmatmul.f32.gmra.mxu0 %v6876
    %v7135 = vpop.f32.mrf.mxu0
    %v7136 = vadd.f32 0.0, %v7135
    %7137 = vmatmul.f32.gmra.mxu0 %v6879
    %v7138 = vpop.f32.mrf.mxu0
    %v7139 = vadd.f32 0.0, %v7138
    %7140 = vmatmul.f32.gmra.mxu0 %v6882
    %v7141 = vpop.f32.mrf.mxu0
    %v7142 = vadd.f32 0.0, %v7141
    %7143 = vmatmul.f32.gmra.mxu0 %v6885
    %v7144 = vpop.f32.mrf.mxu0
    %v7145 = vadd.f32 0.0, %v7144
    %7146 = vmatmul.f32.gmra.mxu0 %v6888
    %v7147 = vpop.f32.mrf.mxu0
    %v7148 = vadd.f32 0.0, %v7147
    %7149 = vmatmul.f32.gmra.mxu0 %v6891
    %v7150 = vpop.f32.mrf.mxu0
    %v7151 = vadd.f32 0.0, %v7150
    %7152 = vmatmul.f32.gmra.mxu0 %v6894
    %v7153 = vpop.f32.mrf.mxu0
    %v7154 = vadd.f32 0.0, %v7153
    %7155 = vmatmul.f32.gmra.mxu0 %v6897
    %v7156 = vpop.f32.mrf.mxu0
    %v7157 = vadd.f32 0.0, %v7156
    %7158 = vmatmul.f32.gmra.mxu0 %v6900
    %v7159 = vpop.f32.mrf.mxu0
    %v7160 = vadd.f32 0.0, %v7159
    %7161 = vmatmul.f32.gmra.mxu0 %v6903
    %v7162 = vpop.f32.mrf.mxu0
    %v7163 = vadd.f32 0.0, %v7162
    %7164 = vmatmul.f32.gmra.mxu0 %v6906
    %v7165 = vpop.f32.mrf.mxu0
    %v7166 = vadd.f32 0.0, %v7165
    %7167 = vmatmul.f32.gmra.mxu0 %v6909
    %v7168 = vpop.f32.mrf.mxu0
    %v7169 = vadd.f32 0.0, %v7168
    %7170 = vmatmul.f32.gmra.mxu0 %v6912
    %v7171 = vpop.f32.mrf.mxu0
    %v7172 = vadd.f32 0.0, %v7171
    %7173 = vmatmul.f32.gmra.mxu0 %v6915
    %v7174 = vpop.f32.mrf.mxu0
    %v7175 = vadd.f32 0.0, %v7174
    %7176 = vdwg.mxu0
    %7177 = vmatpush.msra.mxu0 0.0
    %7178 = vmatpush.msra.mxu0 0.0
    %7179 = vmatpush.msra.mxu0 0.0
    %7180 = vmatpush.msra.mxu0 0.0
    %7181 = vmatpush.msra.mxu0 0.0
    %7182 = vmatpush.msra.mxu0 0.0
    %7183 = vmatpush.msra.mxu0 0.0
    %7184 = vmatpush.msra.mxu0 0.0
    %7185 = vmatpush.msra.mxu0 0.0
    %7186 = vmatpush.msra.mxu0 0.0
    %7187 = vmatpush.msra.mxu0 0.0
    %7188 = vmatpush.msra.mxu0 0.0
    %7189 = vmatpush.msra.mxu0 0.0
    %7190 = vmatpush.msra.mxu0 0.0
    %7191 = vmatpush.msra.mxu0 %v6865
    %7192 = vmatpush.msra.mxu0 %v6857
    %7193 = vmatmul.f32.gmra.mxu0 %v6870
    %v7194 = vpop.f32.mrf.mxu0
    %v7195 = vadd.f32 0.0, %v7194
    %7196 = vmatmul.f32.gmra.mxu0 %v6873
    %v7197 = vpop.f32.mrf.mxu0
    %v7198 = vadd.f32 0.0, %v7197
    %7199 = vmatmul.f32.gmra.mxu0 %v6876
    %v7200 = vpop.f32.mrf.mxu0
    %v7201 = vadd.f32 0.0, %v7200
    %7202 = vmatmul.f32.gmra.mxu0 %v6879
    %v7203 = vpop.f32.mrf.mxu0
    %v7204 = vadd.f32 0.0, %v7203
    %7205 = vmatmul.f32.gmra.mxu0 %v6882
    %v7206 = vpop.f32.mrf.mxu0
    %v7207 = vadd.f32 0.0, %v7206
    %7208 = vmatmul.f32.gmra.mxu0 %v6885
    %v7209 = vpop.f32.mrf.mxu0
    %v7210 = vadd.f32 0.0, %v7209
    %7211 = vmatmul.f32.gmra.mxu0 %v6888
    %v7212 = vpop.f32.mrf.mxu0
    %v7213 = vadd.f32 0.0, %v7212
    %7214 = vmatmul.f32.gmra.mxu0 %v6891
    %v7215 = vpop.f32.mrf.mxu0
    %v7216 = vadd.f32 0.0, %v7215
    %7217 = vmatmul.f32.gmra.mxu0 %v6894
    %v7218 = vpop.f32.mrf.mxu0
    %v7219 = vadd.f32 0.0, %v7218
    %7220 = vmatmul.f32.gmra.mxu0 %v6897
    %v7221 = vpop.f32.mrf.mxu0
    %v7222 = vadd.f32 0.0, %v7221
    %7223 = vmatmul.f32.gmra.mxu0 %v6900
    %v7224 = vpop.f32.mrf.mxu0
    %v7225 = vadd.f32 0.0, %v7224
    %7226 = vmatmul.f32.gmra.mxu0 %v6903
    %v7227 = vpop.f32.mrf.mxu0
    %v7228 = vadd.f32 0.0, %v7227
    %7229 = vmatmul.f32.gmra.mxu0 %v6906
    %v7230 = vpop.f32.mrf.mxu0
    %v7231 = vadd.f32 0.0, %v7230
    %7232 = vmatmul.f32.gmra.mxu0 %v6909
    %v7233 = vpop.f32.mrf.mxu0
    %v7234 = vadd.f32 0.0, %v7233
    %7235 = vmatmul.f32.gmra.mxu0 %v6912
    %v7236 = vpop.f32.mrf.mxu0
    %v7237 = vadd.f32 0.0, %v7236
    %7238 = vmatmul.f32.gmra.mxu0 %v6915
    %v7239 = vpop.f32.mrf.mxu0
    %v7240 = vadd.f32 0.0, %v7239
    %7241 = vdwg.mxu0
    %7242 = vmatpush.msra.mxu0 0.0
    %7243 = vmatpush.msra.mxu0 0.0
    %7244 = vmatpush.msra.mxu0 0.0
    %7245 = vmatpush.msra.mxu0 0.0
    %7246 = vmatpush.msra.mxu0 0.0
    %7247 = vmatpush.msra.mxu0 0.0
    %7248 = vmatpush.msra.mxu0 0.0
    %7249 = vmatpush.msra.mxu0 0.0
    %7250 = vmatpush.msra.mxu0 0.0
    %7251 = vmatpush.msra.mxu0 0.0
    %7252 = vmatpush.msra.mxu0 0.0
    %7253 = vmatpush.msra.mxu0 0.0
    %7254 = vmatpush.msra.mxu0 0.0
    %7255 = vmatpush.msra.mxu0 0.0
    %7256 = vmatpush.msra.mxu0 %v6866
    %7257 = vmatpush.msra.mxu0 %v6858
    %7258 = vmatmul.f32.gmra.mxu0 %v6870
    %v7259 = vpop.f32.mrf.mxu0
    %v7260 = vadd.f32 0.0, %v7259
    %7261 = vmatmul.f32.gmra.mxu0 %v6873
    %v7262 = vpop.f32.mrf.mxu0
    %v7263 = vadd.f32 0.0, %v7262
    %7264 = vmatmul.f32.gmra.mxu0 %v6876
    %v7265 = vpop.f32.mrf.mxu0
    %v7266 = vadd.f32 0.0, %v7265
    %7267 = vmatmul.f32.gmra.mxu0 %v6879
    %v7268 = vpop.f32.mrf.mxu0
    %v7269 = vadd.f32 0.0, %v7268
    %7270 = vmatmul.f32.gmra.mxu0 %v6882
    %v7271 = vpop.f32.mrf.mxu0
    %v7272 = vadd.f32 0.0, %v7271
    %7273 = vmatmul.f32.gmra.mxu0 %v6885
    %v7274 = vpop.f32.mrf.mxu0
    %v7275 = vadd.f32 0.0, %v7274
    %7276 = vmatmul.f32.gmra.mxu0 %v6888
    %v7277 = vpop.f32.mrf.mxu0
    %v7278 = vadd.f32 0.0, %v7277
    %7279 = vmatmul.f32.gmra.mxu0 %v6891
    %v7280 = vpop.f32.mrf.mxu0
    %v7281 = vadd.f32 0.0, %v7280
    %7282 = vmatmul.f32.gmra.mxu0 %v6894
    %v7283 = vpop.f32.mrf.mxu0
    %v7284 = vadd.f32 0.0, %v7283
    %7285 = vmatmul.f32.gmra.mxu0 %v6897
    %v7286 = vpop.f32.mrf.mxu0
    %v7287 = vadd.f32 0.0, %v7286
    %7288 = vmatmul.f32.gmra.mxu0 %v6900
    %v7289 = vpop.f32.mrf.mxu0
    %v7290 = vadd.f32 0.0, %v7289
    %7291 = vmatmul.f32.gmra.mxu0 %v6903
    %v7292 = vpop.f32.mrf.mxu0
    %v7293 = vadd.f32 0.0, %v7292
    %7294 = vmatmul.f32.gmra.mxu0 %v6906
    %v7295 = vpop.f32.mrf.mxu0
    %v7296 = vadd.f32 0.0, %v7295
    %7297 = vmatmul.f32.gmra.mxu0 %v6909
    %v7298 = vpop.f32.mrf.mxu0
    %v7299 = vadd.f32 0.0, %v7298
    %7300 = vmatmul.f32.gmra.mxu0 %v6912
    %v7301 = vpop.f32.mrf.mxu0
    %v7302 = vadd.f32 0.0, %v7301
    %7303 = vmatmul.f32.gmra.mxu0 %v6915
    %v7304 = vpop.f32.mrf.mxu0
    %v7305 = vadd.f32 0.0, %v7304
    %7306 = vdwg.mxu0
    %7307 = vmatpush.msra.mxu0 0.0
    %7308 = vmatpush.msra.mxu0 0.0
    %7309 = vmatpush.msra.mxu0 0.0
    %7310 = vmatpush.msra.mxu0 0.0
    %7311 = vmatpush.msra.mxu0 0.0
    %7312 = vmatpush.msra.mxu0 0.0
    %7313 = vmatpush.msra.mxu0 0.0
    %7314 = vmatpush.msra.mxu0 0.0
    %7315 = vmatpush.msra.mxu0 0.0
    %7316 = vmatpush.msra.mxu0 0.0
    %7317 = vmatpush.msra.mxu0 0.0
    %7318 = vmatpush.msra.mxu0 0.0
    %7319 = vmatpush.msra.mxu0 0.0
    %7320 = vmatpush.msra.mxu0 0.0
    %7321 = vmatpush.msra.mxu0 %v6867
    %7322 = vmatpush.msra.mxu0 %v6859
    %7323 = vmatmul.f32.gmra.mxu0 %v6870
    %v7324 = vpop.f32.mrf.mxu0
    %v7325 = vadd.f32 0.0, %v7324
    %7326 = vmatmul.f32.gmra.mxu0 %v6873
    %v7327 = vpop.f32.mrf.mxu0
    %v7328 = vadd.f32 0.0, %v7327
    %7329 = vmatmul.f32.gmra.mxu0 %v6876
    %v7330 = vpop.f32.mrf.mxu0
    %v7331 = vadd.f32 0.0, %v7330
    %7332 = vmatmul.f32.gmra.mxu0 %v6879
    %v7333 = vpop.f32.mrf.mxu0
    %v7334 = vadd.f32 0.0, %v7333
    %7335 = vmatmul.f32.gmra.mxu0 %v6882
    %v7336 = vpop.f32.mrf.mxu0
    %v7337 = vadd.f32 0.0, %v7336
    %7338 = vmatmul.f32.gmra.mxu0 %v6885
    %v7339 = vpop.f32.mrf.mxu0
    %v7340 = vadd.f32 0.0, %v7339
    %7341 = vmatmul.f32.gmra.mxu0 %v6888
    %v7342 = vpop.f32.mrf.mxu0
    %v7343 = vadd.f32 0.0, %v7342
    %7344 = vmatmul.f32.gmra.mxu0 %v6891
    %v7345 = vpop.f32.mrf.mxu0
    %v7346 = vadd.f32 0.0, %v7345
    %7347 = vmatmul.f32.gmra.mxu0 %v6894
    %v7348 = vpop.f32.mrf.mxu0
    %v7349 = vadd.f32 0.0, %v7348
    %7350 = vmatmul.f32.gmra.mxu0 %v6897
    %v7351 = vpop.f32.mrf.mxu0
    %v7352 = vadd.f32 0.0, %v7351
    %7353 = vmatmul.f32.gmra.mxu0 %v6900
    %v7354 = vpop.f32.mrf.mxu0
    %v7355 = vadd.f32 0.0, %v7354
    %7356 = vmatmul.f32.gmra.mxu0 %v6903
    %v7357 = vpop.f32.mrf.mxu0
    %v7358 = vadd.f32 0.0, %v7357
    %7359 = vmatmul.f32.gmra.mxu0 %v6906
    %v7360 = vpop.f32.mrf.mxu0
    %v7361 = vadd.f32 0.0, %v7360
    %7362 = vmatmul.f32.gmra.mxu0 %v6909
    %v7363 = vpop.f32.mrf.mxu0
    %v7364 = vadd.f32 0.0, %v7363
    %7365 = vmatmul.f32.gmra.mxu0 %v6912
    %v7366 = vpop.f32.mrf.mxu0
    %v7367 = vadd.f32 0.0, %v7366
    %7368 = vmatmul.f32.gmra.mxu0 %v6915
    %v7369 = vpop.f32.mrf.mxu0
    %v7370 = vadd.f32 0.0, %v7369
    %7371 = vdwg.mxu0
    %7372 = vmatpush.msra.mxu0 0.0
    %7373 = vmatpush.msra.mxu0 0.0
    %7374 = vmatpush.msra.mxu0 0.0
    %7375 = vmatpush.msra.mxu0 0.0
    %7376 = vmatpush.msra.mxu0 0.0
    %7377 = vmatpush.msra.mxu0 0.0
    %7378 = vmatpush.msra.mxu0 0.0
    %7379 = vmatpush.msra.mxu0 0.0
    %7380 = vmatpush.msra.mxu0 0.0
    %7381 = vmatpush.msra.mxu0 0.0
    %7382 = vmatpush.msra.mxu0 0.0
    %7383 = vmatpush.msra.mxu0 0.0
    %7384 = vmatpush.msra.mxu0 0.0
    %7385 = vmatpush.msra.mxu0 0.0
    %7386 = vmatpush.msra.mxu0 %v6868
    %7387 = vmatpush.msra.mxu0 %v6860
    %7388 = vmatmul.f32.gmra.mxu0 %v6870
    %v7389 = vpop.f32.mrf.mxu0
    %v7390 = vadd.f32 0.0, %v7389
    %7391 = vmatmul.f32.gmra.mxu0 %v6873
    %v7392 = vpop.f32.mrf.mxu0
    %v7393 = vadd.f32 0.0, %v7392
    %7394 = vmatmul.f32.gmra.mxu0 %v6876
    %v7395 = vpop.f32.mrf.mxu0
    %v7396 = vadd.f32 0.0, %v7395
    %7397 = vmatmul.f32.gmra.mxu0 %v6879
    %v7398 = vpop.f32.mrf.mxu0
    %v7399 = vadd.f32 0.0, %v7398
    %7400 = vmatmul.f32.gmra.mxu0 %v6882
    %v7401 = vpop.f32.mrf.mxu0
    %v7402 = vadd.f32 0.0, %v7401
    %7403 = vmatmul.f32.gmra.mxu0 %v6885
    %v7404 = vpop.f32.mrf.mxu0
    %v7405 = vadd.f32 0.0, %v7404
    %7406 = vmatmul.f32.gmra.mxu0 %v6888
    %v7407 = vpop.f32.mrf.mxu0
    %v7408 = vadd.f32 0.0, %v7407
    %7409 = vmatmul.f32.gmra.mxu0 %v6891
    %v7410 = vpop.f32.mrf.mxu0
    %v7411 = vadd.f32 0.0, %v7410
    %7412 = vmatmul.f32.gmra.mxu0 %v6894
    %v7413 = vpop.f32.mrf.mxu0
    %v7414 = vadd.f32 0.0, %v7413
    %7415 = vmatmul.f32.gmra.mxu0 %v6897
    %v7416 = vpop.f32.mrf.mxu0
    %v7417 = vadd.f32 0.0, %v7416
    %7418 = vmatmul.f32.gmra.mxu0 %v6900
    %v7419 = vpop.f32.mrf.mxu0
    %v7420 = vadd.f32 0.0, %v7419
    %7421 = vmatmul.f32.gmra.mxu0 %v6903
    %v7422 = vpop.f32.mrf.mxu0
    %v7423 = vadd.f32 0.0, %v7422
    %7424 = vmatmul.f32.gmra.mxu0 %v6906
    %v7425 = vpop.f32.mrf.mxu0
    %v7426 = vadd.f32 0.0, %v7425
    %7427 = vmatmul.f32.gmra.mxu0 %v6909
    %v7428 = vpop.f32.mrf.mxu0
    %v7429 = vadd.f32 0.0, %v7428
    %7430 = vmatmul.f32.gmra.mxu0 %v6912
    %v7431 = vpop.f32.mrf.mxu0
    %v7432 = vadd.f32 0.0, %v7431
    %7433 = vmatmul.f32.gmra.mxu0 %v6915
    %v7434 = vpop.f32.mrf.mxu0
    %v7435 = vadd.f32 0.0, %v7434
    %7436 = vdwg.mxu0
    %v7437 = vld [vmem:[#allocation5] sm:$0xff]
    %v7438 = vld [vmem:[#allocation5 + $0x8] sm:$0xff]
    %v7439 = vld [vmem:[#allocation5 + $0x10] sm:$0xff]
    %v7440 = vld [vmem:[#allocation5 + $0x18] sm:$0xff]
    %v7441 = vld [vmem:[#allocation5 + $0x20] sm:$0xff]
    %v7442 = vld [vmem:[#allocation5 + $0x28] sm:$0xff]
    %v7443 = vld [vmem:[#allocation5 + $0x30] sm:$0xff]
    %v7444 = vld [vmem:[#allocation5 + $0x38] sm:$0xff]
    %v7445 = vld [vmem:[#allocation5 + $0x40] sm:$0xff]
    %v7446 = vld [vmem:[#allocation5 + $0x48] sm:$0xff]
    %v7447 = vld [vmem:[#allocation5 + $0x50] sm:$0xff]
    %v7448 = vld [vmem:[#allocation5 + $0x58] sm:$0xff]
    %v7449 = vld [vmem:[#allocation5 + $0x60] sm:$0xff]
    %v7450 = vld [vmem:[#allocation5 + $0x68] sm:$0xff]
    %v7451 = vld [vmem:[#allocation5 + $0x70] sm:$0xff]
    %v7452 = vld [vmem:[#allocation5 + $0x78] sm:$0xff]
    %v7453 = vld [vmem:[#allocation5 + $0x80] sm:$0xff]
    %v7454 = vld [vmem:[#allocation5 + $0x88] sm:$0xff]
    %v7455 = vld [vmem:[#allocation5 + $0x90] sm:$0xff]
    %v7456 = vld [vmem:[#allocation5 + $0x98] sm:$0xff]
    %v7457 = vld [vmem:[#allocation5 + $0xa0] sm:$0xff]
    %v7458 = vld [vmem:[#allocation5 + $0xa8] sm:$0xff]
    %v7459 = vld [vmem:[#allocation5 + $0xb0] sm:$0xff]
    %v7460 = vld [vmem:[#allocation5 + $0xb8] sm:$0xff]
    %v7461 = vld [vmem:[#allocation5 + $0xc0] sm:$0xff]
    %v7462 = vld [vmem:[#allocation5 + $0xc8] sm:$0xff]
    %v7463 = vld [vmem:[#allocation5 + $0xd0] sm:$0xff]
    %v7464 = vld [vmem:[#allocation5 + $0xd8] sm:$0xff]
    %v7465 = vld [vmem:[#allocation5 + $0xe0] sm:$0xff]
    %v7466 = vld [vmem:[#allocation5 + $0xe8] sm:$0xff]
    %v7467 = vld [vmem:[#allocation5 + $0xf0] sm:$0xff]
    %v7468 = vld [vmem:[#allocation5 + $0xf8] sm:$0xff]
    %v7469 = vld [vmem:[#allocation5 + $0x100] sm:$0xff]
    %v7470 = vld [vmem:[#allocation5 + $0x108] sm:$0xff]
    %v7471 = vld [vmem:[#allocation5 + $0x110] sm:$0xff]
    %v7472 = vld [vmem:[#allocation5 + $0x118] sm:$0xff]
    %v7473 = vld [vmem:[#allocation5 + $0x120] sm:$0xff]
    %v7474 = vld [vmem:[#allocation5 + $0x128] sm:$0xff]
    %v7475 = vld [vmem:[#allocation5 + $0x130] sm:$0xff]
    %v7476 = vld [vmem:[#allocation5 + $0x138] sm:$0xff]
    %v7477 = vld [vmem:[#allocation5 + $0x140] sm:$0xff]
    %v7478 = vld [vmem:[#allocation5 + $0x148] sm:$0xff]
    %v7479 = vld [vmem:[#allocation5 + $0x150] sm:$0xff]
    %v7480 = vld [vmem:[#allocation5 + $0x158] sm:$0xff]
    %v7481 = vld [vmem:[#allocation5 + $0x160] sm:$0xff]
    %v7482 = vld [vmem:[#allocation5 + $0x168] sm:$0xff]
    %v7483 = vld [vmem:[#allocation5 + $0x170] sm:$0xff]
    %v7484 = vld [vmem:[#allocation5 + $0x178] sm:$0xff]
    %v7485 = vld [vmem:[#allocation5 + $0x180] sm:$0xff]
    %v7486 = vld [vmem:[#allocation5 + $0x188] sm:$0xff]
    %v7487 = vld [vmem:[#allocation5 + $0x190] sm:$0xff]
    %v7488 = vld [vmem:[#allocation5 + $0x198] sm:$0xff]
    %v7489 = vld [vmem:[#allocation5 + $0x1a0] sm:$0xff]
    %v7490 = vld [vmem:[#allocation5 + $0x1a8] sm:$0xff]
    %v7491 = vld [vmem:[#allocation5 + $0x1b0] sm:$0xff]
    %v7492 = vld [vmem:[#allocation5 + $0x1b8] sm:$0xff]
    %v7493 = vld [vmem:[#allocation5 + $0x1c0] sm:$0xff]
    %v7494 = vld [vmem:[#allocation5 + $0x1c8] sm:$0xff]
    %v7495 = vld [vmem:[#allocation5 + $0x1d0] sm:$0xff]
    %v7496 = vld [vmem:[#allocation5 + $0x1d8] sm:$0xff]
    %v7497 = vld [vmem:[#allocation5 + $0x1e0] sm:$0xff]
    %v7498 = vld [vmem:[#allocation5 + $0x1e8] sm:$0xff]
    %v7499 = vld [vmem:[#allocation5 + $0x1f0] sm:$0xff]
    %v7500 = vld [vmem:[#allocation5 + $0x1f8] sm:$0xff]
    %v7501 = vld [vmem:[#allocation5 + $0x200] sm:$0xff]
    %v7502 = vld [vmem:[#allocation5 + $0x208] sm:$0xff]
    %v7503 = vld [vmem:[#allocation5 + $0x210] sm:$0xff]
    %v7504 = vld [vmem:[#allocation5 + $0x218] sm:$0xff]
    %v7505 = vld [vmem:[#allocation5 + $0x220] sm:$0xff]
    %v7506 = vld [vmem:[#allocation5 + $0x228] sm:$0xff]
    %v7507 = vld [vmem:[#allocation5 + $0x230] sm:$0xff]
    %v7508 = vld [vmem:[#allocation5 + $0x238] sm:$0xff]
    %v7509 = vld [vmem:[#allocation5 + $0x240] sm:$0xff]
    %v7510 = vld [vmem:[#allocation5 + $0x248] sm:$0xff]
    %v7511 = vld [vmem:[#allocation5 + $0x250] sm:$0xff]
    %v7512 = vld [vmem:[#allocation5 + $0x258] sm:$0xff]
    %v7513 = vld [vmem:[#allocation5 + $0x260] sm:$0xff]
    %v7514 = vld [vmem:[#allocation5 + $0x268] sm:$0xff]
    %v7515 = vld [vmem:[#allocation5 + $0x270] sm:$0xff]
    %v7516 = vld [vmem:[#allocation5 + $0x278] sm:$0xff]
    %v7517 = vld [vmem:[#allocation5 + $0x280] sm:$0xff]
    %v7518 = vld [vmem:[#allocation5 + $0x288] sm:$0xff]
    %v7519 = vld [vmem:[#allocation5 + $0x290] sm:$0xff]
    %v7520 = vld [vmem:[#allocation5 + $0x298] sm:$0xff]
    %v7521 = vld [vmem:[#allocation5 + $0x2a0] sm:$0xff]
    %v7522 = vld [vmem:[#allocation5 + $0x2a8] sm:$0xff]
    %v7523 = vld [vmem:[#allocation5 + $0x2b0] sm:$0xff]
    %v7524 = vld [vmem:[#allocation5 + $0x2b8] sm:$0xff]
    %v7525 = vld [vmem:[#allocation5 + $0x2c0] sm:$0xff]
    %v7526 = vld [vmem:[#allocation5 + $0x2c8] sm:$0xff]
    %v7527 = vld [vmem:[#allocation5 + $0x2d0] sm:$0xff]
    %v7528 = vld [vmem:[#allocation5 + $0x2d8] sm:$0xff]
    %v7529 = vld [vmem:[#allocation5 + $0x2e0] sm:$0xff]
    %v7530 = vld [vmem:[#allocation5 + $0x2e8] sm:$0xff]
    %v7531 = vld [vmem:[#allocation5 + $0x2f0] sm:$0xff]
    %v7532 = vld [vmem:[#allocation5 + $0x2f8] sm:$0xff]
    %v7533 = vld [vmem:[#allocation5 + $0x300] sm:$0xff]
    %v7534 = vld [vmem:[#allocation5 + $0x308] sm:$0xff]
    %v7535 = vld [vmem:[#allocation5 + $0x310] sm:$0xff]
    %v7536 = vld [vmem:[#allocation5 + $0x318] sm:$0xff]
    %v7537 = vld [vmem:[#allocation5 + $0x320] sm:$0xff]
    %v7538 = vld [vmem:[#allocation5 + $0x328] sm:$0xff]
    %v7539 = vld [vmem:[#allocation5 + $0x330] sm:$0xff]
    %v7540 = vld [vmem:[#allocation5 + $0x338] sm:$0xff]
    %v7541 = vld [vmem:[#allocation5 + $0x340] sm:$0xff]
    %v7542 = vld [vmem:[#allocation5 + $0x348] sm:$0xff]
    %v7543 = vld [vmem:[#allocation5 + $0x350] sm:$0xff]
    %v7544 = vld [vmem:[#allocation5 + $0x358] sm:$0xff]
    %v7545 = vld [vmem:[#allocation5 + $0x360] sm:$0xff]
    %v7546 = vld [vmem:[#allocation5 + $0x368] sm:$0xff]
    %v7547 = vld [vmem:[#allocation5 + $0x370] sm:$0xff]
    %v7548 = vld [vmem:[#allocation5 + $0x378] sm:$0xff]
    %v7549 = vld [vmem:[#allocation5 + $0x380] sm:$0xff]
    %v7550 = vld [vmem:[#allocation5 + $0x388] sm:$0xff]
    %v7551 = vld [vmem:[#allocation5 + $0x390] sm:$0xff]
    %v7552 = vld [vmem:[#allocation5 + $0x398] sm:$0xff]
    %v7553 = vld [vmem:[#allocation5 + $0x3a0] sm:$0xff]
    %v7554 = vld [vmem:[#allocation5 + $0x3a8] sm:$0xff]
    %v7555 = vld [vmem:[#allocation5 + $0x3b0] sm:$0xff]
    %v7556 = vld [vmem:[#allocation5 + $0x3b8] sm:$0xff]
    %v7557 = vld [vmem:[#allocation5 + $0x3c0] sm:$0xff]
    %v7558 = vld [vmem:[#allocation5 + $0x3c8] sm:$0xff]
    %v7559 = vld [vmem:[#allocation5 + $0x3d0] sm:$0xff]
    %v7560 = vld [vmem:[#allocation5 + $0x3d8] sm:$0xff]
    %v7561 = vld [vmem:[#allocation5 + $0x3e0] sm:$0xff]
    %v7562 = vld [vmem:[#allocation5 + $0x3e8] sm:$0xff]
    %v7563 = vld [vmem:[#allocation5 + $0x3f0] sm:$0xff]
    %v7564 = vld [vmem:[#allocation5 + $0x3f8] sm:$0xff]
    %v7565 = vmul.f32 %v6935, %v7437
    %v7566 = vmul.f32 %v7000, %v7438
    %v7567 = vmul.f32 %v7065, %v7439
    %v7568 = vmul.f32 %v7130, %v7440
    %v7569 = vmul.f32 %v7195, %v7441
    %v7570 = vmul.f32 %v7260, %v7442
    %v7571 = vmul.f32 %v7325, %v7443
    %v7572 = vmul.f32 %v7390, %v7444
    %v7573 = vmul.f32 %v6938, %v7445
    %v7574 = vmul.f32 %v7003, %v7446
    %v7575 = vmul.f32 %v7068, %v7447
    %v7576 = vmul.f32 %v7133, %v7448
    %v7577 = vmul.f32 %v7198, %v7449
    %v7578 = vmul.f32 %v7263, %v7450
    %v7579 = vmul.f32 %v7328, %v7451
    %v7580 = vmul.f32 %v7393, %v7452
    %v7581 = vmul.f32 %v6941, %v7453
    %v7582 = vmul.f32 %v7006, %v7454
    %v7583 = vmul.f32 %v7071, %v7455
    %v7584 = vmul.f32 %v7136, %v7456
    %v7585 = vmul.f32 %v7201, %v7457
    %v7586 = vmul.f32 %v7266, %v7458
    %v7587 = vmul.f32 %v7331, %v7459
    %v7588 = vmul.f32 %v7396, %v7460
    %v7589 = vmul.f32 %v6944, %v7461
    %v7590 = vmul.f32 %v7009, %v7462
    %v7591 = vmul.f32 %v7074, %v7463
    %v7592 = vmul.f32 %v7139, %v7464
    %v7593 = vmul.f32 %v7204, %v7465
    %v7594 = vmul.f32 %v7269, %v7466
    %v7595 = vmul.f32 %v7334, %v7467
    %v7596 = vmul.f32 %v7399, %v7468
    %v7597 = vmul.f32 %v6947, %v7469
    %v7598 = vmul.f32 %v7012, %v7470
    %v7599 = vmul.f32 %v7077, %v7471
    %v7600 = vmul.f32 %v7142, %v7472
    %v7601 = vmul.f32 %v7207, %v7473
    %v7602 = vmul.f32 %v7272, %v7474
    %v7603 = vmul.f32 %v7337, %v7475
    %v7604 = vmul.f32 %v7402, %v7476
    %v7605 = vmul.f32 %v6950, %v7477
    %v7606 = vmul.f32 %v7015, %v7478
    %v7607 = vmul.f32 %v7080, %v7479
    %v7608 = vmul.f32 %v7145, %v7480
    %v7609 = vmul.f32 %v7210, %v7481
    %v7610 = vmul.f32 %v7275, %v7482
    %v7611 = vmul.f32 %v7340, %v7483
    %v7612 = vmul.f32 %v7405, %v7484
    %v7613 = vmul.f32 %v6953, %v7485
    %v7614 = vmul.f32 %v7018, %v7486
    %v7615 = vmul.f32 %v7083, %v7487
    %v7616 = vmul.f32 %v7148, %v7488
    %v7617 = vmul.f32 %v7213, %v7489
    %v7618 = vmul.f32 %v7278, %v7490
    %v7619 = vmul.f32 %v7343, %v7491
    %v7620 = vmul.f32 %v7408, %v7492
    %v7621 = vmul.f32 %v6956, %v7493
    %v7622 = vmul.f32 %v7021, %v7494
    %v7623 = vmul.f32 %v7086, %v7495
    %v7624 = vmul.f32 %v7151, %v7496
    %v7625 = vmul.f32 %v7216, %v7497
    %v7626 = vmul.f32 %v7281, %v7498
    %v7627 = vmul.f32 %v7346, %v7499
    %v7628 = vmul.f32 %v7411, %v7500
    %v7629 = vmul.f32 %v6959, %v7501
    %v7630 = vmul.f32 %v7024, %v7502
    %v7631 = vmul.f32 %v7089, %v7503
    %v7632 = vmul.f32 %v7154, %v7504
    %v7633 = vmul.f32 %v7219, %v7505
    %v7634 = vmul.f32 %v7284, %v7506
    %v7635 = vmul.f32 %v7349, %v7507
    %v7636 = vmul.f32 %v7414, %v7508
    %v7637 = vmul.f32 %v6962, %v7509
    %v7638 = vmul.f32 %v7027, %v7510
    %v7639 = vmul.f32 %v7092, %v7511
    %v7640 = vmul.f32 %v7157, %v7512
    %v7641 = vmul.f32 %v7222, %v7513
    %v7642 = vmul.f32 %v7287, %v7514
    %v7643 = vmul.f32 %v7352, %v7515
    %v7644 = vmul.f32 %v7417, %v7516
    %v7645 = vmul.f32 %v6965, %v7517
    %v7646 = vmul.f32 %v7030, %v7518
    %v7647 = vmul.f32 %v7095, %v7519
    %v7648 = vmul.f32 %v7160, %v7520
    %v7649 = vmul.f32 %v7225, %v7521
    %v7650 = vmul.f32 %v7290, %v7522
    %v7651 = vmul.f32 %v7355, %v7523
    %v7652 = vmul.f32 %v7420, %v7524
    %v7653 = vmul.f32 %v6968, %v7525
    %v7654 = vmul.f32 %v7033, %v7526
    %v7655 = vmul.f32 %v7098, %v7527
    %v7656 = vmul.f32 %v7163, %v7528
    %v7657 = vmul.f32 %v7228, %v7529
    %v7658 = vmul.f32 %v7293, %v7530
    %v7659 = vmul.f32 %v7358, %v7531
    %v7660 = vmul.f32 %v7423, %v7532
    %v7661 = vmul.f32 %v6971, %v7533
    %v7662 = vmul.f32 %v7036, %v7534
    %v7663 = vmul.f32 %v7101, %v7535
    %v7664 = vmul.f32 %v7166, %v7536
    %v7665 = vmul.f32 %v7231, %v7537
    %v7666 = vmul.f32 %v7296, %v7538
    %v7667 = vmul.f32 %v7361, %v7539
    %v7668 = vmul.f32 %v7426, %v7540
    %v7669 = vmul.f32 %v6974, %v7541
    %v7670 = vmul.f32 %v7039, %v7542
    %v7671 = vmul.f32 %v7104, %v7543
    %v7672 = vmul.f32 %v7169, %v7544
    %v7673 = vmul.f32 %v7234, %v7545
    %v7674 = vmul.f32 %v7299, %v7546
    %v7675 = vmul.f32 %v7364, %v7547
    %v7676 = vmul.f32 %v7429, %v7548
    %v7677 = vmul.f32 %v6977, %v7549
    %v7678 = vmul.f32 %v7042, %v7550
    %v7679 = vmul.f32 %v7107, %v7551
    %v7680 = vmul.f32 %v7172, %v7552
    %v7681 = vmul.f32 %v7237, %v7553
    %v7682 = vmul.f32 %v7302, %v7554
    %v7683 = vmul.f32 %v7367, %v7555
    %v7684 = vmul.f32 %v7432, %v7556
    %v7685 = vmul.f32 %v6980, %v7557
    %v7686 = vmul.f32 %v7045, %v7558
    %v7687 = vmul.f32 %v7110, %v7559
    %v7688 = vmul.f32 %v7175, %v7560
    %v7689 = vmul.f32 %v7240, %v7561
    %v7690 = vmul.f32 %v7305, %v7562
    %v7691 = vmul.f32 %v7370, %v7563
    %v7692 = vmul.f32 %v7435, %v7564
    %v7693 = vld [vmem:[#allocation8] sm:$0xff]
    %v7694 = vld [vmem:[#allocation8 + $0x8] sm:$0xff]
    %v7695 = vld [vmem:[#allocation8 + $0x10] sm:$0xff]
    %v7696 = vld [vmem:[#allocation8 + $0x18] sm:$0xff]
    %v7697 = vld [vmem:[#allocation8 + $0x20] sm:$0xff]
    %v7698 = vld [vmem:[#allocation8 + $0x28] sm:$0xff]
    %v7699 = vld [vmem:[#allocation8 + $0x30] sm:$0xff]
    %v7700 = vld [vmem:[#allocation8 + $0x38] sm:$0xff]
    %v7701 = vld [vmem:[#allocation8 + $0x40] sm:$0xff]
    %v7702 = vld [vmem:[#allocation8 + $0x48] sm:$0xff]
    %v7703 = vld [vmem:[#allocation8 + $0x50] sm:$0xff]
    %v7704 = vld [vmem:[#allocation8 + $0x58] sm:$0xff]
    %v7705 = vld [vmem:[#allocation8 + $0x60] sm:$0xff]
    %v7706 = vld [vmem:[#allocation8 + $0x68] sm:$0xff]
    %v7707 = vld [vmem:[#allocation8 + $0x70] sm:$0xff]
    %v7708 = vld [vmem:[#allocation8 + $0x78] sm:$0xff]
    %v7709 = vld [vmem:[#allocation8 + $0x80] sm:$0xff]
    %v7710 = vld [vmem:[#allocation8 + $0x88] sm:$0xff]
    %v7711 = vld [vmem:[#allocation8 + $0x90] sm:$0xff]
    %v7712 = vld [vmem:[#allocation8 + $0x98] sm:$0xff]
    %v7713 = vld [vmem:[#allocation8 + $0xa0] sm:$0xff]
    %v7714 = vld [vmem:[#allocation8 + $0xa8] sm:$0xff]
    %v7715 = vld [vmem:[#allocation8 + $0xb0] sm:$0xff]
    %v7716 = vld [vmem:[#allocation8 + $0xb8] sm:$0xff]
    %v7717 = vld [vmem:[#allocation8 + $0xc0] sm:$0xff]
    %v7718 = vld [vmem:[#allocation8 + $0xc8] sm:$0xff]
    %v7719 = vld [vmem:[#allocation8 + $0xd0] sm:$0xff]
    %v7720 = vld [vmem:[#allocation8 + $0xd8] sm:$0xff]
    %v7721 = vld [vmem:[#allocation8 + $0xe0] sm:$0xff]
    %v7722 = vld [vmem:[#allocation8 + $0xe8] sm:$0xff]
    %v7723 = vld [vmem:[#allocation8 + $0xf0] sm:$0xff]
    %v7724 = vld [vmem:[#allocation8 + $0xf8] sm:$0xff]
    %v7725 = vld [vmem:[#allocation8 + $0x100] sm:$0xff]
    %v7726 = vld [vmem:[#allocation8 + $0x108] sm:$0xff]
    %v7727 = vld [vmem:[#allocation8 + $0x110] sm:$0xff]
    %v7728 = vld [vmem:[#allocation8 + $0x118] sm:$0xff]
    %v7729 = vld [vmem:[#allocation8 + $0x120] sm:$0xff]
    %v7730 = vld [vmem:[#allocation8 + $0x128] sm:$0xff]
    %v7731 = vld [vmem:[#allocation8 + $0x130] sm:$0xff]
    %v7732 = vld [vmem:[#allocation8 + $0x138] sm:$0xff]
    %v7733 = vld [vmem:[#allocation8 + $0x140] sm:$0xff]
    %v7734 = vld [vmem:[#allocation8 + $0x148] sm:$0xff]
    %v7735 = vld [vmem:[#allocation8 + $0x150] sm:$0xff]
    %v7736 = vld [vmem:[#allocation8 + $0x158] sm:$0xff]
    %v7737 = vld [vmem:[#allocation8 + $0x160] sm:$0xff]
    %v7738 = vld [vmem:[#allocation8 + $0x168] sm:$0xff]
    %v7739 = vld [vmem:[#allocation8 + $0x170] sm:$0xff]
    %v7740 = vld [vmem:[#allocation8 + $0x178] sm:$0xff]
    %v7741 = vld [vmem:[#allocation8 + $0x180] sm:$0xff]
    %v7742 = vld [vmem:[#allocation8 + $0x188] sm:$0xff]
    %v7743 = vld [vmem:[#allocation8 + $0x190] sm:$0xff]
    %v7744 = vld [vmem:[#allocation8 + $0x198] sm:$0xff]
    %v7745 = vld [vmem:[#allocation8 + $0x1a0] sm:$0xff]
    %v7746 = vld [vmem:[#allocation8 + $0x1a8] sm:$0xff]
    %v7747 = vld [vmem:[#allocation8 + $0x1b0] sm:$0xff]
    %v7748 = vld [vmem:[#allocation8 + $0x1b8] sm:$0xff]
    %v7749 = vld [vmem:[#allocation8 + $0x1c0] sm:$0xff]
    %v7750 = vld [vmem:[#allocation8 + $0x1c8] sm:$0xff]
    %v7751 = vld [vmem:[#allocation8 + $0x1d0] sm:$0xff]
    %v7752 = vld [vmem:[#allocation8 + $0x1d8] sm:$0xff]
    %v7753 = vld [vmem:[#allocation8 + $0x1e0] sm:$0xff]
    %v7754 = vld [vmem:[#allocation8 + $0x1e8] sm:$0xff]
    %v7755 = vld [vmem:[#allocation8 + $0x1f0] sm:$0xff]
    %v7756 = vld [vmem:[#allocation8 + $0x1f8] sm:$0xff]
    %v7757 = vld [vmem:[#allocation8 + $0x200] sm:$0xff]
    %v7758 = vld [vmem:[#allocation8 + $0x208] sm:$0xff]
    %v7759 = vld [vmem:[#allocation8 + $0x210] sm:$0xff]
    %v7760 = vld [vmem:[#allocation8 + $0x218] sm:$0xff]
    %v7761 = vld [vmem:[#allocation8 + $0x220] sm:$0xff]
    %v7762 = vld [vmem:[#allocation8 + $0x228] sm:$0xff]
    %v7763 = vld [vmem:[#allocation8 + $0x230] sm:$0xff]
    %v7764 = vld [vmem:[#allocation8 + $0x238] sm:$0xff]
    %v7765 = vld [vmem:[#allocation8 + $0x240] sm:$0xff]
    %v7766 = vld [vmem:[#allocation8 + $0x248] sm:$0xff]
    %v7767 = vld [vmem:[#allocation8 + $0x250] sm:$0xff]
    %v7768 = vld [vmem:[#allocation8 + $0x258] sm:$0xff]
    %v7769 = vld [vmem:[#allocation8 + $0x260] sm:$0xff]
    %v7770 = vld [vmem:[#allocation8 + $0x268] sm:$0xff]
    %v7771 = vld [vmem:[#allocation8 + $0x270] sm:$0xff]
    %v7772 = vld [vmem:[#allocation8 + $0x278] sm:$0xff]
    %v7773 = vld [vmem:[#allocation8 + $0x280] sm:$0xff]
    %v7774 = vld [vmem:[#allocation8 + $0x288] sm:$0xff]
    %v7775 = vld [vmem:[#allocation8 + $0x290] sm:$0xff]
    %v7776 = vld [vmem:[#allocation8 + $0x298] sm:$0xff]
    %v7777 = vld [vmem:[#allocation8 + $0x2a0] sm:$0xff]
    %v7778 = vld [vmem:[#allocation8 + $0x2a8] sm:$0xff]
    %v7779 = vld [vmem:[#allocation8 + $0x2b0] sm:$0xff]
    %v7780 = vld [vmem:[#allocation8 + $0x2b8] sm:$0xff]
    %v7781 = vld [vmem:[#allocation8 + $0x2c0] sm:$0xff]
    %v7782 = vld [vmem:[#allocation8 + $0x2c8] sm:$0xff]
    %v7783 = vld [vmem:[#allocation8 + $0x2d0] sm:$0xff]
    %v7784 = vld [vmem:[#allocation8 + $0x2d8] sm:$0xff]
    %v7785 = vld [vmem:[#allocation8 + $0x2e0] sm:$0xff]
    %v7786 = vld [vmem:[#allocation8 + $0x2e8] sm:$0xff]
    %v7787 = vld [vmem:[#allocation8 + $0x2f0] sm:$0xff]
    %v7788 = vld [vmem:[#allocation8 + $0x2f8] sm:$0xff]
    %v7789 = vld [vmem:[#allocation8 + $0x300] sm:$0xff]
    %v7790 = vld [vmem:[#allocation8 + $0x308] sm:$0xff]
    %v7791 = vld [vmem:[#allocation8 + $0x310] sm:$0xff]
    %v7792 = vld [vmem:[#allocation8 + $0x318] sm:$0xff]
    %v7793 = vld [vmem:[#allocation8 + $0x320] sm:$0xff]
    %v7794 = vld [vmem:[#allocation8 + $0x328] sm:$0xff]
    %v7795 = vld [vmem:[#allocation8 + $0x330] sm:$0xff]
    %v7796 = vld [vmem:[#allocation8 + $0x338] sm:$0xff]
    %v7797 = vld [vmem:[#allocation8 + $0x340] sm:$0xff]
    %v7798 = vld [vmem:[#allocation8 + $0x348] sm:$0xff]
    %v7799 = vld [vmem:[#allocation8 + $0x350] sm:$0xff]
    %v7800 = vld [vmem:[#allocation8 + $0x358] sm:$0xff]
    %v7801 = vld [vmem:[#allocation8 + $0x360] sm:$0xff]
    %v7802 = vld [vmem:[#allocation8 + $0x368] sm:$0xff]
    %v7803 = vld [vmem:[#allocation8 + $0x370] sm:$0xff]
    %v7804 = vld [vmem:[#allocation8 + $0x378] sm:$0xff]
    %v7805 = vld [vmem:[#allocation8 + $0x380] sm:$0xff]
    %v7806 = vld [vmem:[#allocation8 + $0x388] sm:$0xff]
    %v7807 = vld [vmem:[#allocation8 + $0x390] sm:$0xff]
    %v7808 = vld [vmem:[#allocation8 + $0x398] sm:$0xff]
    %v7809 = vld [vmem:[#allocation8 + $0x3a0] sm:$0xff]
    %v7810 = vld [vmem:[#allocation8 + $0x3a8] sm:$0xff]
    %v7811 = vld [vmem:[#allocation8 + $0x3b0] sm:$0xff]
    %v7812 = vld [vmem:[#allocation8 + $0x3b8] sm:$0xff]
    %v7814 = vsel %vm6353, %v7572, 0
    %v7817 = vsel %vm6353, %v7580, 0
    %v7820 = vsel %vm6353, %v7588, 0
    %v7823 = vsel %vm6353, %v7596, 0
    %v7826 = vsel %vm6353, %v7604, 0
    %v7829 = vsel %vm6353, %v7612, 0
    %v7832 = vsel %vm6353, %v7620, 0
    %v7835 = vsel %vm6353, %v7628, 0
    %v7838 = vsel %vm6353, %v7636, 0
    %v7841 = vsel %vm6353, %v7644, 0
    %v7844 = vsel %vm6353, %v7652, 0
    %v7847 = vsel %vm6353, %v7660, 0
    %v7850 = vsel %vm6353, %v7668, 0
    %v7853 = vsel %vm6353, %v7676, 0
    %v7856 = vsel %vm6353, %v7684, 0
    %v7859 = vsel %vm6353, %v7692, 0
    %7861 = vmatpush.msra.mxu0 %v7708
    %7862 = vmatpush.msra.mxu0 %v7707
    %7863 = vmatpush.msra.mxu0 %v7706
    %7864 = vmatpush.msra.mxu0 %v7705
    %7865 = vmatpush.msra.mxu0 %v7704
    %7866 = vmatpush.msra.mxu0 %v7703
    %7867 = vmatpush.msra.mxu0 %v7702
    %7868 = vmatpush.msra.mxu0 %v7701
    %7869 = vmatpush.msra.mxu0 %v7700
    %7870 = vmatpush.msra.mxu0 %v7699
    %7871 = vmatpush.msra.mxu0 %v7698
    %7872 = vmatpush.msra.mxu0 %v7697
    %7873 = vmatpush.msra.mxu0 %v7696
    %7874 = vmatpush.msra.mxu0 %v7695
    %7875 = vmatpush.msra.mxu0 %v7694
    %7876 = vmatpush.msra.mxu0 %v7693
    %7877 = vmatmul.f32.gmra.mxu0 %v7565
    %v7878 = vpop.f32.mrf.mxu0
    %v7879 = vadd.f32 0.0, %v7878
    %7880 = vmatmul.f32.gmra.mxu0 %v7573
    %v7881 = vpop.f32.mrf.mxu0
    %v7882 = vadd.f32 0.0, %v7881
    %7883 = vmatmul.f32.gmra.mxu0 %v7581
    %v7884 = vpop.f32.mrf.mxu0
    %v7885 = vadd.f32 0.0, %v7884
    %7886 = vmatmul.f32.gmra.mxu0 %v7589
    %v7887 = vpop.f32.mrf.mxu0
    %v7888 = vadd.f32 0.0, %v7887
    %7889 = vmatmul.f32.gmra.mxu0 %v7597
    %v7890 = vpop.f32.mrf.mxu0
    %v7891 = vadd.f32 0.0, %v7890
    %7892 = vmatmul.f32.gmra.mxu0 %v7605
    %v7893 = vpop.f32.mrf.mxu0
    %v7894 = vadd.f32 0.0, %v7893
    %7895 = vmatmul.f32.gmra.mxu0 %v7613
    %v7896 = vpop.f32.mrf.mxu0
    %v7897 = vadd.f32 0.0, %v7896
    %7898 = vmatmul.f32.gmra.mxu0 %v7621
    %v7899 = vpop.f32.mrf.mxu0
    %v7900 = vadd.f32 0.0, %v7899
    %7901 = vmatmul.f32.gmra.mxu0 %v7629
    %v7902 = vpop.f32.mrf.mxu0
    %v7903 = vadd.f32 0.0, %v7902
    %7904 = vmatmul.f32.gmra.mxu0 %v7637
    %v7905 = vpop.f32.mrf.mxu0
    %v7906 = vadd.f32 0.0, %v7905
    %7907 = vmatmul.f32.gmra.mxu0 %v7645
    %v7908 = vpop.f32.mrf.mxu0
    %v7909 = vadd.f32 0.0, %v7908
    %7910 = vmatmul.f32.gmra.mxu0 %v7653
    %v7911 = vpop.f32.mrf.mxu0
    %v7912 = vadd.f32 0.0, %v7911
    %7913 = vmatmul.f32.gmra.mxu0 %v7661
    %v7914 = vpop.f32.mrf.mxu0
    %v7915 = vadd.f32 0.0, %v7914
    %7916 = vmatmul.f32.gmra.mxu0 %v7669
    %v7917 = vpop.f32.mrf.mxu0
    %v7918 = vadd.f32 0.0, %v7917
    %7919 = vmatmul.f32.gmra.mxu0 %v7677
    %v7920 = vpop.f32.mrf.mxu0
    %v7921 = vadd.f32 0.0, %v7920
    %7922 = vmatmul.f32.gmra.mxu0 %v7685
    %v7923 = vpop.f32.mrf.mxu0
    %v7924 = vadd.f32 0.0, %v7923
    %7925 = vdwg.mxu0
    %7926 = vmatpush.msra.mxu0 %v7724
    %7927 = vmatpush.msra.mxu0 %v7723
    %7928 = vmatpush.msra.mxu0 %v7722
    %7929 = vmatpush.msra.mxu0 %v7721
    %7930 = vmatpush.msra.mxu0 %v7720
    %7931 = vmatpush.msra.mxu0 %v7719
    %7932 = vmatpush.msra.mxu0 %v7718
    %7933 = vmatpush.msra.mxu0 %v7717
    %7934 = vmatpush.msra.mxu0 %v7716
    %7935 = vmatpush.msra.mxu0 %v7715
    %7936 = vmatpush.msra.mxu0 %v7714
    %7937 = vmatpush.msra.mxu0 %v7713
    %7938 = vmatpush.msra.mxu0 %v7712
    %7939 = vmatpush.msra.mxu0 %v7711
    %7940 = vmatpush.msra.mxu0 %v7710
    %7941 = vmatpush.msra.mxu0 %v7709
    %7942 = vmatmul.f32.gmra.mxu0 %v7566
    %v7943 = vpop.f32.mrf.mxu0
    %v7944 = vadd.f32 %v7879, %v7943
    %7945 = vmatmul.f32.gmra.mxu0 %v7574
    %v7946 = vpop.f32.mrf.mxu0
    %v7947 = vadd.f32 %v7882, %v7946
    %7948 = vmatmul.f32.gmra.mxu0 %v7582
    %v7949 = vpop.f32.mrf.mxu0
    %v7950 = vadd.f32 %v7885, %v7949
    %7951 = vmatmul.f32.gmra.mxu0 %v7590
    %v7952 = vpop.f32.mrf.mxu0
    %v7953 = vadd.f32 %v7888, %v7952
    %7954 = vmatmul.f32.gmra.mxu0 %v7598
    %v7955 = vpop.f32.mrf.mxu0
    %v7956 = vadd.f32 %v7891, %v7955
    %7957 = vmatmul.f32.gmra.mxu0 %v7606
    %v7958 = vpop.f32.mrf.mxu0
    %v7959 = vadd.f32 %v7894, %v7958
    %7960 = vmatmul.f32.gmra.mxu0 %v7614
    %v7961 = vpop.f32.mrf.mxu0
    %v7962 = vadd.f32 %v7897, %v7961
    %7963 = vmatmul.f32.gmra.mxu0 %v7622
    %v7964 = vpop.f32.mrf.mxu0
    %v7965 = vadd.f32 %v7900, %v7964
    %7966 = vmatmul.f32.gmra.mxu0 %v7630
    %v7967 = vpop.f32.mrf.mxu0
    %v7968 = vadd.f32 %v7903, %v7967
    %7969 = vmatmul.f32.gmra.mxu0 %v7638
    %v7970 = vpop.f32.mrf.mxu0
    %v7971 = vadd.f32 %v7906, %v7970
    %7972 = vmatmul.f32.gmra.mxu0 %v7646
    %v7973 = vpop.f32.mrf.mxu0
    %v7974 = vadd.f32 %v7909, %v7973
    %7975 = vmatmul.f32.gmra.mxu0 %v7654
    %v7976 = vpop.f32.mrf.mxu0
    %v7977 = vadd.f32 %v7912, %v7976
    %7978 = vmatmul.f32.gmra.mxu0 %v7662
    %v7979 = vpop.f32.mrf.mxu0
    %v7980 = vadd.f32 %v7915, %v7979
    %7981 = vmatmul.f32.gmra.mxu0 %v7670
    %v7982 = vpop.f32.mrf.mxu0
    %v7983 = vadd.f32 %v7918, %v7982
    %7984 = vmatmul.f32.gmra.mxu0 %v7678
    %v7985 = vpop.f32.mrf.mxu0
    %v7986 = vadd.f32 %v7921, %v7985
    %7987 = vmatmul.f32.gmra.mxu0 %v7686
    %v7988 = vpop.f32.mrf.mxu0
    %v7989 = vadd.f32 %v7924, %v7988
    %7990 = vdwg.mxu0
    %7991 = vmatpush.msra.mxu0 %v7740
    %7992 = vmatpush.msra.mxu0 %v7739
    %7993 = vmatpush.msra.mxu0 %v7738
    %7994 = vmatpush.msra.mxu0 %v7737
    %7995 = vmatpush.msra.mxu0 %v7736
    %7996 = vmatpush.msra.mxu0 %v7735
    %7997 = vmatpush.msra.mxu0 %v7734
    %7998 = vmatpush.msra.mxu0 %v7733
    %7999 = vmatpush.msra.mxu0 %v7732
    %8000 = vmatpush.msra.mxu0 %v7731
    %8001 = vmatpush.msra.mxu0 %v7730
    %8002 = vmatpush.msra.mxu0 %v7729
    %8003 = vmatpush.msra.mxu0 %v7728
    %8004 = vmatpush.msra.mxu0 %v7727
    %8005 = vmatpush.msra.mxu0 %v7726
    %8006 = vmatpush.msra.mxu0 %v7725
    %8007 = vmatmul.f32.gmra.mxu0 %v7567
    %v8008 = vpop.f32.mrf.mxu0
    %v8009 = vadd.f32 %v7944, %v8008
    %8010 = vmatmul.f32.gmra.mxu0 %v7575
    %v8011 = vpop.f32.mrf.mxu0
    %v8012 = vadd.f32 %v7947, %v8011
    %8013 = vmatmul.f32.gmra.mxu0 %v7583
    %v8014 = vpop.f32.mrf.mxu0
    %v8015 = vadd.f32 %v7950, %v8014
    %8016 = vmatmul.f32.gmra.mxu0 %v7591
    %v8017 = vpop.f32.mrf.mxu0
    %v8018 = vadd.f32 %v7953, %v8017
    %8019 = vmatmul.f32.gmra.mxu0 %v7599
    %v8020 = vpop.f32.mrf.mxu0
    %v8021 = vadd.f32 %v7956, %v8020
    %8022 = vmatmul.f32.gmra.mxu0 %v7607
    %v8023 = vpop.f32.mrf.mxu0
    %v8024 = vadd.f32 %v7959, %v8023
    %8025 = vmatmul.f32.gmra.mxu0 %v7615
    %v8026 = vpop.f32.mrf.mxu0
    %v8027 = vadd.f32 %v7962, %v8026
    %8028 = vmatmul.f32.gmra.mxu0 %v7623
    %v8029 = vpop.f32.mrf.mxu0
    %v8030 = vadd.f32 %v7965, %v8029
    %8031 = vmatmul.f32.gmra.mxu0 %v7631
    %v8032 = vpop.f32.mrf.mxu0
    %v8033 = vadd.f32 %v7968, %v8032
    %8034 = vmatmul.f32.gmra.mxu0 %v7639
    %v8035 = vpop.f32.mrf.mxu0
    %v8036 = vadd.f32 %v7971, %v8035
    %8037 = vmatmul.f32.gmra.mxu0 %v7647
    %v8038 = vpop.f32.mrf.mxu0
    %v8039 = vadd.f32 %v7974, %v8038
    %8040 = vmatmul.f32.gmra.mxu0 %v7655
    %v8041 = vpop.f32.mrf.mxu0
    %v8042 = vadd.f32 %v7977, %v8041
    %8043 = vmatmul.f32.gmra.mxu0 %v7663
    %v8044 = vpop.f32.mrf.mxu0
    %v8045 = vadd.f32 %v7980, %v8044
    %8046 = vmatmul.f32.gmra.mxu0 %v7671
    %v8047 = vpop.f32.mrf.mxu0
    %v8048 = vadd.f32 %v7983, %v8047
    %8049 = vmatmul.f32.gmra.mxu0 %v7679
    %v8050 = vpop.f32.mrf.mxu0
    %v8051 = vadd.f32 %v7986, %v8050
    %8052 = vmatmul.f32.gmra.mxu0 %v7687
    %v8053 = vpop.f32.mrf.mxu0
    %v8054 = vadd.f32 %v7989, %v8053
    %8055 = vdwg.mxu0
    %8056 = vmatpush.msra.mxu0 %v7756
    %8057 = vmatpush.msra.mxu0 %v7755
    %8058 = vmatpush.msra.mxu0 %v7754
    %8059 = vmatpush.msra.mxu0 %v7753
    %8060 = vmatpush.msra.mxu0 %v7752
    %8061 = vmatpush.msra.mxu0 %v7751
    %8062 = vmatpush.msra.mxu0 %v7750
    %8063 = vmatpush.msra.mxu0 %v7749
    %8064 = vmatpush.msra.mxu0 %v7748
    %8065 = vmatpush.msra.mxu0 %v7747
    %8066 = vmatpush.msra.mxu0 %v7746
    %8067 = vmatpush.msra.mxu0 %v7745
    %8068 = vmatpush.msra.mxu0 %v7744
    %8069 = vmatpush.msra.mxu0 %v7743
    %8070 = vmatpush.msra.mxu0 %v7742
    %8071 = vmatpush.msra.mxu0 %v7741
    %8072 = vmatmul.f32.gmra.mxu0 %v7568
    %v8073 = vpop.f32.mrf.mxu0
    %v8074 = vadd.f32 %v8009, %v8073
    %8075 = vmatmul.f32.gmra.mxu0 %v7576
    %v8076 = vpop.f32.mrf.mxu0
    %v8077 = vadd.f32 %v8012, %v8076
    %8078 = vmatmul.f32.gmra.mxu0 %v7584
    %v8079 = vpop.f32.mrf.mxu0
    %v8080 = vadd.f32 %v8015, %v8079
    %8081 = vmatmul.f32.gmra.mxu0 %v7592
    %v8082 = vpop.f32.mrf.mxu0
    %v8083 = vadd.f32 %v8018, %v8082
    %8084 = vmatmul.f32.gmra.mxu0 %v7600
    %v8085 = vpop.f32.mrf.mxu0
    %v8086 = vadd.f32 %v8021, %v8085
    %8087 = vmatmul.f32.gmra.mxu0 %v7608
    %v8088 = vpop.f32.mrf.mxu0
    %v8089 = vadd.f32 %v8024, %v8088
    %8090 = vmatmul.f32.gmra.mxu0 %v7616
    %v8091 = vpop.f32.mrf.mxu0
    %v8092 = vadd.f32 %v8027, %v8091
    %8093 = vmatmul.f32.gmra.mxu0 %v7624
    %v8094 = vpop.f32.mrf.mxu0
    %v8095 = vadd.f32 %v8030, %v8094
    %8096 = vmatmul.f32.gmra.mxu0 %v7632
    %v8097 = vpop.f32.mrf.mxu0
    %v8098 = vadd.f32 %v8033, %v8097
    %8099 = vmatmul.f32.gmra.mxu0 %v7640
    %v8100 = vpop.f32.mrf.mxu0
    %v8101 = vadd.f32 %v8036, %v8100
    %8102 = vmatmul.f32.gmra.mxu0 %v7648
    %v8103 = vpop.f32.mrf.mxu0
    %v8104 = vadd.f32 %v8039, %v8103
    %8105 = vmatmul.f32.gmra.mxu0 %v7656
    %v8106 = vpop.f32.mrf.mxu0
    %v8107 = vadd.f32 %v8042, %v8106
    %8108 = vmatmul.f32.gmra.mxu0 %v7664
    %v8109 = vpop.f32.mrf.mxu0
    %v8110 = vadd.f32 %v8045, %v8109
    %8111 = vmatmul.f32.gmra.mxu0 %v7672
    %v8112 = vpop.f32.mrf.mxu0
    %v8113 = vadd.f32 %v8048, %v8112
    %8114 = vmatmul.f32.gmra.mxu0 %v7680
    %v8115 = vpop.f32.mrf.mxu0
    %v8116 = vadd.f32 %v8051, %v8115
    %8117 = vmatmul.f32.gmra.mxu0 %v7688
    %v8118 = vpop.f32.mrf.mxu0
    %v8119 = vadd.f32 %v8054, %v8118
    %8120 = vdwg.mxu0
    %8121 = vmatpush.msra.mxu0 %v7772
    %8122 = vmatpush.msra.mxu0 %v7771
    %8123 = vmatpush.msra.mxu0 %v7770
    %8124 = vmatpush.msra.mxu0 %v7769
    %8125 = vmatpush.msra.mxu0 %v7768
    %8126 = vmatpush.msra.mxu0 %v7767
    %8127 = vmatpush.msra.mxu0 %v7766
    %8128 = vmatpush.msra.mxu0 %v7765
    %8129 = vmatpush.msra.mxu0 %v7764
    %8130 = vmatpush.msra.mxu0 %v7763
    %8131 = vmatpush.msra.mxu0 %v7762
    %8132 = vmatpush.msra.mxu0 %v7761
    %8133 = vmatpush.msra.mxu0 %v7760
    %8134 = vmatpush.msra.mxu0 %v7759
    %8135 = vmatpush.msra.mxu0 %v7758
    %8136 = vmatpush.msra.mxu0 %v7757
    %8137 = vmatmul.f32.gmra.mxu0 %v7569
    %v8138 = vpop.f32.mrf.mxu0
    %v8139 = vadd.f32 %v8074, %v8138
    %8140 = vmatmul.f32.gmra.mxu0 %v7577
    %v8141 = vpop.f32.mrf.mxu0
    %v8142 = vadd.f32 %v8077, %v8141
    %8143 = vmatmul.f32.gmra.mxu0 %v7585
    %v8144 = vpop.f32.mrf.mxu0
    %v8145 = vadd.f32 %v8080, %v8144
    %8146 = vmatmul.f32.gmra.mxu0 %v7593
    %v8147 = vpop.f32.mrf.mxu0
    %v8148 = vadd.f32 %v8083, %v8147
    %8149 = vmatmul.f32.gmra.mxu0 %v7601
    %v8150 = vpop.f32.mrf.mxu0
    %v8151 = vadd.f32 %v8086, %v8150
    %8152 = vmatmul.f32.gmra.mxu0 %v7609
    %v8153 = vpop.f32.mrf.mxu0
    %v8154 = vadd.f32 %v8089, %v8153
    %8155 = vmatmul.f32.gmra.mxu0 %v7617
    %v8156 = vpop.f32.mrf.mxu0
    %v8157 = vadd.f32 %v8092, %v8156
    %8158 = vmatmul.f32.gmra.mxu0 %v7625
    %v8159 = vpop.f32.mrf.mxu0
    %v8160 = vadd.f32 %v8095, %v8159
    %8161 = vmatmul.f32.gmra.mxu0 %v7633
    %v8162 = vpop.f32.mrf.mxu0
    %v8163 = vadd.f32 %v8098, %v8162
    %8164 = vmatmul.f32.gmra.mxu0 %v7641
    %v8165 = vpop.f32.mrf.mxu0
    %v8166 = vadd.f32 %v8101, %v8165
    %8167 = vmatmul.f32.gmra.mxu0 %v7649
    %v8168 = vpop.f32.mrf.mxu0
    %v8169 = vadd.f32 %v8104, %v8168
    %8170 = vmatmul.f32.gmra.mxu0 %v7657
    %v8171 = vpop.f32.mrf.mxu0
    %v8172 = vadd.f32 %v8107, %v8171
    %8173 = vmatmul.f32.gmra.mxu0 %v7665
    %v8174 = vpop.f32.mrf.mxu0
    %v8175 = vadd.f32 %v8110, %v8174
    %8176 = vmatmul.f32.gmra.mxu0 %v7673
    %v8177 = vpop.f32.mrf.mxu0
    %v8178 = vadd.f32 %v8113, %v8177
    %8179 = vmatmul.f32.gmra.mxu0 %v7681
    %v8180 = vpop.f32.mrf.mxu0
    %v8181 = vadd.f32 %v8116, %v8180
    %8182 = vmatmul.f32.gmra.mxu0 %v7689
    %v8183 = vpop.f32.mrf.mxu0
    %v8184 = vadd.f32 %v8119, %v8183
    %8185 = vdwg.mxu0
    %8186 = vmatpush.msra.mxu0 %v7788
    %8187 = vmatpush.msra.mxu0 %v7787
    %8188 = vmatpush.msra.mxu0 %v7786
    %8189 = vmatpush.msra.mxu0 %v7785
    %8190 = vmatpush.msra.mxu0 %v7784
    %8191 = vmatpush.msra.mxu0 %v7783
    %8192 = vmatpush.msra.mxu0 %v7782
    %8193 = vmatpush.msra.mxu0 %v7781
    %8194 = vmatpush.msra.mxu0 %v7780
    %8195 = vmatpush.msra.mxu0 %v7779
    %8196 = vmatpush.msra.mxu0 %v7778
    %8197 = vmatpush.msra.mxu0 %v7777
    %8198 = vmatpush.msra.mxu0 %v7776
    %8199 = vmatpush.msra.mxu0 %v7775
    %8200 = vmatpush.msra.mxu0 %v7774
    %8201 = vmatpush.msra.mxu0 %v7773
    %8202 = vmatmul.f32.gmra.mxu0 %v7570
    %v8203 = vpop.f32.mrf.mxu0
    %v8204 = vadd.f32 %v8139, %v8203
    %8205 = vmatmul.f32.gmra.mxu0 %v7578
    %v8206 = vpop.f32.mrf.mxu0
    %v8207 = vadd.f32 %v8142, %v8206
    %8208 = vmatmul.f32.gmra.mxu0 %v7586
    %v8209 = vpop.f32.mrf.mxu0
    %v8210 = vadd.f32 %v8145, %v8209
    %8211 = vmatmul.f32.gmra.mxu0 %v7594
    %v8212 = vpop.f32.mrf.mxu0
    %v8213 = vadd.f32 %v8148, %v8212
    %8214 = vmatmul.f32.gmra.mxu0 %v7602
    %v8215 = vpop.f32.mrf.mxu0
    %v8216 = vadd.f32 %v8151, %v8215
    %8217 = vmatmul.f32.gmra.mxu0 %v7610
    %v8218 = vpop.f32.mrf.mxu0
    %v8219 = vadd.f32 %v8154, %v8218
    %8220 = vmatmul.f32.gmra.mxu0 %v7618
    %v8221 = vpop.f32.mrf.mxu0
    %v8222 = vadd.f32 %v8157, %v8221
    %8223 = vmatmul.f32.gmra.mxu0 %v7626
    %v8224 = vpop.f32.mrf.mxu0
    %v8225 = vadd.f32 %v8160, %v8224
    %8226 = vmatmul.f32.gmra.mxu0 %v7634
    %v8227 = vpop.f32.mrf.mxu0
    %v8228 = vadd.f32 %v8163, %v8227
    %8229 = vmatmul.f32.gmra.mxu0 %v7642
    %v8230 = vpop.f32.mrf.mxu0
    %v8231 = vadd.f32 %v8166, %v8230
    %8232 = vmatmul.f32.gmra.mxu0 %v7650
    %v8233 = vpop.f32.mrf.mxu0
    %v8234 = vadd.f32 %v8169, %v8233
    %8235 = vmatmul.f32.gmra.mxu0 %v7658
    %v8236 = vpop.f32.mrf.mxu0
    %v8237 = vadd.f32 %v8172, %v8236
    %8238 = vmatmul.f32.gmra.mxu0 %v7666
    %v8239 = vpop.f32.mrf.mxu0
    %v8240 = vadd.f32 %v8175, %v8239
    %8241 = vmatmul.f32.gmra.mxu0 %v7674
    %v8242 = vpop.f32.mrf.mxu0
    %v8243 = vadd.f32 %v8178, %v8242
    %8244 = vmatmul.f32.gmra.mxu0 %v7682
    %v8245 = vpop.f32.mrf.mxu0
    %v8246 = vadd.f32 %v8181, %v8245
    %8247 = vmatmul.f32.gmra.mxu0 %v7690
    %v8248 = vpop.f32.mrf.mxu0
    %v8249 = vadd.f32 %v8184, %v8248
    %8250 = vdwg.mxu0
    %8251 = vmatpush.msra.mxu0 %v7804
    %8252 = vmatpush.msra.mxu0 %v7803
    %8253 = vmatpush.msra.mxu0 %v7802
    %8254 = vmatpush.msra.mxu0 %v7801
    %8255 = vmatpush.msra.mxu0 %v7800
    %8256 = vmatpush.msra.mxu0 %v7799
    %8257 = vmatpush.msra.mxu0 %v7798
    %8258 = vmatpush.msra.mxu0 %v7797
    %8259 = vmatpush.msra.mxu0 %v7796
    %8260 = vmatpush.msra.mxu0 %v7795
    %8261 = vmatpush.msra.mxu0 %v7794
    %8262 = vmatpush.msra.mxu0 %v7793
    %8263 = vmatpush.msra.mxu0 %v7792
    %8264 = vmatpush.msra.mxu0 %v7791
    %8265 = vmatpush.msra.mxu0 %v7790
    %8266 = vmatpush.msra.mxu0 %v7789
    %8267 = vmatmul.f32.gmra.mxu0 %v7571
    %v8268 = vpop.f32.mrf.mxu0
    %v8269 = vadd.f32 %v8204, %v8268
    %8270 = vmatmul.f32.gmra.mxu0 %v7579
    %v8271 = vpop.f32.mrf.mxu0
    %v8272 = vadd.f32 %v8207, %v8271
    %8273 = vmatmul.f32.gmra.mxu0 %v7587
    %v8274 = vpop.f32.mrf.mxu0
    %v8275 = vadd.f32 %v8210, %v8274
    %8276 = vmatmul.f32.gmra.mxu0 %v7595
    %v8277 = vpop.f32.mrf.mxu0
    %v8278 = vadd.f32 %v8213, %v8277
    %8279 = vmatmul.f32.gmra.mxu0 %v7603
    %v8280 = vpop.f32.mrf.mxu0
    %v8281 = vadd.f32 %v8216, %v8280
    %8282 = vmatmul.f32.gmra.mxu0 %v7611
    %v8283 = vpop.f32.mrf.mxu0
    %v8284 = vadd.f32 %v8219, %v8283
    %8285 = vmatmul.f32.gmra.mxu0 %v7619
    %v8286 = vpop.f32.mrf.mxu0
    %v8287 = vadd.f32 %v8222, %v8286
    %8288 = vmatmul.f32.gmra.mxu0 %v7627
    %v8289 = vpop.f32.mrf.mxu0
    %v8290 = vadd.f32 %v8225, %v8289
    %8291 = vmatmul.f32.gmra.mxu0 %v7635
    %v8292 = vpop.f32.mrf.mxu0
    %v8293 = vadd.f32 %v8228, %v8292
    %8294 = vmatmul.f32.gmra.mxu0 %v7643
    %v8295 = vpop.f32.mrf.mxu0
    %v8296 = vadd.f32 %v8231, %v8295
    %8297 = vmatmul.f32.gmra.mxu0 %v7651
    %v8298 = vpop.f32.mrf.mxu0
    %v8299 = vadd.f32 %v8234, %v8298
    %8300 = vmatmul.f32.gmra.mxu0 %v7659
    %v8301 = vpop.f32.mrf.mxu0
    %v8302 = vadd.f32 %v8237, %v8301
    %8303 = vmatmul.f32.gmra.mxu0 %v7667
    %v8304 = vpop.f32.mrf.mxu0
    %v8305 = vadd.f32 %v8240, %v8304
    %8306 = vmatmul.f32.gmra.mxu0 %v7675
    %v8307 = vpop.f32.mrf.mxu0
    %v8308 = vadd.f32 %v8243, %v8307
    %8309 = vmatmul.f32.gmra.mxu0 %v7683
    %v8310 = vpop.f32.mrf.mxu0
    %v8311 = vadd.f32 %v8246, %v8310
    %8312 = vmatmul.f32.gmra.mxu0 %v7691
    %v8313 = vpop.f32.mrf.mxu0
    %v8314 = vadd.f32 %v8249, %v8313
    %8315 = vdwg.mxu0
    %8316 = vmatpush.msra.mxu0 0.0
    %8317 = vmatpush.msra.mxu0 0.0
    %8318 = vmatpush.msra.mxu0 0.0
    %8319 = vmatpush.msra.mxu0 0.0
    %8320 = vmatpush.msra.mxu0 0.0
    %8321 = vmatpush.msra.mxu0 0.0
    %8322 = vmatpush.msra.mxu0 0.0
    %8323 = vmatpush.msra.mxu0 0.0
    %8324 = vmatpush.msra.mxu0 %v7812
    %8325 = vmatpush.msra.mxu0 %v7811
    %8326 = vmatpush.msra.mxu0 %v7810
    %8327 = vmatpush.msra.mxu0 %v7809
    %8328 = vmatpush.msra.mxu0 %v7808
    %8329 = vmatpush.msra.mxu0 %v7807
    %8330 = vmatpush.msra.mxu0 %v7806
    %8331 = vmatpush.msra.mxu0 %v7805
    %8332 = vmatmul.f32.gmra.mxu0 %v7814
    %v8333 = vpop.f32.mrf.mxu0
    %v8334 = vadd.f32 %v8269, %v8333
    %8335 = vmatmul.f32.gmra.mxu0 %v7817
    %v8336 = vpop.f32.mrf.mxu0
    %v8337 = vadd.f32 %v8272, %v8336
    %8338 = vmatmul.f32.gmra.mxu0 %v7820
    %v8339 = vpop.f32.mrf.mxu0
    %v8340 = vadd.f32 %v8275, %v8339
    %8341 = vmatmul.f32.gmra.mxu0 %v7823
    %v8342 = vpop.f32.mrf.mxu0
    %v8343 = vadd.f32 %v8278, %v8342
    %8344 = vmatmul.f32.gmra.mxu0 %v7826
    %v8345 = vpop.f32.mrf.mxu0
    %v8346 = vadd.f32 %v8281, %v8345
    %8347 = vmatmul.f32.gmra.mxu0 %v7829
    %v8348 = vpop.f32.mrf.mxu0
    %v8349 = vadd.f32 %v8284, %v8348
    %8350 = vmatmul.f32.gmra.mxu0 %v7832
    %v8351 = vpop.f32.mrf.mxu0
    %v8352 = vadd.f32 %v8287, %v8351
    %8353 = vmatmul.f32.gmra.mxu0 %v7835
    %v8354 = vpop.f32.mrf.mxu0
    %v8355 = vadd.f32 %v8290, %v8354
    %8356 = vmatmul.f32.gmra.mxu0 %v7838
    %v8357 = vpop.f32.mrf.mxu0
    %v8358 = vadd.f32 %v8293, %v8357
    %8359 = vmatmul.f32.gmra.mxu0 %v7841
    %v8360 = vpop.f32.mrf.mxu0
    %v8361 = vadd.f32 %v8296, %v8360
    %8362 = vmatmul.f32.gmra.mxu0 %v7844
    %v8363 = vpop.f32.mrf.mxu0
    %v8364 = vadd.f32 %v8299, %v8363
    %8365 = vmatmul.f32.gmra.mxu0 %v7847
    %v8366 = vpop.f32.mrf.mxu0
    %v8367 = vadd.f32 %v8302, %v8366
    %8368 = vmatmul.f32.gmra.mxu0 %v7850
    %v8369 = vpop.f32.mrf.mxu0
    %v8370 = vadd.f32 %v8305, %v8369
    %8371 = vmatmul.f32.gmra.mxu0 %v7853
    %v8372 = vpop.f32.mrf.mxu0
    %v8373 = vadd.f32 %v8308, %v8372
    %8374 = vmatmul.f32.gmra.mxu0 %v7856
    %v8375 = vpop.f32.mrf.mxu0
    %v8376 = vadd.f32 %v8311, %v8375
    %8377 = vmatmul.f32.gmra.mxu0 %v7859
    %v8378 = vpop.f32.mrf.mxu0
    %v8379 = vadd.f32 %v8314, %v8378
    %8380 = vdwg.mxu0
    %v8381 = vld [vmem:[%s10] sm:$0x3]
    %v8382 = vld [vmem:[%s11] sm:$0x1]
    %v8384 = vperm.slane %v8382, 0
    %8386 = vmatpush.msra.mxu0 %v8379
    %8387 = vmatpush.msra.mxu0 %v8376
    %8388 = vmatpush.msra.mxu0 %v8373
    %8389 = vmatpush.msra.mxu0 %v8370
    %8390 = vmatpush.msra.mxu0 %v8367
    %8391 = vmatpush.msra.mxu0 %v8364
    %8392 = vmatpush.msra.mxu0 %v8361
    %8393 = vmatpush.msra.mxu0 %v8358
    %8394 = vmatpush.msra.mxu0 %v8355
    %8395 = vmatpush.msra.mxu0 %v8352
    %8396 = vmatpush.msra.mxu0 %v8349
    %8397 = vmatpush.msra.mxu0 %v8346
    %8398 = vmatpush.msra.mxu0 %v8343
    %8399 = vmatpush.msra.mxu0 %v8340
    %8400 = vmatpush.msra.mxu0 %v8337
    %8401 = vmatpush.msra.mxu0 %v8334
    %8402 = vmatmul.f32.gmra.mxu0 %v8381
    %v8403 = vpop.f32.mrf.mxu0
    %v8404 = vadd.f32 %v8384, %v8403
    %8405 = vdwg.mxu0
    %vm8406 = vcmask 115712
    %8407 = vst.msk [vmem:[#allocation10] sm:$0x3] %vm8406, %v8404
    // Predicated region
    $region58: #{fwd.1} parent=1 // pred_check
      _
    $region59: #{fwd.1} parent=1 // pred_check_branch
      %8409 = sbr.rel (0) target = $region61
    $region60: #{fwd.1} parent=1 // pred_region
      %8411 = vsyncadd [#allocation7], 0
      %s8413 = sshll.u32 [#allocation10], 4
      %s8414 = int_to_ptr.vmem [resolvable:$true] %s8413
      %s8415 = sshll.u32 %s12, 4
      %s8416 = int_to_ptr.hbm [resolvable:$true] %s8415
      %8418 = dma.vmem_to_hbm [thread:$0]  %s8414, 32, %s8416, [#allocation7]
    $region61: #{fwd.1} parent=1 // pred_fallthru
      _
    // Predicated region
    $region62: #{fwd.1} parent=1 // pred_check
      _
    $region63: #{fwd.1} parent=1 // pred_check_branch
      %8420 = sbr.rel (0) target = $region65
    $region64: #{fwd.1} parent=1 // pred_region
      %8422 = dma.done [#allocation7], 32
    $region65: #{fwd.1} parent=1 // pred_fallthru
      _
    %8423 = vsyncpa [#allocation6], 1
    %8424 = vsyncpa [#allocation9], 1
    %8425 = vsyncpa [#allocation7], 1

</llo_original>
